<compile_context>
chip_gen: v7x
topology: tpu7x:2x2x1
jax: 0.10.0
libtpu: 0.0.40
codegen_flags: <defaults>
</compile_context>

<pallas_src>
import jax
import jax.numpy as jnp
from jax import lax
from jax.experimental import pallas as pl
from jax.experimental.pallas import tpu as pltpu

BN_EPS = 1e-5
CH_IN = 1024 + 512 + 256 + 64       # 1856
TAIL_CH = 512 + 256 + 64            # 832 channels re-used by the concat
SKIP = CH_IN - TAIL_CH              # 1024 (lane-tile aligned slice offset)


def folding_decoder_kernel(x_ref, w1_ref, w2_ref, w3_ref, w4a_ref, w4b_ref,
                           w5_ref, w6_ref, gb512_ref, gb128_ref, b36_ref, o_ref):
    x = x_ref[...]                                    # [M, 1856]
    m = x.shape[0]
    inv_m = 1.0 / m

    def bn_relu(h, gamma, beta):
        # Train-mode BatchNorm (biased variance over the point axis) folded with ReLU.
        mean = jnp.sum(h, axis=0, keepdims=True) * inv_m          # [1, C]
        meansq = jnp.sum(h * h, axis=0, keepdims=True) * inv_m    # [1, C]
        var = meansq - mean * mean
        a = gamma * lax.rsqrt(var + BN_EPS)                       # [1, C]
        c = beta - mean * a                                       # [1, C]
        return jnp.maximum(h * a + c, 0.0)

    # ---- stage 1: conv1 + bn1 + relu (conv1 bias omitted: cancelled by BN) ----
    h = jnp.dot(x, w1_ref[...], preferred_element_type=jnp.float32)       # [M, 512]
    h = bn_relu(h, gb512_ref[0:1, :], gb512_ref[1:2, :])

    # ---- stage 2: conv2 + bn2 + relu ----
    h = jnp.dot(h, w2_ref[...], preferred_element_type=jnp.float32)       # [M, 128]
    h = bn_relu(h, gb128_ref[0:1, :], gb128_ref[1:2, :])

    # ---- stage 3: conv3 (bias kept; no BN follows) ----
    x3 = jnp.dot(h, w3_ref[...], preferred_element_type=jnp.float32)      # [M, 3]
    x3 = x3 + b36_ref[0:1, :]

    # ---- stage 4: conv4 on cat(sp_tail, x3); conv4 bias cancelled by bn3 ----
    sp_tail = x[:, SKIP:]                                                  # [M, 832]
    h = jnp.dot(sp_tail, w4a_ref[...], preferred_element_type=jnp.float32)  # [M, 512]
    # x3 contribution: only 3 columns -> do it as 3 broadcast mul-adds on the VPU
    # instead of a padded K=3 MXU pass.
    h = (h
         + x3[:, 0:1] * w4b_ref[0:1, :]
         + x3[:, 1:2] * w4b_ref[1:2, :]
         + x3[:, 2:3] * w4b_ref[2:3, :])
    h = bn_relu(h, gb512_ref[2:3, :], gb512_ref[3:4, :])

    # ---- stage 5: conv5 + bn4 + relu ----
    h = jnp.dot(h, w5_ref[...], preferred_element_type=jnp.float32)       # [M, 128]
    h = bn_relu(h, gb128_ref[2:3, :], gb128_ref[3:4, :])

    # ---- stage 6: conv6 (bias kept) ----
    out = jnp.dot(h, w6_ref[...], preferred_element_type=jnp.float32)     # [M, 3]
    o_ref[...] = out + b36_ref[1:2, :]


def folding_decoder_small(sp, params):
    """sp: [B, 1856, N] float32 -> [B, N, 3] float32 (train-mode BN semantics)."""
    b, c_in, n = sp.shape
    assert c_in == CH_IN, f"expected {CH_IN} input channels, got {c_in}"
    m = b * n
    # Point-major, channel-last layout: [B, C, N] -> [B*N, C]
    x2d = jnp.transpose(sp, (0, 2, 1)).reshape(m, c_in)

    p = params
    w4a, w4b = p['w4'][:TAIL_CH, :], p['w4'][TAIL_CH:, :]          # [832,512], [3,512]
    gb512 = jnp.stack([p['g1'], p['be1'], p['g3'], p['be3']])      # [4, 512]
    gb128 = jnp.stack([p['g2'], p['be2'], p['g4'], p['be4']])      # [4, 128]
    b36 = jnp.stack([p['b3'], p['b6']])                            # [2, 3]

    full = lambda shape: pl.BlockSpec(shape, lambda: tuple(0 for _ in shape))

    # Right-sized VMEM request (feedback: 64 MiB == all of v7x's physical VMEM).
    weight_elems = (c_in * 512 + 2 * 512 * 128 + 2 * 128 * 3
                    + TAIL_CH * 512 + 3 * 512 + 4 * 512 + 4 * 128 + 2 * 3)
    act_elems = m * (c_in + 2 * 512 + 2 * 128 + 2 * 3)
    vmem_limit = int(min(48 << 20, max(32 << 20, 2 * 4 * (weight_elems + act_elems))))

    out2d = pl.pallas_call(
        folding_decoder_kernel,
        out_shape=jax.ShapeDtypeStruct((m, 3), jnp.float32),
        grid=(),
        in_specs=[
            full((m, c_in)),        # x (points x channels)
            full((c_in, 512)),      # w1  (pre-transposed [in, out])
            full((512, 128)),       # w2
            full((128, 3)),         # w3
            full((TAIL_CH, 512)),   # w4a (rows 0..831 of conv4 weight)
            full((3, 512)),         # w4b (rows for the conv3 output channels)
            full((512, 128)),       # w5
            full((128, 3)),         # w6
            full((4, 512)),         # gamma1, beta1, gamma3, beta3
            full((4, 128)),         # gamma2, beta2, gamma4, beta4
            full((2, 3)),           # conv3 bias, conv6 bias
        ],
        out_specs=full((m, 3)),
        compiler_params=pltpu.CompilerParams(vmem_limit_bytes=vmem_limit),
    )(x2d, p['w1'], p['w2'], p['w3'], w4a, w4b, p['w5'], p['w6'],
      gb512, gb128, b36)

    return out2d.reshape(b, n, 3)


def init_params(key):
    """Deterministic init mimicking nn.Conv1d defaults; BN affine params randomized
    (as after training) so the folded scale/shift path is actually exercised."""
    ks = jax.random.split(key, 10)

    def linear(k, cin, cout):
        lim = 1.0 / jnp.sqrt(jnp.float32(cin))
        kw, kb = jax.random.split(k)
        w = jax.random.uniform(kw, (cin, cout), jnp.float32, -lim, lim)
        bias = jax.random.uniform(kb, (cout,), jnp.float32, -lim, lim)
        return w, bias

    def bn(k, c):
        kg, kb = jax.random.split(k)
        gamma = 1.0 + 0.2 * jax.random.normal(kg, (c,), jnp.float32)
        beta = 0.1 * jax.random.normal(kb, (c,), jnp.float32)
        return gamma, beta

    w1, b1 = linear(ks[0], CH_IN, 512)
    w2, b2 = linear(ks[1], 512, 128)
    w3, b3 = linear(ks[2], 128, 3)
    w4, b4 = linear(ks[3], TAIL_CH + 3, 512)
    w5, b5 = linear(ks[4], 512, 128)
    w6, b6 = linear(ks[5], 128, 3)
    g1, be1 = bn(ks[6], 512)
    g2, be2 = bn(ks[7], 128)
    g3, be3 = bn(ks[8], 512)
    g4, be4 = bn(ks[9], 128)
    return dict(w1=w1, b1=b1, w2=w2, b2=b2, w3=w3, b3=b3,
                w4=w4, b4=b4, w5=w5, b5=b5, w6=w6, b6=b6,
                g1=g1, be1=be1, g2=g2, be2=be2,
                g3=g3, be3=be3, g4=g4, be4=be4)


def reference_forward(sp, params):
    """Pure-JAX reference reproducing the PyTorch train-mode forward (includes the
    conv biases that the kernel drops -- they cancel against the BN mean)."""
    p = params
    hi = lax.Precision.HIGHEST

    def conv(x, w, bias):                      # x: [B, Cin, N], w: [Cin, Cout]
        return jnp.einsum('bcn,cd->bdn', x, w, precision=hi) + bias[None, :, None]

    def bn_relu(x, gamma, beta):
        mean = jnp.mean(x, axis=(0, 2), keepdims=True)
        var = jnp.mean((x - mean) ** 2, axis=(0, 2), keepdims=True)  # biased var
        xh = (x - mean) * lax.rsqrt(var + BN_EPS)
        return jnp.maximum(xh * gamma[None, :, None] + beta[None, :, None], 0.0)

    x = bn_relu(conv(sp, p['w1'], p['b1']), p['g1'], p['be1'])
    x = bn_relu(conv(x, p['w2'], p['b2']), p['g2'], p['be2'])
    x = conv(x, p['w3'], p['b3'])
    y = jnp.concatenate([sp[:, -TAIL_CH:, :], x], axis=1)
    y = bn_relu(conv(y, p['w4'], p['b4']), p['g3'], p['be3'])
    y = bn_relu(conv(y, p['w5'], p['b5']), p['g4'], p['be4'])
    y = conv(y, p['w6'], p['b6'])
    return jnp.transpose(y, (0, 2, 1))


if __name__ == "__main__":
    key = jax.random.PRNGKey(0)
    k_x, k_p = jax.random.split(key)

    B, N = 2, 64                         # small: 128 points total
    sp = jax.random.normal(k_x, (B, CH_IN, N), jnp.float32)
    params = init_params(k_p)

    out = folding_decoder_small(sp, params)
    out = jax.block_until_ready(out)

    ref = reference_forward(sp, params)
    assert out.shape == (B, N, 3)
    assert jnp.allclose(out, ref, atol=1e-3, rtol=1e-3), "mismatch vs reference"

    print("KERNEL_OK")
</pallas_src>

<mosaic_0001>
module attributes {stable_mosaic.version = 11 : i64} {
  func.func @folding_decoder_kernel(%arg0: memref<128x1856xf32, #tpu.memory_space<vmem>>, %arg1: memref<1856x512xf32, #tpu.memory_space<vmem>>, %arg2: memref<512x128xf32, #tpu.memory_space<vmem>>, %arg3: memref<128x3xf32, #tpu.memory_space<vmem>>, %arg4: memref<832x512xf32, #tpu.memory_space<vmem>>, %arg5: memref<3x512xf32, #tpu.memory_space<vmem>>, %arg6: memref<512x128xf32, #tpu.memory_space<vmem>>, %arg7: memref<128x3xf32, #tpu.memory_space<vmem>>, %arg8: memref<4x512xf32, #tpu.memory_space<vmem>>, %arg9: memref<4x128xf32, #tpu.memory_space<vmem>>, %arg10: memref<2x3xf32, #tpu.memory_space<vmem>>, %arg11: memref<128x3xf32, #tpu.memory_space<vmem>>) attributes {dimension_semantics = [], scalar_prefetch = 0 : i64, scratch_operands = 0 : i64, tpu.core_type = #tpu.core_type<tc>} {
    %c0 = arith.constant 0 : index
    %c0_0 = arith.constant 0 : index
    %0 = vector.load %arg0[%c0, %c0_0] : memref<128x1856xf32, #tpu.memory_space<vmem>>, vector<128x1856xf32>
    %c0_1 = arith.constant 0 : index
    %c0_2 = arith.constant 0 : index
    %1 = vector.load %arg1[%c0_1, %c0_2] : memref<1856x512xf32, #tpu.memory_space<vmem>>, vector<1856x512xf32>
    %cst = arith.constant dense<0.000000e+00> : vector<128x512xf32>
    %2 = tpu.matmul %0, %1, %cst {dimension_numbers = #tpu.dot_dimension_numbers<[1], [0], [0], [1], [0, 0, 1, 1], [], []>} : vector<128x1856xf32>, vector<1856x512xf32>, vector<128x512xf32> -> vector<128x512xf32>
    %c0_3 = arith.constant 0 : index
    %c0_4 = arith.constant 0 : index
    %3 = vector.load %arg8[%c0_3, %c0_4] : memref<4x512xf32, #tpu.memory_space<vmem>>, vector<1x512xf32>
    %c1 = arith.constant 1 : index
    %c0_5 = arith.constant 0 : index
    %4 = vector.load %arg8[%c1, %c0_5] : memref<4x512xf32, #tpu.memory_space<vmem>>, vector<1x512xf32>
    %cst_6 = arith.constant dense<0.000000e+00> : vector<512xf32>
    %5 = vector.multi_reduction <add>, %2, %cst_6 [0] : vector<128x512xf32> to vector<512xf32>
    %6 = vector.shape_cast %5 : vector<512xf32> to vector<1x512xf32>
    %cst_7 = arith.constant 7.812500e-03 : f32
    %7 = vector.broadcast %cst_7 : f32 to vector<1x512xf32>
    %8 = arith.mulf %6, %7 : vector<1x512xf32>
    %9 = arith.mulf %2, %2 : vector<128x512xf32>
    %cst_8 = arith.constant dense<0.000000e+00> : vector<512xf32>
    %10 = vector.multi_reduction <add>, %9, %cst_8 [0] : vector<128x512xf32> to vector<512xf32>
    %11 = vector.shape_cast %10 : vector<512xf32> to vector<1x512xf32>
    %cst_9 = arith.constant 7.812500e-03 : f32
    %12 = vector.broadcast %cst_9 : f32 to vector<1x512xf32>
    %13 = arith.mulf %11, %12 : vector<1x512xf32>
    %14 = arith.mulf %8, %8 : vector<1x512xf32>
    %15 = arith.subf %13, %14 : vector<1x512xf32>
    %cst_10 = arith.constant 9.99999974E-6 : f32
    %16 = vector.broadcast %cst_10 : f32 to vector<1x512xf32>
    %17 = arith.addf %15, %16 : vector<1x512xf32>
    %18 = math.rsqrt %17 : vector<1x512xf32>
    %19 = arith.mulf %3, %18 : vector<1x512xf32>
    %20 = arith.mulf %8, %19 : vector<1x512xf32>
    %21 = arith.subf %4, %20 : vector<1x512xf32>
    %22 = vector.broadcast %19 : vector<1x512xf32> to vector<128x512xf32>
    %23 = arith.mulf %2, %22 : vector<128x512xf32>
    %24 = vector.broadcast %21 : vector<1x512xf32> to vector<128x512xf32>
    %25 = arith.addf %23, %24 : vector<128x512xf32>
    %cst_11 = arith.constant 0.000000e+00 : f32
    %26 = vector.broadcast %cst_11 : f32 to vector<128x512xf32>
    %27 = arith.maximumf %25, %26 : vector<128x512xf32>
    %c0_12 = arith.constant 0 : index
    %c0_13 = arith.constant 0 : index
    %28 = vector.load %arg2[%c0_12, %c0_13] : memref<512x128xf32, #tpu.memory_space<vmem>>, vector<512x128xf32>
    %cst_14 = arith.constant dense<0.000000e+00> : vector<128x128xf32>
    %29 = tpu.matmul %27, %28, %cst_14 {dimension_numbers = #tpu.dot_dimension_numbers<[1], [0], [0], [1], [0, 0, 1, 1], [], []>} : vector<128x512xf32>, vector<512x128xf32>, vector<128x128xf32> -> vector<128x128xf32>
    %c0_15 = arith.constant 0 : index
    %c0_16 = arith.constant 0 : index
    %30 = vector.load %arg9[%c0_15, %c0_16] : memref<4x128xf32, #tpu.memory_space<vmem>>, vector<1x128xf32>
    %c1_17 = arith.constant 1 : index
    %c0_18 = arith.constant 0 : index
    %31 = vector.load %arg9[%c1_17, %c0_18] : memref<4x128xf32, #tpu.memory_space<vmem>>, vector<1x128xf32>
    %cst_19 = arith.constant dense<0.000000e+00> : vector<128xf32>
    %32 = vector.multi_reduction <add>, %29, %cst_19 [0] : vector<128x128xf32> to vector<128xf32>
    %33 = vector.shape_cast %32 : vector<128xf32> to vector<1x128xf32>
    %cst_20 = arith.constant 7.812500e-03 : f32
    %34 = vector.broadcast %cst_20 : f32 to vector<1x128xf32>
    %35 = arith.mulf %33, %34 : vector<1x128xf32>
    %36 = arith.mulf %29, %29 : vector<128x128xf32>
    %cst_21 = arith.constant dense<0.000000e+00> : vector<128xf32>
    %37 = vector.multi_reduction <add>, %36, %cst_21 [0] : vector<128x128xf32> to vector<128xf32>
    %38 = vector.shape_cast %37 : vector<128xf32> to vector<1x128xf32>
    %cst_22 = arith.constant 7.812500e-03 : f32
    %39 = vector.broadcast %cst_22 : f32 to vector<1x128xf32>
    %40 = arith.mulf %38, %39 : vector<1x128xf32>
    %41 = arith.mulf %35, %35 : vector<1x128xf32>
    %42 = arith.subf %40, %41 : vector<1x128xf32>
    %cst_23 = arith.constant 9.99999974E-6 : f32
    %43 = vector.broadcast %cst_23 : f32 to vector<1x128xf32>
    %44 = arith.addf %42, %43 : vector<1x128xf32>
    %45 = math.rsqrt %44 : vector<1x128xf32>
    %46 = arith.mulf %30, %45 : vector<1x128xf32>
    %47 = arith.mulf %35, %46 : vector<1x128xf32>
    %48 = arith.subf %31, %47 : vector<1x128xf32>
    %49 = vector.broadcast %46 : vector<1x128xf32> to vector<128x128xf32>
    %50 = arith.mulf %29, %49 : vector<128x128xf32>
    %51 = vector.broadcast %48 : vector<1x128xf32> to vector<128x128xf32>
    %52 = arith.addf %50, %51 : vector<128x128xf32>
    %cst_24 = arith.constant 0.000000e+00 : f32
    %53 = vector.broadcast %cst_24 : f32 to vector<128x128xf32>
    %54 = arith.maximumf %52, %53 : vector<128x128xf32>
    %c0_25 = arith.constant 0 : index
    %c0_26 = arith.constant 0 : index
    %55 = vector.load %arg3[%c0_25, %c0_26] : memref<128x3xf32, #tpu.memory_space<vmem>>, vector<128x3xf32>
    %cst_27 = arith.constant dense<0.000000e+00> : vector<128x3xf32>
    %56 = tpu.matmul %54, %55, %cst_27 {dimension_numbers = #tpu.dot_dimension_numbers<[1], [0], [0], [1], [0, 0, 1, 1], [], []>} : vector<128x128xf32>, vector<128x3xf32>, vector<128x3xf32> -> vector<128x3xf32>
    %c0_28 = arith.constant 0 : index
    %c0_29 = arith.constant 0 : index
    %57 = vector.load %arg10[%c0_28, %c0_29] : memref<2x3xf32, #tpu.memory_space<vmem>>, vector<1x3xf32>
    %58 = vector.broadcast %57 : vector<1x3xf32> to vector<128x3xf32>
    %59 = arith.addf %56, %58 : vector<128x3xf32>
    %60 = vector.extract_strided_slice %0 {offsets = [0, 1024], sizes = [128, 832], strides = [1, 1]} : vector<128x1856xf32> to vector<128x832xf32>
    %c0_30 = arith.constant 0 : index
    %c0_31 = arith.constant 0 : index
    %61 = vector.load %arg4[%c0_30, %c0_31] : memref<832x512xf32, #tpu.memory_space<vmem>>, vector<832x512xf32>
    %cst_32 = arith.constant dense<0.000000e+00> : vector<128x512xf32>
    %62 = tpu.matmul %60, %61, %cst_32 {dimension_numbers = #tpu.dot_dimension_numbers<[1], [0], [0], [1], [0, 0, 1, 1], [], []>} : vector<128x832xf32>, vector<832x512xf32>, vector<128x512xf32> -> vector<128x512xf32>
    %63 = vector.extract_strided_slice %59 {offsets = [0, 0], sizes = [128, 1], strides = [1, 1]} : vector<128x3xf32> to vector<128x1xf32>
    %c0_33 = arith.constant 0 : index
    %c0_34 = arith.constant 0 : index
    %64 = vector.load %arg5[%c0_33, %c0_34] : memref<3x512xf32, #tpu.memory_space<vmem>>, vector<1x512xf32>
    %65 = vector.broadcast %63 : vector<128x1xf32> to vector<128x512xf32>
    %66 = vector.broadcast %64 : vector<1x512xf32> to vector<128x512xf32>
    %67 = arith.mulf %65, %66 : vector<128x512xf32>
    %68 = arith.addf %62, %67 : vector<128x512xf32>
    %69 = vector.extract_strided_slice %59 {offsets = [0, 1], sizes = [128, 1], strides = [1, 1]} : vector<128x3xf32> to vector<128x1xf32>
    %c1_35 = arith.constant 1 : index
    %c0_36 = arith.constant 0 : index
    %70 = vector.load %arg5[%c1_35, %c0_36] : memref<3x512xf32, #tpu.memory_space<vmem>>, vector<1x512xf32>
    %71 = vector.broadcast %69 : vector<128x1xf32> to vector<128x512xf32>
    %72 = vector.broadcast %70 : vector<1x512xf32> to vector<128x512xf32>
    %73 = arith.mulf %71, %72 : vector<128x512xf32>
    %74 = arith.addf %68, %73 : vector<128x512xf32>
    %75 = vector.extract_strided_slice %59 {offsets = [0, 2], sizes = [128, 1], strides = [1, 1]} : vector<128x3xf32> to vector<128x1xf32>
    %c2 = arith.constant 2 : index
    %c0_37 = arith.constant 0 : index
    %76 = vector.load %arg5[%c2, %c0_37] : memref<3x512xf32, #tpu.memory_space<vmem>>, vector<1x512xf32>
    %77 = vector.broadcast %75 : vector<128x1xf32> to vector<128x512xf32>
    %78 = vector.broadcast %76 : vector<1x512xf32> to vector<128x512xf32>
    %79 = arith.mulf %77, %78 : vector<128x512xf32>
    %80 = arith.addf %74, %79 : vector<128x512xf32>
    %c2_38 = arith.constant 2 : index
    %c0_39 = arith.constant 0 : index
    %81 = vector.load %arg8[%c2_38, %c0_39] : memref<4x512xf32, #tpu.memory_space<vmem>>, vector<1x512xf32>
    %c3 = arith.constant 3 : index
    %c0_40 = arith.constant 0 : index
    %82 = vector.load %arg8[%c3, %c0_40] : memref<4x512xf32, #tpu.memory_space<vmem>>, vector<1x512xf32>
    %cst_41 = arith.constant dense<0.000000e+00> : vector<512xf32>
    %83 = vector.multi_reduction <add>, %80, %cst_41 [0] : vector<128x512xf32> to vector<512xf32>
    %84 = vector.shape_cast %83 : vector<512xf32> to vector<1x512xf32>
    %cst_42 = arith.constant 7.812500e-03 : f32
    %85 = vector.broadcast %cst_42 : f32 to vector<1x512xf32>
    %86 = arith.mulf %84, %85 : vector<1x512xf32>
    %87 = arith.mulf %80, %80 : vector<128x512xf32>
    %cst_43 = arith.constant dense<0.000000e+00> : vector<512xf32>
    %88 = vector.multi_reduction <add>, %87, %cst_43 [0] : vector<128x512xf32> to vector<512xf32>
    %89 = vector.shape_cast %88 : vector<512xf32> to vector<1x512xf32>
    %cst_44 = arith.constant 7.812500e-03 : f32
    %90 = vector.broadcast %cst_44 : f32 to vector<1x512xf32>
    %91 = arith.mulf %89, %90 : vector<1x512xf32>
    %92 = arith.mulf %86, %86 : vector<1x512xf32>
    %93 = arith.subf %91, %92 : vector<1x512xf32>
    %cst_45 = arith.constant 9.99999974E-6 : f32
    %94 = vector.broadcast %cst_45 : f32 to vector<1x512xf32>
    %95 = arith.addf %93, %94 : vector<1x512xf32>
    %96 = math.rsqrt %95 : vector<1x512xf32>
    %97 = arith.mulf %81, %96 : vector<1x512xf32>
    %98 = arith.mulf %86, %97 : vector<1x512xf32>
    %99 = arith.subf %82, %98 : vector<1x512xf32>
    %100 = vector.broadcast %97 : vector<1x512xf32> to vector<128x512xf32>
    %101 = arith.mulf %80, %100 : vector<128x512xf32>
    %102 = vector.broadcast %99 : vector<1x512xf32> to vector<128x512xf32>
    %103 = arith.addf %101, %102 : vector<128x512xf32>
    %cst_46 = arith.constant 0.000000e+00 : f32
    %104 = vector.broadcast %cst_46 : f32 to vector<128x512xf32>
    %105 = arith.maximumf %103, %104 : vector<128x512xf32>
    %c0_47 = arith.constant 0 : index
    %c0_48 = arith.constant 0 : index
    %106 = vector.load %arg6[%c0_47, %c0_48] : memref<512x128xf32, #tpu.memory_space<vmem>>, vector<512x128xf32>
    %cst_49 = arith.constant dense<0.000000e+00> : vector<128x128xf32>
    %107 = tpu.matmul %105, %106, %cst_49 {dimension_numbers = #tpu.dot_dimension_numbers<[1], [0], [0], [1], [0, 0, 1, 1], [], []>} : vector<128x512xf32>, vector<512x128xf32>, vector<128x128xf32> -> vector<128x128xf32>
    %c2_50 = arith.constant 2 : index
    %c0_51 = arith.constant 0 : index
    %108 = vector.load %arg9[%c2_50, %c0_51] : memref<4x128xf32, #tpu.memory_space<vmem>>, vector<1x128xf32>
    %c3_52 = arith.constant 3 : index
    %c0_53 = arith.constant 0 : index
    %109 = vector.load %arg9[%c3_52, %c0_53] : memref<4x128xf32, #tpu.memory_space<vmem>>, vector<1x128xf32>
    %cst_54 = arith.constant dense<0.000000e+00> : vector<128xf32>
    %110 = vector.multi_reduction <add>, %107, %cst_54 [0] : vector<128x128xf32> to vector<128xf32>
    %111 = vector.shape_cast %110 : vector<128xf32> to vector<1x128xf32>
    %cst_55 = arith.constant 7.812500e-03 : f32
    %112 = vector.broadcast %cst_55 : f32 to vector<1x128xf32>
    %113 = arith.mulf %111, %112 : vector<1x128xf32>
    %114 = arith.mulf %107, %107 : vector<128x128xf32>
    %cst_56 = arith.constant dense<0.000000e+00> : vector<128xf32>
    %115 = vector.multi_reduction <add>, %114, %cst_56 [0] : vector<128x128xf32> to vector<128xf32>
    %116 = vector.shape_cast %115 : vector<128xf32> to vector<1x128xf32>
    %cst_57 = arith.constant 7.812500e-03 : f32
    %117 = vector.broadcast %cst_57 : f32 to vector<1x128xf32>
    %118 = arith.mulf %116, %117 : vector<1x128xf32>
    %119 = arith.mulf %113, %113 : vector<1x128xf32>
    %120 = arith.subf %118, %119 : vector<1x128xf32>
    %cst_58 = arith.constant 9.99999974E-6 : f32
    %121 = vector.broadcast %cst_58 : f32 to vector<1x128xf32>
    %122 = arith.addf %120, %121 : vector<1x128xf32>
    %123 = math.rsqrt %122 : vector<1x128xf32>
    %124 = arith.mulf %108, %123 : vector<1x128xf32>
    %125 = arith.mulf %113, %124 : vector<1x128xf32>
    %126 = arith.subf %109, %125 : vector<1x128xf32>
    %127 = vector.broadcast %124 : vector<1x128xf32> to vector<128x128xf32>
    %128 = arith.mulf %107, %127 : vector<128x128xf32>
    %129 = vector.broadcast %126 : vector<1x128xf32> to vector<128x128xf32>
    %130 = arith.addf %128, %129 : vector<128x128xf32>
    %cst_59 = arith.constant 0.000000e+00 : f32
    %131 = vector.broadcast %cst_59 : f32 to vector<128x128xf32>
    %132 = arith.maximumf %130, %131 : vector<128x128xf32>
    %c0_60 = arith.constant 0 : index
    %c0_61 = arith.constant 0 : index
    %133 = vector.load %arg7[%c0_60, %c0_61] : memref<128x3xf32, #tpu.memory_space<vmem>>, vector<128x3xf32>
    %cst_62 = arith.constant dense<0.000000e+00> : vector<128x3xf32>
    %134 = tpu.matmul %132, %133, %cst_62 {dimension_numbers = #tpu.dot_dimension_numbers<[1], [0], [0], [1], [0, 0, 1, 1], [], []>} : vector<128x128xf32>, vector<128x3xf32>, vector<128x3xf32> -> vector<128x3xf32>
    %c1_63 = arith.constant 1 : index
    %c0_64 = arith.constant 0 : index
    %135 = vector.load %arg10[%c1_63, %c0_64] : memref<2x3xf32, #tpu.memory_space<vmem>>, vector<1x3xf32>
    %136 = vector.broadcast %135 : vector<1x3xf32> to vector<128x3xf32>
    %137 = arith.addf %134, %136 : vector<128x3xf32>
    %c0_65 = arith.constant 0 : index
    %c0_66 = arith.constant 0 : index
    %138 = vector.load %arg11[%c0_65, %c0_66] : memref<128x3xf32, #tpu.memory_space<vmem>>, vector<128x3xf32>
    tpu.vector_store %arg11[%c0_65, %c0_66], %137 {strides = array<i32>} : memref<128x3xf32, #tpu.memory_space<vmem>>, vector<128x3xf32>,
    return
  }
}

</mosaic_0001>

<llo_original>
// kernel: tpu_custom_call.1
$region0: #{tpu_custom_call.1}
  #allocation0 [shape = 'u32[]', space=smem, size = 0x4, offset = 0x4, fixed_abs, tag = 'smem constant byte address 0x4 - core index']
  #allocation1 [shape = 'u32[144,128]{1,0:T(1,128)}', space=vmem, size = 0x12000, scoped, tag = 'internal scratch']
  %s0 = inlined_call_operand.vmem [shape: f32[128,1856], index: 0, kind: input, shape index: {}]
  %s1 = inlined_call_operand.hbm [shape: f32[1856,512], index: 1, kind: input, shape index: {}]
  %s2 = inlined_call_operand.hbm [shape: f32[512,128], index: 2, kind: input, shape index: {}]
  %s3 = inlined_call_operand.vmem [shape: f32[128,3], index: 3, kind: input, shape index: {}]
  %s4 = inlined_call_operand.hbm [shape: f32[832,512], index: 4, kind: input, shape index: {}]
  %s5 = inlined_call_operand.hbm [shape: f32[3,512], index: 5, kind: input, shape index: {}]
  %s6 = inlined_call_operand.hbm [shape: f32[512,128], index: 6, kind: input, shape index: {}]
  %s7 = inlined_call_operand.vmem [shape: f32[128,3], index: 7, kind: input, shape index: {}]
  %s8 = inlined_call_operand.hbm [shape: f32[4,512], index: 8, kind: input, shape index: {}]
  %s9 = inlined_call_operand.hbm [shape: f32[4,128], index: 9, kind: input, shape index: {}]
  %s10 = inlined_call_operand.hbm [shape: f32[2,3], index: 10, kind: input, shape index: {}]
  %s11 = inlined_call_operand.vmem [shape: f32[128,3], index: 11, kind: output, shape index: {}]
  %s12 = sld [smem:[#allocation0]]
  $region86: #{tpu_custom_call.1} parent=0
    _
  %s14 = ssub.s32 1, %s12
  %s15 = scalar_select 0, %s14, %s12
  $region1: #{tpu_custom_call.1} parent=0
    #allocation2 [shape = 'u8[3801088]{0}', space=vmem, size = 0x3a0000, scoped, tag = 'input window, operand 1, single buffered']
    #allocation3 [shape = 's32[1]{0}', space=sflag, size = 0x4, scoped, tag = 'scoped memory for tpu_custom_call.1']
    #allocation4 [shape = 'u8[262144]{0}', space=vmem, size = 0x40000, scoped, tag = 'input window, operand 2, single buffered']
    #allocation5 [shape = 's32[1]{0}', space=sflag, size = 0x4, scoped, tag = 'scoped memory for tpu_custom_call.1']
    #allocation6 [shape = 'u8[1703936]{0}', space=vmem, size = 0x1a0000, scoped, tag = 'input window, operand 4, single buffered']
    #allocation7 [shape = 'u8[8192]{0}', space=vmem, size = 0x2000, scoped, tag = 'input window, operand 5, single buffered']
    #allocation8 [shape = 's32[1]{0}', space=sflag, size = 0x4, scoped, tag = 'scoped memory for tpu_custom_call.1']
    #allocation9 [shape = 'u8[262144]{0}', space=vmem, size = 0x40000, scoped, tag = 'input window, operand 6, single buffered']
    #allocation10 [shape = 'u8[8192]{0}', space=vmem, size = 0x2000, scoped, tag = 'input window, operand 8, single buffered']
    #allocation11 [shape = 's32[1]{0}', space=sflag, size = 0x4, scoped, tag = 'scoped memory for tpu_custom_call.1']
    #allocation12 [shape = 'u8[2048]{0}', space=vmem, size = 0x800, scoped, tag = 'input window, operand 9, single buffered']
    #allocation13 [shape = 'u8[1024]{0}', space=vmem, size = 0x400, scoped, tag = 'input window, operand 10, single buffered']
    #allocation14 [shape = 's32[1]{0}', space=sflag, size = 0x4, scoped, tag = 'scoped memory for tpu_custom_call.1']
    %16 = vsyncpa [#allocation3], 0
    %17 = vsyncpa [#allocation5], 0
    %18 = vsyncpa [#allocation8], 0
    %19 = vsyncpa [#allocation11], 0
    %20 = vsyncpa [#allocation14], 0
    // Predicated region
    $region2: #{tpu_custom_call.1} parent=1 // pred_check
      _
    $region3: #{tpu_custom_call.1} parent=1 // pred_check_branch
      %22 = sbr.rel (0) target = $region5
    $region4: #{tpu_custom_call.1} parent=1 // pred_region
      _
    $region5: #{tpu_custom_call.1} parent=1 // pred_fallthru
      _
    // Predicated region
    $region6: #{tpu_custom_call.1} parent=1 // pred_check
      _
    $region7: #{tpu_custom_call.1} parent=1 // pred_check_branch
      %24 = sbr.rel (0) target = $region9
    $region8: #{tpu_custom_call.1} parent=1 // pred_region
      %s26 = ssub.s32 118784, 118784
      %27 = vsyncadd [#allocation3], %s26
      %s28 = sshll.u32 [#allocation2], 4
      %s29 = int_to_ptr.vmem [resolvable:$true] %s28
      %34 = dma.hbm_to_vmem [thread:$0]  %s1, 118784, %s29, [#allocation3], 512, 512, 32
    $region9: #{tpu_custom_call.1} parent=1 // pred_fallthru
      _
    // Predicated region
    $region10: #{tpu_custom_call.1} parent=1 // pred_check
      _
    $region11: #{tpu_custom_call.1} parent=1 // pred_check_branch
      %36 = sbr.rel (0) target = $region13
    $region12: #{tpu_custom_call.1} parent=1 // pred_region
      %s38 = ssub.s32 8192, 8192
      %39 = vsyncadd [#allocation5], %s38
      %s40 = sshll.u32 [#allocation4], 4
      %s41 = int_to_ptr.vmem [resolvable:$true] %s40
      %46 = dma.hbm_to_vmem [thread:$0]  %s2, 8192, %s41, [#allocation5], 128, 128, 8
    $region13: #{tpu_custom_call.1} parent=1 // pred_fallthru
      _
    // Predicated region
    $region14: #{tpu_custom_call.1} parent=1 // pred_check
      _
    $region15: #{tpu_custom_call.1} parent=1 // pred_check_branch
      %48 = sbr.rel (0) target = $region17
    $region16: #{tpu_custom_call.1} parent=1 // pred_region
      _
    $region17: #{tpu_custom_call.1} parent=1 // pred_fallthru
      _
    // Predicated region
    $region18: #{tpu_custom_call.1} parent=1 // pred_check
      _
    $region19: #{tpu_custom_call.1} parent=1 // pred_check_branch
      %50 = sbr.rel (0) target = $region21
    $region20: #{tpu_custom_call.1} parent=1 // pred_region
      %s52 = ssub.s32 53248, 53248
      %53 = vsyncadd [#allocation5], %s52
      %s54 = sshll.u32 [#allocation6], 4
      %s55 = int_to_ptr.vmem [resolvable:$true] %s54
      %60 = dma.hbm_to_vmem [thread:$0]  %s4, 53248, %s55, [#allocation5], 512, 512, 32
    $region21: #{tpu_custom_call.1} parent=1 // pred_fallthru
      _
    // Predicated region
    $region22: #{tpu_custom_call.1} parent=1 // pred_check
      _
    $region23: #{tpu_custom_call.1} parent=1 // pred_check_branch
      %62 = sbr.rel (0) target = $region25
    $region24: #{tpu_custom_call.1} parent=1 // pred_region
      %s64 = ssub.s32 256, 256
      %65 = vsyncadd [#allocation8], %s64
      %s67 = sshll.u32 [#allocation7], 4
      %s68 = int_to_ptr.vmem [resolvable:$true] %s67
      %70 = dma.hbm_to_vmem [thread:$0]  %s5, 256, %s68, [#allocation8]
    $region25: #{tpu_custom_call.1} parent=1 // pred_fallthru
      _
    // Predicated region
    $region26: #{tpu_custom_call.1} parent=1 // pred_check
      _
    $region27: #{tpu_custom_call.1} parent=1 // pred_check_branch
      %72 = sbr.rel (0) target = $region29
    $region28: #{tpu_custom_call.1} parent=1 // pred_region
      %s74 = ssub.s32 8192, 8192
      %75 = vsyncadd [#allocation8], %s74
      %s76 = sshll.u32 [#allocation9], 4
      %s77 = int_to_ptr.vmem [resolvable:$true] %s76
      %82 = dma.hbm_to_vmem [thread:$0]  %s6, 8192, %s77, [#allocation8], 128, 128, 8
    $region29: #{tpu_custom_call.1} parent=1 // pred_fallthru
      _
    // Predicated region
    $region30: #{tpu_custom_call.1} parent=1 // pred_check
      _
    $region31: #{tpu_custom_call.1} parent=1 // pred_check_branch
      %84 = sbr.rel (0) target = $region33
    $region32: #{tpu_custom_call.1} parent=1 // pred_region
      _
    $region33: #{tpu_custom_call.1} parent=1 // pred_fallthru
      _
    // Predicated region
    $region34: #{tpu_custom_call.1} parent=1 // pred_check
      _
    $region35: #{tpu_custom_call.1} parent=1 // pred_check_branch
      %86 = sbr.rel (0) target = $region37
    $region36: #{tpu_custom_call.1} parent=1 // pred_region
      %s88 = ssub.s32 256, 256
      %89 = vsyncadd [#allocation11], %s88
      %s91 = sshll.u32 [#allocation10], 4
      %s92 = int_to_ptr.vmem [resolvable:$true] %s91
      %94 = dma.hbm_to_vmem [thread:$0]  %s8, 256, %s92, [#allocation11]
    $region37: #{tpu_custom_call.1} parent=1 // pred_fallthru
      _
    // Predicated region
    $region38: #{tpu_custom_call.1} parent=1 // pred_check
      _
    $region39: #{tpu_custom_call.1} parent=1 // pred_check_branch
      %96 = sbr.rel (0) target = $region41
    $region40: #{tpu_custom_call.1} parent=1 // pred_region
      %s98 = ssub.s32 64, 64
      %99 = vsyncadd [#allocation11], %s98
      %s101 = sshll.u32 [#allocation12], 4
      %s102 = int_to_ptr.vmem [resolvable:$true] %s101
      %104 = dma.hbm_to_vmem [thread:$0]  %s9, 64, %s102, [#allocation11]
    $region41: #{tpu_custom_call.1} parent=1 // pred_fallthru
      _
    // Predicated region
    $region42: #{tpu_custom_call.1} parent=1 // pred_check
      _
    $region43: #{tpu_custom_call.1} parent=1 // pred_check_branch
      %106 = sbr.rel (0) target = $region45
    $region44: #{tpu_custom_call.1} parent=1 // pred_region
      %s108 = ssub.s32 32, 32
      %109 = vsyncadd [#allocation14], %s108
      %s111 = sshll.u32 [#allocation13], 4
      %s112 = int_to_ptr.vmem [resolvable:$true] %s111
      %114 = dma.hbm_to_vmem [thread:$0]  %s10, 32, %s112, [#allocation14]
    $region45: #{tpu_custom_call.1} parent=1 // pred_fallthru
      _
    // Predicated region
    $region46: #{tpu_custom_call.1} parent=1 // pred_check
      _
    $region47: #{tpu_custom_call.1} parent=1 // pred_check_branch
      %116 = sbr.rel (0) target = $region49
    $region48: #{tpu_custom_call.1} parent=1 // pred_region
      %117 = dma.done [#allocation3], 118784
    $region49: #{tpu_custom_call.1} parent=1 // pred_fallthru
      _
    // Predicated region
    $region50: #{tpu_custom_call.1} parent=1 // pred_check
      _
    $region51: #{tpu_custom_call.1} parent=1 // pred_check_branch
      %119 = sbr.rel (0) target = $region53
    $region52: #{tpu_custom_call.1} parent=1 // pred_region
      %120 = dma.done [#allocation5], 8192
    $region53: #{tpu_custom_call.1} parent=1 // pred_fallthru
      _
    // Predicated region
    $region54: #{tpu_custom_call.1} parent=1 // pred_check
      _
    $region55: #{tpu_custom_call.1} parent=1 // pred_check_branch
      %122 = sbr.rel (0) target = $region57
    $region56: #{tpu_custom_call.1} parent=1 // pred_region
      %123 = dma.done [#allocation5], 53248
    $region57: #{tpu_custom_call.1} parent=1 // pred_fallthru
      _
    // Predicated region
    $region58: #{tpu_custom_call.1} parent=1 // pred_check
      _
    $region59: #{tpu_custom_call.1} parent=1 // pred_check_branch
      %125 = sbr.rel (0) target = $region61
    $region60: #{tpu_custom_call.1} parent=1 // pred_region
      %126 = dma.done [#allocation8], 256
    $region61: #{tpu_custom_call.1} parent=1 // pred_fallthru
      _
    // Predicated region
    $region62: #{tpu_custom_call.1} parent=1 // pred_check
      _
    $region63: #{tpu_custom_call.1} parent=1 // pred_check_branch
      %128 = sbr.rel (0) target = $region65
    $region64: #{tpu_custom_call.1} parent=1 // pred_region
      %129 = dma.done [#allocation8], 8192
    $region65: #{tpu_custom_call.1} parent=1 // pred_fallthru
      _
    // Predicated region
    $region66: #{tpu_custom_call.1} parent=1 // pred_check
      _
    $region67: #{tpu_custom_call.1} parent=1 // pred_check_branch
      %131 = sbr.rel (0) target = $region69
    $region68: #{tpu_custom_call.1} parent=1 // pred_region
      %132 = dma.done [#allocation11], 256
    $region69: #{tpu_custom_call.1} parent=1 // pred_fallthru
      _
    // Predicated region
    $region70: #{tpu_custom_call.1} parent=1 // pred_check
      _
    $region71: #{tpu_custom_call.1} parent=1 // pred_check_branch
      %134 = sbr.rel (0) target = $region73
    $region72: #{tpu_custom_call.1} parent=1 // pred_region
      %135 = dma.done [#allocation11], 64
    $region73: #{tpu_custom_call.1} parent=1 // pred_fallthru
      _
    // Predicated region
    $region74: #{tpu_custom_call.1} parent=1 // pred_check
      _
    $region75: #{tpu_custom_call.1} parent=1 // pred_check_branch
      %137 = sbr.rel (0) target = $region77
    $region76: #{tpu_custom_call.1} parent=1 // pred_region
      %138 = dma.done [#allocation14], 32
    $region77: #{tpu_custom_call.1} parent=1 // pred_fallthru
      _
    %v139 = vld [vmem:[%s0] sm:$0xff]
    %v140 = vld [vmem:[%s0 + $0x8] sm:$0xff]
    %v141 = vld [vmem:[%s0 + $0x10] sm:$0xff]
    %v142 = vld [vmem:[%s0 + $0x18] sm:$0xff]
    %v143 = vld [vmem:[%s0 + $0x20] sm:$0xff]
    %v144 = vld [vmem:[%s0 + $0x28] sm:$0xff]
    %v145 = vld [vmem:[%s0 + $0x30] sm:$0xff]
    %v146 = vld [vmem:[%s0 + $0x38] sm:$0xff]
    %v147 = vld [vmem:[%s0 + $0x40] sm:$0xff]
    %v148 = vld [vmem:[%s0 + $0x48] sm:$0xff]
    %v149 = vld [vmem:[%s0 + $0x50] sm:$0xff]
    %v150 = vld [vmem:[%s0 + $0x58] sm:$0xff]
    %v151 = vld [vmem:[%s0 + $0x60] sm:$0xff]
    %v152 = vld [vmem:[%s0 + $0x68] sm:$0xff]
    %v153 = vld [vmem:[%s0 + $0x70] sm:$0xff]
    %v154 = vld [vmem:[%s0 + $0x78] sm:$0xff]
    %v155 = vld [vmem:[%s0 + $0x80] sm:$0xff]
    %v156 = vld [vmem:[%s0 + $0x88] sm:$0xff]
    %v157 = vld [vmem:[%s0 + $0x90] sm:$0xff]
    %v158 = vld [vmem:[%s0 + $0x98] sm:$0xff]
    %v159 = vld [vmem:[%s0 + $0xa0] sm:$0xff]
    %v160 = vld [vmem:[%s0 + $0xa8] sm:$0xff]
    %v161 = vld [vmem:[%s0 + $0xb0] sm:$0xff]
    %v162 = vld [vmem:[%s0 + $0xb8] sm:$0xff]
    %v163 = vld [vmem:[%s0 + $0xc0] sm:$0xff]
    %v164 = vld [vmem:[%s0 + $0xc8] sm:$0xff]
    %v165 = vld [vmem:[%s0 + $0xd0] sm:$0xff]
    %v166 = vld [vmem:[%s0 + $0xd8] sm:$0xff]
    %v167 = vld [vmem:[%s0 + $0xe0] sm:$0xff]
    %v168 = vld [vmem:[%s0 + $0xe8] sm:$0xff]
    %v169 = vld [vmem:[%s0 + $0xf0] sm:$0xff]
    %v170 = vld [vmem:[%s0 + $0xf8] sm:$0xff]
    %v171 = vld [vmem:[%s0 + $0x100] sm:$0xff]
    %v172 = vld [vmem:[%s0 + $0x108] sm:$0xff]
    %v173 = vld [vmem:[%s0 + $0x110] sm:$0xff]
    %v174 = vld [vmem:[%s0 + $0x118] sm:$0xff]
    %v175 = vld [vmem:[%s0 + $0x120] sm:$0xff]
    %v176 = vld [vmem:[%s0 + $0x128] sm:$0xff]
    %v177 = vld [vmem:[%s0 + $0x130] sm:$0xff]
    %v178 = vld [vmem:[%s0 + $0x138] sm:$0xff]
    %v179 = vld [vmem:[%s0 + $0x140] sm:$0xff]
    %v180 = vld [vmem:[%s0 + $0x148] sm:$0xff]
    %v181 = vld [vmem:[%s0 + $0x150] sm:$0xff]
    %v182 = vld [vmem:[%s0 + $0x158] sm:$0xff]
    %v183 = vld [vmem:[%s0 + $0x160] sm:$0xff]
    %v184 = vld [vmem:[%s0 + $0x168] sm:$0xff]
    %v185 = vld [vmem:[%s0 + $0x170] sm:$0xff]
    %v186 = vld [vmem:[%s0 + $0x178] sm:$0xff]
    %v187 = vld [vmem:[%s0 + $0x180] sm:$0xff]
    %v188 = vld [vmem:[%s0 + $0x188] sm:$0xff]
    %v189 = vld [vmem:[%s0 + $0x190] sm:$0xff]
    %v190 = vld [vmem:[%s0 + $0x198] sm:$0xff]
    %v191 = vld [vmem:[%s0 + $0x1a0] sm:$0xff]
    %v192 = vld [vmem:[%s0 + $0x1a8] sm:$0xff]
    %v193 = vld [vmem:[%s0 + $0x1b0] sm:$0xff]
    %v194 = vld [vmem:[%s0 + $0x1b8] sm:$0xff]
    %v195 = vld [vmem:[%s0 + $0x1c0] sm:$0xff]
    %v196 = vld [vmem:[%s0 + $0x1c8] sm:$0xff]
    %v197 = vld [vmem:[%s0 + $0x1d0] sm:$0xff]
    %v198 = vld [vmem:[%s0 + $0x1d8] sm:$0xff]
    %v199 = vld [vmem:[%s0 + $0x1e0] sm:$0xff]
    %v200 = vld [vmem:[%s0 + $0x1e8] sm:$0xff]
    %v201 = vld [vmem:[%s0 + $0x1f0] sm:$0xff]
    %v202 = vld [vmem:[%s0 + $0x1f8] sm:$0xff]
    %v203 = vld [vmem:[%s0 + $0x200] sm:$0xff]
    %v204 = vld [vmem:[%s0 + $0x208] sm:$0xff]
    %v205 = vld [vmem:[%s0 + $0x210] sm:$0xff]
    %v206 = vld [vmem:[%s0 + $0x218] sm:$0xff]
    %v207 = vld [vmem:[%s0 + $0x220] sm:$0xff]
    %v208 = vld [vmem:[%s0 + $0x228] sm:$0xff]
    %v209 = vld [vmem:[%s0 + $0x230] sm:$0xff]
    %v210 = vld [vmem:[%s0 + $0x238] sm:$0xff]
    %v211 = vld [vmem:[%s0 + $0x240] sm:$0xff]
    %v212 = vld [vmem:[%s0 + $0x248] sm:$0xff]
    %v213 = vld [vmem:[%s0 + $0x250] sm:$0xff]
    %v214 = vld [vmem:[%s0 + $0x258] sm:$0xff]
    %v215 = vld [vmem:[%s0 + $0x260] sm:$0xff]
    %v216 = vld [vmem:[%s0 + $0x268] sm:$0xff]
    %v217 = vld [vmem:[%s0 + $0x270] sm:$0xff]
    %v218 = vld [vmem:[%s0 + $0x278] sm:$0xff]
    %v219 = vld [vmem:[%s0 + $0x280] sm:$0xff]
    %v220 = vld [vmem:[%s0 + $0x288] sm:$0xff]
    %v221 = vld [vmem:[%s0 + $0x290] sm:$0xff]
    %v222 = vld [vmem:[%s0 + $0x298] sm:$0xff]
    %v223 = vld [vmem:[%s0 + $0x2a0] sm:$0xff]
    %v224 = vld [vmem:[%s0 + $0x2a8] sm:$0xff]
    %v225 = vld [vmem:[%s0 + $0x2b0] sm:$0xff]
    %v226 = vld [vmem:[%s0 + $0x2b8] sm:$0xff]
    %v227 = vld [vmem:[%s0 + $0x2c0] sm:$0xff]
    %v228 = vld [vmem:[%s0 + $0x2c8] sm:$0xff]
    %v229 = vld [vmem:[%s0 + $0x2d0] sm:$0xff]
    %v230 = vld [vmem:[%s0 + $0x2d8] sm:$0xff]
    %v231 = vld [vmem:[%s0 + $0x2e0] sm:$0xff]
    %v232 = vld [vmem:[%s0 + $0x2e8] sm:$0xff]
    %v233 = vld [vmem:[%s0 + $0x2f0] sm:$0xff]
    %v234 = vld [vmem:[%s0 + $0x2f8] sm:$0xff]
    %v235 = vld [vmem:[%s0 + $0x300] sm:$0xff]
    %v236 = vld [vmem:[%s0 + $0x308] sm:$0xff]
    %v237 = vld [vmem:[%s0 + $0x310] sm:$0xff]
    %v238 = vld [vmem:[%s0 + $0x318] sm:$0xff]
    %v239 = vld [vmem:[%s0 + $0x320] sm:$0xff]
    %v240 = vld [vmem:[%s0 + $0x328] sm:$0xff]
    %v241 = vld [vmem:[%s0 + $0x330] sm:$0xff]
    %v242 = vld [vmem:[%s0 + $0x338] sm:$0xff]
    %v243 = vld [vmem:[%s0 + $0x340] sm:$0xff]
    %v244 = vld [vmem:[%s0 + $0x348] sm:$0xff]
    %v245 = vld [vmem:[%s0 + $0x350] sm:$0xff]
    %v246 = vld [vmem:[%s0 + $0x358] sm:$0xff]
    %v247 = vld [vmem:[%s0 + $0x360] sm:$0xff]
    %v248 = vld [vmem:[%s0 + $0x368] sm:$0xff]
    %v249 = vld [vmem:[%s0 + $0x370] sm:$0xff]
    %v250 = vld [vmem:[%s0 + $0x378] sm:$0xff]
    %v251 = vld [vmem:[%s0 + $0x380] sm:$0xff]
    %v252 = vld [vmem:[%s0 + $0x388] sm:$0xff]
    %v253 = vld [vmem:[%s0 + $0x390] sm:$0xff]
    %v254 = vld [vmem:[%s0 + $0x398] sm:$0xff]
    %v255 = vld [vmem:[%s0 + $0x3a0] sm:$0xff]
    %v256 = vld [vmem:[%s0 + $0x3a8] sm:$0xff]
    %v257 = vld [vmem:[%s0 + $0x3b0] sm:$0xff]
    %v258 = vld [vmem:[%s0 + $0x3b8] sm:$0xff]
    %v259 = vld [vmem:[%s0 + $0x3c0] sm:$0xff]
    %v260 = vld [vmem:[%s0 + $0x3c8] sm:$0xff]
    %v261 = vld [vmem:[%s0 + $0x3d0] sm:$0xff]
    %v262 = vld [vmem:[%s0 + $0x3d8] sm:$0xff]
    %v263 = vld [vmem:[%s0 + $0x3e0] sm:$0xff]
    %v264 = vld [vmem:[%s0 + $0x3e8] sm:$0xff]
    %v265 = vld [vmem:[%s0 + $0x3f0] sm:$0xff]
    %v266 = vld [vmem:[%s0 + $0x3f8] sm:$0xff]
    %v267 = vld [vmem:[%s0 + $0x400] sm:$0xff]
    %v268 = vld [vmem:[%s0 + $0x408] sm:$0xff]
    %v269 = vld [vmem:[%s0 + $0x410] sm:$0xff]
    %v270 = vld [vmem:[%s0 + $0x418] sm:$0xff]
    %v271 = vld [vmem:[%s0 + $0x420] sm:$0xff]
    %v272 = vld [vmem:[%s0 + $0x428] sm:$0xff]
    %v273 = vld [vmem:[%s0 + $0x430] sm:$0xff]
    %v274 = vld [vmem:[%s0 + $0x438] sm:$0xff]
    %v275 = vld [vmem:[%s0 + $0x440] sm:$0xff]
    %v276 = vld [vmem:[%s0 + $0x448] sm:$0xff]
    %v277 = vld [vmem:[%s0 + $0x450] sm:$0xff]
    %v278 = vld [vmem:[%s0 + $0x458] sm:$0xff]
    %v279 = vld [vmem:[%s0 + $0x460] sm:$0xff]
    %v280 = vld [vmem:[%s0 + $0x468] sm:$0xff]
    %v281 = vld [vmem:[%s0 + $0x470] sm:$0xff]
    %v282 = vld [vmem:[%s0 + $0x478] sm:$0xff]
    %v283 = vld [vmem:[%s0 + $0x480] sm:$0xff]
    %v284 = vld [vmem:[%s0 + $0x488] sm:$0xff]
    %v285 = vld [vmem:[%s0 + $0x490] sm:$0xff]
    %v286 = vld [vmem:[%s0 + $0x498] sm:$0xff]
    %v287 = vld [vmem:[%s0 + $0x4a0] sm:$0xff]
    %v288 = vld [vmem:[%s0 + $0x4a8] sm:$0xff]
    %v289 = vld [vmem:[%s0 + $0x4b0] sm:$0xff]
    %v290 = vld [vmem:[%s0 + $0x4b8] sm:$0xff]
    %v291 = vld [vmem:[%s0 + $0x4c0] sm:$0xff]
    %v292 = vld [vmem:[%s0 + $0x4c8] sm:$0xff]
    %v293 = vld [vmem:[%s0 + $0x4d0] sm:$0xff]
    %v294 = vld [vmem:[%s0 + $0x4d8] sm:$0xff]
    %v295 = vld [vmem:[%s0 + $0x4e0] sm:$0xff]
    %v296 = vld [vmem:[%s0 + $0x4e8] sm:$0xff]
    %v297 = vld [vmem:[%s0 + $0x4f0] sm:$0xff]
    %v298 = vld [vmem:[%s0 + $0x4f8] sm:$0xff]
    %v299 = vld [vmem:[%s0 + $0x500] sm:$0xff]
    %v300 = vld [vmem:[%s0 + $0x508] sm:$0xff]
    %v301 = vld [vmem:[%s0 + $0x510] sm:$0xff]
    %v302 = vld [vmem:[%s0 + $0x518] sm:$0xff]
    %v303 = vld [vmem:[%s0 + $0x520] sm:$0xff]
    %v304 = vld [vmem:[%s0 + $0x528] sm:$0xff]
    %v305 = vld [vmem:[%s0 + $0x530] sm:$0xff]
    %v306 = vld [vmem:[%s0 + $0x538] sm:$0xff]
    %v307 = vld [vmem:[%s0 + $0x540] sm:$0xff]
    %v308 = vld [vmem:[%s0 + $0x548] sm:$0xff]
    %v309 = vld [vmem:[%s0 + $0x550] sm:$0xff]
    %v310 = vld [vmem:[%s0 + $0x558] sm:$0xff]
    %v311 = vld [vmem:[%s0 + $0x560] sm:$0xff]
    %v312 = vld [vmem:[%s0 + $0x568] sm:$0xff]
    %v313 = vld [vmem:[%s0 + $0x570] sm:$0xff]
    %v314 = vld [vmem:[%s0 + $0x578] sm:$0xff]
    %v315 = vld [vmem:[%s0 + $0x580] sm:$0xff]
    %v316 = vld [vmem:[%s0 + $0x588] sm:$0xff]
    %v317 = vld [vmem:[%s0 + $0x590] sm:$0xff]
    %v318 = vld [vmem:[%s0 + $0x598] sm:$0xff]
    %v319 = vld [vmem:[%s0 + $0x5a0] sm:$0xff]
    %v320 = vld [vmem:[%s0 + $0x5a8] sm:$0xff]
    %v321 = vld [vmem:[%s0 + $0x5b0] sm:$0xff]
    %v322 = vld [vmem:[%s0 + $0x5b8] sm:$0xff]
    %v323 = vld [vmem:[%s0 + $0x5c0] sm:$0xff]
    %v324 = vld [vmem:[%s0 + $0x5c8] sm:$0xff]
    %v325 = vld [vmem:[%s0 + $0x5d0] sm:$0xff]
    %v326 = vld [vmem:[%s0 + $0x5d8] sm:$0xff]
    %v327 = vld [vmem:[%s0 + $0x5e0] sm:$0xff]
    %v328 = vld [vmem:[%s0 + $0x5e8] sm:$0xff]
    %v329 = vld [vmem:[%s0 + $0x5f0] sm:$0xff]
    %v330 = vld [vmem:[%s0 + $0x5f8] sm:$0xff]
    %v331 = vld [vmem:[%s0 + $0x600] sm:$0xff]
    %v332 = vld [vmem:[%s0 + $0x608] sm:$0xff]
    %v333 = vld [vmem:[%s0 + $0x610] sm:$0xff]
    %v334 = vld [vmem:[%s0 + $0x618] sm:$0xff]
    %v335 = vld [vmem:[%s0 + $0x620] sm:$0xff]
    %v336 = vld [vmem:[%s0 + $0x628] sm:$0xff]
    %v337 = vld [vmem:[%s0 + $0x630] sm:$0xff]
    %v338 = vld [vmem:[%s0 + $0x638] sm:$0xff]
    %v339 = vld [vmem:[%s0 + $0x640] sm:$0xff]
    %v340 = vld [vmem:[%s0 + $0x648] sm:$0xff]
    %v341 = vld [vmem:[%s0 + $0x650] sm:$0xff]
    %v342 = vld [vmem:[%s0 + $0x658] sm:$0xff]
    %v343 = vld [vmem:[%s0 + $0x660] sm:$0xff]
    %v344 = vld [vmem:[%s0 + $0x668] sm:$0xff]
    %v345 = vld [vmem:[%s0 + $0x670] sm:$0xff]
    %v346 = vld [vmem:[%s0 + $0x678] sm:$0xff]
    %v347 = vld [vmem:[%s0 + $0x680] sm:$0xff]
    %v348 = vld [vmem:[%s0 + $0x688] sm:$0xff]
    %v349 = vld [vmem:[%s0 + $0x690] sm:$0xff]
    %v350 = vld [vmem:[%s0 + $0x698] sm:$0xff]
    %v351 = vld [vmem:[%s0 + $0x6a0] sm:$0xff]
    %v352 = vld [vmem:[%s0 + $0x6a8] sm:$0xff]
    %v353 = vld [vmem:[%s0 + $0x6b0] sm:$0xff]
    %v354 = vld [vmem:[%s0 + $0x6b8] sm:$0xff]
    %v355 = vld [vmem:[%s0 + $0x6c0] sm:$0xff]
    %v356 = vld [vmem:[%s0 + $0x6c8] sm:$0xff]
    %v357 = vld [vmem:[%s0 + $0x6d0] sm:$0xff]
    %v358 = vld [vmem:[%s0 + $0x6d8] sm:$0xff]
    %v359 = vld [vmem:[%s0 + $0x6e0] sm:$0xff]
    %v360 = vld [vmem:[%s0 + $0x6e8] sm:$0xff]
    %v361 = vld [vmem:[%s0 + $0x6f0] sm:$0xff]
    %v362 = vld [vmem:[%s0 + $0x6f8] sm:$0xff]
    %v363 = vld [vmem:[%s0 + $0x700] sm:$0xff]
    %v364 = vld [vmem:[%s0 + $0x708] sm:$0xff]
    %v365 = vld [vmem:[%s0 + $0x710] sm:$0xff]
    %v366 = vld [vmem:[%s0 + $0x718] sm:$0xff]
    %v367 = vld [vmem:[%s0 + $0x720] sm:$0xff]
    %v368 = vld [vmem:[%s0 + $0x728] sm:$0xff]
    %v369 = vld [vmem:[%s0 + $0x730] sm:$0xff]
    %v370 = vld [vmem:[%s0 + $0x738] sm:$0xff]
    %v371 = vld [vmem:[%s0 + $0x740] sm:$0xff]
    %v372 = vld [vmem:[%s0 + $0x748] sm:$0xff]
    %v373 = vld [vmem:[%s0 + $0x750] sm:$0xff]
    %v374 = vld [vmem:[%s0 + $0x758] sm:$0xff]
    %v375 = vld [vmem:[%s0 + $0x760] sm:$0xff]
    %v376 = vld [vmem:[%s0 + $0x768] sm:$0xff]
    %v377 = vld [vmem:[%s0 + $0x770] sm:$0xff]
    %v378 = vld [vmem:[%s0 + $0x778] sm:$0xff]
    %v379 = vld [vmem:[#allocation2] sm:$0xff]
    %v380 = vld [vmem:[#allocation2 + $0x8] sm:$0xff]
    %v381 = vld [vmem:[#allocation2 + $0x10] sm:$0xff]
    %v382 = vld [vmem:[#allocation2 + $0x18] sm:$0xff]
    %v383 = vld [vmem:[#allocation2 + $0x20] sm:$0xff]
    %v384 = vld [vmem:[#allocation2 + $0x28] sm:$0xff]
    %v385 = vld [vmem:[#allocation2 + $0x30] sm:$0xff]
    %v386 = vld [vmem:[#allocation2 + $0x38] sm:$0xff]
    %v387 = vld [vmem:[#allocation2 + $0x40] sm:$0xff]
    %v388 = vld [vmem:[#allocation2 + $0x48] sm:$0xff]
    %v389 = vld [vmem:[#allocation2 + $0x50] sm:$0xff]
    %v390 = vld [vmem:[#allocation2 + $0x58] sm:$0xff]
    %v391 = vld [vmem:[#allocation2 + $0x60] sm:$0xff]
    %v392 = vld [vmem:[#allocation2 + $0x68] sm:$0xff]
    %v393 = vld [vmem:[#allocation2 + $0x70] sm:$0xff]
    %v394 = vld [vmem:[#allocation2 + $0x78] sm:$0xff]
    %v395 = vld [vmem:[#allocation2 + $0x80] sm:$0xff]
    %v396 = vld [vmem:[#allocation2 + $0x88] sm:$0xff]
    %v397 = vld [vmem:[#allocation2 + $0x90] sm:$0xff]
    %v398 = vld [vmem:[#allocation2 + $0x98] sm:$0xff]
    %v399 = vld [vmem:[#allocation2 + $0xa0] sm:$0xff]
    %v400 = vld [vmem:[#allocation2 + $0xa8] sm:$0xff]
    %v401 = vld [vmem:[#allocation2 + $0xb0] sm:$0xff]
    %v402 = vld [vmem:[#allocation2 + $0xb8] sm:$0xff]
    %v403 = vld [vmem:[#allocation2 + $0xc0] sm:$0xff]
    %v404 = vld [vmem:[#allocation2 + $0xc8] sm:$0xff]
    %v405 = vld [vmem:[#allocation2 + $0xd0] sm:$0xff]
    %v406 = vld [vmem:[#allocation2 + $0xd8] sm:$0xff]
    %v407 = vld [vmem:[#allocation2 + $0xe0] sm:$0xff]
    %v408 = vld [vmem:[#allocation2 + $0xe8] sm:$0xff]
    %v409 = vld [vmem:[#allocation2 + $0xf0] sm:$0xff]
    %v410 = vld [vmem:[#allocation2 + $0xf8] sm:$0xff]
    %v411 = vld [vmem:[#allocation2 + $0x100] sm:$0xff]
    %v412 = vld [vmem:[#allocation2 + $0x108] sm:$0xff]
    %v413 = vld [vmem:[#allocation2 + $0x110] sm:$0xff]
    %v414 = vld [vmem:[#allocation2 + $0x118] sm:$0xff]
    %v415 = vld [vmem:[#allocation2 + $0x120] sm:$0xff]
    %v416 = vld [vmem:[#allocation2 + $0x128] sm:$0xff]
    %v417 = vld [vmem:[#allocation2 + $0x130] sm:$0xff]
    %v418 = vld [vmem:[#allocation2 + $0x138] sm:$0xff]
    %v419 = vld [vmem:[#allocation2 + $0x140] sm:$0xff]
    %v420 = vld [vmem:[#allocation2 + $0x148] sm:$0xff]
    %v421 = vld [vmem:[#allocation2 + $0x150] sm:$0xff]
    %v422 = vld [vmem:[#allocation2 + $0x158] sm:$0xff]
    %v423 = vld [vmem:[#allocation2 + $0x160] sm:$0xff]
    %v424 = vld [vmem:[#allocation2 + $0x168] sm:$0xff]
    %v425 = vld [vmem:[#allocation2 + $0x170] sm:$0xff]
    %v426 = vld [vmem:[#allocation2 + $0x178] sm:$0xff]
    %v427 = vld [vmem:[#allocation2 + $0x180] sm:$0xff]
    %v428 = vld [vmem:[#allocation2 + $0x188] sm:$0xff]
    %v429 = vld [vmem:[#allocation2 + $0x190] sm:$0xff]
    %v430 = vld [vmem:[#allocation2 + $0x198] sm:$0xff]
    %v431 = vld [vmem:[#allocation2 + $0x1a0] sm:$0xff]
    %v432 = vld [vmem:[#allocation2 + $0x1a8] sm:$0xff]
    %v433 = vld [vmem:[#allocation2 + $0x1b0] sm:$0xff]
    %v434 = vld [vmem:[#allocation2 + $0x1b8] sm:$0xff]
    %v435 = vld [vmem:[#allocation2 + $0x1c0] sm:$0xff]
    %v436 = vld [vmem:[#allocation2 + $0x1c8] sm:$0xff]
    %v437 = vld [vmem:[#allocation2 + $0x1d0] sm:$0xff]
    %v438 = vld [vmem:[#allocation2 + $0x1d8] sm:$0xff]
    %v439 = vld [vmem:[#allocation2 + $0x1e0] sm:$0xff]
    %v440 = vld [vmem:[#allocation2 + $0x1e8] sm:$0xff]
    %v441 = vld [vmem:[#allocation2 + $0x1f0] sm:$0xff]
    %v442 = vld [vmem:[#allocation2 + $0x1f8] sm:$0xff]
    %v443 = vld [vmem:[#allocation2 + $0x200] sm:$0xff]
    %v444 = vld [vmem:[#allocation2 + $0x208] sm:$0xff]
    %v445 = vld [vmem:[#allocation2 + $0x210] sm:$0xff]
    %v446 = vld [vmem:[#allocation2 + $0x218] sm:$0xff]
    %v447 = vld [vmem:[#allocation2 + $0x220] sm:$0xff]
    %v448 = vld [vmem:[#allocation2 + $0x228] sm:$0xff]
    %v449 = vld [vmem:[#allocation2 + $0x230] sm:$0xff]
    %v450 = vld [vmem:[#allocation2 + $0x238] sm:$0xff]
    %v451 = vld [vmem:[#allocation2 + $0x240] sm:$0xff]
    %v452 = vld [vmem:[#allocation2 + $0x248] sm:$0xff]
    %v453 = vld [vmem:[#allocation2 + $0x250] sm:$0xff]
    %v454 = vld [vmem:[#allocation2 + $0x258] sm:$0xff]
    %v455 = vld [vmem:[#allocation2 + $0x260] sm:$0xff]
    %v456 = vld [vmem:[#allocation2 + $0x268] sm:$0xff]
    %v457 = vld [vmem:[#allocation2 + $0x270] sm:$0xff]
    %v458 = vld [vmem:[#allocation2 + $0x278] sm:$0xff]
    %v459 = vld [vmem:[#allocation2 + $0x280] sm:$0xff]
    %v460 = vld [vmem:[#allocation2 + $0x288] sm:$0xff]
    %v461 = vld [vmem:[#allocation2 + $0x290] sm:$0xff]
    %v462 = vld [vmem:[#allocation2 + $0x298] sm:$0xff]
    %v463 = vld [vmem:[#allocation2 + $0x2a0] sm:$0xff]
    %v464 = vld [vmem:[#allocation2 + $0x2a8] sm:$0xff]
    %v465 = vld [vmem:[#allocation2 + $0x2b0] sm:$0xff]
    %v466 = vld [vmem:[#allocation2 + $0x2b8] sm:$0xff]
    %v467 = vld [vmem:[#allocation2 + $0x2c0] sm:$0xff]
    %v468 = vld [vmem:[#allocation2 + $0x2c8] sm:$0xff]
    %v469 = vld [vmem:[#allocation2 + $0x2d0] sm:$0xff]
    %v470 = vld [vmem:[#allocation2 + $0x2d8] sm:$0xff]
    %v471 = vld [vmem:[#allocation2 + $0x2e0] sm:$0xff]
    %v472 = vld [vmem:[#allocation2 + $0x2e8] sm:$0xff]
    %v473 = vld [vmem:[#allocation2 + $0x2f0] sm:$0xff]
    %v474 = vld [vmem:[#allocation2 + $0x2f8] sm:$0xff]
    %v475 = vld [vmem:[#allocation2 + $0x300] sm:$0xff]
    %v476 = vld [vmem:[#allocation2 + $0x308] sm:$0xff]
    %v477 = vld [vmem:[#allocation2 + $0x310] sm:$0xff]
    %v478 = vld [vmem:[#allocation2 + $0x318] sm:$0xff]
    %v479 = vld [vmem:[#allocation2 + $0x320] sm:$0xff]
    %v480 = vld [vmem:[#allocation2 + $0x328] sm:$0xff]
    %v481 = vld [vmem:[#allocation2 + $0x330] sm:$0xff]
    %v482 = vld [vmem:[#allocation2 + $0x338] sm:$0xff]
    %v483 = vld [vmem:[#allocation2 + $0x340] sm:$0xff]
    %v484 = vld [vmem:[#allocation2 + $0x348] sm:$0xff]
    %v485 = vld [vmem:[#allocation2 + $0x350] sm:$0xff]
    %v486 = vld [vmem:[#allocation2 + $0x358] sm:$0xff]
    %v487 = vld [vmem:[#allocation2 + $0x360] sm:$0xff]
    %v488 = vld [vmem:[#allocation2 + $0x368] sm:$0xff]
    %v489 = vld [vmem:[#allocation2 + $0x370] sm:$0xff]
    %v490 = vld [vmem:[#allocation2 + $0x378] sm:$0xff]
    %v491 = vld [vmem:[#allocation2 + $0x380] sm:$0xff]
    %v492 = vld [vmem:[#allocation2 + $0x388] sm:$0xff]
    %v493 = vld [vmem:[#allocation2 + $0x390] sm:$0xff]
    %v494 = vld [vmem:[#allocation2 + $0x398] sm:$0xff]
    %v495 = vld [vmem:[#allocation2 + $0x3a0] sm:$0xff]
    %v496 = vld [vmem:[#allocation2 + $0x3a8] sm:$0xff]
    %v497 = vld [vmem:[#allocation2 + $0x3b0] sm:$0xff]
    %v498 = vld [vmem:[#allocation2 + $0x3b8] sm:$0xff]
    %v499 = vld [vmem:[#allocation2 + $0x3c0] sm:$0xff]
    %v500 = vld [vmem:[#allocation2 + $0x3c8] sm:$0xff]
    %v501 = vld [vmem:[#allocation2 + $0x3d0] sm:$0xff]
    %v502 = vld [vmem:[#allocation2 + $0x3d8] sm:$0xff]
    %v503 = vld [vmem:[#allocation2 + $0x3e0] sm:$0xff]
    %v504 = vld [vmem:[#allocation2 + $0x3e8] sm:$0xff]
    %v505 = vld [vmem:[#allocation2 + $0x3f0] sm:$0xff]
    %v506 = vld [vmem:[#allocation2 + $0x3f8] sm:$0xff]
    %v507 = vld [vmem:[#allocation2 + $0x400] sm:$0xff]
    %v508 = vld [vmem:[#allocation2 + $0x408] sm:$0xff]
    %v509 = vld [vmem:[#allocation2 + $0x410] sm:$0xff]
    %v510 = vld [vmem:[#allocation2 + $0x418] sm:$0xff]
    %v511 = vld [vmem:[#allocation2 + $0x420] sm:$0xff]
    %v512 = vld [vmem:[#allocation2 + $0x428] sm:$0xff]
    %v513 = vld [vmem:[#allocation2 + $0x430] sm:$0xff]
    %v514 = vld [vmem:[#allocation2 + $0x438] sm:$0xff]
    %v515 = vld [vmem:[#allocation2 + $0x440] sm:$0xff]
    %v516 = vld [vmem:[#allocation2 + $0x448] sm:$0xff]
    %v517 = vld [vmem:[#allocation2 + $0x450] sm:$0xff]
    %v518 = vld [vmem:[#allocation2 + $0x458] sm:$0xff]
    %v519 = vld [vmem:[#allocation2 + $0x460] sm:$0xff]
    %v520 = vld [vmem:[#allocation2 + $0x468] sm:$0xff]
    %v521 = vld [vmem:[#allocation2 + $0x470] sm:$0xff]
    %v522 = vld [vmem:[#allocation2 + $0x478] sm:$0xff]
    %v523 = vld [vmem:[#allocation2 + $0x480] sm:$0xff]
    %v524 = vld [vmem:[#allocation2 + $0x488] sm:$0xff]
    %v525 = vld [vmem:[#allocation2 + $0x490] sm:$0xff]
    %v526 = vld [vmem:[#allocation2 + $0x498] sm:$0xff]
    %v527 = vld [vmem:[#allocation2 + $0x4a0] sm:$0xff]
    %v528 = vld [vmem:[#allocation2 + $0x4a8] sm:$0xff]
    %v529 = vld [vmem:[#allocation2 + $0x4b0] sm:$0xff]
    %v530 = vld [vmem:[#allocation2 + $0x4b8] sm:$0xff]
    %v531 = vld [vmem:[#allocation2 + $0x4c0] sm:$0xff]
    %v532 = vld [vmem:[#allocation2 + $0x4c8] sm:$0xff]
    %v533 = vld [vmem:[#allocation2 + $0x4d0] sm:$0xff]
    %v534 = vld [vmem:[#allocation2 + $0x4d8] sm:$0xff]
    %v535 = vld [vmem:[#allocation2 + $0x4e0] sm:$0xff]
    %v536 = vld [vmem:[#allocation2 + $0x4e8] sm:$0xff]
    %v537 = vld [vmem:[#allocation2 + $0x4f0] sm:$0xff]
    %v538 = vld [vmem:[#allocation2 + $0x4f8] sm:$0xff]
    %v539 = vld [vmem:[#allocation2 + $0x500] sm:$0xff]
    %v540 = vld [vmem:[#allocation2 + $0x508] sm:$0xff]
    %v541 = vld [vmem:[#allocation2 + $0x510] sm:$0xff]
    %v542 = vld [vmem:[#allocation2 + $0x518] sm:$0xff]
    %v543 = vld [vmem:[#allocation2 + $0x520] sm:$0xff]
    %v544 = vld [vmem:[#allocation2 + $0x528] sm:$0xff]
    %v545 = vld [vmem:[#allocation2 + $0x530] sm:$0xff]
    %v546 = vld [vmem:[#allocation2 + $0x538] sm:$0xff]
    %v547 = vld [vmem:[#allocation2 + $0x540] sm:$0xff]
    %v548 = vld [vmem:[#allocation2 + $0x548] sm:$0xff]
    %v549 = vld [vmem:[#allocation2 + $0x550] sm:$0xff]
    %v550 = vld [vmem:[#allocation2 + $0x558] sm:$0xff]
    %v551 = vld [vmem:[#allocation2 + $0x560] sm:$0xff]
    %v552 = vld [vmem:[#allocation2 + $0x568] sm:$0xff]
    %v553 = vld [vmem:[#allocation2 + $0x570] sm:$0xff]
    %v554 = vld [vmem:[#allocation2 + $0x578] sm:$0xff]
    %v555 = vld [vmem:[#allocation2 + $0x580] sm:$0xff]
    %v556 = vld [vmem:[#allocation2 + $0x588] sm:$0xff]
    %v557 = vld [vmem:[#allocation2 + $0x590] sm:$0xff]
    %v558 = vld [vmem:[#allocation2 + $0x598] sm:$0xff]
    %v559 = vld [vmem:[#allocation2 + $0x5a0] sm:$0xff]
    %v560 = vld [vmem:[#allocation2 + $0x5a8] sm:$0xff]
    %v561 = vld [vmem:[#allocation2 + $0x5b0] sm:$0xff]
    %v562 = vld [vmem:[#allocation2 + $0x5b8] sm:$0xff]
    %v563 = vld [vmem:[#allocation2 + $0x5c0] sm:$0xff]
    %v564 = vld [vmem:[#allocation2 + $0x5c8] sm:$0xff]
    %v565 = vld [vmem:[#allocation2 + $0x5d0] sm:$0xff]
    %v566 = vld [vmem:[#allocation2 + $0x5d8] sm:$0xff]
    %v567 = vld [vmem:[#allocation2 + $0x5e0] sm:$0xff]
    %v568 = vld [vmem:[#allocation2 + $0x5e8] sm:$0xff]
    %v569 = vld [vmem:[#allocation2 + $0x5f0] sm:$0xff]
    %v570 = vld [vmem:[#allocation2 + $0x5f8] sm:$0xff]
    %v571 = vld [vmem:[#allocation2 + $0x600] sm:$0xff]
    %v572 = vld [vmem:[#allocation2 + $0x608] sm:$0xff]
    %v573 = vld [vmem:[#allocation2 + $0x610] sm:$0xff]
    %v574 = vld [vmem:[#allocation2 + $0x618] sm:$0xff]
    %v575 = vld [vmem:[#allocation2 + $0x620] sm:$0xff]
    %v576 = vld [vmem:[#allocation2 + $0x628] sm:$0xff]
    %v577 = vld [vmem:[#allocation2 + $0x630] sm:$0xff]
    %v578 = vld [vmem:[#allocation2 + $0x638] sm:$0xff]
    %v579 = vld [vmem:[#allocation2 + $0x640] sm:$0xff]
    %v580 = vld [vmem:[#allocation2 + $0x648] sm:$0xff]
    %v581 = vld [vmem:[#allocation2 + $0x650] sm:$0xff]
    %v582 = vld [vmem:[#allocation2 + $0x658] sm:$0xff]
    %v583 = vld [vmem:[#allocation2 + $0x660] sm:$0xff]
    %v584 = vld [vmem:[#allocation2 + $0x668] sm:$0xff]
    %v585 = vld [vmem:[#allocation2 + $0x670] sm:$0xff]
    %v586 = vld [vmem:[#allocation2 + $0x678] sm:$0xff]
    %v587 = vld [vmem:[#allocation2 + $0x680] sm:$0xff]
    %v588 = vld [vmem:[#allocation2 + $0x688] sm:$0xff]
    %v589 = vld [vmem:[#allocation2 + $0x690] sm:$0xff]
    %v590 = vld [vmem:[#allocation2 + $0x698] sm:$0xff]
    %v591 = vld [vmem:[#allocation2 + $0x6a0] sm:$0xff]
    %v592 = vld [vmem:[#allocation2 + $0x6a8] sm:$0xff]
    %v593 = vld [vmem:[#allocation2 + $0x6b0] sm:$0xff]
    %v594 = vld [vmem:[#allocation2 + $0x6b8] sm:$0xff]
    %v595 = vld [vmem:[#allocation2 + $0x6c0] sm:$0xff]
    %v596 = vld [vmem:[#allocation2 + $0x6c8] sm:$0xff]
    %v597 = vld [vmem:[#allocation2 + $0x6d0] sm:$0xff]
    %v598 = vld [vmem:[#allocation2 + $0x6d8] sm:$0xff]
    %v599 = vld [vmem:[#allocation2 + $0x6e0] sm:$0xff]
    %v600 = vld [vmem:[#allocation2 + $0x6e8] sm:$0xff]
    %v601 = vld [vmem:[#allocation2 + $0x6f0] sm:$0xff]
    %v602 = vld [vmem:[#allocation2 + $0x6f8] sm:$0xff]
    %v603 = vld [vmem:[#allocation2 + $0x700] sm:$0xff]
    %v604 = vld [vmem:[#allocation2 + $0x708] sm:$0xff]
    %v605 = vld [vmem:[#allocation2 + $0x710] sm:$0xff]
    %v606 = vld [vmem:[#allocation2 + $0x718] sm:$0xff]
    %v607 = vld [vmem:[#allocation2 + $0x720] sm:$0xff]
    %v608 = vld [vmem:[#allocation2 + $0x728] sm:$0xff]
    %v609 = vld [vmem:[#allocation2 + $0x730] sm:$0xff]
    %v610 = vld [vmem:[#allocation2 + $0x738] sm:$0xff]
    %v611 = vld [vmem:[#allocation2 + $0x740] sm:$0xff]
    %v612 = vld [vmem:[#allocation2 + $0x748] sm:$0xff]
    %v613 = vld [vmem:[#allocation2 + $0x750] sm:$0xff]
    %v614 = vld [vmem:[#allocation2 + $0x758] sm:$0xff]
    %v615 = vld [vmem:[#allocation2 + $0x760] sm:$0xff]
    %v616 = vld [vmem:[#allocation2 + $0x768] sm:$0xff]
    %v617 = vld [vmem:[#allocation2 + $0x770] sm:$0xff]
    %v618 = vld [vmem:[#allocation2 + $0x778] sm:$0xff]
    %v619 = vld [vmem:[#allocation2 + $0x780] sm:$0xff]
    %v620 = vld [vmem:[#allocation2 + $0x788] sm:$0xff]
    %v621 = vld [vmem:[#allocation2 + $0x790] sm:$0xff]
    %v622 = vld [vmem:[#allocation2 + $0x798] sm:$0xff]
    %v623 = vld [vmem:[#allocation2 + $0x7a0] sm:$0xff]
    %v624 = vld [vmem:[#allocation2 + $0x7a8] sm:$0xff]
    %v625 = vld [vmem:[#allocation2 + $0x7b0] sm:$0xff]
    %v626 = vld [vmem:[#allocation2 + $0x7b8] sm:$0xff]
    %v627 = vld [vmem:[#allocation2 + $0x7c0] sm:$0xff]
    %v628 = vld [vmem:[#allocation2 + $0x7c8] sm:$0xff]
    %v629 = vld [vmem:[#allocation2 + $0x7d0] sm:$0xff]
    %v630 = vld [vmem:[#allocation2 + $0x7d8] sm:$0xff]
    %v631 = vld [vmem:[#allocation2 + $0x7e0] sm:$0xff]
    %v632 = vld [vmem:[#allocation2 + $0x7e8] sm:$0xff]
    %v633 = vld [vmem:[#allocation2 + $0x7f0] sm:$0xff]
    %v634 = vld [vmem:[#allocation2 + $0x7f8] sm:$0xff]
    %v635 = vld [vmem:[#allocation2 + $0x800] sm:$0xff]
    %v636 = vld [vmem:[#allocation2 + $0x808] sm:$0xff]
    %v637 = vld [vmem:[#allocation2 + $0x810] sm:$0xff]
    %v638 = vld [vmem:[#allocation2 + $0x818] sm:$0xff]
    %v639 = vld [vmem:[#allocation2 + $0x820] sm:$0xff]
    %v640 = vld [vmem:[#allocation2 + $0x828] sm:$0xff]
    %v641 = vld [vmem:[#allocation2 + $0x830] sm:$0xff]
    %v642 = vld [vmem:[#allocation2 + $0x838] sm:$0xff]
    %v643 = vld [vmem:[#allocation2 + $0x840] sm:$0xff]
    %v644 = vld [vmem:[#allocation2 + $0x848] sm:$0xff]
    %v645 = vld [vmem:[#allocation2 + $0x850] sm:$0xff]
    %v646 = vld [vmem:[#allocation2 + $0x858] sm:$0xff]
    %v647 = vld [vmem:[#allocation2 + $0x860] sm:$0xff]
    %v648 = vld [vmem:[#allocation2 + $0x868] sm:$0xff]
    %v649 = vld [vmem:[#allocation2 + $0x870] sm:$0xff]
    %v650 = vld [vmem:[#allocation2 + $0x878] sm:$0xff]
    %v651 = vld [vmem:[#allocation2 + $0x880] sm:$0xff]
    %v652 = vld [vmem:[#allocation2 + $0x888] sm:$0xff]
    %v653 = vld [vmem:[#allocation2 + $0x890] sm:$0xff]
    %v654 = vld [vmem:[#allocation2 + $0x898] sm:$0xff]
    %v655 = vld [vmem:[#allocation2 + $0x8a0] sm:$0xff]
    %v656 = vld [vmem:[#allocation2 + $0x8a8] sm:$0xff]
    %v657 = vld [vmem:[#allocation2 + $0x8b0] sm:$0xff]
    %v658 = vld [vmem:[#allocation2 + $0x8b8] sm:$0xff]
    %v659 = vld [vmem:[#allocation2 + $0x8c0] sm:$0xff]
    %v660 = vld [vmem:[#allocation2 + $0x8c8] sm:$0xff]
    %v661 = vld [vmem:[#allocation2 + $0x8d0] sm:$0xff]
    %v662 = vld [vmem:[#allocation2 + $0x8d8] sm:$0xff]
    %v663 = vld [vmem:[#allocation2 + $0x8e0] sm:$0xff]
    %v664 = vld [vmem:[#allocation2 + $0x8e8] sm:$0xff]
    %v665 = vld [vmem:[#allocation2 + $0x8f0] sm:$0xff]
    %v666 = vld [vmem:[#allocation2 + $0x8f8] sm:$0xff]
    %v667 = vld [vmem:[#allocation2 + $0x900] sm:$0xff]
    %v668 = vld [vmem:[#allocation2 + $0x908] sm:$0xff]
    %v669 = vld [vmem:[#allocation2 + $0x910] sm:$0xff]
    %v670 = vld [vmem:[#allocation2 + $0x918] sm:$0xff]
    %v671 = vld [vmem:[#allocation2 + $0x920] sm:$0xff]
    %v672 = vld [vmem:[#allocation2 + $0x928] sm:$0xff]
    %v673 = vld [vmem:[#allocation2 + $0x930] sm:$0xff]
    %v674 = vld [vmem:[#allocation2 + $0x938] sm:$0xff]
    %v675 = vld [vmem:[#allocation2 + $0x940] sm:$0xff]
    %v676 = vld [vmem:[#allocation2 + $0x948] sm:$0xff]
    %v677 = vld [vmem:[#allocation2 + $0x950] sm:$0xff]
    %v678 = vld [vmem:[#allocation2 + $0x958] sm:$0xff]
    %v679 = vld [vmem:[#allocation2 + $0x960] sm:$0xff]
    %v680 = vld [vmem:[#allocation2 + $0x968] sm:$0xff]
    %v681 = vld [vmem:[#allocation2 + $0x970] sm:$0xff]
    %v682 = vld [vmem:[#allocation2 + $0x978] sm:$0xff]
    %v683 = vld [vmem:[#allocation2 + $0x980] sm:$0xff]
    %v684 = vld [vmem:[#allocation2 + $0x988] sm:$0xff]
    %v685 = vld [vmem:[#allocation2 + $0x990] sm:$0xff]
    %v686 = vld [vmem:[#allocation2 + $0x998] sm:$0xff]
    %v687 = vld [vmem:[#allocation2 + $0x9a0] sm:$0xff]
    %v688 = vld [vmem:[#allocation2 + $0x9a8] sm:$0xff]
    %v689 = vld [vmem:[#allocation2 + $0x9b0] sm:$0xff]
    %v690 = vld [vmem:[#allocation2 + $0x9b8] sm:$0xff]
    %v691 = vld [vmem:[#allocation2 + $0x9c0] sm:$0xff]
    %v692 = vld [vmem:[#allocation2 + $0x9c8] sm:$0xff]
    %v693 = vld [vmem:[#allocation2 + $0x9d0] sm:$0xff]
    %v694 = vld [vmem:[#allocation2 + $0x9d8] sm:$0xff]
    %v695 = vld [vmem:[#allocation2 + $0x9e0] sm:$0xff]
    %v696 = vld [vmem:[#allocation2 + $0x9e8] sm:$0xff]
    %v697 = vld [vmem:[#allocation2 + $0x9f0] sm:$0xff]
    %v698 = vld [vmem:[#allocation2 + $0x9f8] sm:$0xff]
    %v699 = vld [vmem:[#allocation2 + $0xa00] sm:$0xff]
    %v700 = vld [vmem:[#allocation2 + $0xa08] sm:$0xff]
    %v701 = vld [vmem:[#allocation2 + $0xa10] sm:$0xff]
    %v702 = vld [vmem:[#allocation2 + $0xa18] sm:$0xff]
    %v703 = vld [vmem:[#allocation2 + $0xa20] sm:$0xff]
    %v704 = vld [vmem:[#allocation2 + $0xa28] sm:$0xff]
    %v705 = vld [vmem:[#allocation2 + $0xa30] sm:$0xff]
    %v706 = vld [vmem:[#allocation2 + $0xa38] sm:$0xff]
    %v707 = vld [vmem:[#allocation2 + $0xa40] sm:$0xff]
    %v708 = vld [vmem:[#allocation2 + $0xa48] sm:$0xff]
    %v709 = vld [vmem:[#allocation2 + $0xa50] sm:$0xff]
    %v710 = vld [vmem:[#allocation2 + $0xa58] sm:$0xff]
    %v711 = vld [vmem:[#allocation2 + $0xa60] sm:$0xff]
    %v712 = vld [vmem:[#allocation2 + $0xa68] sm:$0xff]
    %v713 = vld [vmem:[#allocation2 + $0xa70] sm:$0xff]
    %v714 = vld [vmem:[#allocation2 + $0xa78] sm:$0xff]
    %v715 = vld [vmem:[#allocation2 + $0xa80] sm:$0xff]
    %v716 = vld [vmem:[#allocation2 + $0xa88] sm:$0xff]
    %v717 = vld [vmem:[#allocation2 + $0xa90] sm:$0xff]
    %v718 = vld [vmem:[#allocation2 + $0xa98] sm:$0xff]
    %v719 = vld [vmem:[#allocation2 + $0xaa0] sm:$0xff]
    %v720 = vld [vmem:[#allocation2 + $0xaa8] sm:$0xff]
    %v721 = vld [vmem:[#allocation2 + $0xab0] sm:$0xff]
    %v722 = vld [vmem:[#allocation2 + $0xab8] sm:$0xff]
    %v723 = vld [vmem:[#allocation2 + $0xac0] sm:$0xff]
    %v724 = vld [vmem:[#allocation2 + $0xac8] sm:$0xff]
    %v725 = vld [vmem:[#allocation2 + $0xad0] sm:$0xff]
    %v726 = vld [vmem:[#allocation2 + $0xad8] sm:$0xff]
    %v727 = vld [vmem:[#allocation2 + $0xae0] sm:$0xff]
    %v728 = vld [vmem:[#allocation2 + $0xae8] sm:$0xff]
    %v729 = vld [vmem:[#allocation2 + $0xaf0] sm:$0xff]
    %v730 = vld [vmem:[#allocation2 + $0xaf8] sm:$0xff]
    %v731 = vld [vmem:[#allocation2 + $0xb00] sm:$0xff]
    %v732 = vld [vmem:[#allocation2 + $0xb08] sm:$0xff]
    %v733 = vld [vmem:[#allocation2 + $0xb10] sm:$0xff]
    %v734 = vld [vmem:[#allocation2 + $0xb18] sm:$0xff]
    %v735 = vld [vmem:[#allocation2 + $0xb20] sm:$0xff]
    %v736 = vld [vmem:[#allocation2 + $0xb28] sm:$0xff]
    %v737 = vld [vmem:[#allocation2 + $0xb30] sm:$0xff]
    %v738 = vld [vmem:[#allocation2 + $0xb38] sm:$0xff]
    %v739 = vld [vmem:[#allocation2 + $0xb40] sm:$0xff]
    %v740 = vld [vmem:[#allocation2 + $0xb48] sm:$0xff]
    %v741 = vld [vmem:[#allocation2 + $0xb50] sm:$0xff]
    %v742 = vld [vmem:[#allocation2 + $0xb58] sm:$0xff]
    %v743 = vld [vmem:[#allocation2 + $0xb60] sm:$0xff]
    %v744 = vld [vmem:[#allocation2 + $0xb68] sm:$0xff]
    %v745 = vld [vmem:[#allocation2 + $0xb70] sm:$0xff]
    %v746 = vld [vmem:[#allocation2 + $0xb78] sm:$0xff]
    %v747 = vld [vmem:[#allocation2 + $0xb80] sm:$0xff]
    %v748 = vld [vmem:[#allocation2 + $0xb88] sm:$0xff]
    %v749 = vld [vmem:[#allocation2 + $0xb90] sm:$0xff]
    %v750 = vld [vmem:[#allocation2 + $0xb98] sm:$0xff]
    %v751 = vld [vmem:[#allocation2 + $0xba0] sm:$0xff]
    %v752 = vld [vmem:[#allocation2 + $0xba8] sm:$0xff]
    %v753 = vld [vmem:[#allocation2 + $0xbb0] sm:$0xff]
    %v754 = vld [vmem:[#allocation2 + $0xbb8] sm:$0xff]
    %v755 = vld [vmem:[#allocation2 + $0xbc0] sm:$0xff]
    %v756 = vld [vmem:[#allocation2 + $0xbc8] sm:$0xff]
    %v757 = vld [vmem:[#allocation2 + $0xbd0] sm:$0xff]
    %v758 = vld [vmem:[#allocation2 + $0xbd8] sm:$0xff]
    %v759 = vld [vmem:[#allocation2 + $0xbe0] sm:$0xff]
    %v760 = vld [vmem:[#allocation2 + $0xbe8] sm:$0xff]
    %v761 = vld [vmem:[#allocation2 + $0xbf0] sm:$0xff]
    %v762 = vld [vmem:[#allocation2 + $0xbf8] sm:$0xff]
    %v763 = vld [vmem:[#allocation2 + $0xc00] sm:$0xff]
    %v764 = vld [vmem:[#allocation2 + $0xc08] sm:$0xff]
    %v765 = vld [vmem:[#allocation2 + $0xc10] sm:$0xff]
    %v766 = vld [vmem:[#allocation2 + $0xc18] sm:$0xff]
    %v767 = vld [vmem:[#allocation2 + $0xc20] sm:$0xff]
    %v768 = vld [vmem:[#allocation2 + $0xc28] sm:$0xff]
    %v769 = vld [vmem:[#allocation2 + $0xc30] sm:$0xff]
    %v770 = vld [vmem:[#allocation2 + $0xc38] sm:$0xff]
    %v771 = vld [vmem:[#allocation2 + $0xc40] sm:$0xff]
    %v772 = vld [vmem:[#allocation2 + $0xc48] sm:$0xff]
    %v773 = vld [vmem:[#allocation2 + $0xc50] sm:$0xff]
    %v774 = vld [vmem:[#allocation2 + $0xc58] sm:$0xff]
    %v775 = vld [vmem:[#allocation2 + $0xc60] sm:$0xff]
    %v776 = vld [vmem:[#allocation2 + $0xc68] sm:$0xff]
    %v777 = vld [vmem:[#allocation2 + $0xc70] sm:$0xff]
    %v778 = vld [vmem:[#allocation2 + $0xc78] sm:$0xff]
    %v779 = vld [vmem:[#allocation2 + $0xc80] sm:$0xff]
    %v780 = vld [vmem:[#allocation2 + $0xc88] sm:$0xff]
    %v781 = vld [vmem:[#allocation2 + $0xc90] sm:$0xff]
    %v782 = vld [vmem:[#allocation2 + $0xc98] sm:$0xff]
    %v783 = vld [vmem:[#allocation2 + $0xca0] sm:$0xff]
    %v784 = vld [vmem:[#allocation2 + $0xca8] sm:$0xff]
    %v785 = vld [vmem:[#allocation2 + $0xcb0] sm:$0xff]
    %v786 = vld [vmem:[#allocation2 + $0xcb8] sm:$0xff]
    %v787 = vld [vmem:[#allocation2 + $0xcc0] sm:$0xff]
    %v788 = vld [vmem:[#allocation2 + $0xcc8] sm:$0xff]
    %v789 = vld [vmem:[#allocation2 + $0xcd0] sm:$0xff]
    %v790 = vld [vmem:[#allocation2 + $0xcd8] sm:$0xff]
    %v791 = vld [vmem:[#allocation2 + $0xce0] sm:$0xff]
    %v792 = vld [vmem:[#allocation2 + $0xce8] sm:$0xff]
    %v793 = vld [vmem:[#allocation2 + $0xcf0] sm:$0xff]
    %v794 = vld [vmem:[#allocation2 + $0xcf8] sm:$0xff]
    %v795 = vld [vmem:[#allocation2 + $0xd00] sm:$0xff]
    %v796 = vld [vmem:[#allocation2 + $0xd08] sm:$0xff]
    %v797 = vld [vmem:[#allocation2 + $0xd10] sm:$0xff]
    %v798 = vld [vmem:[#allocation2 + $0xd18] sm:$0xff]
    %v799 = vld [vmem:[#allocation2 + $0xd20] sm:$0xff]
    %v800 = vld [vmem:[#allocation2 + $0xd28] sm:$0xff]
    %v801 = vld [vmem:[#allocation2 + $0xd30] sm:$0xff]
    %v802 = vld [vmem:[#allocation2 + $0xd38] sm:$0xff]
    %v803 = vld [vmem:[#allocation2 + $0xd40] sm:$0xff]
    %v804 = vld [vmem:[#allocation2 + $0xd48] sm:$0xff]
    %v805 = vld [vmem:[#allocation2 + $0xd50] sm:$0xff]
    %v806 = vld [vmem:[#allocation2 + $0xd58] sm:$0xff]
    %v807 = vld [vmem:[#allocation2 + $0xd60] sm:$0xff]
    %v808 = vld [vmem:[#allocation2 + $0xd68] sm:$0xff]
    %v809 = vld [vmem:[#allocation2 + $0xd70] sm:$0xff]
    %v810 = vld [vmem:[#allocation2 + $0xd78] sm:$0xff]
    %v811 = vld [vmem:[#allocation2 + $0xd80] sm:$0xff]
    %v812 = vld [vmem:[#allocation2 + $0xd88] sm:$0xff]
    %v813 = vld [vmem:[#allocation2 + $0xd90] sm:$0xff]
    %v814 = vld [vmem:[#allocation2 + $0xd98] sm:$0xff]
    %v815 = vld [vmem:[#allocation2 + $0xda0] sm:$0xff]
    %v816 = vld [vmem:[#allocation2 + $0xda8] sm:$0xff]
    %v817 = vld [vmem:[#allocation2 + $0xdb0] sm:$0xff]
    %v818 = vld [vmem:[#allocation2 + $0xdb8] sm:$0xff]
    %v819 = vld [vmem:[#allocation2 + $0xdc0] sm:$0xff]
    %v820 = vld [vmem:[#allocation2 + $0xdc8] sm:$0xff]
    %v821 = vld [vmem:[#allocation2 + $0xdd0] sm:$0xff]
    %v822 = vld [vmem:[#allocation2 + $0xdd8] sm:$0xff]
    %v823 = vld [vmem:[#allocation2 + $0xde0] sm:$0xff]
    %v824 = vld [vmem:[#allocation2 + $0xde8] sm:$0xff]
    %v825 = vld [vmem:[#allocation2 + $0xdf0] sm:$0xff]
    %v826 = vld [vmem:[#allocation2 + $0xdf8] sm:$0xff]
    %v827 = vld [vmem:[#allocation2 + $0xe00] sm:$0xff]
    %v828 = vld [vmem:[#allocation2 + $0xe08] sm:$0xff]
    %v829 = vld [vmem:[#allocation2 + $0xe10] sm:$0xff]
    %v830 = vld [vmem:[#allocation2 + $0xe18] sm:$0xff]
    %v831 = vld [vmem:[#allocation2 + $0xe20] sm:$0xff]
    %v832 = vld [vmem:[#allocation2 + $0xe28] sm:$0xff]
    %v833 = vld [vmem:[#allocation2 + $0xe30] sm:$0xff]
    %v834 = vld [vmem:[#allocation2 + $0xe38] sm:$0xff]
    %v835 = vld [vmem:[#allocation2 + $0xe40] sm:$0xff]
    %v836 = vld [vmem:[#allocation2 + $0xe48] sm:$0xff]
    %v837 = vld [vmem:[#allocation2 + $0xe50] sm:$0xff]
    %v838 = vld [vmem:[#allocation2 + $0xe58] sm:$0xff]
    %v839 = vld [vmem:[#allocation2 + $0xe60] sm:$0xff]
    %v840 = vld [vmem:[#allocation2 + $0xe68] sm:$0xff]
    %v841 = vld [vmem:[#allocation2 + $0xe70] sm:$0xff]
    %v842 = vld [vmem:[#allocation2 + $0xe78] sm:$0xff]
    %v843 = vld [vmem:[#allocation2 + $0xe80] sm:$0xff]
    %v844 = vld [vmem:[#allocation2 + $0xe88] sm:$0xff]
    %v845 = vld [vmem:[#allocation2 + $0xe90] sm:$0xff]
    %v846 = vld [vmem:[#allocation2 + $0xe98] sm:$0xff]
    %v847 = vld [vmem:[#allocation2 + $0xea0] sm:$0xff]
    %v848 = vld [vmem:[#allocation2 + $0xea8] sm:$0xff]
    %v849 = vld [vmem:[#allocation2 + $0xeb0] sm:$0xff]
    %v850 = vld [vmem:[#allocation2 + $0xeb8] sm:$0xff]
    %v851 = vld [vmem:[#allocation2 + $0xec0] sm:$0xff]
    %v852 = vld [vmem:[#allocation2 + $0xec8] sm:$0xff]
    %v853 = vld [vmem:[#allocation2 + $0xed0] sm:$0xff]
    %v854 = vld [vmem:[#allocation2 + $0xed8] sm:$0xff]
    %v855 = vld [vmem:[#allocation2 + $0xee0] sm:$0xff]
    %v856 = vld [vmem:[#allocation2 + $0xee8] sm:$0xff]
    %v857 = vld [vmem:[#allocation2 + $0xef0] sm:$0xff]
    %v858 = vld [vmem:[#allocation2 + $0xef8] sm:$0xff]
    %v859 = vld [vmem:[#allocation2 + $0xf00] sm:$0xff]
    %v860 = vld [vmem:[#allocation2 + $0xf08] sm:$0xff]
    %v861 = vld [vmem:[#allocation2 + $0xf10] sm:$0xff]
    %v862 = vld [vmem:[#allocation2 + $0xf18] sm:$0xff]
    %v863 = vld [vmem:[#allocation2 + $0xf20] sm:$0xff]
    %v864 = vld [vmem:[#allocation2 + $0xf28] sm:$0xff]
    %v865 = vld [vmem:[#allocation2 + $0xf30] sm:$0xff]
    %v866 = vld [vmem:[#allocation2 + $0xf38] sm:$0xff]
    %v867 = vld [vmem:[#allocation2 + $0xf40] sm:$0xff]
    %v868 = vld [vmem:[#allocation2 + $0xf48] sm:$0xff]
    %v869 = vld [vmem:[#allocation2 + $0xf50] sm:$0xff]
    %v870 = vld [vmem:[#allocation2 + $0xf58] sm:$0xff]
    %v871 = vld [vmem:[#allocation2 + $0xf60] sm:$0xff]
    %v872 = vld [vmem:[#allocation2 + $0xf68] sm:$0xff]
    %v873 = vld [vmem:[#allocation2 + $0xf70] sm:$0xff]
    %v874 = vld [vmem:[#allocation2 + $0xf78] sm:$0xff]
    %v875 = vld [vmem:[#allocation2 + $0xf80] sm:$0xff]
    %v876 = vld [vmem:[#allocation2 + $0xf88] sm:$0xff]
    %v877 = vld [vmem:[#allocation2 + $0xf90] sm:$0xff]
    %v878 = vld [vmem:[#allocation2 + $0xf98] sm:$0xff]
    %v879 = vld [vmem:[#allocation2 + $0xfa0] sm:$0xff]
    %v880 = vld [vmem:[#allocation2 + $0xfa8] sm:$0xff]
    %v881 = vld [vmem:[#allocation2 + $0xfb0] sm:$0xff]
    %v882 = vld [vmem:[#allocation2 + $0xfb8] sm:$0xff]
    %v883 = vld [vmem:[#allocation2 + $0xfc0] sm:$0xff]
    %v884 = vld [vmem:[#allocation2 + $0xfc8] sm:$0xff]
    %v885 = vld [vmem:[#allocation2 + $0xfd0] sm:$0xff]
    %v886 = vld [vmem:[#allocation2 + $0xfd8] sm:$0xff]
    %v887 = vld [vmem:[#allocation2 + $0xfe0] sm:$0xff]
    %v888 = vld [vmem:[#allocation2 + $0xfe8] sm:$0xff]
    %v889 = vld [vmem:[#allocation2 + $0xff0] sm:$0xff]
    %v890 = vld [vmem:[#allocation2 + $0xff8] sm:$0xff]
    %v891 = vld [vmem:[#allocation2 + $0x1000] sm:$0xff]
    %v892 = vld [vmem:[#allocation2 + $0x1008] sm:$0xff]
    %v893 = vld [vmem:[#allocation2 + $0x1010] sm:$0xff]
    %v894 = vld [vmem:[#allocation2 + $0x1018] sm:$0xff]
    %v895 = vld [vmem:[#allocation2 + $0x1020] sm:$0xff]
    %v896 = vld [vmem:[#allocation2 + $0x1028] sm:$0xff]
    %v897 = vld [vmem:[#allocation2 + $0x1030] sm:$0xff]
    %v898 = vld [vmem:[#allocation2 + $0x1038] sm:$0xff]
    %v899 = vld [vmem:[#allocation2 + $0x1040] sm:$0xff]
    %v900 = vld [vmem:[#allocation2 + $0x1048] sm:$0xff]
    %v901 = vld [vmem:[#allocation2 + $0x1050] sm:$0xff]
    %v902 = vld [vmem:[#allocation2 + $0x1058] sm:$0xff]
    %v903 = vld [vmem:[#allocation2 + $0x1060] sm:$0xff]
    %v904 = vld [vmem:[#allocation2 + $0x1068] sm:$0xff]
    %v905 = vld [vmem:[#allocation2 + $0x1070] sm:$0xff]
    %v906 = vld [vmem:[#allocation2 + $0x1078] sm:$0xff]
    %v907 = vld [vmem:[#allocation2 + $0x1080] sm:$0xff]
    %v908 = vld [vmem:[#allocation2 + $0x1088] sm:$0xff]
    %v909 = vld [vmem:[#allocation2 + $0x1090] sm:$0xff]
    %v910 = vld [vmem:[#allocation2 + $0x1098] sm:$0xff]
    %v911 = vld [vmem:[#allocation2 + $0x10a0] sm:$0xff]
    %v912 = vld [vmem:[#allocation2 + $0x10a8] sm:$0xff]
    %v913 = vld [vmem:[#allocation2 + $0x10b0] sm:$0xff]
    %v914 = vld [vmem:[#allocation2 + $0x10b8] sm:$0xff]
    %v915 = vld [vmem:[#allocation2 + $0x10c0] sm:$0xff]
    %v916 = vld [vmem:[#allocation2 + $0x10c8] sm:$0xff]
    %v917 = vld [vmem:[#allocation2 + $0x10d0] sm:$0xff]
    %v918 = vld [vmem:[#allocation2 + $0x10d8] sm:$0xff]
    %v919 = vld [vmem:[#allocation2 + $0x10e0] sm:$0xff]
    %v920 = vld [vmem:[#allocation2 + $0x10e8] sm:$0xff]
    %v921 = vld [vmem:[#allocation2 + $0x10f0] sm:$0xff]
    %v922 = vld [vmem:[#allocation2 + $0x10f8] sm:$0xff]
    %v923 = vld [vmem:[#allocation2 + $0x1100] sm:$0xff]
    %v924 = vld [vmem:[#allocation2 + $0x1108] sm:$0xff]
    %v925 = vld [vmem:[#allocation2 + $0x1110] sm:$0xff]
    %v926 = vld [vmem:[#allocation2 + $0x1118] sm:$0xff]
    %v927 = vld [vmem:[#allocation2 + $0x1120] sm:$0xff]
    %v928 = vld [vmem:[#allocation2 + $0x1128] sm:$0xff]
    %v929 = vld [vmem:[#allocation2 + $0x1130] sm:$0xff]
    %v930 = vld [vmem:[#allocation2 + $0x1138] sm:$0xff]
    %v931 = vld [vmem:[#allocation2 + $0x1140] sm:$0xff]
    %v932 = vld [vmem:[#allocation2 + $0x1148] sm:$0xff]
    %v933 = vld [vmem:[#allocation2 + $0x1150] sm:$0xff]
    %v934 = vld [vmem:[#allocation2 + $0x1158] sm:$0xff]
    %v935 = vld [vmem:[#allocation2 + $0x1160] sm:$0xff]
    %v936 = vld [vmem:[#allocation2 + $0x1168] sm:$0xff]
    %v937 = vld [vmem:[#allocation2 + $0x1170] sm:$0xff]
    %v938 = vld [vmem:[#allocation2 + $0x1178] sm:$0xff]
    %v939 = vld [vmem:[#allocation2 + $0x1180] sm:$0xff]
    %v940 = vld [vmem:[#allocation2 + $0x1188] sm:$0xff]
    %v941 = vld [vmem:[#allocation2 + $0x1190] sm:$0xff]
    %v942 = vld [vmem:[#allocation2 + $0x1198] sm:$0xff]
    %v943 = vld [vmem:[#allocation2 + $0x11a0] sm:$0xff]
    %v944 = vld [vmem:[#allocation2 + $0x11a8] sm:$0xff]
    %v945 = vld [vmem:[#allocation2 + $0x11b0] sm:$0xff]
    %v946 = vld [vmem:[#allocation2 + $0x11b8] sm:$0xff]
    %v947 = vld [vmem:[#allocation2 + $0x11c0] sm:$0xff]
    %v948 = vld [vmem:[#allocation2 + $0x11c8] sm:$0xff]
    %v949 = vld [vmem:[#allocation2 + $0x11d0] sm:$0xff]
    %v950 = vld [vmem:[#allocation2 + $0x11d8] sm:$0xff]
    %v951 = vld [vmem:[#allocation2 + $0x11e0] sm:$0xff]
    %v952 = vld [vmem:[#allocation2 + $0x11e8] sm:$0xff]
    %v953 = vld [vmem:[#allocation2 + $0x11f0] sm:$0xff]
    %v954 = vld [vmem:[#allocation2 + $0x11f8] sm:$0xff]
    %v955 = vld [vmem:[#allocation2 + $0x1200] sm:$0xff]
    %v956 = vld [vmem:[#allocation2 + $0x1208] sm:$0xff]
    %v957 = vld [vmem:[#allocation2 + $0x1210] sm:$0xff]
    %v958 = vld [vmem:[#allocation2 + $0x1218] sm:$0xff]
    %v959 = vld [vmem:[#allocation2 + $0x1220] sm:$0xff]
    %v960 = vld [vmem:[#allocation2 + $0x1228] sm:$0xff]
    %v961 = vld [vmem:[#allocation2 + $0x1230] sm:$0xff]
    %v962 = vld [vmem:[#allocation2 + $0x1238] sm:$0xff]
    %v963 = vld [vmem:[#allocation2 + $0x1240] sm:$0xff]
    %v964 = vld [vmem:[#allocation2 + $0x1248] sm:$0xff]
    %v965 = vld [vmem:[#allocation2 + $0x1250] sm:$0xff]
    %v966 = vld [vmem:[#allocation2 + $0x1258] sm:$0xff]
    %v967 = vld [vmem:[#allocation2 + $0x1260] sm:$0xff]
    %v968 = vld [vmem:[#allocation2 + $0x1268] sm:$0xff]
    %v969 = vld [vmem:[#allocation2 + $0x1270] sm:$0xff]
    %v970 = vld [vmem:[#allocation2 + $0x1278] sm:$0xff]
    %v971 = vld [vmem:[#allocation2 + $0x1280] sm:$0xff]
    %v972 = vld [vmem:[#allocation2 + $0x1288] sm:$0xff]
    %v973 = vld [vmem:[#allocation2 + $0x1290] sm:$0xff]
    %v974 = vld [vmem:[#allocation2 + $0x1298] sm:$0xff]
    %v975 = vld [vmem:[#allocation2 + $0x12a0] sm:$0xff]
    %v976 = vld [vmem:[#allocation2 + $0x12a8] sm:$0xff]
    %v977 = vld [vmem:[#allocation2 + $0x12b0] sm:$0xff]
    %v978 = vld [vmem:[#allocation2 + $0x12b8] sm:$0xff]
    %v979 = vld [vmem:[#allocation2 + $0x12c0] sm:$0xff]
    %v980 = vld [vmem:[#allocation2 + $0x12c8] sm:$0xff]
    %v981 = vld [vmem:[#allocation2 + $0x12d0] sm:$0xff]
    %v982 = vld [vmem:[#allocation2 + $0x12d8] sm:$0xff]
    %v983 = vld [vmem:[#allocation2 + $0x12e0] sm:$0xff]
    %v984 = vld [vmem:[#allocation2 + $0x12e8] sm:$0xff]
    %v985 = vld [vmem:[#allocation2 + $0x12f0] sm:$0xff]
    %v986 = vld [vmem:[#allocation2 + $0x12f8] sm:$0xff]
    %v987 = vld [vmem:[#allocation2 + $0x1300] sm:$0xff]
    %v988 = vld [vmem:[#allocation2 + $0x1308] sm:$0xff]
    %v989 = vld [vmem:[#allocation2 + $0x1310] sm:$0xff]
    %v990 = vld [vmem:[#allocation2 + $0x1318] sm:$0xff]
    %v991 = vld [vmem:[#allocation2 + $0x1320] sm:$0xff]
    %v992 = vld [vmem:[#allocation2 + $0x1328] sm:$0xff]
    %v993 = vld [vmem:[#allocation2 + $0x1330] sm:$0xff]
    %v994 = vld [vmem:[#allocation2 + $0x1338] sm:$0xff]
    %v995 = vld [vmem:[#allocation2 + $0x1340] sm:$0xff]
    %v996 = vld [vmem:[#allocation2 + $0x1348] sm:$0xff]
    %v997 = vld [vmem:[#allocation2 + $0x1350] sm:$0xff]
    %v998 = vld [vmem:[#allocation2 + $0x1358] sm:$0xff]
    %v999 = vld [vmem:[#allocation2 + $0x1360] sm:$0xff]
    %v1000 = vld [vmem:[#allocation2 + $0x1368] sm:$0xff]
    %v1001 = vld [vmem:[#allocation2 + $0x1370] sm:$0xff]
    %v1002 = vld [vmem:[#allocation2 + $0x1378] sm:$0xff]
    %v1003 = vld [vmem:[#allocation2 + $0x1380] sm:$0xff]
    %v1004 = vld [vmem:[#allocation2 + $0x1388] sm:$0xff]
    %v1005 = vld [vmem:[#allocation2 + $0x1390] sm:$0xff]
    %v1006 = vld [vmem:[#allocation2 + $0x1398] sm:$0xff]
    %v1007 = vld [vmem:[#allocation2 + $0x13a0] sm:$0xff]
    %v1008 = vld [vmem:[#allocation2 + $0x13a8] sm:$0xff]
    %v1009 = vld [vmem:[#allocation2 + $0x13b0] sm:$0xff]
    %v1010 = vld [vmem:[#allocation2 + $0x13b8] sm:$0xff]
    %v1011 = vld [vmem:[#allocation2 + $0x13c0] sm:$0xff]
    %v1012 = vld [vmem:[#allocation2 + $0x13c8] sm:$0xff]
    %v1013 = vld [vmem:[#allocation2 + $0x13d0] sm:$0xff]
    %v1014 = vld [vmem:[#allocation2 + $0x13d8] sm:$0xff]
    %v1015 = vld [vmem:[#allocation2 + $0x13e0] sm:$0xff]
    %v1016 = vld [vmem:[#allocation2 + $0x13e8] sm:$0xff]
    %v1017 = vld [vmem:[#allocation2 + $0x13f0] sm:$0xff]
    %v1018 = vld [vmem:[#allocation2 + $0x13f8] sm:$0xff]
    %v1019 = vld [vmem:[#allocation2 + $0x1400] sm:$0xff]
    %v1020 = vld [vmem:[#allocation2 + $0x1408] sm:$0xff]
    %v1021 = vld [vmem:[#allocation2 + $0x1410] sm:$0xff]
    %v1022 = vld [vmem:[#allocation2 + $0x1418] sm:$0xff]
    %v1023 = vld [vmem:[#allocation2 + $0x1420] sm:$0xff]
    %v1024 = vld [vmem:[#allocation2 + $0x1428] sm:$0xff]
    %v1025 = vld [vmem:[#allocation2 + $0x1430] sm:$0xff]
    %v1026 = vld [vmem:[#allocation2 + $0x1438] sm:$0xff]
    %v1027 = vld [vmem:[#allocation2 + $0x1440] sm:$0xff]
    %v1028 = vld [vmem:[#allocation2 + $0x1448] sm:$0xff]
    %v1029 = vld [vmem:[#allocation2 + $0x1450] sm:$0xff]
    %v1030 = vld [vmem:[#allocation2 + $0x1458] sm:$0xff]
    %v1031 = vld [vmem:[#allocation2 + $0x1460] sm:$0xff]
    %v1032 = vld [vmem:[#allocation2 + $0x1468] sm:$0xff]
    %v1033 = vld [vmem:[#allocation2 + $0x1470] sm:$0xff]
    %v1034 = vld [vmem:[#allocation2 + $0x1478] sm:$0xff]
    %v1035 = vld [vmem:[#allocation2 + $0x1480] sm:$0xff]
    %v1036 = vld [vmem:[#allocation2 + $0x1488] sm:$0xff]
    %v1037 = vld [vmem:[#allocation2 + $0x1490] sm:$0xff]
    %v1038 = vld [vmem:[#allocation2 + $0x1498] sm:$0xff]
    %v1039 = vld [vmem:[#allocation2 + $0x14a0] sm:$0xff]
    %v1040 = vld [vmem:[#allocation2 + $0x14a8] sm:$0xff]
    %v1041 = vld [vmem:[#allocation2 + $0x14b0] sm:$0xff]
    %v1042 = vld [vmem:[#allocation2 + $0x14b8] sm:$0xff]
    %v1043 = vld [vmem:[#allocation2 + $0x14c0] sm:$0xff]
    %v1044 = vld [vmem:[#allocation2 + $0x14c8] sm:$0xff]
    %v1045 = vld [vmem:[#allocation2 + $0x14d0] sm:$0xff]
    %v1046 = vld [vmem:[#allocation2 + $0x14d8] sm:$0xff]
    %v1047 = vld [vmem:[#allocation2 + $0x14e0] sm:$0xff]
    %v1048 = vld [vmem:[#allocation2 + $0x14e8] sm:$0xff]
    %v1049 = vld [vmem:[#allocation2 + $0x14f0] sm:$0xff]
    %v1050 = vld [vmem:[#allocation2 + $0x14f8] sm:$0xff]
    %v1051 = vld [vmem:[#allocation2 + $0x1500] sm:$0xff]
    %v1052 = vld [vmem:[#allocation2 + $0x1508] sm:$0xff]
    %v1053 = vld [vmem:[#allocation2 + $0x1510] sm:$0xff]
    %v1054 = vld [vmem:[#allocation2 + $0x1518] sm:$0xff]
    %v1055 = vld [vmem:[#allocation2 + $0x1520] sm:$0xff]
    %v1056 = vld [vmem:[#allocation2 + $0x1528] sm:$0xff]
    %v1057 = vld [vmem:[#allocation2 + $0x1530] sm:$0xff]
    %v1058 = vld [vmem:[#allocation2 + $0x1538] sm:$0xff]
    %v1059 = vld [vmem:[#allocation2 + $0x1540] sm:$0xff]
    %v1060 = vld [vmem:[#allocation2 + $0x1548] sm:$0xff]
    %v1061 = vld [vmem:[#allocation2 + $0x1550] sm:$0xff]
    %v1062 = vld [vmem:[#allocation2 + $0x1558] sm:$0xff]
    %v1063 = vld [vmem:[#allocation2 + $0x1560] sm:$0xff]
    %v1064 = vld [vmem:[#allocation2 + $0x1568] sm:$0xff]
    %v1065 = vld [vmem:[#allocation2 + $0x1570] sm:$0xff]
    %v1066 = vld [vmem:[#allocation2 + $0x1578] sm:$0xff]
    %v1067 = vld [vmem:[#allocation2 + $0x1580] sm:$0xff]
    %v1068 = vld [vmem:[#allocation2 + $0x1588] sm:$0xff]
    %v1069 = vld [vmem:[#allocation2 + $0x1590] sm:$0xff]
    %v1070 = vld [vmem:[#allocation2 + $0x1598] sm:$0xff]
    %v1071 = vld [vmem:[#allocation2 + $0x15a0] sm:$0xff]
    %v1072 = vld [vmem:[#allocation2 + $0x15a8] sm:$0xff]
    %v1073 = vld [vmem:[#allocation2 + $0x15b0] sm:$0xff]
    %v1074 = vld [vmem:[#allocation2 + $0x15b8] sm:$0xff]
    %v1075 = vld [vmem:[#allocation2 + $0x15c0] sm:$0xff]
    %v1076 = vld [vmem:[#allocation2 + $0x15c8] sm:$0xff]
    %v1077 = vld [vmem:[#allocation2 + $0x15d0] sm:$0xff]
    %v1078 = vld [vmem:[#allocation2 + $0x15d8] sm:$0xff]
    %v1079 = vld [vmem:[#allocation2 + $0x15e0] sm:$0xff]
    %v1080 = vld [vmem:[#allocation2 + $0x15e8] sm:$0xff]
    %v1081 = vld [vmem:[#allocation2 + $0x15f0] sm:$0xff]
    %v1082 = vld [vmem:[#allocation2 + $0x15f8] sm:$0xff]
    %v1083 = vld [vmem:[#allocation2 + $0x1600] sm:$0xff]
    %v1084 = vld [vmem:[#allocation2 + $0x1608] sm:$0xff]
    %v1085 = vld [vmem:[#allocation2 + $0x1610] sm:$0xff]
    %v1086 = vld [vmem:[#allocation2 + $0x1618] sm:$0xff]
    %v1087 = vld [vmem:[#allocation2 + $0x1620] sm:$0xff]
    %v1088 = vld [vmem:[#allocation2 + $0x1628] sm:$0xff]
    %v1089 = vld [vmem:[#allocation2 + $0x1630] sm:$0xff]
    %v1090 = vld [vmem:[#allocation2 + $0x1638] sm:$0xff]
    %v1091 = vld [vmem:[#allocation2 + $0x1640] sm:$0xff]
    %v1092 = vld [vmem:[#allocation2 + $0x1648] sm:$0xff]
    %v1093 = vld [vmem:[#allocation2 + $0x1650] sm:$0xff]
    %v1094 = vld [vmem:[#allocation2 + $0x1658] sm:$0xff]
    %v1095 = vld [vmem:[#allocation2 + $0x1660] sm:$0xff]
    %v1096 = vld [vmem:[#allocation2 + $0x1668] sm:$0xff]
    %v1097 = vld [vmem:[#allocation2 + $0x1670] sm:$0xff]
    %v1098 = vld [vmem:[#allocation2 + $0x1678] sm:$0xff]
    %v1099 = vld [vmem:[#allocation2 + $0x1680] sm:$0xff]
    %v1100 = vld [vmem:[#allocation2 + $0x1688] sm:$0xff]
    %v1101 = vld [vmem:[#allocation2 + $0x1690] sm:$0xff]
    %v1102 = vld [vmem:[#allocation2 + $0x1698] sm:$0xff]
    %v1103 = vld [vmem:[#allocation2 + $0x16a0] sm:$0xff]
    %v1104 = vld [vmem:[#allocation2 + $0x16a8] sm:$0xff]
    %v1105 = vld [vmem:[#allocation2 + $0x16b0] sm:$0xff]
    %v1106 = vld [vmem:[#allocation2 + $0x16b8] sm:$0xff]
    %v1107 = vld [vmem:[#allocation2 + $0x16c0] sm:$0xff]
    %v1108 = vld [vmem:[#allocation2 + $0x16c8] sm:$0xff]
    %v1109 = vld [vmem:[#allocation2 + $0x16d0] sm:$0xff]
    %v1110 = vld [vmem:[#allocation2 + $0x16d8] sm:$0xff]
    %v1111 = vld [vmem:[#allocation2 + $0x16e0] sm:$0xff]
    %v1112 = vld [vmem:[#allocation2 + $0x16e8] sm:$0xff]
    %v1113 = vld [vmem:[#allocation2 + $0x16f0] sm:$0xff]
    %v1114 = vld [vmem:[#allocation2 + $0x16f8] sm:$0xff]
    %v1115 = vld [vmem:[#allocation2 + $0x1700] sm:$0xff]
    %v1116 = vld [vmem:[#allocation2 + $0x1708] sm:$0xff]
    %v1117 = vld [vmem:[#allocation2 + $0x1710] sm:$0xff]
    %v1118 = vld [vmem:[#allocation2 + $0x1718] sm:$0xff]
    %v1119 = vld [vmem:[#allocation2 + $0x1720] sm:$0xff]
    %v1120 = vld [vmem:[#allocation2 + $0x1728] sm:$0xff]
    %v1121 = vld [vmem:[#allocation2 + $0x1730] sm:$0xff]
    %v1122 = vld [vmem:[#allocation2 + $0x1738] sm:$0xff]
    %v1123 = vld [vmem:[#allocation2 + $0x1740] sm:$0xff]
    %v1124 = vld [vmem:[#allocation2 + $0x1748] sm:$0xff]
    %v1125 = vld [vmem:[#allocation2 + $0x1750] sm:$0xff]
    %v1126 = vld [vmem:[#allocation2 + $0x1758] sm:$0xff]
    %v1127 = vld [vmem:[#allocation2 + $0x1760] sm:$0xff]
    %v1128 = vld [vmem:[#allocation2 + $0x1768] sm:$0xff]
    %v1129 = vld [vmem:[#allocation2 + $0x1770] sm:$0xff]
    %v1130 = vld [vmem:[#allocation2 + $0x1778] sm:$0xff]
    %v1131 = vld [vmem:[#allocation2 + $0x1780] sm:$0xff]
    %v1132 = vld [vmem:[#allocation2 + $0x1788] sm:$0xff]
    %v1133 = vld [vmem:[#allocation2 + $0x1790] sm:$0xff]
    %v1134 = vld [vmem:[#allocation2 + $0x1798] sm:$0xff]
    %v1135 = vld [vmem:[#allocation2 + $0x17a0] sm:$0xff]
    %v1136 = vld [vmem:[#allocation2 + $0x17a8] sm:$0xff]
    %v1137 = vld [vmem:[#allocation2 + $0x17b0] sm:$0xff]
    %v1138 = vld [vmem:[#allocation2 + $0x17b8] sm:$0xff]
    %v1139 = vld [vmem:[#allocation2 + $0x17c0] sm:$0xff]
    %v1140 = vld [vmem:[#allocation2 + $0x17c8] sm:$0xff]
    %v1141 = vld [vmem:[#allocation2 + $0x17d0] sm:$0xff]
    %v1142 = vld [vmem:[#allocation2 + $0x17d8] sm:$0xff]
    %v1143 = vld [vmem:[#allocation2 + $0x17e0] sm:$0xff]
    %v1144 = vld [vmem:[#allocation2 + $0x17e8] sm:$0xff]
    %v1145 = vld [vmem:[#allocation2 + $0x17f0] sm:$0xff]
    %v1146 = vld [vmem:[#allocation2 + $0x17f8] sm:$0xff]
    %v1147 = vld [vmem:[#allocation2 + $0x1800] sm:$0xff]
    %v1148 = vld [vmem:[#allocation2 + $0x1808] sm:$0xff]
    %v1149 = vld [vmem:[#allocation2 + $0x1810] sm:$0xff]
    %v1150 = vld [vmem:[#allocation2 + $0x1818] sm:$0xff]
    %v1151 = vld [vmem:[#allocation2 + $0x1820] sm:$0xff]
    %v1152 = vld [vmem:[#allocation2 + $0x1828] sm:$0xff]
    %v1153 = vld [vmem:[#allocation2 + $0x1830] sm:$0xff]
    %v1154 = vld [vmem:[#allocation2 + $0x1838] sm:$0xff]
    %v1155 = vld [vmem:[#allocation2 + $0x1840] sm:$0xff]
    %v1156 = vld [vmem:[#allocation2 + $0x1848] sm:$0xff]
    %v1157 = vld [vmem:[#allocation2 + $0x1850] sm:$0xff]
    %v1158 = vld [vmem:[#allocation2 + $0x1858] sm:$0xff]
    %v1159 = vld [vmem:[#allocation2 + $0x1860] sm:$0xff]
    %v1160 = vld [vmem:[#allocation2 + $0x1868] sm:$0xff]
    %v1161 = vld [vmem:[#allocation2 + $0x1870] sm:$0xff]
    %v1162 = vld [vmem:[#allocation2 + $0x1878] sm:$0xff]
    %v1163 = vld [vmem:[#allocation2 + $0x1880] sm:$0xff]
    %v1164 = vld [vmem:[#allocation2 + $0x1888] sm:$0xff]
    %v1165 = vld [vmem:[#allocation2 + $0x1890] sm:$0xff]
    %v1166 = vld [vmem:[#allocation2 + $0x1898] sm:$0xff]
    %v1167 = vld [vmem:[#allocation2 + $0x18a0] sm:$0xff]
    %v1168 = vld [vmem:[#allocation2 + $0x18a8] sm:$0xff]
    %v1169 = vld [vmem:[#allocation2 + $0x18b0] sm:$0xff]
    %v1170 = vld [vmem:[#allocation2 + $0x18b8] sm:$0xff]
    %v1171 = vld [vmem:[#allocation2 + $0x18c0] sm:$0xff]
    %v1172 = vld [vmem:[#allocation2 + $0x18c8] sm:$0xff]
    %v1173 = vld [vmem:[#allocation2 + $0x18d0] sm:$0xff]
    %v1174 = vld [vmem:[#allocation2 + $0x18d8] sm:$0xff]
    %v1175 = vld [vmem:[#allocation2 + $0x18e0] sm:$0xff]
    %v1176 = vld [vmem:[#allocation2 + $0x18e8] sm:$0xff]
    %v1177 = vld [vmem:[#allocation2 + $0x18f0] sm:$0xff]
    %v1178 = vld [vmem:[#allocation2 + $0x18f8] sm:$0xff]
    %v1179 = vld [vmem:[#allocation2 + $0x1900] sm:$0xff]
    %v1180 = vld [vmem:[#allocation2 + $0x1908] sm:$0xff]
    %v1181 = vld [vmem:[#allocation2 + $0x1910] sm:$0xff]
    %v1182 = vld [vmem:[#allocation2 + $0x1918] sm:$0xff]
    %v1183 = vld [vmem:[#allocation2 + $0x1920] sm:$0xff]
    %v1184 = vld [vmem:[#allocation2 + $0x1928] sm:$0xff]
    %v1185 = vld [vmem:[#allocation2 + $0x1930] sm:$0xff]
    %v1186 = vld [vmem:[#allocation2 + $0x1938] sm:$0xff]
    %v1187 = vld [vmem:[#allocation2 + $0x1940] sm:$0xff]
    %v1188 = vld [vmem:[#allocation2 + $0x1948] sm:$0xff]
    %v1189 = vld [vmem:[#allocation2 + $0x1950] sm:$0xff]
    %v1190 = vld [vmem:[#allocation2 + $0x1958] sm:$0xff]
    %v1191 = vld [vmem:[#allocation2 + $0x1960] sm:$0xff]
    %v1192 = vld [vmem:[#allocation2 + $0x1968] sm:$0xff]
    %v1193 = vld [vmem:[#allocation2 + $0x1970] sm:$0xff]
    %v1194 = vld [vmem:[#allocation2 + $0x1978] sm:$0xff]
    %v1195 = vld [vmem:[#allocation2 + $0x1980] sm:$0xff]
    %v1196 = vld [vmem:[#allocation2 + $0x1988] sm:$0xff]
    %v1197 = vld [vmem:[#allocation2 + $0x1990] sm:$0xff]
    %v1198 = vld [vmem:[#allocation2 + $0x1998] sm:$0xff]
    %v1199 = vld [vmem:[#allocation2 + $0x19a0] sm:$0xff]
    %v1200 = vld [vmem:[#allocation2 + $0x19a8] sm:$0xff]
    %v1201 = vld [vmem:[#allocation2 + $0x19b0] sm:$0xff]
    %v1202 = vld [vmem:[#allocation2 + $0x19b8] sm:$0xff]
    %v1203 = vld [vmem:[#allocation2 + $0x19c0] sm:$0xff]
    %v1204 = vld [vmem:[#allocation2 + $0x19c8] sm:$0xff]
    %v1205 = vld [vmem:[#allocation2 + $0x19d0] sm:$0xff]
    %v1206 = vld [vmem:[#allocation2 + $0x19d8] sm:$0xff]
    %v1207 = vld [vmem:[#allocation2 + $0x19e0] sm:$0xff]
    %v1208 = vld [vmem:[#allocation2 + $0x19e8] sm:$0xff]
    %v1209 = vld [vmem:[#allocation2 + $0x19f0] sm:$0xff]
    %v1210 = vld [vmem:[#allocation2 + $0x19f8] sm:$0xff]
    %v1211 = vld [vmem:[#allocation2 + $0x1a00] sm:$0xff]
    %v1212 = vld [vmem:[#allocation2 + $0x1a08] sm:$0xff]
    %v1213 = vld [vmem:[#allocation2 + $0x1a10] sm:$0xff]
    %v1214 = vld [vmem:[#allocation2 + $0x1a18] sm:$0xff]
    %v1215 = vld [vmem:[#allocation2 + $0x1a20] sm:$0xff]
    %v1216 = vld [vmem:[#allocation2 + $0x1a28] sm:$0xff]
    %v1217 = vld [vmem:[#allocation2 + $0x1a30] sm:$0xff]
    %v1218 = vld [vmem:[#allocation2 + $0x1a38] sm:$0xff]
    %v1219 = vld [vmem:[#allocation2 + $0x1a40] sm:$0xff]
    %v1220 = vld [vmem:[#allocation2 + $0x1a48] sm:$0xff]
    %v1221 = vld [vmem:[#allocation2 + $0x1a50] sm:$0xff]
    %v1222 = vld [vmem:[#allocation2 + $0x1a58] sm:$0xff]
    %v1223 = vld [vmem:[#allocation2 + $0x1a60] sm:$0xff]
    %v1224 = vld [vmem:[#allocation2 + $0x1a68] sm:$0xff]
    %v1225 = vld [vmem:[#allocation2 + $0x1a70] sm:$0xff]
    %v1226 = vld [vmem:[#allocation2 + $0x1a78] sm:$0xff]
    %v1227 = vld [vmem:[#allocation2 + $0x1a80] sm:$0xff]
    %v1228 = vld [vmem:[#allocation2 + $0x1a88] sm:$0xff]
    %v1229 = vld [vmem:[#allocation2 + $0x1a90] sm:$0xff]
    %v1230 = vld [vmem:[#allocation2 + $0x1a98] sm:$0xff]
    %v1231 = vld [vmem:[#allocation2 + $0x1aa0] sm:$0xff]
    %v1232 = vld [vmem:[#allocation2 + $0x1aa8] sm:$0xff]
    %v1233 = vld [vmem:[#allocation2 + $0x1ab0] sm:$0xff]
    %v1234 = vld [vmem:[#allocation2 + $0x1ab8] sm:$0xff]
    %v1235 = vld [vmem:[#allocation2 + $0x1ac0] sm:$0xff]
    %v1236 = vld [vmem:[#allocation2 + $0x1ac8] sm:$0xff]
    %v1237 = vld [vmem:[#allocation2 + $0x1ad0] sm:$0xff]
    %v1238 = vld [vmem:[#allocation2 + $0x1ad8] sm:$0xff]
    %v1239 = vld [vmem:[#allocation2 + $0x1ae0] sm:$0xff]
    %v1240 = vld [vmem:[#allocation2 + $0x1ae8] sm:$0xff]
    %v1241 = vld [vmem:[#allocation2 + $0x1af0] sm:$0xff]
    %v1242 = vld [vmem:[#allocation2 + $0x1af8] sm:$0xff]
    %v1243 = vld [vmem:[#allocation2 + $0x1b00] sm:$0xff]
    %v1244 = vld [vmem:[#allocation2 + $0x1b08] sm:$0xff]
    %v1245 = vld [vmem:[#allocation2 + $0x1b10] sm:$0xff]
    %v1246 = vld [vmem:[#allocation2 + $0x1b18] sm:$0xff]
    %v1247 = vld [vmem:[#allocation2 + $0x1b20] sm:$0xff]
    %v1248 = vld [vmem:[#allocation2 + $0x1b28] sm:$0xff]
    %v1249 = vld [vmem:[#allocation2 + $0x1b30] sm:$0xff]
    %v1250 = vld [vmem:[#allocation2 + $0x1b38] sm:$0xff]
    %v1251 = vld [vmem:[#allocation2 + $0x1b40] sm:$0xff]
    %v1252 = vld [vmem:[#allocation2 + $0x1b48] sm:$0xff]
    %v1253 = vld [vmem:[#allocation2 + $0x1b50] sm:$0xff]
    %v1254 = vld [vmem:[#allocation2 + $0x1b58] sm:$0xff]
    %v1255 = vld [vmem:[#allocation2 + $0x1b60] sm:$0xff]
    %v1256 = vld [vmem:[#allocation2 + $0x1b68] sm:$0xff]
    %v1257 = vld [vmem:[#allocation2 + $0x1b70] sm:$0xff]
    %v1258 = vld [vmem:[#allocation2 + $0x1b78] sm:$0xff]
    %v1259 = vld [vmem:[#allocation2 + $0x1b80] sm:$0xff]
    %v1260 = vld [vmem:[#allocation2 + $0x1b88] sm:$0xff]
    %v1261 = vld [vmem:[#allocation2 + $0x1b90] sm:$0xff]
    %v1262 = vld [vmem:[#allocation2 + $0x1b98] sm:$0xff]
    %v1263 = vld [vmem:[#allocation2 + $0x1ba0] sm:$0xff]
    %v1264 = vld [vmem:[#allocation2 + $0x1ba8] sm:$0xff]
    %v1265 = vld [vmem:[#allocation2 + $0x1bb0] sm:$0xff]
    %v1266 = vld [vmem:[#allocation2 + $0x1bb8] sm:$0xff]
    %v1267 = vld [vmem:[#allocation2 + $0x1bc0] sm:$0xff]
    %v1268 = vld [vmem:[#allocation2 + $0x1bc8] sm:$0xff]
    %v1269 = vld [vmem:[#allocation2 + $0x1bd0] sm:$0xff]
    %v1270 = vld [vmem:[#allocation2 + $0x1bd8] sm:$0xff]
    %v1271 = vld [vmem:[#allocation2 + $0x1be0] sm:$0xff]
    %v1272 = vld [vmem:[#allocation2 + $0x1be8] sm:$0xff]
    %v1273 = vld [vmem:[#allocation2 + $0x1bf0] sm:$0xff]
    %v1274 = vld [vmem:[#allocation2 + $0x1bf8] sm:$0xff]
    %v1275 = vld [vmem:[#allocation2 + $0x1c00] sm:$0xff]
    %v1276 = vld [vmem:[#allocation2 + $0x1c08] sm:$0xff]
    %v1277 = vld [vmem:[#allocation2 + $0x1c10] sm:$0xff]
    %v1278 = vld [vmem:[#allocation2 + $0x1c18] sm:$0xff]
    %v1279 = vld [vmem:[#allocation2 + $0x1c20] sm:$0xff]
    %v1280 = vld [vmem:[#allocation2 + $0x1c28] sm:$0xff]
    %v1281 = vld [vmem:[#allocation2 + $0x1c30] sm:$0xff]
    %v1282 = vld [vmem:[#allocation2 + $0x1c38] sm:$0xff]
    %v1283 = vld [vmem:[#allocation2 + $0x1c40] sm:$0xff]
    %v1284 = vld [vmem:[#allocation2 + $0x1c48] sm:$0xff]
    %v1285 = vld [vmem:[#allocation2 + $0x1c50] sm:$0xff]
    %v1286 = vld [vmem:[#allocation2 + $0x1c58] sm:$0xff]
    %v1287 = vld [vmem:[#allocation2 + $0x1c60] sm:$0xff]
    %v1288 = vld [vmem:[#allocation2 + $0x1c68] sm:$0xff]
    %v1289 = vld [vmem:[#allocation2 + $0x1c70] sm:$0xff]
    %v1290 = vld [vmem:[#allocation2 + $0x1c78] sm:$0xff]
    %v1291 = vld [vmem:[#allocation2 + $0x1c80] sm:$0xff]
    %v1292 = vld [vmem:[#allocation2 + $0x1c88] sm:$0xff]
    %v1293 = vld [vmem:[#allocation2 + $0x1c90] sm:$0xff]
    %v1294 = vld [vmem:[#allocation2 + $0x1c98] sm:$0xff]
    %v1295 = vld [vmem:[#allocation2 + $0x1ca0] sm:$0xff]
    %v1296 = vld [vmem:[#allocation2 + $0x1ca8] sm:$0xff]
    %v1297 = vld [vmem:[#allocation2 + $0x1cb0] sm:$0xff]
    %v1298 = vld [vmem:[#allocation2 + $0x1cb8] sm:$0xff]
    %v1299 = vld [vmem:[#allocation2 + $0x1cc0] sm:$0xff]
    %v1300 = vld [vmem:[#allocation2 + $0x1cc8] sm:$0xff]
    %v1301 = vld [vmem:[#allocation2 + $0x1cd0] sm:$0xff]
    %v1302 = vld [vmem:[#allocation2 + $0x1cd8] sm:$0xff]
    %v1303 = vld [vmem:[#allocation2 + $0x1ce0] sm:$0xff]
    %v1304 = vld [vmem:[#allocation2 + $0x1ce8] sm:$0xff]
    %v1305 = vld [vmem:[#allocation2 + $0x1cf0] sm:$0xff]
    %v1306 = vld [vmem:[#allocation2 + $0x1cf8] sm:$0xff]
    %vm1307 = vcmask 523264
    %v1309 = vsel %vm1307, %v153, 0
    %v1312 = vsel %vm1307, %v168, 0
    %v1315 = vsel %vm1307, %v183, 0
    %v1318 = vsel %vm1307, %v198, 0
    %v1321 = vsel %vm1307, %v213, 0
    %v1324 = vsel %vm1307, %v228, 0
    %v1327 = vsel %vm1307, %v243, 0
    %v1330 = vsel %vm1307, %v258, 0
    %v1333 = vsel %vm1307, %v273, 0
    %v1336 = vsel %vm1307, %v288, 0
    %v1339 = vsel %vm1307, %v303, 0
    %v1342 = vsel %vm1307, %v318, 0
    %v1345 = vsel %vm1307, %v333, 0
    %v1348 = vsel %vm1307, %v348, 0
    %v1351 = vsel %vm1307, %v363, 0
    %v1354 = vsel %vm1307, %v378, 0
    %1356 = vmatprep.subr.mxu0 %v380
    %1357 = vmatpush1.msra.mxu0 %v379
    %1358 = vmatprep.subr.mxu0 %v384
    %1359 = vmatpush1.msra.mxu0 %v383
    %1360 = vmatprep.subr.mxu0 %v388
    %1361 = vmatpush1.msra.mxu0 %v387
    %1362 = vmatprep.subr.mxu0 %v392
    %1363 = vmatpush1.msra.mxu0 %v391
    %1364 = vmatprep.subr.mxu0 %v396
    %1365 = vmatpush1.msra.mxu0 %v395
    %1366 = vmatprep.subr.mxu0 %v400
    %1367 = vmatpush1.msra.mxu0 %v399
    %1368 = vmatprep.subr.mxu0 %v404
    %1369 = vmatpush1.msra.mxu0 %v403
    %1370 = vmatprep.subr.mxu0 %v408
    %1371 = vmatpush1.msra.mxu0 %v407
    %1372 = vmatprep.subr.mxu0 %v412
    %1373 = vmatpush1.msra.mxu0 %v411
    %1374 = vmatprep.subr.mxu0 %v416
    %1375 = vmatpush1.msra.mxu0 %v415
    %1376 = vmatprep.subr.mxu0 %v420
    %1377 = vmatpush1.msra.mxu0 %v419
    %1378 = vmatprep.subr.mxu0 %v424
    %1379 = vmatpush1.msra.mxu0 %v423
    %1380 = vmatprep.subr.mxu0 %v428
    %1381 = vmatpush1.msra.mxu0 %v427
    %1382 = vmatprep.subr.mxu0 %v432
    %1383 = vmatpush1.msra.mxu0 %v431
    %1384 = vmatprep.subr.mxu0 %v436
    %1385 = vmatpush1.msra.mxu0 %v435
    %1386 = vmatprep.subr.mxu0 %v440
    %1387 = vmatpush1.msra.mxu0 %v439
    %1388 = vmatprep.subr.mxu0 %v444
    %1389 = vmatpush1.msra.mxu0 %v443
    %1390 = vmatprep.subr.mxu0 %v448
    %1391 = vmatpush1.msra.mxu0 %v447
    %1392 = vmatprep.subr.mxu0 %v452
    %1393 = vmatpush1.msra.mxu0 %v451
    %1394 = vmatprep.subr.mxu0 %v456
    %1395 = vmatpush1.msra.mxu0 %v455
    %1396 = vmatprep.subr.mxu0 %v460
    %1397 = vmatpush1.msra.mxu0 %v459
    %1398 = vmatprep.subr.mxu0 %v464
    %1399 = vmatpush1.msra.mxu0 %v463
    %1400 = vmatprep.subr.mxu0 %v468
    %1401 = vmatpush1.msra.mxu0 %v467
    %1402 = vmatprep.subr.mxu0 %v472
    %1403 = vmatpush1.msra.mxu0 %v471
    %1404 = vmatprep.subr.mxu0 %v476
    %1405 = vmatpush1.msra.mxu0 %v475
    %1406 = vmatprep.subr.mxu0 %v480
    %1407 = vmatpush1.msra.mxu0 %v479
    %1408 = vmatprep.subr.mxu0 %v484
    %1409 = vmatpush1.msra.mxu0 %v483
    %1410 = vmatprep.subr.mxu0 %v488
    %1411 = vmatpush1.msra.mxu0 %v487
    %1412 = vmatprep.subr.mxu0 %v492
    %1413 = vmatpush1.msra.mxu0 %v491
    %1414 = vmatprep.subr.mxu0 %v496
    %1415 = vmatpush1.msra.mxu0 %v495
    %1416 = vmatprep.subr.mxu0 %v500
    %1417 = vmatpush1.msra.mxu0 %v499
    %1418 = vmatprep.subr.mxu0 %v504
    %1419 = vmatpush1.msra.mxu0 %v503
    %1420 = vmatprep.mubr.f32.mxu0 %v140
    %1421 = vmatmul.mubr.f32.gmra.mrb[0].mxu0 %v139
    %v1422 = vpop.f32.mrb[0].mxu0
    %v1423 = vadd.f32 0.0, %v1422
    %v1424 = vpop.f32.mrb[0].mxu0
    %v1425 = vadd.f32 0.0, %v1424
    %1426 = vmatprep.mubr.f32.mxu0 %v155
    %1427 = vmatmul.mubr.f32.gmra.mrb[0].mxu0 %v154
    %v1428 = vpop.f32.mrb[0].mxu0
    %v1429 = vadd.f32 0.0, %v1428
    %v1430 = vpop.f32.mrb[0].mxu0
    %v1431 = vadd.f32 0.0, %v1430
    %1432 = vmatprep.mubr.f32.mxu0 %v170
    %1433 = vmatmul.mubr.f32.gmra.mrb[0].mxu0 %v169
    %v1434 = vpop.f32.mrb[0].mxu0
    %v1435 = vadd.f32 0.0, %v1434
    %v1436 = vpop.f32.mrb[0].mxu0
    %v1437 = vadd.f32 0.0, %v1436
    %1438 = vmatprep.mubr.f32.mxu0 %v185
    %1439 = vmatmul.mubr.f32.gmra.mrb[0].mxu0 %v184
    %v1440 = vpop.f32.mrb[0].mxu0
    %v1441 = vadd.f32 0.0, %v1440
    %v1442 = vpop.f32.mrb[0].mxu0
    %v1443 = vadd.f32 0.0, %v1442
    %1444 = vmatprep.mubr.f32.mxu0 %v200
    %1445 = vmatmul.mubr.f32.gmra.mrb[0].mxu0 %v199
    %v1446 = vpop.f32.mrb[0].mxu0
    %v1447 = vadd.f32 0.0, %v1446
    %v1448 = vpop.f32.mrb[0].mxu0
    %v1449 = vadd.f32 0.0, %v1448
    %1450 = vmatprep.mubr.f32.mxu0 %v215
    %1451 = vmatmul.mubr.f32.gmra.mrb[0].mxu0 %v214
    %v1452 = vpop.f32.mrb[0].mxu0
    %v1453 = vadd.f32 0.0, %v1452
    %v1454 = vpop.f32.mrb[0].mxu0
    %v1455 = vadd.f32 0.0, %v1454
    %1456 = vmatprep.mubr.f32.mxu0 %v230
    %1457 = vmatmul.mubr.f32.gmra.mrb[0].mxu0 %v229
    %v1458 = vpop.f32.mrb[0].mxu0
    %v1459 = vadd.f32 0.0, %v1458
    %v1460 = vpop.f32.mrb[0].mxu0
    %v1461 = vadd.f32 0.0, %v1460
    %1462 = vmatprep.mubr.f32.mxu0 %v245
    %1463 = vmatmul.mubr.f32.gmra.mrb[0].mxu0 %v244
    %v1464 = vpop.f32.mrb[0].mxu0
    %v1465 = vadd.f32 0.0, %v1464
    %v1466 = vpop.f32.mrb[0].mxu0
    %v1467 = vadd.f32 0.0, %v1466
    %1468 = vmatprep.mubr.f32.mxu0 %v260
    %1469 = vmatmul.mubr.f32.gmra.mrb[0].mxu0 %v259
    %v1470 = vpop.f32.mrb[0].mxu0
    %v1471 = vadd.f32 0.0, %v1470
    %v1472 = vpop.f32.mrb[0].mxu0
    %v1473 = vadd.f32 0.0, %v1472
    %1474 = vmatprep.mubr.f32.mxu0 %v275
    %1475 = vmatmul.mubr.f32.gmra.mrb[0].mxu0 %v274
    %v1476 = vpop.f32.mrb[0].mxu0
    %v1477 = vadd.f32 0.0, %v1476
    %v1478 = vpop.f32.mrb[0].mxu0
    %v1479 = vadd.f32 0.0, %v1478
    %1480 = vmatprep.mubr.f32.mxu0 %v290
    %1481 = vmatmul.mubr.f32.gmra.mrb[0].mxu0 %v289
    %v1482 = vpop.f32.mrb[0].mxu0
    %v1483 = vadd.f32 0.0, %v1482
    %v1484 = vpop.f32.mrb[0].mxu0
    %v1485 = vadd.f32 0.0, %v1484
    %1486 = vmatprep.mubr.f32.mxu0 %v305
    %1487 = vmatmul.mubr.f32.gmra.mrb[0].mxu0 %v304
    %v1488 = vpop.f32.mrb[0].mxu0
    %v1489 = vadd.f32 0.0, %v1488
    %v1490 = vpop.f32.mrb[0].mxu0
    %v1491 = vadd.f32 0.0, %v1490
    %1492 = vmatprep.mubr.f32.mxu0 %v320
    %1493 = vmatmul.mubr.f32.gmra.mrb[0].mxu0 %v319
    %v1494 = vpop.f32.mrb[0].mxu0
    %v1495 = vadd.f32 0.0, %v1494
    %v1496 = vpop.f32.mrb[0].mxu0
    %v1497 = vadd.f32 0.0, %v1496
    %1498 = vmatprep.mubr.f32.mxu0 %v335
    %1499 = vmatmul.mubr.f32.gmra.mrb[0].mxu0 %v334
    %v1500 = vpop.f32.mrb[0].mxu0
    %v1501 = vadd.f32 0.0, %v1500
    %v1502 = vpop.f32.mrb[0].mxu0
    %v1503 = vadd.f32 0.0, %v1502
    %1504 = vmatprep.mubr.f32.mxu0 %v350
    %1505 = vmatmul.mubr.f32.gmra.mrb[0].mxu0 %v349
    %v1506 = vpop.f32.mrb[0].mxu0
    %v1507 = vadd.f32 0.0, %v1506
    %v1508 = vpop.f32.mrb[0].mxu0
    %v1509 = vadd.f32 0.0, %v1508
    %1510 = vmatprep.mubr.f32.mxu0 %v365
    %1511 = vmatmul.mubr.f32.gmra.mrb[0].mxu0 %v364
    %v1512 = vpop.f32.mrb[0].mxu0
    %v1513 = vadd.f32 0.0, %v1512
    %v1514 = vpop.f32.mrb[0].mxu0
    %v1515 = vadd.f32 0.0, %v1514
    %1516 = vdwg.mxu0
    %1517 = vmatprep.subr.mxu0 %v508
    %1518 = vmatpush1.msra.mxu0 %v507
    %1519 = vmatprep.subr.mxu0 %v512
    %1520 = vmatpush1.msra.mxu0 %v511
    %1521 = vmatprep.subr.mxu0 %v516
    %1522 = vmatpush1.msra.mxu0 %v515
    %1523 = vmatprep.subr.mxu0 %v520
    %1524 = vmatpush1.msra.mxu0 %v519
    %1525 = vmatprep.subr.mxu0 %v524
    %1526 = vmatpush1.msra.mxu0 %v523
    %1527 = vmatprep.subr.mxu0 %v528
    %1528 = vmatpush1.msra.mxu0 %v527
    %1529 = vmatprep.subr.mxu0 %v532
    %1530 = vmatpush1.msra.mxu0 %v531
    %1531 = vmatprep.subr.mxu0 %v536
    %1532 = vmatpush1.msra.mxu0 %v535
    %1533 = vmatprep.subr.mxu0 %v540
    %1534 = vmatpush1.msra.mxu0 %v539
    %1535 = vmatprep.subr.mxu0 %v544
    %1536 = vmatpush1.msra.mxu0 %v543
    %1537 = vmatprep.subr.mxu0 %v548
    %1538 = vmatpush1.msra.mxu0 %v547
    %1539 = vmatprep.subr.mxu0 %v552
    %1540 = vmatpush1.msra.mxu0 %v551
    %1541 = vmatprep.subr.mxu0 %v556
    %1542 = vmatpush1.msra.mxu0 %v555
    %1543 = vmatprep.subr.mxu0 %v560
    %1544 = vmatpush1.msra.mxu0 %v559
    %1545 = vmatprep.subr.mxu0 %v564
    %1546 = vmatpush1.msra.mxu0 %v563
    %1547 = vmatprep.subr.mxu0 %v568
    %1548 = vmatpush1.msra.mxu0 %v567
    %1549 = vmatprep.subr.mxu0 %v572
    %1550 = vmatpush1.msra.mxu0 %v571
    %1551 = vmatprep.subr.mxu0 %v576
    %1552 = vmatpush1.msra.mxu0 %v575
    %1553 = vmatprep.subr.mxu0 %v580
    %1554 = vmatpush1.msra.mxu0 %v579
    %1555 = vmatprep.subr.mxu0 %v584
    %1556 = vmatpush1.msra.mxu0 %v583
    %1557 = vmatprep.subr.mxu0 %v588
    %1558 = vmatpush1.msra.mxu0 %v587
    %1559 = vmatprep.subr.mxu0 %v592
    %1560 = vmatpush1.msra.mxu0 %v591
    %1561 = vmatprep.subr.mxu0 %v596
    %1562 = vmatpush1.msra.mxu0 %v595
    %1563 = vmatprep.subr.mxu0 %v600
    %1564 = vmatpush1.msra.mxu0 %v599
    %1565 = vmatprep.subr.mxu0 %v604
    %1566 = vmatpush1.msra.mxu0 %v603
    %1567 = vmatprep.subr.mxu0 %v608
    %1568 = vmatpush1.msra.mxu0 %v607
    %1569 = vmatprep.subr.mxu0 %v612
    %1570 = vmatpush1.msra.mxu0 %v611
    %1571 = vmatprep.subr.mxu0 %v616
    %1572 = vmatpush1.msra.mxu0 %v615
    %1573 = vmatprep.subr.mxu0 %v620
    %1574 = vmatpush1.msra.mxu0 %v619
    %1575 = vmatprep.subr.mxu0 %v624
    %1576 = vmatpush1.msra.mxu0 %v623
    %1577 = vmatprep.subr.mxu0 %v628
    %1578 = vmatpush1.msra.mxu0 %v627
    %1579 = vmatprep.subr.mxu0 %v632
    %1580 = vmatpush1.msra.mxu0 %v631
    %1581 = vmatprep.mubr.f32.mxu0 %v142
    %1582 = vmatmul.mubr.f32.gmra.mrb[0].mxu0 %v141
    %v1583 = vpop.f32.mrb[0].mxu0
    %v1584 = vadd.f32 %v1423, %v1583
    %v1585 = vpop.f32.mrb[0].mxu0
    %v1586 = vadd.f32 %v1425, %v1585
    %1587 = vmatprep.mubr.f32.mxu0 %v157
    %1588 = vmatmul.mubr.f32.gmra.mrb[0].mxu0 %v156
    %v1589 = vpop.f32.mrb[0].mxu0
    %v1590 = vadd.f32 %v1429, %v1589
    %v1591 = vpop.f32.mrb[0].mxu0
    %v1592 = vadd.f32 %v1431, %v1591
    %1593 = vmatprep.mubr.f32.mxu0 %v172
    %1594 = vmatmul.mubr.f32.gmra.mrb[0].mxu0 %v171
    %v1595 = vpop.f32.mrb[0].mxu0
    %v1596 = vadd.f32 %v1435, %v1595
    %v1597 = vpop.f32.mrb[0].mxu0
    %v1598 = vadd.f32 %v1437, %v1597
    %1599 = vmatprep.mubr.f32.mxu0 %v187
    %1600 = vmatmul.mubr.f32.gmra.mrb[0].mxu0 %v186
    %v1601 = vpop.f32.mrb[0].mxu0
    %v1602 = vadd.f32 %v1441, %v1601
    %v1603 = vpop.f32.mrb[0].mxu0
    %v1604 = vadd.f32 %v1443, %v1603
    %1605 = vmatprep.mubr.f32.mxu0 %v202
    %1606 = vmatmul.mubr.f32.gmra.mrb[0].mxu0 %v201
    %v1607 = vpop.f32.mrb[0].mxu0
    %v1608 = vadd.f32 %v1447, %v1607
    %v1609 = vpop.f32.mrb[0].mxu0
    %v1610 = vadd.f32 %v1449, %v1609
    %1611 = vmatprep.mubr.f32.mxu0 %v217
    %1612 = vmatmul.mubr.f32.gmra.mrb[0].mxu0 %v216
    %v1613 = vpop.f32.mrb[0].mxu0
    %v1614 = vadd.f32 %v1453, %v1613
    %v1615 = vpop.f32.mrb[0].mxu0
    %v1616 = vadd.f32 %v1455, %v1615
    %1617 = vmatprep.mubr.f32.mxu0 %v232
    %1618 = vmatmul.mubr.f32.gmra.mrb[0].mxu0 %v231
    %v1619 = vpop.f32.mrb[0].mxu0
    %v1620 = vadd.f32 %v1459, %v1619
    %v1621 = vpop.f32.mrb[0].mxu0
    %v1622 = vadd.f32 %v1461, %v1621
    %1623 = vmatprep.mubr.f32.mxu0 %v247
    %1624 = vmatmul.mubr.f32.gmra.mrb[0].mxu0 %v246
    %v1625 = vpop.f32.mrb[0].mxu0
    %v1626 = vadd.f32 %v1465, %v1625
    %v1627 = vpop.f32.mrb[0].mxu0
    %v1628 = vadd.f32 %v1467, %v1627
    %1629 = vmatprep.mubr.f32.mxu0 %v262
    %1630 = vmatmul.mubr.f32.gmra.mrb[0].mxu0 %v261
    %v1631 = vpop.f32.mrb[0].mxu0
    %v1632 = vadd.f32 %v1471, %v1631
    %v1633 = vpop.f32.mrb[0].mxu0
    %v1634 = vadd.f32 %v1473, %v1633
    %1635 = vmatprep.mubr.f32.mxu0 %v277
    %1636 = vmatmul.mubr.f32.gmra.mrb[0].mxu0 %v276
    %v1637 = vpop.f32.mrb[0].mxu0
    %v1638 = vadd.f32 %v1477, %v1637
    %v1639 = vpop.f32.mrb[0].mxu0
    %v1640 = vadd.f32 %v1479, %v1639
    %1641 = vmatprep.mubr.f32.mxu0 %v292
    %1642 = vmatmul.mubr.f32.gmra.mrb[0].mxu0 %v291
    %v1643 = vpop.f32.mrb[0].mxu0
    %v1644 = vadd.f32 %v1483, %v1643
    %v1645 = vpop.f32.mrb[0].mxu0
    %v1646 = vadd.f32 %v1485, %v1645
    %1647 = vmatprep.mubr.f32.mxu0 %v307
    %1648 = vmatmul.mubr.f32.gmra.mrb[0].mxu0 %v306
    %v1649 = vpop.f32.mrb[0].mxu0
    %v1650 = vadd.f32 %v1489, %v1649
    %v1651 = vpop.f32.mrb[0].mxu0
    %v1652 = vadd.f32 %v1491, %v1651
    %1653 = vmatprep.mubr.f32.mxu0 %v322
    %1654 = vmatmul.mubr.f32.gmra.mrb[0].mxu0 %v321
    %v1655 = vpop.f32.mrb[0].mxu0
    %v1656 = vadd.f32 %v1495, %v1655
    %v1657 = vpop.f32.mrb[0].mxu0
    %v1658 = vadd.f32 %v1497, %v1657
    %1659 = vmatprep.mubr.f32.mxu0 %v337
    %1660 = vmatmul.mubr.f32.gmra.mrb[0].mxu0 %v336
    %v1661 = vpop.f32.mrb[0].mxu0
    %v1662 = vadd.f32 %v1501, %v1661
    %v1663 = vpop.f32.mrb[0].mxu0
    %v1664 = vadd.f32 %v1503, %v1663
    %1665 = vmatprep.mubr.f32.mxu0 %v352
    %1666 = vmatmul.mubr.f32.gmra.mrb[0].mxu0 %v351
    %v1667 = vpop.f32.mrb[0].mxu0
    %v1668 = vadd.f32 %v1507, %v1667
    %v1669 = vpop.f32.mrb[0].mxu0
    %v1670 = vadd.f32 %v1509, %v1669
    %1671 = vmatprep.mubr.f32.mxu0 %v367
    %1672 = vmatmul.mubr.f32.gmra.mrb[0].mxu0 %v366
    %v1673 = vpop.f32.mrb[0].mxu0
    %v1674 = vadd.f32 %v1513, %v1673
    %v1675 = vpop.f32.mrb[0].mxu0
    %v1676 = vadd.f32 %v1515, %v1675
    %1677 = vdwg.mxu0
    %1678 = vmatprep.subr.mxu0 %v636
    %1679 = vmatpush1.msra.mxu0 %v635
    %1680 = vmatprep.subr.mxu0 %v640
    %1681 = vmatpush1.msra.mxu0 %v639
    %1682 = vmatprep.subr.mxu0 %v644
    %1683 = vmatpush1.msra.mxu0 %v643
    %1684 = vmatprep.subr.mxu0 %v648
    %1685 = vmatpush1.msra.mxu0 %v647
    %1686 = vmatprep.subr.mxu0 %v652
    %1687 = vmatpush1.msra.mxu0 %v651
    %1688 = vmatprep.subr.mxu0 %v656
    %1689 = vmatpush1.msra.mxu0 %v655
    %1690 = vmatprep.subr.mxu0 %v660
    %1691 = vmatpush1.msra.mxu0 %v659
    %1692 = vmatprep.subr.mxu0 %v664
    %1693 = vmatpush1.msra.mxu0 %v663
    %1694 = vmatprep.subr.mxu0 %v668
    %1695 = vmatpush1.msra.mxu0 %v667
    %1696 = vmatprep.subr.mxu0 %v672
    %1697 = vmatpush1.msra.mxu0 %v671
    %1698 = vmatprep.subr.mxu0 %v676
    %1699 = vmatpush1.msra.mxu0 %v675
    %1700 = vmatprep.subr.mxu0 %v680
    %1701 = vmatpush1.msra.mxu0 %v679
    %1702 = vmatprep.subr.mxu0 %v684
    %1703 = vmatpush1.msra.mxu0 %v683
    %1704 = vmatprep.subr.mxu0 %v688
    %1705 = vmatpush1.msra.mxu0 %v687
    %1706 = vmatprep.subr.mxu0 %v692
    %1707 = vmatpush1.msra.mxu0 %v691
    %1708 = vmatprep.subr.mxu0 %v696
    %1709 = vmatpush1.msra.mxu0 %v695
    %1710 = vmatprep.subr.mxu0 %v700
    %1711 = vmatpush1.msra.mxu0 %v699
    %1712 = vmatprep.subr.mxu0 %v704
    %1713 = vmatpush1.msra.mxu0 %v703
    %1714 = vmatprep.subr.mxu0 %v708
    %1715 = vmatpush1.msra.mxu0 %v707
    %1716 = vmatprep.subr.mxu0 %v712
    %1717 = vmatpush1.msra.mxu0 %v711
    %1718 = vmatprep.subr.mxu0 %v716
    %1719 = vmatpush1.msra.mxu0 %v715
    %1720 = vmatprep.subr.mxu0 %v720
    %1721 = vmatpush1.msra.mxu0 %v719
    %1722 = vmatprep.subr.mxu0 %v724
    %1723 = vmatpush1.msra.mxu0 %v723
    %1724 = vmatprep.subr.mxu0 %v728
    %1725 = vmatpush1.msra.mxu0 %v727
    %1726 = vmatprep.subr.mxu0 %v732
    %1727 = vmatpush1.msra.mxu0 %v731
    %1728 = vmatprep.subr.mxu0 %v736
    %1729 = vmatpush1.msra.mxu0 %v735
    %1730 = vmatprep.subr.mxu0 %v740
    %1731 = vmatpush1.msra.mxu0 %v739
    %1732 = vmatprep.subr.mxu0 %v744
    %1733 = vmatpush1.msra.mxu0 %v743
    %1734 = vmatprep.subr.mxu0 %v748
    %1735 = vmatpush1.msra.mxu0 %v747
    %1736 = vmatprep.subr.mxu0 %v752
    %1737 = vmatpush1.msra.mxu0 %v751
    %1738 = vmatprep.subr.mxu0 %v756
    %1739 = vmatpush1.msra.mxu0 %v755
    %1740 = vmatprep.subr.mxu0 %v760
    %1741 = vmatpush1.msra.mxu0 %v759
    %1742 = vmatprep.mubr.f32.mxu0 %v144
    %1743 = vmatmul.mubr.f32.gmra.mrb[0].mxu0 %v143
    %v1744 = vpop.f32.mrb[0].mxu0
    %v1745 = vadd.f32 %v1584, %v1744
    %v1746 = vpop.f32.mrb[0].mxu0
    %v1747 = vadd.f32 %v1586, %v1746
    %1748 = vmatprep.mubr.f32.mxu0 %v159
    %1749 = vmatmul.mubr.f32.gmra.mrb[0].mxu0 %v158
    %v1750 = vpop.f32.mrb[0].mxu0
    %v1751 = vadd.f32 %v1590, %v1750
    %v1752 = vpop.f32.mrb[0].mxu0
    %v1753 = vadd.f32 %v1592, %v1752
    %1754 = vmatprep.mubr.f32.mxu0 %v174
    %1755 = vmatmul.mubr.f32.gmra.mrb[0].mxu0 %v173
    %v1756 = vpop.f32.mrb[0].mxu0
    %v1757 = vadd.f32 %v1596, %v1756
    %v1758 = vpop.f32.mrb[0].mxu0
    %v1759 = vadd.f32 %v1598, %v1758
    %1760 = vmatprep.mubr.f32.mxu0 %v189
    %1761 = vmatmul.mubr.f32.gmra.mrb[0].mxu0 %v188
    %v1762 = vpop.f32.mrb[0].mxu0
    %v1763 = vadd.f32 %v1602, %v1762
    %v1764 = vpop.f32.mrb[0].mxu0
    %v1765 = vadd.f32 %v1604, %v1764
    %1766 = vmatprep.mubr.f32.mxu0 %v204
    %1767 = vmatmul.mubr.f32.gmra.mrb[0].mxu0 %v203
    %v1768 = vpop.f32.mrb[0].mxu0
    %v1769 = vadd.f32 %v1608, %v1768
    %v1770 = vpop.f32.mrb[0].mxu0
    %v1771 = vadd.f32 %v1610, %v1770
    %1772 = vmatprep.mubr.f32.mxu0 %v219
    %1773 = vmatmul.mubr.f32.gmra.mrb[0].mxu0 %v218
    %v1774 = vpop.f32.mrb[0].mxu0
    %v1775 = vadd.f32 %v1614, %v1774
    %v1776 = vpop.f32.mrb[0].mxu0
    %v1777 = vadd.f32 %v1616, %v1776
    %1778 = vmatprep.mubr.f32.mxu0 %v234
    %1779 = vmatmul.mubr.f32.gmra.mrb[0].mxu0 %v233
    %v1780 = vpop.f32.mrb[0].mxu0
    %v1781 = vadd.f32 %v1620, %v1780
    %v1782 = vpop.f32.mrb[0].mxu0
    %v1783 = vadd.f32 %v1622, %v1782
    %1784 = vmatprep.mubr.f32.mxu0 %v249
    %1785 = vmatmul.mubr.f32.gmra.mrb[0].mxu0 %v248
    %v1786 = vpop.f32.mrb[0].mxu0
    %v1787 = vadd.f32 %v1626, %v1786
    %v1788 = vpop.f32.mrb[0].mxu0
    %v1789 = vadd.f32 %v1628, %v1788
    %1790 = vmatprep.mubr.f32.mxu0 %v264
    %1791 = vmatmul.mubr.f32.gmra.mrb[0].mxu0 %v263
    %v1792 = vpop.f32.mrb[0].mxu0
    %v1793 = vadd.f32 %v1632, %v1792
    %v1794 = vpop.f32.mrb[0].mxu0
    %v1795 = vadd.f32 %v1634, %v1794
    %1796 = vmatprep.mubr.f32.mxu0 %v279
    %1797 = vmatmul.mubr.f32.gmra.mrb[0].mxu0 %v278
    %v1798 = vpop.f32.mrb[0].mxu0
    %v1799 = vadd.f32 %v1638, %v1798
    %v1800 = vpop.f32.mrb[0].mxu0
    %v1801 = vadd.f32 %v1640, %v1800
    %1802 = vmatprep.mubr.f32.mxu0 %v294
    %1803 = vmatmul.mubr.f32.gmra.mrb[0].mxu0 %v293
    %v1804 = vpop.f32.mrb[0].mxu0
    %v1805 = vadd.f32 %v1644, %v1804
    %v1806 = vpop.f32.mrb[0].mxu0
    %v1807 = vadd.f32 %v1646, %v1806
    %1808 = vmatprep.mubr.f32.mxu0 %v309
    %1809 = vmatmul.mubr.f32.gmra.mrb[0].mxu0 %v308
    %v1810 = vpop.f32.mrb[0].mxu0
    %v1811 = vadd.f32 %v1650, %v1810
    %v1812 = vpop.f32.mrb[0].mxu0
    %v1813 = vadd.f32 %v1652, %v1812
    %1814 = vmatprep.mubr.f32.mxu0 %v324
    %1815 = vmatmul.mubr.f32.gmra.mrb[0].mxu0 %v323
    %v1816 = vpop.f32.mrb[0].mxu0
    %v1817 = vadd.f32 %v1656, %v1816
    %v1818 = vpop.f32.mrb[0].mxu0
    %v1819 = vadd.f32 %v1658, %v1818
    %1820 = vmatprep.mubr.f32.mxu0 %v339
    %1821 = vmatmul.mubr.f32.gmra.mrb[0].mxu0 %v338
    %v1822 = vpop.f32.mrb[0].mxu0
    %v1823 = vadd.f32 %v1662, %v1822
    %v1824 = vpop.f32.mrb[0].mxu0
    %v1825 = vadd.f32 %v1664, %v1824
    %1826 = vmatprep.mubr.f32.mxu0 %v354
    %1827 = vmatmul.mubr.f32.gmra.mrb[0].mxu0 %v353
    %v1828 = vpop.f32.mrb[0].mxu0
    %v1829 = vadd.f32 %v1668, %v1828
    %v1830 = vpop.f32.mrb[0].mxu0
    %v1831 = vadd.f32 %v1670, %v1830
    %1832 = vmatprep.mubr.f32.mxu0 %v369
    %1833 = vmatmul.mubr.f32.gmra.mrb[0].mxu0 %v368
    %v1834 = vpop.f32.mrb[0].mxu0
    %v1835 = vadd.f32 %v1674, %v1834
    %v1836 = vpop.f32.mrb[0].mxu0
    %v1837 = vadd.f32 %v1676, %v1836
    %1838 = vdwg.mxu0
    %1839 = vmatprep.subr.mxu0 %v764
    %1840 = vmatpush1.msra.mxu0 %v763
    %1841 = vmatprep.subr.mxu0 %v768
    %1842 = vmatpush1.msra.mxu0 %v767
    %1843 = vmatprep.subr.mxu0 %v772
    %1844 = vmatpush1.msra.mxu0 %v771
    %1845 = vmatprep.subr.mxu0 %v776
    %1846 = vmatpush1.msra.mxu0 %v775
    %1847 = vmatprep.subr.mxu0 %v780
    %1848 = vmatpush1.msra.mxu0 %v779
    %1849 = vmatprep.subr.mxu0 %v784
    %1850 = vmatpush1.msra.mxu0 %v783
    %1851 = vmatprep.subr.mxu0 %v788
    %1852 = vmatpush1.msra.mxu0 %v787
    %1853 = vmatprep.subr.mxu0 %v792
    %1854 = vmatpush1.msra.mxu0 %v791
    %1855 = vmatprep.subr.mxu0 %v796
    %1856 = vmatpush1.msra.mxu0 %v795
    %1857 = vmatprep.subr.mxu0 %v800
    %1858 = vmatpush1.msra.mxu0 %v799
    %1859 = vmatprep.subr.mxu0 %v804
    %1860 = vmatpush1.msra.mxu0 %v803
    %1861 = vmatprep.subr.mxu0 %v808
    %1862 = vmatpush1.msra.mxu0 %v807
    %1863 = vmatprep.subr.mxu0 %v812
    %1864 = vmatpush1.msra.mxu0 %v811
    %1865 = vmatprep.subr.mxu0 %v816
    %1866 = vmatpush1.msra.mxu0 %v815
    %1867 = vmatprep.subr.mxu0 %v820
    %1868 = vmatpush1.msra.mxu0 %v819
    %1869 = vmatprep.subr.mxu0 %v824
    %1870 = vmatpush1.msra.mxu0 %v823
    %1871 = vmatprep.subr.mxu0 %v828
    %1872 = vmatpush1.msra.mxu0 %v827
    %1873 = vmatprep.subr.mxu0 %v832
    %1874 = vmatpush1.msra.mxu0 %v831
    %1875 = vmatprep.subr.mxu0 %v836
    %1876 = vmatpush1.msra.mxu0 %v835
    %1877 = vmatprep.subr.mxu0 %v840
    %1878 = vmatpush1.msra.mxu0 %v839
    %1879 = vmatprep.subr.mxu0 %v844
    %1880 = vmatpush1.msra.mxu0 %v843
    %1881 = vmatprep.subr.mxu0 %v848
    %1882 = vmatpush1.msra.mxu0 %v847
    %1883 = vmatprep.subr.mxu0 %v852
    %1884 = vmatpush1.msra.mxu0 %v851
    %1885 = vmatprep.subr.mxu0 %v856
    %1886 = vmatpush1.msra.mxu0 %v855
    %1887 = vmatprep.subr.mxu0 %v860
    %1888 = vmatpush1.msra.mxu0 %v859
    %1889 = vmatprep.subr.mxu0 %v864
    %1890 = vmatpush1.msra.mxu0 %v863
    %1891 = vmatprep.subr.mxu0 %v868
    %1892 = vmatpush1.msra.mxu0 %v867
    %1893 = vmatprep.subr.mxu0 %v872
    %1894 = vmatpush1.msra.mxu0 %v871
    %1895 = vmatprep.subr.mxu0 %v876
    %1896 = vmatpush1.msra.mxu0 %v875
    %1897 = vmatprep.subr.mxu0 %v880
    %1898 = vmatpush1.msra.mxu0 %v879
    %1899 = vmatprep.subr.mxu0 %v884
    %1900 = vmatpush1.msra.mxu0 %v883
    %1901 = vmatprep.subr.mxu0 %v888
    %1902 = vmatpush1.msra.mxu0 %v887
    %1903 = vmatprep.mubr.f32.mxu0 %v146
    %1904 = vmatmul.mubr.f32.gmra.mrb[0].mxu0 %v145
    %v1905 = vpop.f32.mrb[0].mxu0
    %v1906 = vadd.f32 %v1745, %v1905
    %v1907 = vpop.f32.mrb[0].mxu0
    %v1908 = vadd.f32 %v1747, %v1907
    %1909 = vmatprep.mubr.f32.mxu0 %v161
    %1910 = vmatmul.mubr.f32.gmra.mrb[0].mxu0 %v160
    %v1911 = vpop.f32.mrb[0].mxu0
    %v1912 = vadd.f32 %v1751, %v1911
    %v1913 = vpop.f32.mrb[0].mxu0
    %v1914 = vadd.f32 %v1753, %v1913
    %1915 = vmatprep.mubr.f32.mxu0 %v176
    %1916 = vmatmul.mubr.f32.gmra.mrb[0].mxu0 %v175
    %v1917 = vpop.f32.mrb[0].mxu0
    %v1918 = vadd.f32 %v1757, %v1917
    %v1919 = vpop.f32.mrb[0].mxu0
    %v1920 = vadd.f32 %v1759, %v1919
    %1921 = vmatprep.mubr.f32.mxu0 %v191
    %1922 = vmatmul.mubr.f32.gmra.mrb[0].mxu0 %v190
    %v1923 = vpop.f32.mrb[0].mxu0
    %v1924 = vadd.f32 %v1763, %v1923
    %v1925 = vpop.f32.mrb[0].mxu0
    %v1926 = vadd.f32 %v1765, %v1925
    %1927 = vmatprep.mubr.f32.mxu0 %v206
    %1928 = vmatmul.mubr.f32.gmra.mrb[0].mxu0 %v205
    %v1929 = vpop.f32.mrb[0].mxu0
    %v1930 = vadd.f32 %v1769, %v1929
    %v1931 = vpop.f32.mrb[0].mxu0
    %v1932 = vadd.f32 %v1771, %v1931
    %1933 = vmatprep.mubr.f32.mxu0 %v221
    %1934 = vmatmul.mubr.f32.gmra.mrb[0].mxu0 %v220
    %v1935 = vpop.f32.mrb[0].mxu0
    %v1936 = vadd.f32 %v1775, %v1935
    %v1937 = vpop.f32.mrb[0].mxu0
    %v1938 = vadd.f32 %v1777, %v1937
    %1939 = vmatprep.mubr.f32.mxu0 %v236
    %1940 = vmatmul.mubr.f32.gmra.mrb[0].mxu0 %v235
    %v1941 = vpop.f32.mrb[0].mxu0
    %v1942 = vadd.f32 %v1781, %v1941
    %v1943 = vpop.f32.mrb[0].mxu0
    %v1944 = vadd.f32 %v1783, %v1943
    %1945 = vmatprep.mubr.f32.mxu0 %v251
    %1946 = vmatmul.mubr.f32.gmra.mrb[0].mxu0 %v250
    %v1947 = vpop.f32.mrb[0].mxu0
    %v1948 = vadd.f32 %v1787, %v1947
    %v1949 = vpop.f32.mrb[0].mxu0
    %v1950 = vadd.f32 %v1789, %v1949
    %1951 = vmatprep.mubr.f32.mxu0 %v266
    %1952 = vmatmul.mubr.f32.gmra.mrb[0].mxu0 %v265
    %v1953 = vpop.f32.mrb[0].mxu0
    %v1954 = vadd.f32 %v1793, %v1953
    %v1955 = vpop.f32.mrb[0].mxu0
    %v1956 = vadd.f32 %v1795, %v1955
    %1957 = vmatprep.mubr.f32.mxu0 %v281
    %1958 = vmatmul.mubr.f32.gmra.mrb[0].mxu0 %v280
    %v1959 = vpop.f32.mrb[0].mxu0
    %v1960 = vadd.f32 %v1799, %v1959
    %v1961 = vpop.f32.mrb[0].mxu0
    %v1962 = vadd.f32 %v1801, %v1961
    %1963 = vmatprep.mubr.f32.mxu0 %v296
    %1964 = vmatmul.mubr.f32.gmra.mrb[0].mxu0 %v295
    %v1965 = vpop.f32.mrb[0].mxu0
    %v1966 = vadd.f32 %v1805, %v1965
    %v1967 = vpop.f32.mrb[0].mxu0
    %v1968 = vadd.f32 %v1807, %v1967
    %1969 = vmatprep.mubr.f32.mxu0 %v311
    %1970 = vmatmul.mubr.f32.gmra.mrb[0].mxu0 %v310
    %v1971 = vpop.f32.mrb[0].mxu0
    %v1972 = vadd.f32 %v1811, %v1971
    %v1973 = vpop.f32.mrb[0].mxu0
    %v1974 = vadd.f32 %v1813, %v1973
    %1975 = vmatprep.mubr.f32.mxu0 %v326
    %1976 = vmatmul.mubr.f32.gmra.mrb[0].mxu0 %v325
    %v1977 = vpop.f32.mrb[0].mxu0
    %v1978 = vadd.f32 %v1817, %v1977
    %v1979 = vpop.f32.mrb[0].mxu0
    %v1980 = vadd.f32 %v1819, %v1979
    %1981 = vmatprep.mubr.f32.mxu0 %v341
    %1982 = vmatmul.mubr.f32.gmra.mrb[0].mxu0 %v340
    %v1983 = vpop.f32.mrb[0].mxu0
    %v1984 = vadd.f32 %v1823, %v1983
    %v1985 = vpop.f32.mrb[0].mxu0
    %v1986 = vadd.f32 %v1825, %v1985
    %1987 = vmatprep.mubr.f32.mxu0 %v356
    %1988 = vmatmul.mubr.f32.gmra.mrb[0].mxu0 %v355
    %v1989 = vpop.f32.mrb[0].mxu0
    %v1990 = vadd.f32 %v1829, %v1989
    %v1991 = vpop.f32.mrb[0].mxu0
    %v1992 = vadd.f32 %v1831, %v1991
    %1993 = vmatprep.mubr.f32.mxu0 %v371
    %1994 = vmatmul.mubr.f32.gmra.mrb[0].mxu0 %v370
    %v1995 = vpop.f32.mrb[0].mxu0
    %v1996 = vadd.f32 %v1835, %v1995
    %v1997 = vpop.f32.mrb[0].mxu0
    %v1998 = vadd.f32 %v1837, %v1997
    %1999 = vdwg.mxu0
    %2000 = vmatprep.subr.mxu0 %v892
    %2001 = vmatpush1.msra.mxu0 %v891
    %2002 = vmatprep.subr.mxu0 %v896
    %2003 = vmatpush1.msra.mxu0 %v895
    %2004 = vmatprep.subr.mxu0 %v900
    %2005 = vmatpush1.msra.mxu0 %v899
    %2006 = vmatprep.subr.mxu0 %v904
    %2007 = vmatpush1.msra.mxu0 %v903
    %2008 = vmatprep.subr.mxu0 %v908
    %2009 = vmatpush1.msra.mxu0 %v907
    %2010 = vmatprep.subr.mxu0 %v912
    %2011 = vmatpush1.msra.mxu0 %v911
    %2012 = vmatprep.subr.mxu0 %v916
    %2013 = vmatpush1.msra.mxu0 %v915
    %2014 = vmatprep.subr.mxu0 %v920
    %2015 = vmatpush1.msra.mxu0 %v919
    %2016 = vmatprep.subr.mxu0 %v924
    %2017 = vmatpush1.msra.mxu0 %v923
    %2018 = vmatprep.subr.mxu0 %v928
    %2019 = vmatpush1.msra.mxu0 %v927
    %2020 = vmatprep.subr.mxu0 %v932
    %2021 = vmatpush1.msra.mxu0 %v931
    %2022 = vmatprep.subr.mxu0 %v936
    %2023 = vmatpush1.msra.mxu0 %v935
    %2024 = vmatprep.subr.mxu0 %v940
    %2025 = vmatpush1.msra.mxu0 %v939
    %2026 = vmatprep.subr.mxu0 %v944
    %2027 = vmatpush1.msra.mxu0 %v943
    %2028 = vmatprep.subr.mxu0 %v948
    %2029 = vmatpush1.msra.mxu0 %v947
    %2030 = vmatprep.subr.mxu0 %v952
    %2031 = vmatpush1.msra.mxu0 %v951
    %2032 = vmatprep.subr.mxu0 %v956
    %2033 = vmatpush1.msra.mxu0 %v955
    %2034 = vmatprep.subr.mxu0 %v960
    %2035 = vmatpush1.msra.mxu0 %v959
    %2036 = vmatprep.subr.mxu0 %v964
    %2037 = vmatpush1.msra.mxu0 %v963
    %2038 = vmatprep.subr.mxu0 %v968
    %2039 = vmatpush1.msra.mxu0 %v967
    %2040 = vmatprep.subr.mxu0 %v972
    %2041 = vmatpush1.msra.mxu0 %v971
    %2042 = vmatprep.subr.mxu0 %v976
    %2043 = vmatpush1.msra.mxu0 %v975
    %2044 = vmatprep.subr.mxu0 %v980
    %2045 = vmatpush1.msra.mxu0 %v979
    %2046 = vmatprep.subr.mxu0 %v984
    %2047 = vmatpush1.msra.mxu0 %v983
    %2048 = vmatprep.subr.mxu0 %v988
    %2049 = vmatpush1.msra.mxu0 %v987
    %2050 = vmatprep.subr.mxu0 %v992
    %2051 = vmatpush1.msra.mxu0 %v991
    %2052 = vmatprep.subr.mxu0 %v996
    %2053 = vmatpush1.msra.mxu0 %v995
    %2054 = vmatprep.subr.mxu0 %v1000
    %2055 = vmatpush1.msra.mxu0 %v999
    %2056 = vmatprep.subr.mxu0 %v1004
    %2057 = vmatpush1.msra.mxu0 %v1003
    %2058 = vmatprep.subr.mxu0 %v1008
    %2059 = vmatpush1.msra.mxu0 %v1007
    %2060 = vmatprep.subr.mxu0 %v1012
    %2061 = vmatpush1.msra.mxu0 %v1011
    %2062 = vmatprep.subr.mxu0 %v1016
    %2063 = vmatpush1.msra.mxu0 %v1015
    %2064 = vmatprep.mubr.f32.mxu0 %v148
    %2065 = vmatmul.mubr.f32.gmra.mrb[0].mxu0 %v147
    %v2066 = vpop.f32.mrb[0].mxu0
    %v2067 = vadd.f32 %v1906, %v2066
    %v2068 = vpop.f32.mrb[0].mxu0
    %v2069 = vadd.f32 %v1908, %v2068
    %2070 = vmatprep.mubr.f32.mxu0 %v163
    %2071 = vmatmul.mubr.f32.gmra.mrb[0].mxu0 %v162
    %v2072 = vpop.f32.mrb[0].mxu0
    %v2073 = vadd.f32 %v1912, %v2072
    %v2074 = vpop.f32.mrb[0].mxu0
    %v2075 = vadd.f32 %v1914, %v2074
    %2076 = vmatprep.mubr.f32.mxu0 %v178
    %2077 = vmatmul.mubr.f32.gmra.mrb[0].mxu0 %v177
    %v2078 = vpop.f32.mrb[0].mxu0
    %v2079 = vadd.f32 %v1918, %v2078
    %v2080 = vpop.f32.mrb[0].mxu0
    %v2081 = vadd.f32 %v1920, %v2080
    %2082 = vmatprep.mubr.f32.mxu0 %v193
    %2083 = vmatmul.mubr.f32.gmra.mrb[0].mxu0 %v192
    %v2084 = vpop.f32.mrb[0].mxu0
    %v2085 = vadd.f32 %v1924, %v2084
    %v2086 = vpop.f32.mrb[0].mxu0
    %v2087 = vadd.f32 %v1926, %v2086
    %2088 = vmatprep.mubr.f32.mxu0 %v208
    %2089 = vmatmul.mubr.f32.gmra.mrb[0].mxu0 %v207
    %v2090 = vpop.f32.mrb[0].mxu0
    %v2091 = vadd.f32 %v1930, %v2090
    %v2092 = vpop.f32.mrb[0].mxu0
    %v2093 = vadd.f32 %v1932, %v2092
    %2094 = vmatprep.mubr.f32.mxu0 %v223
    %2095 = vmatmul.mubr.f32.gmra.mrb[0].mxu0 %v222
    %v2096 = vpop.f32.mrb[0].mxu0
    %v2097 = vadd.f32 %v1936, %v2096
    %v2098 = vpop.f32.mrb[0].mxu0
    %v2099 = vadd.f32 %v1938, %v2098
    %2100 = vmatprep.mubr.f32.mxu0 %v238
    %2101 = vmatmul.mubr.f32.gmra.mrb[0].mxu0 %v237
    %v2102 = vpop.f32.mrb[0].mxu0
    %v2103 = vadd.f32 %v1942, %v2102
    %v2104 = vpop.f32.mrb[0].mxu0
    %v2105 = vadd.f32 %v1944, %v2104
    %2106 = vmatprep.mubr.f32.mxu0 %v253
    %2107 = vmatmul.mubr.f32.gmra.mrb[0].mxu0 %v252
    %v2108 = vpop.f32.mrb[0].mxu0
    %v2109 = vadd.f32 %v1948, %v2108
    %v2110 = vpop.f32.mrb[0].mxu0
    %v2111 = vadd.f32 %v1950, %v2110
    %2112 = vmatprep.mubr.f32.mxu0 %v268
    %2113 = vmatmul.mubr.f32.gmra.mrb[0].mxu0 %v267
    %v2114 = vpop.f32.mrb[0].mxu0
    %v2115 = vadd.f32 %v1954, %v2114
    %v2116 = vpop.f32.mrb[0].mxu0
    %v2117 = vadd.f32 %v1956, %v2116
    %2118 = vmatprep.mubr.f32.mxu0 %v283
    %2119 = vmatmul.mubr.f32.gmra.mrb[0].mxu0 %v282
    %v2120 = vpop.f32.mrb[0].mxu0
    %v2121 = vadd.f32 %v1960, %v2120
    %v2122 = vpop.f32.mrb[0].mxu0
    %v2123 = vadd.f32 %v1962, %v2122
    %2124 = vmatprep.mubr.f32.mxu0 %v298
    %2125 = vmatmul.mubr.f32.gmra.mrb[0].mxu0 %v297
    %v2126 = vpop.f32.mrb[0].mxu0
    %v2127 = vadd.f32 %v1966, %v2126
    %v2128 = vpop.f32.mrb[0].mxu0
    %v2129 = vadd.f32 %v1968, %v2128
    %2130 = vmatprep.mubr.f32.mxu0 %v313
    %2131 = vmatmul.mubr.f32.gmra.mrb[0].mxu0 %v312
    %v2132 = vpop.f32.mrb[0].mxu0
    %v2133 = vadd.f32 %v1972, %v2132
    %v2134 = vpop.f32.mrb[0].mxu0
    %v2135 = vadd.f32 %v1974, %v2134
    %2136 = vmatprep.mubr.f32.mxu0 %v328
    %2137 = vmatmul.mubr.f32.gmra.mrb[0].mxu0 %v327
    %v2138 = vpop.f32.mrb[0].mxu0
    %v2139 = vadd.f32 %v1978, %v2138
    %v2140 = vpop.f32.mrb[0].mxu0
    %v2141 = vadd.f32 %v1980, %v2140
    %2142 = vmatprep.mubr.f32.mxu0 %v343
    %2143 = vmatmul.mubr.f32.gmra.mrb[0].mxu0 %v342
    %v2144 = vpop.f32.mrb[0].mxu0
    %v2145 = vadd.f32 %v1984, %v2144
    %v2146 = vpop.f32.mrb[0].mxu0
    %v2147 = vadd.f32 %v1986, %v2146
    %2148 = vmatprep.mubr.f32.mxu0 %v358
    %2149 = vmatmul.mubr.f32.gmra.mrb[0].mxu0 %v357
    %v2150 = vpop.f32.mrb[0].mxu0
    %v2151 = vadd.f32 %v1990, %v2150
    %v2152 = vpop.f32.mrb[0].mxu0
    %v2153 = vadd.f32 %v1992, %v2152
    %2154 = vmatprep.mubr.f32.mxu0 %v373
    %2155 = vmatmul.mubr.f32.gmra.mrb[0].mxu0 %v372
    %v2156 = vpop.f32.mrb[0].mxu0
    %v2157 = vadd.f32 %v1996, %v2156
    %v2158 = vpop.f32.mrb[0].mxu0
    %v2159 = vadd.f32 %v1998, %v2158
    %2160 = vdwg.mxu0
    %2161 = vmatprep.subr.mxu0 %v1020
    %2162 = vmatpush1.msra.mxu0 %v1019
    %2163 = vmatprep.subr.mxu0 %v1024
    %2164 = vmatpush1.msra.mxu0 %v1023
    %2165 = vmatprep.subr.mxu0 %v1028
    %2166 = vmatpush1.msra.mxu0 %v1027
    %2167 = vmatprep.subr.mxu0 %v1032
    %2168 = vmatpush1.msra.mxu0 %v1031
    %2169 = vmatprep.subr.mxu0 %v1036
    %2170 = vmatpush1.msra.mxu0 %v1035
    %2171 = vmatprep.subr.mxu0 %v1040
    %2172 = vmatpush1.msra.mxu0 %v1039
    %2173 = vmatprep.subr.mxu0 %v1044
    %2174 = vmatpush1.msra.mxu0 %v1043
    %2175 = vmatprep.subr.mxu0 %v1048
    %2176 = vmatpush1.msra.mxu0 %v1047
    %2177 = vmatprep.subr.mxu0 %v1052
    %2178 = vmatpush1.msra.mxu0 %v1051
    %2179 = vmatprep.subr.mxu0 %v1056
    %2180 = vmatpush1.msra.mxu0 %v1055
    %2181 = vmatprep.subr.mxu0 %v1060
    %2182 = vmatpush1.msra.mxu0 %v1059
    %2183 = vmatprep.subr.mxu0 %v1064
    %2184 = vmatpush1.msra.mxu0 %v1063
    %2185 = vmatprep.subr.mxu0 %v1068
    %2186 = vmatpush1.msra.mxu0 %v1067
    %2187 = vmatprep.subr.mxu0 %v1072
    %2188 = vmatpush1.msra.mxu0 %v1071
    %2189 = vmatprep.subr.mxu0 %v1076
    %2190 = vmatpush1.msra.mxu0 %v1075
    %2191 = vmatprep.subr.mxu0 %v1080
    %2192 = vmatpush1.msra.mxu0 %v1079
    %2193 = vmatprep.subr.mxu0 %v1084
    %2194 = vmatpush1.msra.mxu0 %v1083
    %2195 = vmatprep.subr.mxu0 %v1088
    %2196 = vmatpush1.msra.mxu0 %v1087
    %2197 = vmatprep.subr.mxu0 %v1092
    %2198 = vmatpush1.msra.mxu0 %v1091
    %2199 = vmatprep.subr.mxu0 %v1096
    %2200 = vmatpush1.msra.mxu0 %v1095
    %2201 = vmatprep.subr.mxu0 %v1100
    %2202 = vmatpush1.msra.mxu0 %v1099
    %2203 = vmatprep.subr.mxu0 %v1104
    %2204 = vmatpush1.msra.mxu0 %v1103
    %2205 = vmatprep.subr.mxu0 %v1108
    %2206 = vmatpush1.msra.mxu0 %v1107
    %2207 = vmatprep.subr.mxu0 %v1112
    %2208 = vmatpush1.msra.mxu0 %v1111
    %2209 = vmatprep.subr.mxu0 %v1116
    %2210 = vmatpush1.msra.mxu0 %v1115
    %2211 = vmatprep.subr.mxu0 %v1120
    %2212 = vmatpush1.msra.mxu0 %v1119
    %2213 = vmatprep.subr.mxu0 %v1124
    %2214 = vmatpush1.msra.mxu0 %v1123
    %2215 = vmatprep.subr.mxu0 %v1128
    %2216 = vmatpush1.msra.mxu0 %v1127
    %2217 = vmatprep.subr.mxu0 %v1132
    %2218 = vmatpush1.msra.mxu0 %v1131
    %2219 = vmatprep.subr.mxu0 %v1136
    %2220 = vmatpush1.msra.mxu0 %v1135
    %2221 = vmatprep.subr.mxu0 %v1140
    %2222 = vmatpush1.msra.mxu0 %v1139
    %2223 = vmatprep.subr.mxu0 %v1144
    %2224 = vmatpush1.msra.mxu0 %v1143
    %2225 = vmatprep.mubr.f32.mxu0 %v150
    %2226 = vmatmul.mubr.f32.gmra.mrb[0].mxu0 %v149
    %v2227 = vpop.f32.mrb[0].mxu0
    %v2228 = vadd.f32 %v2067, %v2227
    %v2229 = vpop.f32.mrb[0].mxu0
    %v2230 = vadd.f32 %v2069, %v2229
    %2231 = vmatprep.mubr.f32.mxu0 %v165
    %2232 = vmatmul.mubr.f32.gmra.mrb[0].mxu0 %v164
    %v2233 = vpop.f32.mrb[0].mxu0
    %v2234 = vadd.f32 %v2073, %v2233
    %v2235 = vpop.f32.mrb[0].mxu0
    %v2236 = vadd.f32 %v2075, %v2235
    %2237 = vmatprep.mubr.f32.mxu0 %v180
    %2238 = vmatmul.mubr.f32.gmra.mrb[0].mxu0 %v179
    %v2239 = vpop.f32.mrb[0].mxu0
    %v2240 = vadd.f32 %v2079, %v2239
    %v2241 = vpop.f32.mrb[0].mxu0
    %v2242 = vadd.f32 %v2081, %v2241
    %2243 = vmatprep.mubr.f32.mxu0 %v195
    %2244 = vmatmul.mubr.f32.gmra.mrb[0].mxu0 %v194
    %v2245 = vpop.f32.mrb[0].mxu0
    %v2246 = vadd.f32 %v2085, %v2245
    %v2247 = vpop.f32.mrb[0].mxu0
    %v2248 = vadd.f32 %v2087, %v2247
    %2249 = vmatprep.mubr.f32.mxu0 %v210
    %2250 = vmatmul.mubr.f32.gmra.mrb[0].mxu0 %v209
    %v2251 = vpop.f32.mrb[0].mxu0
    %v2252 = vadd.f32 %v2091, %v2251
    %v2253 = vpop.f32.mrb[0].mxu0
    %v2254 = vadd.f32 %v2093, %v2253
    %2255 = vmatprep.mubr.f32.mxu0 %v225
    %2256 = vmatmul.mubr.f32.gmra.mrb[0].mxu0 %v224
    %v2257 = vpop.f32.mrb[0].mxu0
    %v2258 = vadd.f32 %v2097, %v2257
    %v2259 = vpop.f32.mrb[0].mxu0
    %v2260 = vadd.f32 %v2099, %v2259
    %2261 = vmatprep.mubr.f32.mxu0 %v240
    %2262 = vmatmul.mubr.f32.gmra.mrb[0].mxu0 %v239
    %v2263 = vpop.f32.mrb[0].mxu0
    %v2264 = vadd.f32 %v2103, %v2263
    %v2265 = vpop.f32.mrb[0].mxu0
    %v2266 = vadd.f32 %v2105, %v2265
    %2267 = vmatprep.mubr.f32.mxu0 %v255
    %2268 = vmatmul.mubr.f32.gmra.mrb[0].mxu0 %v254
    %v2269 = vpop.f32.mrb[0].mxu0
    %v2270 = vadd.f32 %v2109, %v2269
    %v2271 = vpop.f32.mrb[0].mxu0
    %v2272 = vadd.f32 %v2111, %v2271
    %2273 = vmatprep.mubr.f32.mxu0 %v270
    %2274 = vmatmul.mubr.f32.gmra.mrb[0].mxu0 %v269
    %v2275 = vpop.f32.mrb[0].mxu0
    %v2276 = vadd.f32 %v2115, %v2275
    %v2277 = vpop.f32.mrb[0].mxu0
    %v2278 = vadd.f32 %v2117, %v2277
    %2279 = vmatprep.mubr.f32.mxu0 %v285
    %2280 = vmatmul.mubr.f32.gmra.mrb[0].mxu0 %v284
    %v2281 = vpop.f32.mrb[0].mxu0
    %v2282 = vadd.f32 %v2121, %v2281
    %v2283 = vpop.f32.mrb[0].mxu0
    %v2284 = vadd.f32 %v2123, %v2283
    %2285 = vmatprep.mubr.f32.mxu0 %v300
    %2286 = vmatmul.mubr.f32.gmra.mrb[0].mxu0 %v299
    %v2287 = vpop.f32.mrb[0].mxu0
    %v2288 = vadd.f32 %v2127, %v2287
    %v2289 = vpop.f32.mrb[0].mxu0
    %v2290 = vadd.f32 %v2129, %v2289
    %2291 = vmatprep.mubr.f32.mxu0 %v315
    %2292 = vmatmul.mubr.f32.gmra.mrb[0].mxu0 %v314
    %v2293 = vpop.f32.mrb[0].mxu0
    %v2294 = vadd.f32 %v2133, %v2293
    %v2295 = vpop.f32.mrb[0].mxu0
    %v2296 = vadd.f32 %v2135, %v2295
    %2297 = vmatprep.mubr.f32.mxu0 %v330
    %2298 = vmatmul.mubr.f32.gmra.mrb[0].mxu0 %v329
    %v2299 = vpop.f32.mrb[0].mxu0
    %v2300 = vadd.f32 %v2139, %v2299
    %v2301 = vpop.f32.mrb[0].mxu0
    %v2302 = vadd.f32 %v2141, %v2301
    %2303 = vmatprep.mubr.f32.mxu0 %v345
    %2304 = vmatmul.mubr.f32.gmra.mrb[0].mxu0 %v344
    %v2305 = vpop.f32.mrb[0].mxu0
    %v2306 = vadd.f32 %v2145, %v2305
    %v2307 = vpop.f32.mrb[0].mxu0
    %v2308 = vadd.f32 %v2147, %v2307
    %2309 = vmatprep.mubr.f32.mxu0 %v360
    %2310 = vmatmul.mubr.f32.gmra.mrb[0].mxu0 %v359
    %v2311 = vpop.f32.mrb[0].mxu0
    %v2312 = vadd.f32 %v2151, %v2311
    %v2313 = vpop.f32.mrb[0].mxu0
    %v2314 = vadd.f32 %v2153, %v2313
    %2315 = vmatprep.mubr.f32.mxu0 %v375
    %2316 = vmatmul.mubr.f32.gmra.mrb[0].mxu0 %v374
    %v2317 = vpop.f32.mrb[0].mxu0
    %v2318 = vadd.f32 %v2157, %v2317
    %v2319 = vpop.f32.mrb[0].mxu0
    %v2320 = vadd.f32 %v2159, %v2319
    %2321 = vdwg.mxu0
    %2322 = vmatprep.subr.mxu0 %v1148
    %2323 = vmatpush1.msra.mxu0 %v1147
    %2324 = vmatprep.subr.mxu0 %v1152
    %2325 = vmatpush1.msra.mxu0 %v1151
    %2326 = vmatprep.subr.mxu0 %v1156
    %2327 = vmatpush1.msra.mxu0 %v1155
    %2328 = vmatprep.subr.mxu0 %v1160
    %2329 = vmatpush1.msra.mxu0 %v1159
    %2330 = vmatprep.subr.mxu0 %v1164
    %2331 = vmatpush1.msra.mxu0 %v1163
    %2332 = vmatprep.subr.mxu0 %v1168
    %2333 = vmatpush1.msra.mxu0 %v1167
    %2334 = vmatprep.subr.mxu0 %v1172
    %2335 = vmatpush1.msra.mxu0 %v1171
    %2336 = vmatprep.subr.mxu0 %v1176
    %2337 = vmatpush1.msra.mxu0 %v1175
    %2338 = vmatprep.subr.mxu0 %v1180
    %2339 = vmatpush1.msra.mxu0 %v1179
    %2340 = vmatprep.subr.mxu0 %v1184
    %2341 = vmatpush1.msra.mxu0 %v1183
    %2342 = vmatprep.subr.mxu0 %v1188
    %2343 = vmatpush1.msra.mxu0 %v1187
    %2344 = vmatprep.subr.mxu0 %v1192
    %2345 = vmatpush1.msra.mxu0 %v1191
    %2346 = vmatprep.subr.mxu0 %v1196
    %2347 = vmatpush1.msra.mxu0 %v1195
    %2348 = vmatprep.subr.mxu0 %v1200
    %2349 = vmatpush1.msra.mxu0 %v1199
    %2350 = vmatprep.subr.mxu0 %v1204
    %2351 = vmatpush1.msra.mxu0 %v1203
    %2352 = vmatprep.subr.mxu0 %v1208
    %2353 = vmatpush1.msra.mxu0 %v1207
    %2354 = vmatprep.subr.mxu0 %v1212
    %2355 = vmatpush1.msra.mxu0 %v1211
    %2356 = vmatprep.subr.mxu0 %v1216
    %2357 = vmatpush1.msra.mxu0 %v1215
    %2358 = vmatprep.subr.mxu0 %v1220
    %2359 = vmatpush1.msra.mxu0 %v1219
    %2360 = vmatprep.subr.mxu0 %v1224
    %2361 = vmatpush1.msra.mxu0 %v1223
    %2362 = vmatprep.subr.mxu0 %v1228
    %2363 = vmatpush1.msra.mxu0 %v1227
    %2364 = vmatprep.subr.mxu0 %v1232
    %2365 = vmatpush1.msra.mxu0 %v1231
    %2366 = vmatprep.subr.mxu0 %v1236
    %2367 = vmatpush1.msra.mxu0 %v1235
    %2368 = vmatprep.subr.mxu0 %v1240
    %2369 = vmatpush1.msra.mxu0 %v1239
    %2370 = vmatprep.subr.mxu0 %v1244
    %2371 = vmatpush1.msra.mxu0 %v1243
    %2372 = vmatprep.subr.mxu0 %v1248
    %2373 = vmatpush1.msra.mxu0 %v1247
    %2374 = vmatprep.subr.mxu0 %v1252
    %2375 = vmatpush1.msra.mxu0 %v1251
    %2376 = vmatprep.subr.mxu0 %v1256
    %2377 = vmatpush1.msra.mxu0 %v1255
    %2378 = vmatprep.subr.mxu0 %v1260
    %2379 = vmatpush1.msra.mxu0 %v1259
    %2380 = vmatprep.subr.mxu0 %v1264
    %2381 = vmatpush1.msra.mxu0 %v1263
    %2382 = vmatprep.subr.mxu0 %v1268
    %2383 = vmatpush1.msra.mxu0 %v1267
    %2384 = vmatprep.subr.mxu0 %v1272
    %2385 = vmatpush1.msra.mxu0 %v1271
    %2386 = vmatprep.mubr.f32.mxu0 %v152
    %2387 = vmatmul.mubr.f32.gmra.mrb[0].mxu0 %v151
    %v2388 = vpop.f32.mrb[0].mxu0
    %v2389 = vadd.f32 %v2228, %v2388
    %v2390 = vpop.f32.mrb[0].mxu0
    %v2391 = vadd.f32 %v2230, %v2390
    %2392 = vmatprep.mubr.f32.mxu0 %v167
    %2393 = vmatmul.mubr.f32.gmra.mrb[0].mxu0 %v166
    %v2394 = vpop.f32.mrb[0].mxu0
    %v2395 = vadd.f32 %v2234, %v2394
    %v2396 = vpop.f32.mrb[0].mxu0
    %v2397 = vadd.f32 %v2236, %v2396
    %2398 = vmatprep.mubr.f32.mxu0 %v182
    %2399 = vmatmul.mubr.f32.gmra.mrb[0].mxu0 %v181
    %v2400 = vpop.f32.mrb[0].mxu0
    %v2401 = vadd.f32 %v2240, %v2400
    %v2402 = vpop.f32.mrb[0].mxu0
    %v2403 = vadd.f32 %v2242, %v2402
    %2404 = vmatprep.mubr.f32.mxu0 %v197
    %2405 = vmatmul.mubr.f32.gmra.mrb[0].mxu0 %v196
    %v2406 = vpop.f32.mrb[0].mxu0
    %v2407 = vadd.f32 %v2246, %v2406
    %v2408 = vpop.f32.mrb[0].mxu0
    %v2409 = vadd.f32 %v2248, %v2408
    %2410 = vmatprep.mubr.f32.mxu0 %v212
    %2411 = vmatmul.mubr.f32.gmra.mrb[0].mxu0 %v211
    %v2412 = vpop.f32.mrb[0].mxu0
    %v2413 = vadd.f32 %v2252, %v2412
    %v2414 = vpop.f32.mrb[0].mxu0
    %v2415 = vadd.f32 %v2254, %v2414
    %2416 = vmatprep.mubr.f32.mxu0 %v227
    %2417 = vmatmul.mubr.f32.gmra.mrb[0].mxu0 %v226
    %v2418 = vpop.f32.mrb[0].mxu0
    %v2419 = vadd.f32 %v2258, %v2418
    %v2420 = vpop.f32.mrb[0].mxu0
    %v2421 = vadd.f32 %v2260, %v2420
    %2422 = vmatprep.mubr.f32.mxu0 %v242
    %2423 = vmatmul.mubr.f32.gmra.mrb[0].mxu0 %v241
    %v2424 = vpop.f32.mrb[0].mxu0
    %v2425 = vadd.f32 %v2264, %v2424
    %v2426 = vpop.f32.mrb[0].mxu0
    %v2427 = vadd.f32 %v2266, %v2426
    %2428 = vmatprep.mubr.f32.mxu0 %v257
    %2429 = vmatmul.mubr.f32.gmra.mrb[0].mxu0 %v256
    %v2430 = vpop.f32.mrb[0].mxu0
    %v2431 = vadd.f32 %v2270, %v2430
    %v2432 = vpop.f32.mrb[0].mxu0
    %v2433 = vadd.f32 %v2272, %v2432
    %2434 = vmatprep.mubr.f32.mxu0 %v272
    %2435 = vmatmul.mubr.f32.gmra.mrb[0].mxu0 %v271
    %v2436 = vpop.f32.mrb[0].mxu0
    %v2437 = vadd.f32 %v2276, %v2436
    %v2438 = vpop.f32.mrb[0].mxu0
    %v2439 = vadd.f32 %v2278, %v2438
    %2440 = vmatprep.mubr.f32.mxu0 %v287
    %2441 = vmatmul.mubr.f32.gmra.mrb[0].mxu0 %v286
    %v2442 = vpop.f32.mrb[0].mxu0
    %v2443 = vadd.f32 %v2282, %v2442
    %v2444 = vpop.f32.mrb[0].mxu0
    %v2445 = vadd.f32 %v2284, %v2444
    %2446 = vmatprep.mubr.f32.mxu0 %v302
    %2447 = vmatmul.mubr.f32.gmra.mrb[0].mxu0 %v301
    %v2448 = vpop.f32.mrb[0].mxu0
    %v2449 = vadd.f32 %v2288, %v2448
    %v2450 = vpop.f32.mrb[0].mxu0
    %v2451 = vadd.f32 %v2290, %v2450
    %2452 = vmatprep.mubr.f32.mxu0 %v317
    %2453 = vmatmul.mubr.f32.gmra.mrb[0].mxu0 %v316
    %v2454 = vpop.f32.mrb[0].mxu0
    %v2455 = vadd.f32 %v2294, %v2454
    %v2456 = vpop.f32.mrb[0].mxu0
    %v2457 = vadd.f32 %v2296, %v2456
    %2458 = vmatprep.mubr.f32.mxu0 %v332
    %2459 = vmatmul.mubr.f32.gmra.mrb[0].mxu0 %v331
    %v2460 = vpop.f32.mrb[0].mxu0
    %v2461 = vadd.f32 %v2300, %v2460
    %v2462 = vpop.f32.mrb[0].mxu0
    %v2463 = vadd.f32 %v2302, %v2462
    %2464 = vmatprep.mubr.f32.mxu0 %v347
    %2465 = vmatmul.mubr.f32.gmra.mrb[0].mxu0 %v346
    %v2466 = vpop.f32.mrb[0].mxu0
    %v2467 = vadd.f32 %v2306, %v2466
    %v2468 = vpop.f32.mrb[0].mxu0
    %v2469 = vadd.f32 %v2308, %v2468
    %2470 = vmatprep.mubr.f32.mxu0 %v362
    %2471 = vmatmul.mubr.f32.gmra.mrb[0].mxu0 %v361
    %v2472 = vpop.f32.mrb[0].mxu0
    %v2473 = vadd.f32 %v2312, %v2472
    %v2474 = vpop.f32.mrb[0].mxu0
    %v2475 = vadd.f32 %v2314, %v2474
    %2476 = vmatprep.mubr.f32.mxu0 %v377
    %2477 = vmatmul.mubr.f32.gmra.mrb[0].mxu0 %v376
    %v2478 = vpop.f32.mrb[0].mxu0
    %v2479 = vadd.f32 %v2318, %v2478
    %v2480 = vpop.f32.mrb[0].mxu0
    %v2481 = vadd.f32 %v2320, %v2480
    %2482 = vdwg.mxu0
    %2483 = vmatprep.subr.mxu0 %v1276
    %2484 = vmatpush1.msra.mxu0 %v1275
    %2485 = vmatprep.subr.mxu0 %v1280
    %2486 = vmatpush1.msra.mxu0 %v1279
    %2487 = vmatprep.subr.mxu0 %v1284
    %2488 = vmatpush1.msra.mxu0 %v1283
    %2489 = vmatprep.subr.mxu0 %v1288
    %2490 = vmatpush1.msra.mxu0 %v1287
    %2491 = vmatprep.subr.mxu0 %v1292
    %2492 = vmatpush1.msra.mxu0 %v1291
    %2493 = vmatprep.subr.mxu0 %v1296
    %2494 = vmatpush1.msra.mxu0 %v1295
    %2495 = vmatprep.subr.mxu0 %v1300
    %2496 = vmatpush1.msra.mxu0 %v1299
    %2497 = vmatprep.subr.mxu0 %v1304
    %2498 = vmatpush1.msra.mxu0 %v1303
    %2499 = vmatprep.subr.mxu0 0.0
    %2500 = vmatpush1.msra.mxu0 0.0
    %2501 = vmatprep.subr.mxu0 0.0
    %2502 = vmatpush1.msra.mxu0 0.0
    %2503 = vmatprep.subr.mxu0 0.0
    %2504 = vmatpush1.msra.mxu0 0.0
    %2505 = vmatprep.subr.mxu0 0.0
    %2506 = vmatpush1.msra.mxu0 0.0
    %2507 = vmatprep.subr.mxu0 0.0
    %2508 = vmatpush1.msra.mxu0 0.0
    %2509 = vmatprep.subr.mxu0 0.0
    %2510 = vmatpush1.msra.mxu0 0.0
    %2511 = vmatprep.subr.mxu0 0.0
    %2512 = vmatpush1.msra.mxu0 0.0
    %2513 = vmatprep.subr.mxu0 0.0
    %2514 = vmatpush1.msra.mxu0 0.0
    %2515 = vmatprep.subr.mxu0 0.0
    %2516 = vmatpush1.msra.mxu0 0.0
    %2517 = vmatprep.subr.mxu0 0.0
    %2518 = vmatpush1.msra.mxu0 0.0
    %2519 = vmatprep.subr.mxu0 0.0
    %2520 = vmatpush1.msra.mxu0 0.0
    %2521 = vmatprep.subr.mxu0 0.0
    %2522 = vmatpush1.msra.mxu0 0.0
    %2523 = vmatprep.subr.mxu0 0.0
    %2524 = vmatpush1.msra.mxu0 0.0
    %2525 = vmatprep.subr.mxu0 0.0
    %2526 = vmatpush1.msra.mxu0 0.0
    %2527 = vmatprep.subr.mxu0 0.0
    %2528 = vmatpush1.msra.mxu0 0.0
    %2529 = vmatprep.subr.mxu0 0.0
    %2530 = vmatpush1.msra.mxu0 0.0
    %2531 = vmatprep.subr.mxu0 0.0
    %2532 = vmatpush1.msra.mxu0 0.0
    %2533 = vmatprep.subr.mxu0 0.0
    %2534 = vmatpush1.msra.mxu0 0.0
    %2535 = vmatprep.subr.mxu0 0.0
    %2536 = vmatpush1.msra.mxu0 0.0
    %2537 = vmatprep.subr.mxu0 0.0
    %2538 = vmatpush1.msra.mxu0 0.0
    %2539 = vmatprep.subr.mxu0 0.0
    %2540 = vmatpush1.msra.mxu0 0.0
    %2541 = vmatprep.subr.mxu0 0.0
    %2542 = vmatpush1.msra.mxu0 0.0
    %2543 = vmatprep.subr.mxu0 0.0
    %2544 = vmatpush1.msra.mxu0 0.0
    %2545 = vmatprep.subr.mxu0 0.0
    %2546 = vmatpush1.msra.mxu0 0.0
    %2547 = vmatprep.mubr.f32.mxu0 0.0
    %2548 = vmatmul.mubr.f32.gmra.mrb[0].mxu0 %v1309
    %v2549 = vpop.f32.mrb[0].mxu0
    %v2550 = vadd.f32 %v2389, %v2549
    %v2551 = vpop.f32.mrb[0].mxu0
    %v2552 = vadd.f32 %v2391, %v2551
    %2553 = vmatprep.mubr.f32.mxu0 0.0
    %2554 = vmatmul.mubr.f32.gmra.mrb[0].mxu0 %v1312
    %v2555 = vpop.f32.mrb[0].mxu0
    %v2556 = vadd.f32 %v2395, %v2555
    %v2557 = vpop.f32.mrb[0].mxu0
    %v2558 = vadd.f32 %v2397, %v2557
    %2559 = vmatprep.mubr.f32.mxu0 0.0
    %2560 = vmatmul.mubr.f32.gmra.mrb[0].mxu0 %v1315
    %v2561 = vpop.f32.mrb[0].mxu0
    %v2562 = vadd.f32 %v2401, %v2561
    %v2563 = vpop.f32.mrb[0].mxu0
    %v2564 = vadd.f32 %v2403, %v2563
    %2565 = vmatprep.mubr.f32.mxu0 0.0
    %2566 = vmatmul.mubr.f32.gmra.mrb[0].mxu0 %v1318
    %v2567 = vpop.f32.mrb[0].mxu0
    %v2568 = vadd.f32 %v2407, %v2567
    %v2569 = vpop.f32.mrb[0].mxu0
    %v2570 = vadd.f32 %v2409, %v2569
    %2571 = vmatprep.mubr.f32.mxu0 0.0
    %2572 = vmatmul.mubr.f32.gmra.mrb[0].mxu0 %v1321
    %v2573 = vpop.f32.mrb[0].mxu0
    %v2574 = vadd.f32 %v2413, %v2573
    %v2575 = vpop.f32.mrb[0].mxu0
    %v2576 = vadd.f32 %v2415, %v2575
    %2577 = vmatprep.mubr.f32.mxu0 0.0
    %2578 = vmatmul.mubr.f32.gmra.mrb[0].mxu0 %v1324
    %v2579 = vpop.f32.mrb[0].mxu0
    %v2580 = vadd.f32 %v2419, %v2579
    %v2581 = vpop.f32.mrb[0].mxu0
    %v2582 = vadd.f32 %v2421, %v2581
    %2583 = vmatprep.mubr.f32.mxu0 0.0
    %2584 = vmatmul.mubr.f32.gmra.mrb[0].mxu0 %v1327
    %v2585 = vpop.f32.mrb[0].mxu0
    %v2586 = vadd.f32 %v2425, %v2585
    %v2587 = vpop.f32.mrb[0].mxu0
    %v2588 = vadd.f32 %v2427, %v2587
    %2589 = vmatprep.mubr.f32.mxu0 0.0
    %2590 = vmatmul.mubr.f32.gmra.mrb[0].mxu0 %v1330
    %v2591 = vpop.f32.mrb[0].mxu0
    %v2592 = vadd.f32 %v2431, %v2591
    %v2593 = vpop.f32.mrb[0].mxu0
    %v2594 = vadd.f32 %v2433, %v2593
    %2595 = vmatprep.mubr.f32.mxu0 0.0
    %2596 = vmatmul.mubr.f32.gmra.mrb[0].mxu0 %v1333
    %v2597 = vpop.f32.mrb[0].mxu0
    %v2598 = vadd.f32 %v2437, %v2597
    %v2599 = vpop.f32.mrb[0].mxu0
    %v2600 = vadd.f32 %v2439, %v2599
    %2601 = vmatprep.mubr.f32.mxu0 0.0
    %2602 = vmatmul.mubr.f32.gmra.mrb[0].mxu0 %v1336
    %v2603 = vpop.f32.mrb[0].mxu0
    %v2604 = vadd.f32 %v2443, %v2603
    %v2605 = vpop.f32.mrb[0].mxu0
    %v2606 = vadd.f32 %v2445, %v2605
    %2607 = vmatprep.mubr.f32.mxu0 0.0
    %2608 = vmatmul.mubr.f32.gmra.mrb[0].mxu0 %v1339
    %v2609 = vpop.f32.mrb[0].mxu0
    %v2610 = vadd.f32 %v2449, %v2609
    %v2611 = vpop.f32.mrb[0].mxu0
    %v2612 = vadd.f32 %v2451, %v2611
    %2613 = vmatprep.mubr.f32.mxu0 0.0
    %2614 = vmatmul.mubr.f32.gmra.mrb[0].mxu0 %v1342
    %v2615 = vpop.f32.mrb[0].mxu0
    %v2616 = vadd.f32 %v2455, %v2615
    %v2617 = vpop.f32.mrb[0].mxu0
    %v2618 = vadd.f32 %v2457, %v2617
    %2619 = vmatprep.mubr.f32.mxu0 0.0
    %2620 = vmatmul.mubr.f32.gmra.mrb[0].mxu0 %v1345
    %v2621 = vpop.f32.mrb[0].mxu0
    %v2622 = vadd.f32 %v2461, %v2621
    %v2623 = vpop.f32.mrb[0].mxu0
    %v2624 = vadd.f32 %v2463, %v2623
    %2625 = vmatprep.mubr.f32.mxu0 0.0
    %2626 = vmatmul.mubr.f32.gmra.mrb[0].mxu0 %v1348
    %v2627 = vpop.f32.mrb[0].mxu0
    %v2628 = vadd.f32 %v2467, %v2627
    %v2629 = vpop.f32.mrb[0].mxu0
    %v2630 = vadd.f32 %v2469, %v2629
    %2631 = vmatprep.mubr.f32.mxu0 0.0
    %2632 = vmatmul.mubr.f32.gmra.mrb[0].mxu0 %v1351
    %v2633 = vpop.f32.mrb[0].mxu0
    %v2634 = vadd.f32 %v2473, %v2633
    %v2635 = vpop.f32.mrb[0].mxu0
    %v2636 = vadd.f32 %v2475, %v2635
    %2637 = vmatprep.mubr.f32.mxu0 0.0
    %2638 = vmatmul.mubr.f32.gmra.mrb[0].mxu0 %v1354
    %v2639 = vpop.f32.mrb[0].mxu0
    %v2640 = vadd.f32 %v2479, %v2639
    %v2641 = vpop.f32.mrb[0].mxu0
    %v2642 = vadd.f32 %v2481, %v2641
    %2643 = vdwg.mxu0
    %2644 = vmatprep.subr.mxu0 %v382
    %2645 = vmatpush1.msra.mxu0 %v381
    %2646 = vmatprep.subr.mxu0 %v386
    %2647 = vmatpush1.msra.mxu0 %v385
    %2648 = vmatprep.subr.mxu0 %v390
    %2649 = vmatpush1.msra.mxu0 %v389
    %2650 = vmatprep.subr.mxu0 %v394
    %2651 = vmatpush1.msra.mxu0 %v393
    %2652 = vmatprep.subr.mxu0 %v398
    %2653 = vmatpush1.msra.mxu0 %v397
    %2654 = vmatprep.subr.mxu0 %v402
    %2655 = vmatpush1.msra.mxu0 %v401
    %2656 = vmatprep.subr.mxu0 %v406
    %2657 = vmatpush1.msra.mxu0 %v405
    %2658 = vmatprep.subr.mxu0 %v410
    %2659 = vmatpush1.msra.mxu0 %v409
    %2660 = vmatprep.subr.mxu0 %v414
    %2661 = vmatpush1.msra.mxu0 %v413
    %2662 = vmatprep.subr.mxu0 %v418
    %2663 = vmatpush1.msra.mxu0 %v417
    %2664 = vmatprep.subr.mxu0 %v422
    %2665 = vmatpush1.msra.mxu0 %v421
    %2666 = vmatprep.subr.mxu0 %v426
    %2667 = vmatpush1.msra.mxu0 %v425
    %2668 = vmatprep.subr.mxu0 %v430
    %2669 = vmatpush1.msra.mxu0 %v429
    %2670 = vmatprep.subr.mxu0 %v434
    %2671 = vmatpush1.msra.mxu0 %v433
    %2672 = vmatprep.subr.mxu0 %v438
    %2673 = vmatpush1.msra.mxu0 %v437
    %2674 = vmatprep.subr.mxu0 %v442
    %2675 = vmatpush1.msra.mxu0 %v441
    %2676 = vmatprep.subr.mxu0 %v446
    %2677 = vmatpush1.msra.mxu0 %v445
    %2678 = vmatprep.subr.mxu0 %v450
    %2679 = vmatpush1.msra.mxu0 %v449
    %2680 = vmatprep.subr.mxu0 %v454
    %2681 = vmatpush1.msra.mxu0 %v453
    %2682 = vmatprep.subr.mxu0 %v458
    %2683 = vmatpush1.msra.mxu0 %v457
    %2684 = vmatprep.subr.mxu0 %v462
    %2685 = vmatpush1.msra.mxu0 %v461
    %2686 = vmatprep.subr.mxu0 %v466
    %2687 = vmatpush1.msra.mxu0 %v465
    %2688 = vmatprep.subr.mxu0 %v470
    %2689 = vmatpush1.msra.mxu0 %v469
    %2690 = vmatprep.subr.mxu0 %v474
    %2691 = vmatpush1.msra.mxu0 %v473
    %2692 = vmatprep.subr.mxu0 %v478
    %2693 = vmatpush1.msra.mxu0 %v477
    %2694 = vmatprep.subr.mxu0 %v482
    %2695 = vmatpush1.msra.mxu0 %v481
    %2696 = vmatprep.subr.mxu0 %v486
    %2697 = vmatpush1.msra.mxu0 %v485
    %2698 = vmatprep.subr.mxu0 %v490
    %2699 = vmatpush1.msra.mxu0 %v489
    %2700 = vmatprep.subr.mxu0 %v494
    %2701 = vmatpush1.msra.mxu0 %v493
    %2702 = vmatprep.subr.mxu0 %v498
    %2703 = vmatpush1.msra.mxu0 %v497
    %2704 = vmatprep.subr.mxu0 %v502
    %2705 = vmatpush1.msra.mxu0 %v501
    %2706 = vmatprep.subr.mxu0 %v506
    %2707 = vmatpush1.msra.mxu0 %v505
    %2708 = vmatprep.mubr.f32.mxu0 %v140
    %2709 = vmatmul.mubr.f32.gmra.mrb[0].mxu0 %v139
    %v2710 = vpop.f32.mrb[0].mxu0
    %v2711 = vadd.f32 0.0, %v2710
    %v2712 = vpop.f32.mrb[0].mxu0
    %v2713 = vadd.f32 0.0, %v2712
    %2714 = vmatprep.mubr.f32.mxu0 %v155
    %2715 = vmatmul.mubr.f32.gmra.mrb[0].mxu0 %v154
    %v2716 = vpop.f32.mrb[0].mxu0
    %v2717 = vadd.f32 0.0, %v2716
    %v2718 = vpop.f32.mrb[0].mxu0
    %v2719 = vadd.f32 0.0, %v2718
    %2720 = vmatprep.mubr.f32.mxu0 %v170
    %2721 = vmatmul.mubr.f32.gmra.mrb[0].mxu0 %v169
    %v2722 = vpop.f32.mrb[0].mxu0
    %v2723 = vadd.f32 0.0, %v2722
    %v2724 = vpop.f32.mrb[0].mxu0
    %v2725 = vadd.f32 0.0, %v2724
    %2726 = vmatprep.mubr.f32.mxu0 %v185
    %2727 = vmatmul.mubr.f32.gmra.mrb[0].mxu0 %v184
    %v2728 = vpop.f32.mrb[0].mxu0
    %v2729 = vadd.f32 0.0, %v2728
    %v2730 = vpop.f32.mrb[0].mxu0
    %v2731 = vadd.f32 0.0, %v2730
    %2732 = vmatprep.mubr.f32.mxu0 %v200
    %2733 = vmatmul.mubr.f32.gmra.mrb[0].mxu0 %v199
    %v2734 = vpop.f32.mrb[0].mxu0
    %v2735 = vadd.f32 0.0, %v2734
    %v2736 = vpop.f32.mrb[0].mxu0
    %v2737 = vadd.f32 0.0, %v2736
    %2738 = vmatprep.mubr.f32.mxu0 %v215
    %2739 = vmatmul.mubr.f32.gmra.mrb[0].mxu0 %v214
    %v2740 = vpop.f32.mrb[0].mxu0
    %v2741 = vadd.f32 0.0, %v2740
    %v2742 = vpop.f32.mrb[0].mxu0
    %v2743 = vadd.f32 0.0, %v2742
    %2744 = vmatprep.mubr.f32.mxu0 %v230
    %2745 = vmatmul.mubr.f32.gmra.mrb[0].mxu0 %v229
    %v2746 = vpop.f32.mrb[0].mxu0
    %v2747 = vadd.f32 0.0, %v2746
    %v2748 = vpop.f32.mrb[0].mxu0
    %v2749 = vadd.f32 0.0, %v2748
    %2750 = vmatprep.mubr.f32.mxu0 %v245
    %2751 = vmatmul.mubr.f32.gmra.mrb[0].mxu0 %v244
    %v2752 = vpop.f32.mrb[0].mxu0
    %v2753 = vadd.f32 0.0, %v2752
    %v2754 = vpop.f32.mrb[0].mxu0
    %v2755 = vadd.f32 0.0, %v2754
    %2756 = vmatprep.mubr.f32.mxu0 %v260
    %2757 = vmatmul.mubr.f32.gmra.mrb[0].mxu0 %v259
    %v2758 = vpop.f32.mrb[0].mxu0
    %v2759 = vadd.f32 0.0, %v2758
    %v2760 = vpop.f32.mrb[0].mxu0
    %v2761 = vadd.f32 0.0, %v2760
    %2762 = vmatprep.mubr.f32.mxu0 %v275
    %2763 = vmatmul.mubr.f32.gmra.mrb[0].mxu0 %v274
    %v2764 = vpop.f32.mrb[0].mxu0
    %v2765 = vadd.f32 0.0, %v2764
    %v2766 = vpop.f32.mrb[0].mxu0
    %v2767 = vadd.f32 0.0, %v2766
    %2768 = vmatprep.mubr.f32.mxu0 %v290
    %2769 = vmatmul.mubr.f32.gmra.mrb[0].mxu0 %v289
    %v2770 = vpop.f32.mrb[0].mxu0
    %v2771 = vadd.f32 0.0, %v2770
    %v2772 = vpop.f32.mrb[0].mxu0
    %v2773 = vadd.f32 0.0, %v2772
    %2774 = vmatprep.mubr.f32.mxu0 %v305
    %2775 = vmatmul.mubr.f32.gmra.mrb[0].mxu0 %v304
    %v2776 = vpop.f32.mrb[0].mxu0
    %v2777 = vadd.f32 0.0, %v2776
    %v2778 = vpop.f32.mrb[0].mxu0
    %v2779 = vadd.f32 0.0, %v2778
    %2780 = vmatprep.mubr.f32.mxu0 %v320
    %2781 = vmatmul.mubr.f32.gmra.mrb[0].mxu0 %v319
    %v2782 = vpop.f32.mrb[0].mxu0
    %v2783 = vadd.f32 0.0, %v2782
    %v2784 = vpop.f32.mrb[0].mxu0
    %v2785 = vadd.f32 0.0, %v2784
    %2786 = vmatprep.mubr.f32.mxu0 %v335
    %2787 = vmatmul.mubr.f32.gmra.mrb[0].mxu0 %v334
    %v2788 = vpop.f32.mrb[0].mxu0
    %v2789 = vadd.f32 0.0, %v2788
    %v2790 = vpop.f32.mrb[0].mxu0
    %v2791 = vadd.f32 0.0, %v2790
    %2792 = vmatprep.mubr.f32.mxu0 %v350
    %2793 = vmatmul.mubr.f32.gmra.mrb[0].mxu0 %v349
    %v2794 = vpop.f32.mrb[0].mxu0
    %v2795 = vadd.f32 0.0, %v2794
    %v2796 = vpop.f32.mrb[0].mxu0
    %v2797 = vadd.f32 0.0, %v2796
    %2798 = vmatprep.mubr.f32.mxu0 %v365
    %2799 = vmatmul.mubr.f32.gmra.mrb[0].mxu0 %v364
    %v2800 = vpop.f32.mrb[0].mxu0
    %v2801 = vadd.f32 0.0, %v2800
    %v2802 = vpop.f32.mrb[0].mxu0
    %v2803 = vadd.f32 0.0, %v2802
    %2804 = vdwg.mxu0
    %2805 = vmatprep.subr.mxu0 %v510
    %2806 = vmatpush1.msra.mxu0 %v509
    %2807 = vmatprep.subr.mxu0 %v514
    %2808 = vmatpush1.msra.mxu0 %v513
    %2809 = vmatprep.subr.mxu0 %v518
    %2810 = vmatpush1.msra.mxu0 %v517
    %2811 = vmatprep.subr.mxu0 %v522
    %2812 = vmatpush1.msra.mxu0 %v521
    %2813 = vmatprep.subr.mxu0 %v526
    %2814 = vmatpush1.msra.mxu0 %v525
    %2815 = vmatprep.subr.mxu0 %v530
    %2816 = vmatpush1.msra.mxu0 %v529
    %2817 = vmatprep.subr.mxu0 %v534
    %2818 = vmatpush1.msra.mxu0 %v533
    %2819 = vmatprep.subr.mxu0 %v538
    %2820 = vmatpush1.msra.mxu0 %v537
    %2821 = vmatprep.subr.mxu0 %v542
    %2822 = vmatpush1.msra.mxu0 %v541
    %2823 = vmatprep.subr.mxu0 %v546
    %2824 = vmatpush1.msra.mxu0 %v545
    %2825 = vmatprep.subr.mxu0 %v550
    %2826 = vmatpush1.msra.mxu0 %v549
    %2827 = vmatprep.subr.mxu0 %v554
    %2828 = vmatpush1.msra.mxu0 %v553
    %2829 = vmatprep.subr.mxu0 %v558
    %2830 = vmatpush1.msra.mxu0 %v557
    %2831 = vmatprep.subr.mxu0 %v562
    %2832 = vmatpush1.msra.mxu0 %v561
    %2833 = vmatprep.subr.mxu0 %v566
    %2834 = vmatpush1.msra.mxu0 %v565
    %2835 = vmatprep.subr.mxu0 %v570
    %2836 = vmatpush1.msra.mxu0 %v569
    %2837 = vmatprep.subr.mxu0 %v574
    %2838 = vmatpush1.msra.mxu0 %v573
    %2839 = vmatprep.subr.mxu0 %v578
    %2840 = vmatpush1.msra.mxu0 %v577
    %2841 = vmatprep.subr.mxu0 %v582
    %2842 = vmatpush1.msra.mxu0 %v581
    %2843 = vmatprep.subr.mxu0 %v586
    %2844 = vmatpush1.msra.mxu0 %v585
    %2845 = vmatprep.subr.mxu0 %v590
    %2846 = vmatpush1.msra.mxu0 %v589
    %2847 = vmatprep.subr.mxu0 %v594
    %2848 = vmatpush1.msra.mxu0 %v593
    %2849 = vmatprep.subr.mxu0 %v598
    %2850 = vmatpush1.msra.mxu0 %v597
    %2851 = vmatprep.subr.mxu0 %v602
    %2852 = vmatpush1.msra.mxu0 %v601
    %2853 = vmatprep.subr.mxu0 %v606
    %2854 = vmatpush1.msra.mxu0 %v605
    %2855 = vmatprep.subr.mxu0 %v610
    %2856 = vmatpush1.msra.mxu0 %v609
    %2857 = vmatprep.subr.mxu0 %v614
    %2858 = vmatpush1.msra.mxu0 %v613
    %2859 = vmatprep.subr.mxu0 %v618
    %2860 = vmatpush1.msra.mxu0 %v617
    %2861 = vmatprep.subr.mxu0 %v622
    %2862 = vmatpush1.msra.mxu0 %v621
    %2863 = vmatprep.subr.mxu0 %v626
    %2864 = vmatpush1.msra.mxu0 %v625
    %2865 = vmatprep.subr.mxu0 %v630
    %2866 = vmatpush1.msra.mxu0 %v629
    %2867 = vmatprep.subr.mxu0 %v634
    %2868 = vmatpush1.msra.mxu0 %v633
    %2869 = vmatprep.mubr.f32.mxu0 %v142
    %2870 = vmatmul.mubr.f32.gmra.mrb[0].mxu0 %v141
    %v2871 = vpop.f32.mrb[0].mxu0
    %v2872 = vadd.f32 %v2711, %v2871
    %v2873 = vpop.f32.mrb[0].mxu0
    %v2874 = vadd.f32 %v2713, %v2873
    %2875 = vmatprep.mubr.f32.mxu0 %v157
    %2876 = vmatmul.mubr.f32.gmra.mrb[0].mxu0 %v156
    %v2877 = vpop.f32.mrb[0].mxu0
    %v2878 = vadd.f32 %v2717, %v2877
    %v2879 = vpop.f32.mrb[0].mxu0
    %v2880 = vadd.f32 %v2719, %v2879
    %2881 = vmatprep.mubr.f32.mxu0 %v172
    %2882 = vmatmul.mubr.f32.gmra.mrb[0].mxu0 %v171
    %v2883 = vpop.f32.mrb[0].mxu0
    %v2884 = vadd.f32 %v2723, %v2883
    %v2885 = vpop.f32.mrb[0].mxu0
    %v2886 = vadd.f32 %v2725, %v2885
    %2887 = vmatprep.mubr.f32.mxu0 %v187
    %2888 = vmatmul.mubr.f32.gmra.mrb[0].mxu0 %v186
    %v2889 = vpop.f32.mrb[0].mxu0
    %v2890 = vadd.f32 %v2729, %v2889
    %v2891 = vpop.f32.mrb[0].mxu0
    %v2892 = vadd.f32 %v2731, %v2891
    %2893 = vmatprep.mubr.f32.mxu0 %v202
    %2894 = vmatmul.mubr.f32.gmra.mrb[0].mxu0 %v201
    %v2895 = vpop.f32.mrb[0].mxu0
    %v2896 = vadd.f32 %v2735, %v2895
    %v2897 = vpop.f32.mrb[0].mxu0
    %v2898 = vadd.f32 %v2737, %v2897
    %2899 = vmatprep.mubr.f32.mxu0 %v217
    %2900 = vmatmul.mubr.f32.gmra.mrb[0].mxu0 %v216
    %v2901 = vpop.f32.mrb[0].mxu0
    %v2902 = vadd.f32 %v2741, %v2901
    %v2903 = vpop.f32.mrb[0].mxu0
    %v2904 = vadd.f32 %v2743, %v2903
    %2905 = vmatprep.mubr.f32.mxu0 %v232
    %2906 = vmatmul.mubr.f32.gmra.mrb[0].mxu0 %v231
    %v2907 = vpop.f32.mrb[0].mxu0
    %v2908 = vadd.f32 %v2747, %v2907
    %v2909 = vpop.f32.mrb[0].mxu0
    %v2910 = vadd.f32 %v2749, %v2909
    %2911 = vmatprep.mubr.f32.mxu0 %v247
    %2912 = vmatmul.mubr.f32.gmra.mrb[0].mxu0 %v246
    %v2913 = vpop.f32.mrb[0].mxu0
    %v2914 = vadd.f32 %v2753, %v2913
    %v2915 = vpop.f32.mrb[0].mxu0
    %v2916 = vadd.f32 %v2755, %v2915
    %2917 = vmatprep.mubr.f32.mxu0 %v262
    %2918 = vmatmul.mubr.f32.gmra.mrb[0].mxu0 %v261
    %v2919 = vpop.f32.mrb[0].mxu0
    %v2920 = vadd.f32 %v2759, %v2919
    %v2921 = vpop.f32.mrb[0].mxu0
    %v2922 = vadd.f32 %v2761, %v2921
    %2923 = vmatprep.mubr.f32.mxu0 %v277
    %2924 = vmatmul.mubr.f32.gmra.mrb[0].mxu0 %v276
    %v2925 = vpop.f32.mrb[0].mxu0
    %v2926 = vadd.f32 %v2765, %v2925
    %v2927 = vpop.f32.mrb[0].mxu0
    %v2928 = vadd.f32 %v2767, %v2927
    %2929 = vmatprep.mubr.f32.mxu0 %v292
    %2930 = vmatmul.mubr.f32.gmra.mrb[0].mxu0 %v291
    %v2931 = vpop.f32.mrb[0].mxu0
    %v2932 = vadd.f32 %v2771, %v2931
    %v2933 = vpop.f32.mrb[0].mxu0
    %v2934 = vadd.f32 %v2773, %v2933
    %2935 = vmatprep.mubr.f32.mxu0 %v307
    %2936 = vmatmul.mubr.f32.gmra.mrb[0].mxu0 %v306
    %v2937 = vpop.f32.mrb[0].mxu0
    %v2938 = vadd.f32 %v2777, %v2937
    %v2939 = vpop.f32.mrb[0].mxu0
    %v2940 = vadd.f32 %v2779, %v2939
    %2941 = vmatprep.mubr.f32.mxu0 %v322
    %2942 = vmatmul.mubr.f32.gmra.mrb[0].mxu0 %v321
    %v2943 = vpop.f32.mrb[0].mxu0
    %v2944 = vadd.f32 %v2783, %v2943
    %v2945 = vpop.f32.mrb[0].mxu0
    %v2946 = vadd.f32 %v2785, %v2945
    %2947 = vmatprep.mubr.f32.mxu0 %v337
    %2948 = vmatmul.mubr.f32.gmra.mrb[0].mxu0 %v336
    %v2949 = vpop.f32.mrb[0].mxu0
    %v2950 = vadd.f32 %v2789, %v2949
    %v2951 = vpop.f32.mrb[0].mxu0
    %v2952 = vadd.f32 %v2791, %v2951
    %2953 = vmatprep.mubr.f32.mxu0 %v352
    %2954 = vmatmul.mubr.f32.gmra.mrb[0].mxu0 %v351
    %v2955 = vpop.f32.mrb[0].mxu0
    %v2956 = vadd.f32 %v2795, %v2955
    %v2957 = vpop.f32.mrb[0].mxu0
    %v2958 = vadd.f32 %v2797, %v2957
    %2959 = vmatprep.mubr.f32.mxu0 %v367
    %2960 = vmatmul.mubr.f32.gmra.mrb[0].mxu0 %v366
    %v2961 = vpop.f32.mrb[0].mxu0
    %v2962 = vadd.f32 %v2801, %v2961
    %v2963 = vpop.f32.mrb[0].mxu0
    %v2964 = vadd.f32 %v2803, %v2963
    %2965 = vdwg.mxu0
    %2966 = vmatprep.subr.mxu0 %v638
    %2967 = vmatpush1.msra.mxu0 %v637
    %2968 = vmatprep.subr.mxu0 %v642
    %2969 = vmatpush1.msra.mxu0 %v641
    %2970 = vmatprep.subr.mxu0 %v646
    %2971 = vmatpush1.msra.mxu0 %v645
    %2972 = vmatprep.subr.mxu0 %v650
    %2973 = vmatpush1.msra.mxu0 %v649
    %2974 = vmatprep.subr.mxu0 %v654
    %2975 = vmatpush1.msra.mxu0 %v653
    %2976 = vmatprep.subr.mxu0 %v658
    %2977 = vmatpush1.msra.mxu0 %v657
    %2978 = vmatprep.subr.mxu0 %v662
    %2979 = vmatpush1.msra.mxu0 %v661
    %2980 = vmatprep.subr.mxu0 %v666
    %2981 = vmatpush1.msra.mxu0 %v665
    %2982 = vmatprep.subr.mxu0 %v670
    %2983 = vmatpush1.msra.mxu0 %v669
    %2984 = vmatprep.subr.mxu0 %v674
    %2985 = vmatpush1.msra.mxu0 %v673
    %2986 = vmatprep.subr.mxu0 %v678
    %2987 = vmatpush1.msra.mxu0 %v677
    %2988 = vmatprep.subr.mxu0 %v682
    %2989 = vmatpush1.msra.mxu0 %v681
    %2990 = vmatprep.subr.mxu0 %v686
    %2991 = vmatpush1.msra.mxu0 %v685
    %2992 = vmatprep.subr.mxu0 %v690
    %2993 = vmatpush1.msra.mxu0 %v689
    %2994 = vmatprep.subr.mxu0 %v694
    %2995 = vmatpush1.msra.mxu0 %v693
    %2996 = vmatprep.subr.mxu0 %v698
    %2997 = vmatpush1.msra.mxu0 %v697
    %2998 = vmatprep.subr.mxu0 %v702
    %2999 = vmatpush1.msra.mxu0 %v701
    %3000 = vmatprep.subr.mxu0 %v706
    %3001 = vmatpush1.msra.mxu0 %v705
    %3002 = vmatprep.subr.mxu0 %v710
    %3003 = vmatpush1.msra.mxu0 %v709
    %3004 = vmatprep.subr.mxu0 %v714
    %3005 = vmatpush1.msra.mxu0 %v713
    %3006 = vmatprep.subr.mxu0 %v718
    %3007 = vmatpush1.msra.mxu0 %v717
    %3008 = vmatprep.subr.mxu0 %v722
    %3009 = vmatpush1.msra.mxu0 %v721
    %3010 = vmatprep.subr.mxu0 %v726
    %3011 = vmatpush1.msra.mxu0 %v725
    %3012 = vmatprep.subr.mxu0 %v730
    %3013 = vmatpush1.msra.mxu0 %v729
    %3014 = vmatprep.subr.mxu0 %v734
    %3015 = vmatpush1.msra.mxu0 %v733
    %3016 = vmatprep.subr.mxu0 %v738
    %3017 = vmatpush1.msra.mxu0 %v737
    %3018 = vmatprep.subr.mxu0 %v742
    %3019 = vmatpush1.msra.mxu0 %v741
    %3020 = vmatprep.subr.mxu0 %v746
    %3021 = vmatpush1.msra.mxu0 %v745
    %3022 = vmatprep.subr.mxu0 %v750
    %3023 = vmatpush1.msra.mxu0 %v749
    %3024 = vmatprep.subr.mxu0 %v754
    %3025 = vmatpush1.msra.mxu0 %v753
    %3026 = vmatprep.subr.mxu0 %v758
    %3027 = vmatpush1.msra.mxu0 %v757
    %3028 = vmatprep.subr.mxu0 %v762
    %3029 = vmatpush1.msra.mxu0 %v761
    %3030 = vmatprep.mubr.f32.mxu0 %v144
    %3031 = vmatmul.mubr.f32.gmra.mrb[0].mxu0 %v143
    %v3032 = vpop.f32.mrb[0].mxu0
    %v3033 = vadd.f32 %v2872, %v3032
    %v3034 = vpop.f32.mrb[0].mxu0
    %v3035 = vadd.f32 %v2874, %v3034
    %3036 = vmatprep.mubr.f32.mxu0 %v159
    %3037 = vmatmul.mubr.f32.gmra.mrb[0].mxu0 %v158
    %v3038 = vpop.f32.mrb[0].mxu0
    %v3039 = vadd.f32 %v2878, %v3038
    %v3040 = vpop.f32.mrb[0].mxu0
    %v3041 = vadd.f32 %v2880, %v3040
    %3042 = vmatprep.mubr.f32.mxu0 %v174
    %3043 = vmatmul.mubr.f32.gmra.mrb[0].mxu0 %v173
    %v3044 = vpop.f32.mrb[0].mxu0
    %v3045 = vadd.f32 %v2884, %v3044
    %v3046 = vpop.f32.mrb[0].mxu0
    %v3047 = vadd.f32 %v2886, %v3046
    %3048 = vmatprep.mubr.f32.mxu0 %v189
    %3049 = vmatmul.mubr.f32.gmra.mrb[0].mxu0 %v188
    %v3050 = vpop.f32.mrb[0].mxu0
    %v3051 = vadd.f32 %v2890, %v3050
    %v3052 = vpop.f32.mrb[0].mxu0
    %v3053 = vadd.f32 %v2892, %v3052
    %3054 = vmatprep.mubr.f32.mxu0 %v204
    %3055 = vmatmul.mubr.f32.gmra.mrb[0].mxu0 %v203
    %v3056 = vpop.f32.mrb[0].mxu0
    %v3057 = vadd.f32 %v2896, %v3056
    %v3058 = vpop.f32.mrb[0].mxu0
    %v3059 = vadd.f32 %v2898, %v3058
    %3060 = vmatprep.mubr.f32.mxu0 %v219
    %3061 = vmatmul.mubr.f32.gmra.mrb[0].mxu0 %v218
    %v3062 = vpop.f32.mrb[0].mxu0
    %v3063 = vadd.f32 %v2902, %v3062
    %v3064 = vpop.f32.mrb[0].mxu0
    %v3065 = vadd.f32 %v2904, %v3064
    %3066 = vmatprep.mubr.f32.mxu0 %v234
    %3067 = vmatmul.mubr.f32.gmra.mrb[0].mxu0 %v233
    %v3068 = vpop.f32.mrb[0].mxu0
    %v3069 = vadd.f32 %v2908, %v3068
    %v3070 = vpop.f32.mrb[0].mxu0
    %v3071 = vadd.f32 %v2910, %v3070
    %3072 = vmatprep.mubr.f32.mxu0 %v249
    %3073 = vmatmul.mubr.f32.gmra.mrb[0].mxu0 %v248
    %v3074 = vpop.f32.mrb[0].mxu0
    %v3075 = vadd.f32 %v2914, %v3074
    %v3076 = vpop.f32.mrb[0].mxu0
    %v3077 = vadd.f32 %v2916, %v3076
    %3078 = vmatprep.mubr.f32.mxu0 %v264
    %3079 = vmatmul.mubr.f32.gmra.mrb[0].mxu0 %v263
    %v3080 = vpop.f32.mrb[0].mxu0
    %v3081 = vadd.f32 %v2920, %v3080
    %v3082 = vpop.f32.mrb[0].mxu0
    %v3083 = vadd.f32 %v2922, %v3082
    %3084 = vmatprep.mubr.f32.mxu0 %v279
    %3085 = vmatmul.mubr.f32.gmra.mrb[0].mxu0 %v278
    %v3086 = vpop.f32.mrb[0].mxu0
    %v3087 = vadd.f32 %v2926, %v3086
    %v3088 = vpop.f32.mrb[0].mxu0
    %v3089 = vadd.f32 %v2928, %v3088
    %3090 = vmatprep.mubr.f32.mxu0 %v294
    %3091 = vmatmul.mubr.f32.gmra.mrb[0].mxu0 %v293
    %v3092 = vpop.f32.mrb[0].mxu0
    %v3093 = vadd.f32 %v2932, %v3092
    %v3094 = vpop.f32.mrb[0].mxu0
    %v3095 = vadd.f32 %v2934, %v3094
    %3096 = vmatprep.mubr.f32.mxu0 %v309
    %3097 = vmatmul.mubr.f32.gmra.mrb[0].mxu0 %v308
    %v3098 = vpop.f32.mrb[0].mxu0
    %v3099 = vadd.f32 %v2938, %v3098
    %v3100 = vpop.f32.mrb[0].mxu0
    %v3101 = vadd.f32 %v2940, %v3100
    %3102 = vmatprep.mubr.f32.mxu0 %v324
    %3103 = vmatmul.mubr.f32.gmra.mrb[0].mxu0 %v323
    %v3104 = vpop.f32.mrb[0].mxu0
    %v3105 = vadd.f32 %v2944, %v3104
    %v3106 = vpop.f32.mrb[0].mxu0
    %v3107 = vadd.f32 %v2946, %v3106
    %3108 = vmatprep.mubr.f32.mxu0 %v339
    %3109 = vmatmul.mubr.f32.gmra.mrb[0].mxu0 %v338
    %v3110 = vpop.f32.mrb[0].mxu0
    %v3111 = vadd.f32 %v2950, %v3110
    %v3112 = vpop.f32.mrb[0].mxu0
    %v3113 = vadd.f32 %v2952, %v3112
    %3114 = vmatprep.mubr.f32.mxu0 %v354
    %3115 = vmatmul.mubr.f32.gmra.mrb[0].mxu0 %v353
    %v3116 = vpop.f32.mrb[0].mxu0
    %v3117 = vadd.f32 %v2956, %v3116
    %v3118 = vpop.f32.mrb[0].mxu0
    %v3119 = vadd.f32 %v2958, %v3118
    %3120 = vmatprep.mubr.f32.mxu0 %v369
    %3121 = vmatmul.mubr.f32.gmra.mrb[0].mxu0 %v368
    %v3122 = vpop.f32.mrb[0].mxu0
    %v3123 = vadd.f32 %v2962, %v3122
    %v3124 = vpop.f32.mrb[0].mxu0
    %v3125 = vadd.f32 %v2964, %v3124
    %3126 = vdwg.mxu0
    %3127 = vmatprep.subr.mxu0 %v766
    %3128 = vmatpush1.msra.mxu0 %v765
    %3129 = vmatprep.subr.mxu0 %v770
    %3130 = vmatpush1.msra.mxu0 %v769
    %3131 = vmatprep.subr.mxu0 %v774
    %3132 = vmatpush1.msra.mxu0 %v773
    %3133 = vmatprep.subr.mxu0 %v778
    %3134 = vmatpush1.msra.mxu0 %v777
    %3135 = vmatprep.subr.mxu0 %v782
    %3136 = vmatpush1.msra.mxu0 %v781
    %3137 = vmatprep.subr.mxu0 %v786
    %3138 = vmatpush1.msra.mxu0 %v785
    %3139 = vmatprep.subr.mxu0 %v790
    %3140 = vmatpush1.msra.mxu0 %v789
    %3141 = vmatprep.subr.mxu0 %v794
    %3142 = vmatpush1.msra.mxu0 %v793
    %3143 = vmatprep.subr.mxu0 %v798
    %3144 = vmatpush1.msra.mxu0 %v797
    %3145 = vmatprep.subr.mxu0 %v802
    %3146 = vmatpush1.msra.mxu0 %v801
    %3147 = vmatprep.subr.mxu0 %v806
    %3148 = vmatpush1.msra.mxu0 %v805
    %3149 = vmatprep.subr.mxu0 %v810
    %3150 = vmatpush1.msra.mxu0 %v809
    %3151 = vmatprep.subr.mxu0 %v814
    %3152 = vmatpush1.msra.mxu0 %v813
    %3153 = vmatprep.subr.mxu0 %v818
    %3154 = vmatpush1.msra.mxu0 %v817
    %3155 = vmatprep.subr.mxu0 %v822
    %3156 = vmatpush1.msra.mxu0 %v821
    %3157 = vmatprep.subr.mxu0 %v826
    %3158 = vmatpush1.msra.mxu0 %v825
    %3159 = vmatprep.subr.mxu0 %v830
    %3160 = vmatpush1.msra.mxu0 %v829
    %3161 = vmatprep.subr.mxu0 %v834
    %3162 = vmatpush1.msra.mxu0 %v833
    %3163 = vmatprep.subr.mxu0 %v838
    %3164 = vmatpush1.msra.mxu0 %v837
    %3165 = vmatprep.subr.mxu0 %v842
    %3166 = vmatpush1.msra.mxu0 %v841
    %3167 = vmatprep.subr.mxu0 %v846
    %3168 = vmatpush1.msra.mxu0 %v845
    %3169 = vmatprep.subr.mxu0 %v850
    %3170 = vmatpush1.msra.mxu0 %v849
    %3171 = vmatprep.subr.mxu0 %v854
    %3172 = vmatpush1.msra.mxu0 %v853
    %3173 = vmatprep.subr.mxu0 %v858
    %3174 = vmatpush1.msra.mxu0 %v857
    %3175 = vmatprep.subr.mxu0 %v862
    %3176 = vmatpush1.msra.mxu0 %v861
    %3177 = vmatprep.subr.mxu0 %v866
    %3178 = vmatpush1.msra.mxu0 %v865
    %3179 = vmatprep.subr.mxu0 %v870
    %3180 = vmatpush1.msra.mxu0 %v869
    %3181 = vmatprep.subr.mxu0 %v874
    %3182 = vmatpush1.msra.mxu0 %v873
    %3183 = vmatprep.subr.mxu0 %v878
    %3184 = vmatpush1.msra.mxu0 %v877
    %3185 = vmatprep.subr.mxu0 %v882
    %3186 = vmatpush1.msra.mxu0 %v881
    %3187 = vmatprep.subr.mxu0 %v886
    %3188 = vmatpush1.msra.mxu0 %v885
    %3189 = vmatprep.subr.mxu0 %v890
    %3190 = vmatpush1.msra.mxu0 %v889
    %3191 = vmatprep.mubr.f32.mxu0 %v146
    %3192 = vmatmul.mubr.f32.gmra.mrb[0].mxu0 %v145
    %v3193 = vpop.f32.mrb[0].mxu0
    %v3194 = vadd.f32 %v3033, %v3193
    %v3195 = vpop.f32.mrb[0].mxu0
    %v3196 = vadd.f32 %v3035, %v3195
    %3197 = vmatprep.mubr.f32.mxu0 %v161
    %3198 = vmatmul.mubr.f32.gmra.mrb[0].mxu0 %v160
    %v3199 = vpop.f32.mrb[0].mxu0
    %v3200 = vadd.f32 %v3039, %v3199
    %v3201 = vpop.f32.mrb[0].mxu0
    %v3202 = vadd.f32 %v3041, %v3201
    %3203 = vmatprep.mubr.f32.mxu0 %v176
    %3204 = vmatmul.mubr.f32.gmra.mrb[0].mxu0 %v175
    %v3205 = vpop.f32.mrb[0].mxu0
    %v3206 = vadd.f32 %v3045, %v3205
    %v3207 = vpop.f32.mrb[0].mxu0
    %v3208 = vadd.f32 %v3047, %v3207
    %3209 = vmatprep.mubr.f32.mxu0 %v191
    %3210 = vmatmul.mubr.f32.gmra.mrb[0].mxu0 %v190
    %v3211 = vpop.f32.mrb[0].mxu0
    %v3212 = vadd.f32 %v3051, %v3211
    %v3213 = vpop.f32.mrb[0].mxu0
    %v3214 = vadd.f32 %v3053, %v3213
    %3215 = vmatprep.mubr.f32.mxu0 %v206
    %3216 = vmatmul.mubr.f32.gmra.mrb[0].mxu0 %v205
    %v3217 = vpop.f32.mrb[0].mxu0
    %v3218 = vadd.f32 %v3057, %v3217
    %v3219 = vpop.f32.mrb[0].mxu0
    %v3220 = vadd.f32 %v3059, %v3219
    %3221 = vmatprep.mubr.f32.mxu0 %v221
    %3222 = vmatmul.mubr.f32.gmra.mrb[0].mxu0 %v220
    %v3223 = vpop.f32.mrb[0].mxu0
    %v3224 = vadd.f32 %v3063, %v3223
    %v3225 = vpop.f32.mrb[0].mxu0
    %v3226 = vadd.f32 %v3065, %v3225
    %3227 = vmatprep.mubr.f32.mxu0 %v236
    %3228 = vmatmul.mubr.f32.gmra.mrb[0].mxu0 %v235
    %v3229 = vpop.f32.mrb[0].mxu0
    %v3230 = vadd.f32 %v3069, %v3229
    %v3231 = vpop.f32.mrb[0].mxu0
    %v3232 = vadd.f32 %v3071, %v3231
    %3233 = vmatprep.mubr.f32.mxu0 %v251
    %3234 = vmatmul.mubr.f32.gmra.mrb[0].mxu0 %v250
    %v3235 = vpop.f32.mrb[0].mxu0
    %v3236 = vadd.f32 %v3075, %v3235
    %v3237 = vpop.f32.mrb[0].mxu0
    %v3238 = vadd.f32 %v3077, %v3237
    %3239 = vmatprep.mubr.f32.mxu0 %v266
    %3240 = vmatmul.mubr.f32.gmra.mrb[0].mxu0 %v265
    %v3241 = vpop.f32.mrb[0].mxu0
    %v3242 = vadd.f32 %v3081, %v3241
    %v3243 = vpop.f32.mrb[0].mxu0
    %v3244 = vadd.f32 %v3083, %v3243
    %3245 = vmatprep.mubr.f32.mxu0 %v281
    %3246 = vmatmul.mubr.f32.gmra.mrb[0].mxu0 %v280
    %v3247 = vpop.f32.mrb[0].mxu0
    %v3248 = vadd.f32 %v3087, %v3247
    %v3249 = vpop.f32.mrb[0].mxu0
    %v3250 = vadd.f32 %v3089, %v3249
    %3251 = vmatprep.mubr.f32.mxu0 %v296
    %3252 = vmatmul.mubr.f32.gmra.mrb[0].mxu0 %v295
    %v3253 = vpop.f32.mrb[0].mxu0
    %v3254 = vadd.f32 %v3093, %v3253
    %v3255 = vpop.f32.mrb[0].mxu0
    %v3256 = vadd.f32 %v3095, %v3255
    %3257 = vmatprep.mubr.f32.mxu0 %v311
    %3258 = vmatmul.mubr.f32.gmra.mrb[0].mxu0 %v310
    %v3259 = vpop.f32.mrb[0].mxu0
    %v3260 = vadd.f32 %v3099, %v3259
    %v3261 = vpop.f32.mrb[0].mxu0
    %v3262 = vadd.f32 %v3101, %v3261
    %3263 = vmatprep.mubr.f32.mxu0 %v326
    %3264 = vmatmul.mubr.f32.gmra.mrb[0].mxu0 %v325
    %v3265 = vpop.f32.mrb[0].mxu0
    %v3266 = vadd.f32 %v3105, %v3265
    %v3267 = vpop.f32.mrb[0].mxu0
    %v3268 = vadd.f32 %v3107, %v3267
    %3269 = vmatprep.mubr.f32.mxu0 %v341
    %3270 = vmatmul.mubr.f32.gmra.mrb[0].mxu0 %v340
    %v3271 = vpop.f32.mrb[0].mxu0
    %v3272 = vadd.f32 %v3111, %v3271
    %v3273 = vpop.f32.mrb[0].mxu0
    %v3274 = vadd.f32 %v3113, %v3273
    %3275 = vmatprep.mubr.f32.mxu0 %v356
    %3276 = vmatmul.mubr.f32.gmra.mrb[0].mxu0 %v355
    %v3277 = vpop.f32.mrb[0].mxu0
    %v3278 = vadd.f32 %v3117, %v3277
    %v3279 = vpop.f32.mrb[0].mxu0
    %v3280 = vadd.f32 %v3119, %v3279
    %3281 = vmatprep.mubr.f32.mxu0 %v371
    %3282 = vmatmul.mubr.f32.gmra.mrb[0].mxu0 %v370
    %v3283 = vpop.f32.mrb[0].mxu0
    %v3284 = vadd.f32 %v3123, %v3283
    %v3285 = vpop.f32.mrb[0].mxu0
    %v3286 = vadd.f32 %v3125, %v3285
    %3287 = vdwg.mxu0
    %3288 = vmatprep.subr.mxu0 %v894
    %3289 = vmatpush1.msra.mxu0 %v893
    %3290 = vmatprep.subr.mxu0 %v898
    %3291 = vmatpush1.msra.mxu0 %v897
    %3292 = vmatprep.subr.mxu0 %v902
    %3293 = vmatpush1.msra.mxu0 %v901
    %3294 = vmatprep.subr.mxu0 %v906
    %3295 = vmatpush1.msra.mxu0 %v905
    %3296 = vmatprep.subr.mxu0 %v910
    %3297 = vmatpush1.msra.mxu0 %v909
    %3298 = vmatprep.subr.mxu0 %v914
    %3299 = vmatpush1.msra.mxu0 %v913
    %3300 = vmatprep.subr.mxu0 %v918
    %3301 = vmatpush1.msra.mxu0 %v917
    %3302 = vmatprep.subr.mxu0 %v922
    %3303 = vmatpush1.msra.mxu0 %v921
    %3304 = vmatprep.subr.mxu0 %v926
    %3305 = vmatpush1.msra.mxu0 %v925
    %3306 = vmatprep.subr.mxu0 %v930
    %3307 = vmatpush1.msra.mxu0 %v929
    %3308 = vmatprep.subr.mxu0 %v934
    %3309 = vmatpush1.msra.mxu0 %v933
    %3310 = vmatprep.subr.mxu0 %v938
    %3311 = vmatpush1.msra.mxu0 %v937
    %3312 = vmatprep.subr.mxu0 %v942
    %3313 = vmatpush1.msra.mxu0 %v941
    %3314 = vmatprep.subr.mxu0 %v946
    %3315 = vmatpush1.msra.mxu0 %v945
    %3316 = vmatprep.subr.mxu0 %v950
    %3317 = vmatpush1.msra.mxu0 %v949
    %3318 = vmatprep.subr.mxu0 %v954
    %3319 = vmatpush1.msra.mxu0 %v953
    %3320 = vmatprep.subr.mxu0 %v958
    %3321 = vmatpush1.msra.mxu0 %v957
    %3322 = vmatprep.subr.mxu0 %v962
    %3323 = vmatpush1.msra.mxu0 %v961
    %3324 = vmatprep.subr.mxu0 %v966
    %3325 = vmatpush1.msra.mxu0 %v965
    %3326 = vmatprep.subr.mxu0 %v970
    %3327 = vmatpush1.msra.mxu0 %v969
    %3328 = vmatprep.subr.mxu0 %v974
    %3329 = vmatpush1.msra.mxu0 %v973
    %3330 = vmatprep.subr.mxu0 %v978
    %3331 = vmatpush1.msra.mxu0 %v977
    %3332 = vmatprep.subr.mxu0 %v982
    %3333 = vmatpush1.msra.mxu0 %v981
    %3334 = vmatprep.subr.mxu0 %v986
    %3335 = vmatpush1.msra.mxu0 %v985
    %3336 = vmatprep.subr.mxu0 %v990
    %3337 = vmatpush1.msra.mxu0 %v989
    %3338 = vmatprep.subr.mxu0 %v994
    %3339 = vmatpush1.msra.mxu0 %v993
    %3340 = vmatprep.subr.mxu0 %v998
    %3341 = vmatpush1.msra.mxu0 %v997
    %3342 = vmatprep.subr.mxu0 %v1002
    %3343 = vmatpush1.msra.mxu0 %v1001
    %3344 = vmatprep.subr.mxu0 %v1006
    %3345 = vmatpush1.msra.mxu0 %v1005
    %3346 = vmatprep.subr.mxu0 %v1010
    %3347 = vmatpush1.msra.mxu0 %v1009
    %3348 = vmatprep.subr.mxu0 %v1014
    %3349 = vmatpush1.msra.mxu0 %v1013
    %3350 = vmatprep.subr.mxu0 %v1018
    %3351 = vmatpush1.msra.mxu0 %v1017
    %3352 = vmatprep.mubr.f32.mxu0 %v148
    %3353 = vmatmul.mubr.f32.gmra.mrb[0].mxu0 %v147
    %v3354 = vpop.f32.mrb[0].mxu0
    %v3355 = vadd.f32 %v3194, %v3354
    %v3356 = vpop.f32.mrb[0].mxu0
    %v3357 = vadd.f32 %v3196, %v3356
    %3358 = vmatprep.mubr.f32.mxu0 %v163
    %3359 = vmatmul.mubr.f32.gmra.mrb[0].mxu0 %v162
    %v3360 = vpop.f32.mrb[0].mxu0
    %v3361 = vadd.f32 %v3200, %v3360
    %v3362 = vpop.f32.mrb[0].mxu0
    %v3363 = vadd.f32 %v3202, %v3362
    %3364 = vmatprep.mubr.f32.mxu0 %v178
    %3365 = vmatmul.mubr.f32.gmra.mrb[0].mxu0 %v177
    %v3366 = vpop.f32.mrb[0].mxu0
    %v3367 = vadd.f32 %v3206, %v3366
    %v3368 = vpop.f32.mrb[0].mxu0
    %v3369 = vadd.f32 %v3208, %v3368
    %3370 = vmatprep.mubr.f32.mxu0 %v193
    %3371 = vmatmul.mubr.f32.gmra.mrb[0].mxu0 %v192
    %v3372 = vpop.f32.mrb[0].mxu0
    %v3373 = vadd.f32 %v3212, %v3372
    %v3374 = vpop.f32.mrb[0].mxu0
    %v3375 = vadd.f32 %v3214, %v3374
    %3376 = vmatprep.mubr.f32.mxu0 %v208
    %3377 = vmatmul.mubr.f32.gmra.mrb[0].mxu0 %v207
    %v3378 = vpop.f32.mrb[0].mxu0
    %v3379 = vadd.f32 %v3218, %v3378
    %v3380 = vpop.f32.mrb[0].mxu0
    %v3381 = vadd.f32 %v3220, %v3380
    %3382 = vmatprep.mubr.f32.mxu0 %v223
    %3383 = vmatmul.mubr.f32.gmra.mrb[0].mxu0 %v222
    %v3384 = vpop.f32.mrb[0].mxu0
    %v3385 = vadd.f32 %v3224, %v3384
    %v3386 = vpop.f32.mrb[0].mxu0
    %v3387 = vadd.f32 %v3226, %v3386
    %3388 = vmatprep.mubr.f32.mxu0 %v238
    %3389 = vmatmul.mubr.f32.gmra.mrb[0].mxu0 %v237
    %v3390 = vpop.f32.mrb[0].mxu0
    %v3391 = vadd.f32 %v3230, %v3390
    %v3392 = vpop.f32.mrb[0].mxu0
    %v3393 = vadd.f32 %v3232, %v3392
    %3394 = vmatprep.mubr.f32.mxu0 %v253
    %3395 = vmatmul.mubr.f32.gmra.mrb[0].mxu0 %v252
    %v3396 = vpop.f32.mrb[0].mxu0
    %v3397 = vadd.f32 %v3236, %v3396
    %v3398 = vpop.f32.mrb[0].mxu0
    %v3399 = vadd.f32 %v3238, %v3398
    %3400 = vmatprep.mubr.f32.mxu0 %v268
    %3401 = vmatmul.mubr.f32.gmra.mrb[0].mxu0 %v267
    %v3402 = vpop.f32.mrb[0].mxu0
    %v3403 = vadd.f32 %v3242, %v3402
    %v3404 = vpop.f32.mrb[0].mxu0
    %v3405 = vadd.f32 %v3244, %v3404
    %3406 = vmatprep.mubr.f32.mxu0 %v283
    %3407 = vmatmul.mubr.f32.gmra.mrb[0].mxu0 %v282
    %v3408 = vpop.f32.mrb[0].mxu0
    %v3409 = vadd.f32 %v3248, %v3408
    %v3410 = vpop.f32.mrb[0].mxu0
    %v3411 = vadd.f32 %v3250, %v3410
    %3412 = vmatprep.mubr.f32.mxu0 %v298
    %3413 = vmatmul.mubr.f32.gmra.mrb[0].mxu0 %v297
    %v3414 = vpop.f32.mrb[0].mxu0
    %v3415 = vadd.f32 %v3254, %v3414
    %v3416 = vpop.f32.mrb[0].mxu0
    %v3417 = vadd.f32 %v3256, %v3416
    %3418 = vmatprep.mubr.f32.mxu0 %v313
    %3419 = vmatmul.mubr.f32.gmra.mrb[0].mxu0 %v312
    %v3420 = vpop.f32.mrb[0].mxu0
    %v3421 = vadd.f32 %v3260, %v3420
    %v3422 = vpop.f32.mrb[0].mxu0
    %v3423 = vadd.f32 %v3262, %v3422
    %3424 = vmatprep.mubr.f32.mxu0 %v328
    %3425 = vmatmul.mubr.f32.gmra.mrb[0].mxu0 %v327
    %v3426 = vpop.f32.mrb[0].mxu0
    %v3427 = vadd.f32 %v3266, %v3426
    %v3428 = vpop.f32.mrb[0].mxu0
    %v3429 = vadd.f32 %v3268, %v3428
    %3430 = vmatprep.mubr.f32.mxu0 %v343
    %3431 = vmatmul.mubr.f32.gmra.mrb[0].mxu0 %v342
    %v3432 = vpop.f32.mrb[0].mxu0
    %v3433 = vadd.f32 %v3272, %v3432
    %v3434 = vpop.f32.mrb[0].mxu0
    %v3435 = vadd.f32 %v3274, %v3434
    %3436 = vmatprep.mubr.f32.mxu0 %v358
    %3437 = vmatmul.mubr.f32.gmra.mrb[0].mxu0 %v357
    %v3438 = vpop.f32.mrb[0].mxu0
    %v3439 = vadd.f32 %v3278, %v3438
    %v3440 = vpop.f32.mrb[0].mxu0
    %v3441 = vadd.f32 %v3280, %v3440
    %3442 = vmatprep.mubr.f32.mxu0 %v373
    %3443 = vmatmul.mubr.f32.gmra.mrb[0].mxu0 %v372
    %v3444 = vpop.f32.mrb[0].mxu0
    %v3445 = vadd.f32 %v3284, %v3444
    %v3446 = vpop.f32.mrb[0].mxu0
    %v3447 = vadd.f32 %v3286, %v3446
    %3448 = vdwg.mxu0
    %3449 = vmatprep.subr.mxu0 %v1022
    %3450 = vmatpush1.msra.mxu0 %v1021
    %3451 = vmatprep.subr.mxu0 %v1026
    %3452 = vmatpush1.msra.mxu0 %v1025
    %3453 = vmatprep.subr.mxu0 %v1030
    %3454 = vmatpush1.msra.mxu0 %v1029
    %3455 = vmatprep.subr.mxu0 %v1034
    %3456 = vmatpush1.msra.mxu0 %v1033
    %3457 = vmatprep.subr.mxu0 %v1038
    %3458 = vmatpush1.msra.mxu0 %v1037
    %3459 = vmatprep.subr.mxu0 %v1042
    %3460 = vmatpush1.msra.mxu0 %v1041
    %3461 = vmatprep.subr.mxu0 %v1046
    %3462 = vmatpush1.msra.mxu0 %v1045
    %3463 = vmatprep.subr.mxu0 %v1050
    %3464 = vmatpush1.msra.mxu0 %v1049
    %3465 = vmatprep.subr.mxu0 %v1054
    %3466 = vmatpush1.msra.mxu0 %v1053
    %3467 = vmatprep.subr.mxu0 %v1058
    %3468 = vmatpush1.msra.mxu0 %v1057
    %3469 = vmatprep.subr.mxu0 %v1062
    %3470 = vmatpush1.msra.mxu0 %v1061
    %3471 = vmatprep.subr.mxu0 %v1066
    %3472 = vmatpush1.msra.mxu0 %v1065
    %3473 = vmatprep.subr.mxu0 %v1070
    %3474 = vmatpush1.msra.mxu0 %v1069
    %3475 = vmatprep.subr.mxu0 %v1074
    %3476 = vmatpush1.msra.mxu0 %v1073
    %3477 = vmatprep.subr.mxu0 %v1078
    %3478 = vmatpush1.msra.mxu0 %v1077
    %3479 = vmatprep.subr.mxu0 %v1082
    %3480 = vmatpush1.msra.mxu0 %v1081
    %3481 = vmatprep.subr.mxu0 %v1086
    %3482 = vmatpush1.msra.mxu0 %v1085
    %3483 = vmatprep.subr.mxu0 %v1090
    %3484 = vmatpush1.msra.mxu0 %v1089
    %3485 = vmatprep.subr.mxu0 %v1094
    %3486 = vmatpush1.msra.mxu0 %v1093
    %3487 = vmatprep.subr.mxu0 %v1098
    %3488 = vmatpush1.msra.mxu0 %v1097
    %3489 = vmatprep.subr.mxu0 %v1102
    %3490 = vmatpush1.msra.mxu0 %v1101
    %3491 = vmatprep.subr.mxu0 %v1106
    %3492 = vmatpush1.msra.mxu0 %v1105
    %3493 = vmatprep.subr.mxu0 %v1110
    %3494 = vmatpush1.msra.mxu0 %v1109
    %3495 = vmatprep.subr.mxu0 %v1114
    %3496 = vmatpush1.msra.mxu0 %v1113
    %3497 = vmatprep.subr.mxu0 %v1118
    %3498 = vmatpush1.msra.mxu0 %v1117
    %3499 = vmatprep.subr.mxu0 %v1122
    %3500 = vmatpush1.msra.mxu0 %v1121
    %3501 = vmatprep.subr.mxu0 %v1126
    %3502 = vmatpush1.msra.mxu0 %v1125
    %3503 = vmatprep.subr.mxu0 %v1130
    %3504 = vmatpush1.msra.mxu0 %v1129
    %3505 = vmatprep.subr.mxu0 %v1134
    %3506 = vmatpush1.msra.mxu0 %v1133
    %3507 = vmatprep.subr.mxu0 %v1138
    %3508 = vmatpush1.msra.mxu0 %v1137
    %3509 = vmatprep.subr.mxu0 %v1142
    %3510 = vmatpush1.msra.mxu0 %v1141
    %3511 = vmatprep.subr.mxu0 %v1146
    %3512 = vmatpush1.msra.mxu0 %v1145
    %3513 = vmatprep.mubr.f32.mxu0 %v150
    %3514 = vmatmul.mubr.f32.gmra.mrb[0].mxu0 %v149
    %v3515 = vpop.f32.mrb[0].mxu0
    %v3516 = vadd.f32 %v3355, %v3515
    %v3517 = vpop.f32.mrb[0].mxu0
    %v3518 = vadd.f32 %v3357, %v3517
    %3519 = vmatprep.mubr.f32.mxu0 %v165
    %3520 = vmatmul.mubr.f32.gmra.mrb[0].mxu0 %v164
    %v3521 = vpop.f32.mrb[0].mxu0
    %v3522 = vadd.f32 %v3361, %v3521
    %v3523 = vpop.f32.mrb[0].mxu0
    %v3524 = vadd.f32 %v3363, %v3523
    %3525 = vmatprep.mubr.f32.mxu0 %v180
    %3526 = vmatmul.mubr.f32.gmra.mrb[0].mxu0 %v179
    %v3527 = vpop.f32.mrb[0].mxu0
    %v3528 = vadd.f32 %v3367, %v3527
    %v3529 = vpop.f32.mrb[0].mxu0
    %v3530 = vadd.f32 %v3369, %v3529
    %3531 = vmatprep.mubr.f32.mxu0 %v195
    %3532 = vmatmul.mubr.f32.gmra.mrb[0].mxu0 %v194
    %v3533 = vpop.f32.mrb[0].mxu0
    %v3534 = vadd.f32 %v3373, %v3533
    %v3535 = vpop.f32.mrb[0].mxu0
    %v3536 = vadd.f32 %v3375, %v3535
    %3537 = vmatprep.mubr.f32.mxu0 %v210
    %3538 = vmatmul.mubr.f32.gmra.mrb[0].mxu0 %v209
    %v3539 = vpop.f32.mrb[0].mxu0
    %v3540 = vadd.f32 %v3379, %v3539
    %v3541 = vpop.f32.mrb[0].mxu0
    %v3542 = vadd.f32 %v3381, %v3541
    %3543 = vmatprep.mubr.f32.mxu0 %v225
    %3544 = vmatmul.mubr.f32.gmra.mrb[0].mxu0 %v224
    %v3545 = vpop.f32.mrb[0].mxu0
    %v3546 = vadd.f32 %v3385, %v3545
    %v3547 = vpop.f32.mrb[0].mxu0
    %v3548 = vadd.f32 %v3387, %v3547
    %3549 = vmatprep.mubr.f32.mxu0 %v240
    %3550 = vmatmul.mubr.f32.gmra.mrb[0].mxu0 %v239
    %v3551 = vpop.f32.mrb[0].mxu0
    %v3552 = vadd.f32 %v3391, %v3551
    %v3553 = vpop.f32.mrb[0].mxu0
    %v3554 = vadd.f32 %v3393, %v3553
    %3555 = vmatprep.mubr.f32.mxu0 %v255
    %3556 = vmatmul.mubr.f32.gmra.mrb[0].mxu0 %v254
    %v3557 = vpop.f32.mrb[0].mxu0
    %v3558 = vadd.f32 %v3397, %v3557
    %v3559 = vpop.f32.mrb[0].mxu0
    %v3560 = vadd.f32 %v3399, %v3559
    %3561 = vmatprep.mubr.f32.mxu0 %v270
    %3562 = vmatmul.mubr.f32.gmra.mrb[0].mxu0 %v269
    %v3563 = vpop.f32.mrb[0].mxu0
    %v3564 = vadd.f32 %v3403, %v3563
    %v3565 = vpop.f32.mrb[0].mxu0
    %v3566 = vadd.f32 %v3405, %v3565
    %3567 = vmatprep.mubr.f32.mxu0 %v285
    %3568 = vmatmul.mubr.f32.gmra.mrb[0].mxu0 %v284
    %v3569 = vpop.f32.mrb[0].mxu0
    %v3570 = vadd.f32 %v3409, %v3569
    %v3571 = vpop.f32.mrb[0].mxu0
    %v3572 = vadd.f32 %v3411, %v3571
    %3573 = vmatprep.mubr.f32.mxu0 %v300
    %3574 = vmatmul.mubr.f32.gmra.mrb[0].mxu0 %v299
    %v3575 = vpop.f32.mrb[0].mxu0
    %v3576 = vadd.f32 %v3415, %v3575
    %v3577 = vpop.f32.mrb[0].mxu0
    %v3578 = vadd.f32 %v3417, %v3577
    %3579 = vmatprep.mubr.f32.mxu0 %v315
    %3580 = vmatmul.mubr.f32.gmra.mrb[0].mxu0 %v314
    %v3581 = vpop.f32.mrb[0].mxu0
    %v3582 = vadd.f32 %v3421, %v3581
    %v3583 = vpop.f32.mrb[0].mxu0
    %v3584 = vadd.f32 %v3423, %v3583
    %3585 = vmatprep.mubr.f32.mxu0 %v330
    %3586 = vmatmul.mubr.f32.gmra.mrb[0].mxu0 %v329
    %v3587 = vpop.f32.mrb[0].mxu0
    %v3588 = vadd.f32 %v3427, %v3587
    %v3589 = vpop.f32.mrb[0].mxu0
    %v3590 = vadd.f32 %v3429, %v3589
    %3591 = vmatprep.mubr.f32.mxu0 %v345
    %3592 = vmatmul.mubr.f32.gmra.mrb[0].mxu0 %v344
    %v3593 = vpop.f32.mrb[0].mxu0
    %v3594 = vadd.f32 %v3433, %v3593
    %v3595 = vpop.f32.mrb[0].mxu0
    %v3596 = vadd.f32 %v3435, %v3595
    %3597 = vmatprep.mubr.f32.mxu0 %v360
    %3598 = vmatmul.mubr.f32.gmra.mrb[0].mxu0 %v359
    %v3599 = vpop.f32.mrb[0].mxu0
    %v3600 = vadd.f32 %v3439, %v3599
    %v3601 = vpop.f32.mrb[0].mxu0
    %v3602 = vadd.f32 %v3441, %v3601
    %3603 = vmatprep.mubr.f32.mxu0 %v375
    %3604 = vmatmul.mubr.f32.gmra.mrb[0].mxu0 %v374
    %v3605 = vpop.f32.mrb[0].mxu0
    %v3606 = vadd.f32 %v3445, %v3605
    %v3607 = vpop.f32.mrb[0].mxu0
    %v3608 = vadd.f32 %v3447, %v3607
    %3609 = vdwg.mxu0
    %3610 = vmatprep.subr.mxu0 %v1150
    %3611 = vmatpush1.msra.mxu0 %v1149
    %3612 = vmatprep.subr.mxu0 %v1154
    %3613 = vmatpush1.msra.mxu0 %v1153
    %3614 = vmatprep.subr.mxu0 %v1158
    %3615 = vmatpush1.msra.mxu0 %v1157
    %3616 = vmatprep.subr.mxu0 %v1162
    %3617 = vmatpush1.msra.mxu0 %v1161
    %3618 = vmatprep.subr.mxu0 %v1166
    %3619 = vmatpush1.msra.mxu0 %v1165
    %3620 = vmatprep.subr.mxu0 %v1170
    %3621 = vmatpush1.msra.mxu0 %v1169
    %3622 = vmatprep.subr.mxu0 %v1174
    %3623 = vmatpush1.msra.mxu0 %v1173
    %3624 = vmatprep.subr.mxu0 %v1178
    %3625 = vmatpush1.msra.mxu0 %v1177
    %3626 = vmatprep.subr.mxu0 %v1182
    %3627 = vmatpush1.msra.mxu0 %v1181
    %3628 = vmatprep.subr.mxu0 %v1186
    %3629 = vmatpush1.msra.mxu0 %v1185
    %3630 = vmatprep.subr.mxu0 %v1190
    %3631 = vmatpush1.msra.mxu0 %v1189
    %3632 = vmatprep.subr.mxu0 %v1194
    %3633 = vmatpush1.msra.mxu0 %v1193
    %3634 = vmatprep.subr.mxu0 %v1198
    %3635 = vmatpush1.msra.mxu0 %v1197
    %3636 = vmatprep.subr.mxu0 %v1202
    %3637 = vmatpush1.msra.mxu0 %v1201
    %3638 = vmatprep.subr.mxu0 %v1206
    %3639 = vmatpush1.msra.mxu0 %v1205
    %3640 = vmatprep.subr.mxu0 %v1210
    %3641 = vmatpush1.msra.mxu0 %v1209
    %3642 = vmatprep.subr.mxu0 %v1214
    %3643 = vmatpush1.msra.mxu0 %v1213
    %3644 = vmatprep.subr.mxu0 %v1218
    %3645 = vmatpush1.msra.mxu0 %v1217
    %3646 = vmatprep.subr.mxu0 %v1222
    %3647 = vmatpush1.msra.mxu0 %v1221
    %3648 = vmatprep.subr.mxu0 %v1226
    %3649 = vmatpush1.msra.mxu0 %v1225
    %3650 = vmatprep.subr.mxu0 %v1230
    %3651 = vmatpush1.msra.mxu0 %v1229
    %3652 = vmatprep.subr.mxu0 %v1234
    %3653 = vmatpush1.msra.mxu0 %v1233
    %3654 = vmatprep.subr.mxu0 %v1238
    %3655 = vmatpush1.msra.mxu0 %v1237
    %3656 = vmatprep.subr.mxu0 %v1242
    %3657 = vmatpush1.msra.mxu0 %v1241
    %3658 = vmatprep.subr.mxu0 %v1246
    %3659 = vmatpush1.msra.mxu0 %v1245
    %3660 = vmatprep.subr.mxu0 %v1250
    %3661 = vmatpush1.msra.mxu0 %v1249
    %3662 = vmatprep.subr.mxu0 %v1254
    %3663 = vmatpush1.msra.mxu0 %v1253
    %3664 = vmatprep.subr.mxu0 %v1258
    %3665 = vmatpush1.msra.mxu0 %v1257
    %3666 = vmatprep.subr.mxu0 %v1262
    %3667 = vmatpush1.msra.mxu0 %v1261
    %3668 = vmatprep.subr.mxu0 %v1266
    %3669 = vmatpush1.msra.mxu0 %v1265
    %3670 = vmatprep.subr.mxu0 %v1270
    %3671 = vmatpush1.msra.mxu0 %v1269
    %3672 = vmatprep.subr.mxu0 %v1274
    %3673 = vmatpush1.msra.mxu0 %v1273
    %3674 = vmatprep.mubr.f32.mxu0 %v152
    %3675 = vmatmul.mubr.f32.gmra.mrb[0].mxu0 %v151
    %v3676 = vpop.f32.mrb[0].mxu0
    %v3677 = vadd.f32 %v3516, %v3676
    %v3678 = vpop.f32.mrb[0].mxu0
    %v3679 = vadd.f32 %v3518, %v3678
    %3680 = vmatprep.mubr.f32.mxu0 %v167
    %3681 = vmatmul.mubr.f32.gmra.mrb[0].mxu0 %v166
    %v3682 = vpop.f32.mrb[0].mxu0
    %v3683 = vadd.f32 %v3522, %v3682
    %v3684 = vpop.f32.mrb[0].mxu0
    %v3685 = vadd.f32 %v3524, %v3684
    %3686 = vmatprep.mubr.f32.mxu0 %v182
    %3687 = vmatmul.mubr.f32.gmra.mrb[0].mxu0 %v181
    %v3688 = vpop.f32.mrb[0].mxu0
    %v3689 = vadd.f32 %v3528, %v3688
    %v3690 = vpop.f32.mrb[0].mxu0
    %v3691 = vadd.f32 %v3530, %v3690
    %3692 = vmatprep.mubr.f32.mxu0 %v197
    %3693 = vmatmul.mubr.f32.gmra.mrb[0].mxu0 %v196
    %v3694 = vpop.f32.mrb[0].mxu0
    %v3695 = vadd.f32 %v3534, %v3694
    %v3696 = vpop.f32.mrb[0].mxu0
    %v3697 = vadd.f32 %v3536, %v3696
    %3698 = vmatprep.mubr.f32.mxu0 %v212
    %3699 = vmatmul.mubr.f32.gmra.mrb[0].mxu0 %v211
    %v3700 = vpop.f32.mrb[0].mxu0
    %v3701 = vadd.f32 %v3540, %v3700
    %v3702 = vpop.f32.mrb[0].mxu0
    %v3703 = vadd.f32 %v3542, %v3702
    %3704 = vmatprep.mubr.f32.mxu0 %v227
    %3705 = vmatmul.mubr.f32.gmra.mrb[0].mxu0 %v226
    %v3706 = vpop.f32.mrb[0].mxu0
    %v3707 = vadd.f32 %v3546, %v3706
    %v3708 = vpop.f32.mrb[0].mxu0
    %v3709 = vadd.f32 %v3548, %v3708
    %3710 = vmatprep.mubr.f32.mxu0 %v242
    %3711 = vmatmul.mubr.f32.gmra.mrb[0].mxu0 %v241
    %v3712 = vpop.f32.mrb[0].mxu0
    %v3713 = vadd.f32 %v3552, %v3712
    %v3714 = vpop.f32.mrb[0].mxu0
    %v3715 = vadd.f32 %v3554, %v3714
    %3716 = vmatprep.mubr.f32.mxu0 %v257
    %3717 = vmatmul.mubr.f32.gmra.mrb[0].mxu0 %v256
    %v3718 = vpop.f32.mrb[0].mxu0
    %v3719 = vadd.f32 %v3558, %v3718
    %v3720 = vpop.f32.mrb[0].mxu0
    %v3721 = vadd.f32 %v3560, %v3720
    %3722 = vmatprep.mubr.f32.mxu0 %v272
    %3723 = vmatmul.mubr.f32.gmra.mrb[0].mxu0 %v271
    %v3724 = vpop.f32.mrb[0].mxu0
    %v3725 = vadd.f32 %v3564, %v3724
    %v3726 = vpop.f32.mrb[0].mxu0
    %v3727 = vadd.f32 %v3566, %v3726
    %3728 = vmatprep.mubr.f32.mxu0 %v287
    %3729 = vmatmul.mubr.f32.gmra.mrb[0].mxu0 %v286
    %v3730 = vpop.f32.mrb[0].mxu0
    %v3731 = vadd.f32 %v3570, %v3730
    %v3732 = vpop.f32.mrb[0].mxu0
    %v3733 = vadd.f32 %v3572, %v3732
    %3734 = vmatprep.mubr.f32.mxu0 %v302
    %3735 = vmatmul.mubr.f32.gmra.mrb[0].mxu0 %v301
    %v3736 = vpop.f32.mrb[0].mxu0
    %v3737 = vadd.f32 %v3576, %v3736
    %v3738 = vpop.f32.mrb[0].mxu0
    %v3739 = vadd.f32 %v3578, %v3738
    %3740 = vmatprep.mubr.f32.mxu0 %v317
    %3741 = vmatmul.mubr.f32.gmra.mrb[0].mxu0 %v316
    %v3742 = vpop.f32.mrb[0].mxu0
    %v3743 = vadd.f32 %v3582, %v3742
    %v3744 = vpop.f32.mrb[0].mxu0
    %v3745 = vadd.f32 %v3584, %v3744
    %3746 = vmatprep.mubr.f32.mxu0 %v332
    %3747 = vmatmul.mubr.f32.gmra.mrb[0].mxu0 %v331
    %v3748 = vpop.f32.mrb[0].mxu0
    %v3749 = vadd.f32 %v3588, %v3748
    %v3750 = vpop.f32.mrb[0].mxu0
    %v3751 = vadd.f32 %v3590, %v3750
    %3752 = vmatprep.mubr.f32.mxu0 %v347
    %3753 = vmatmul.mubr.f32.gmra.mrb[0].mxu0 %v346
    %v3754 = vpop.f32.mrb[0].mxu0
    %v3755 = vadd.f32 %v3594, %v3754
    %v3756 = vpop.f32.mrb[0].mxu0
    %v3757 = vadd.f32 %v3596, %v3756
    %3758 = vmatprep.mubr.f32.mxu0 %v362
    %3759 = vmatmul.mubr.f32.gmra.mrb[0].mxu0 %v361
    %v3760 = vpop.f32.mrb[0].mxu0
    %v3761 = vadd.f32 %v3600, %v3760
    %v3762 = vpop.f32.mrb[0].mxu0
    %v3763 = vadd.f32 %v3602, %v3762
    %3764 = vmatprep.mubr.f32.mxu0 %v377
    %3765 = vmatmul.mubr.f32.gmra.mrb[0].mxu0 %v376
    %v3766 = vpop.f32.mrb[0].mxu0
    %v3767 = vadd.f32 %v3606, %v3766
    %v3768 = vpop.f32.mrb[0].mxu0
    %v3769 = vadd.f32 %v3608, %v3768
    %3770 = vdwg.mxu0
    %3771 = vmatprep.subr.mxu0 %v1278
    %3772 = vmatpush1.msra.mxu0 %v1277
    %3773 = vmatprep.subr.mxu0 %v1282
    %3774 = vmatpush1.msra.mxu0 %v1281
    %3775 = vmatprep.subr.mxu0 %v1286
    %3776 = vmatpush1.msra.mxu0 %v1285
    %3777 = vmatprep.subr.mxu0 %v1290
    %3778 = vmatpush1.msra.mxu0 %v1289
    %3779 = vmatprep.subr.mxu0 %v1294
    %3780 = vmatpush1.msra.mxu0 %v1293
    %3781 = vmatprep.subr.mxu0 %v1298
    %3782 = vmatpush1.msra.mxu0 %v1297
    %3783 = vmatprep.subr.mxu0 %v1302
    %3784 = vmatpush1.msra.mxu0 %v1301
    %3785 = vmatprep.subr.mxu0 %v1306
    %3786 = vmatpush1.msra.mxu0 %v1305
    %3787 = vmatprep.subr.mxu0 0.0
    %3788 = vmatpush1.msra.mxu0 0.0
    %3789 = vmatprep.subr.mxu0 0.0
    %3790 = vmatpush1.msra.mxu0 0.0
    %3791 = vmatprep.subr.mxu0 0.0
    %3792 = vmatpush1.msra.mxu0 0.0
    %3793 = vmatprep.subr.mxu0 0.0
    %3794 = vmatpush1.msra.mxu0 0.0
    %3795 = vmatprep.subr.mxu0 0.0
    %3796 = vmatpush1.msra.mxu0 0.0
    %3797 = vmatprep.subr.mxu0 0.0
    %3798 = vmatpush1.msra.mxu0 0.0
    %3799 = vmatprep.subr.mxu0 0.0
    %3800 = vmatpush1.msra.mxu0 0.0
    %3801 = vmatprep.subr.mxu0 0.0
    %3802 = vmatpush1.msra.mxu0 0.0
    %3803 = vmatprep.subr.mxu0 0.0
    %3804 = vmatpush1.msra.mxu0 0.0
    %3805 = vmatprep.subr.mxu0 0.0
    %3806 = vmatpush1.msra.mxu0 0.0
    %3807 = vmatprep.subr.mxu0 0.0
    %3808 = vmatpush1.msra.mxu0 0.0
    %3809 = vmatprep.subr.mxu0 0.0
    %3810 = vmatpush1.msra.mxu0 0.0
    %3811 = vmatprep.subr.mxu0 0.0
    %3812 = vmatpush1.msra.mxu0 0.0
    %3813 = vmatprep.subr.mxu0 0.0
    %3814 = vmatpush1.msra.mxu0 0.0
    %3815 = vmatprep.subr.mxu0 0.0
    %3816 = vmatpush1.msra.mxu0 0.0
    %3817 = vmatprep.subr.mxu0 0.0
    %3818 = vmatpush1.msra.mxu0 0.0
    %3819 = vmatprep.subr.mxu0 0.0
    %3820 = vmatpush1.msra.mxu0 0.0
    %3821 = vmatprep.subr.mxu0 0.0
    %3822 = vmatpush1.msra.mxu0 0.0
    %3823 = vmatprep.subr.mxu0 0.0
    %3824 = vmatpush1.msra.mxu0 0.0
    %3825 = vmatprep.subr.mxu0 0.0
    %3826 = vmatpush1.msra.mxu0 0.0
    %3827 = vmatprep.subr.mxu0 0.0
    %3828 = vmatpush1.msra.mxu0 0.0
    %3829 = vmatprep.subr.mxu0 0.0
    %3830 = vmatpush1.msra.mxu0 0.0
    %3831 = vmatprep.subr.mxu0 0.0
    %3832 = vmatpush1.msra.mxu0 0.0
    %3833 = vmatprep.subr.mxu0 0.0
    %3834 = vmatpush1.msra.mxu0 0.0
    %3835 = vmatprep.mubr.f32.mxu0 0.0
    %3836 = vmatmul.mubr.f32.gmra.mrb[0].mxu0 %v1309
    %v3837 = vpop.f32.mrb[0].mxu0
    %v3838 = vadd.f32 %v3677, %v3837
    %v3839 = vpop.f32.mrb[0].mxu0
    %v3840 = vadd.f32 %v3679, %v3839
    %3841 = vmatprep.mubr.f32.mxu0 0.0
    %3842 = vmatmul.mubr.f32.gmra.mrb[0].mxu0 %v1312
    %v3843 = vpop.f32.mrb[0].mxu0
    %v3844 = vadd.f32 %v3683, %v3843
    %v3845 = vpop.f32.mrb[0].mxu0
    %v3846 = vadd.f32 %v3685, %v3845
    %3847 = vmatprep.mubr.f32.mxu0 0.0
    %3848 = vmatmul.mubr.f32.gmra.mrb[0].mxu0 %v1315
    %v3849 = vpop.f32.mrb[0].mxu0
    %v3850 = vadd.f32 %v3689, %v3849
    %v3851 = vpop.f32.mrb[0].mxu0
    %v3852 = vadd.f32 %v3691, %v3851
    %3853 = vmatprep.mubr.f32.mxu0 0.0
    %3854 = vmatmul.mubr.f32.gmra.mrb[0].mxu0 %v1318
    %v3855 = vpop.f32.mrb[0].mxu0
    %v3856 = vadd.f32 %v3695, %v3855
    %v3857 = vpop.f32.mrb[0].mxu0
    %v3858 = vadd.f32 %v3697, %v3857
    %3859 = vmatprep.mubr.f32.mxu0 0.0
    %3860 = vmatmul.mubr.f32.gmra.mrb[0].mxu0 %v1321
    %v3861 = vpop.f32.mrb[0].mxu0
    %v3862 = vadd.f32 %v3701, %v3861
    %v3863 = vpop.f32.mrb[0].mxu0
    %v3864 = vadd.f32 %v3703, %v3863
    %3865 = vmatprep.mubr.f32.mxu0 0.0
    %3866 = vmatmul.mubr.f32.gmra.mrb[0].mxu0 %v1324
    %v3867 = vpop.f32.mrb[0].mxu0
    %v3868 = vadd.f32 %v3707, %v3867
    %v3869 = vpop.f32.mrb[0].mxu0
    %v3870 = vadd.f32 %v3709, %v3869
    %3871 = vmatprep.mubr.f32.mxu0 0.0
    %3872 = vmatmul.mubr.f32.gmra.mrb[0].mxu0 %v1327
    %v3873 = vpop.f32.mrb[0].mxu0
    %v3874 = vadd.f32 %v3713, %v3873
    %v3875 = vpop.f32.mrb[0].mxu0
    %v3876 = vadd.f32 %v3715, %v3875
    %3877 = vmatprep.mubr.f32.mxu0 0.0
    %3878 = vmatmul.mubr.f32.gmra.mrb[0].mxu0 %v1330
    %v3879 = vpop.f32.mrb[0].mxu0
    %v3880 = vadd.f32 %v3719, %v3879
    %v3881 = vpop.f32.mrb[0].mxu0
    %v3882 = vadd.f32 %v3721, %v3881
    %3883 = vmatprep.mubr.f32.mxu0 0.0
    %3884 = vmatmul.mubr.f32.gmra.mrb[0].mxu0 %v1333
    %v3885 = vpop.f32.mrb[0].mxu0
    %v3886 = vadd.f32 %v3725, %v3885
    %v3887 = vpop.f32.mrb[0].mxu0
    %v3888 = vadd.f32 %v3727, %v3887
    %3889 = vmatprep.mubr.f32.mxu0 0.0
    %3890 = vmatmul.mubr.f32.gmra.mrb[0].mxu0 %v1336
    %v3891 = vpop.f32.mrb[0].mxu0
    %v3892 = vadd.f32 %v3731, %v3891
    %v3893 = vpop.f32.mrb[0].mxu0
    %v3894 = vadd.f32 %v3733, %v3893
    %3895 = vmatprep.mubr.f32.mxu0 0.0
    %3896 = vmatmul.mubr.f32.gmra.mrb[0].mxu0 %v1339
    %v3897 = vpop.f32.mrb[0].mxu0
    %v3898 = vadd.f32 %v3737, %v3897
    %v3899 = vpop.f32.mrb[0].mxu0
    %v3900 = vadd.f32 %v3739, %v3899
    %3901 = vmatprep.mubr.f32.mxu0 0.0
    %3902 = vmatmul.mubr.f32.gmra.mrb[0].mxu0 %v1342
    %v3903 = vpop.f32.mrb[0].mxu0
    %v3904 = vadd.f32 %v3743, %v3903
    %v3905 = vpop.f32.mrb[0].mxu0
    %v3906 = vadd.f32 %v3745, %v3905
    %3907 = vmatprep.mubr.f32.mxu0 0.0
    %3908 = vmatmul.mubr.f32.gmra.mrb[0].mxu0 %v1345
    %v3909 = vpop.f32.mrb[0].mxu0
    %v3910 = vadd.f32 %v3749, %v3909
    %v3911 = vpop.f32.mrb[0].mxu0
    %v3912 = vadd.f32 %v3751, %v3911
    %3913 = vmatprep.mubr.f32.mxu0 0.0
    %3914 = vmatmul.mubr.f32.gmra.mrb[0].mxu0 %v1348
    %v3915 = vpop.f32.mrb[0].mxu0
    %v3916 = vadd.f32 %v3755, %v3915
    %v3917 = vpop.f32.mrb[0].mxu0
    %v3918 = vadd.f32 %v3757, %v3917
    %3919 = vmatprep.mubr.f32.mxu0 0.0
    %3920 = vmatmul.mubr.f32.gmra.mrb[0].mxu0 %v1351
    %v3921 = vpop.f32.mrb[0].mxu0
    %v3922 = vadd.f32 %v3761, %v3921
    %v3923 = vpop.f32.mrb[0].mxu0
    %v3924 = vadd.f32 %v3763, %v3923
    %3925 = vmatprep.mubr.f32.mxu0 0.0
    %3926 = vmatmul.mubr.f32.gmra.mrb[0].mxu0 %v1354
    %v3927 = vpop.f32.mrb[0].mxu0
    %v3928 = vadd.f32 %v3767, %v3927
    %v3929 = vpop.f32.mrb[0].mxu0
    %v3930 = vadd.f32 %v3769, %v3929
    %3931 = vdwg.mxu0
    %v3932 = vld [vmem:[#allocation10] ss:$4 sm:$0xf]
    %s3933 = scalar_lea.vmem [#allocation10], 1
    %v3934 = vld [vmem:[%s3933] ss:$4 sm:$0xf]
    %v3935 = vadd.f32 %v2550, %v2556
    %v3936 = vadd.f32 %v3935, %v2562
    %v3937 = vadd.f32 %v3936, %v2568
    %v3938 = vadd.f32 %v3937, %v2574
    %v3939 = vadd.f32 %v3938, %v2580
    %v3940 = vadd.f32 %v3939, %v2586
    %v3941 = vadd.f32 %v3940, %v2592
    %v3942 = vadd.f32 %v3941, %v2598
    %v3943 = vadd.f32 %v3942, %v2604
    %v3944 = vadd.f32 %v3943, %v2610
    %v3945 = vadd.f32 %v3944, %v2616
    %v3946 = vadd.f32 %v3945, %v2622
    %v3947 = vadd.f32 %v3946, %v2628
    %v3948 = vadd.f32 %v3947, %v2634
    %v3949 = vadd.f32 %v3948, %v2640
    %v3950 = vrot.slane %v3949, 4
    %v3951 = vadd.f32 %v3949, %v3950
    %v3952 = vrot.slane %v3951, 2
    %v3953 = vadd.f32 %v3951, %v3952
    %v3954 = vrot.slane %v3953, 1
    %v3955 = vadd.f32 %v3953, %v3954
    %v3956 = vadd.f32 %v2552, %v2558
    %v3957 = vadd.f32 %v3956, %v2564
    %v3958 = vadd.f32 %v3957, %v2570
    %v3959 = vadd.f32 %v3958, %v2576
    %v3960 = vadd.f32 %v3959, %v2582
    %v3961 = vadd.f32 %v3960, %v2588
    %v3962 = vadd.f32 %v3961, %v2594
    %v3963 = vadd.f32 %v3962, %v2600
    %v3964 = vadd.f32 %v3963, %v2606
    %v3965 = vadd.f32 %v3964, %v2612
    %v3966 = vadd.f32 %v3965, %v2618
    %v3967 = vadd.f32 %v3966, %v2624
    %v3968 = vadd.f32 %v3967, %v2630
    %v3969 = vadd.f32 %v3968, %v2636
    %v3970 = vadd.f32 %v3969, %v2642
    %v3971 = vrot.slane %v3970, 4
    %v3972 = vadd.f32 %v3970, %v3971
    %v3973 = vrot.slane %v3972, 2
    %v3974 = vadd.f32 %v3972, %v3973
    %v3975 = vrot.slane %v3974, 1
    %v3976 = vadd.f32 %v3974, %v3975
    %v3977 = vadd.f32 %v3838, %v3844
    %v3978 = vadd.f32 %v3977, %v3850
    %v3979 = vadd.f32 %v3978, %v3856
    %v3980 = vadd.f32 %v3979, %v3862
    %v3981 = vadd.f32 %v3980, %v3868
    %v3982 = vadd.f32 %v3981, %v3874
    %v3983 = vadd.f32 %v3982, %v3880
    %v3984 = vadd.f32 %v3983, %v3886
    %v3985 = vadd.f32 %v3984, %v3892
    %v3986 = vadd.f32 %v3985, %v3898
    %v3987 = vadd.f32 %v3986, %v3904
    %v3988 = vadd.f32 %v3987, %v3910
    %v3989 = vadd.f32 %v3988, %v3916
    %v3990 = vadd.f32 %v3989, %v3922
    %v3991 = vadd.f32 %v3990, %v3928
    %v3992 = vrot.slane %v3991, 4
    %v3993 = vadd.f32 %v3991, %v3992
    %v3994 = vrot.slane %v3993, 2
    %v3995 = vadd.f32 %v3993, %v3994
    %v3996 = vrot.slane %v3995, 1
    %v3997 = vadd.f32 %v3995, %v3996
    %v3998 = vadd.f32 %v3840, %v3846
    %v3999 = vadd.f32 %v3998, %v3852
    %v4000 = vadd.f32 %v3999, %v3858
    %v4001 = vadd.f32 %v4000, %v3864
    %v4002 = vadd.f32 %v4001, %v3870
    %v4003 = vadd.f32 %v4002, %v3876
    %v4004 = vadd.f32 %v4003, %v3882
    %v4005 = vadd.f32 %v4004, %v3888
    %v4006 = vadd.f32 %v4005, %v3894
    %v4007 = vadd.f32 %v4006, %v3900
    %v4008 = vadd.f32 %v4007, %v3906
    %v4009 = vadd.f32 %v4008, %v3912
    %v4010 = vadd.f32 %v4009, %v3918
    %v4011 = vadd.f32 %v4010, %v3924
    %v4012 = vadd.f32 %v4011, %v3930
    %v4013 = vrot.slane %v4012, 4
    %v4014 = vadd.f32 %v4012, %v4013
    %v4015 = vrot.slane %v4014, 2
    %v4016 = vadd.f32 %v4014, %v4015
    %v4017 = vrot.slane %v4016, 1
    %v4018 = vadd.f32 %v4016, %v4017
    %v4019 = vmul.f32 %v3955, 0.0078125
    %v4020 = vmul.f32 %v3976, 0.0078125
    %v4021 = vmul.f32 %v3997, 0.0078125
    %v4022 = vmul.f32 %v4018, 0.0078125
    %v4023 = vmul.f32 %v2550, %v2550
    %v4024 = vmul.f32 %v2552, %v2552
    %v4025 = vmul.f32 %v3838, %v3838
    %v4026 = vmul.f32 %v3840, %v3840
    %v4027 = vmul.f32 %v2556, %v2556
    %v4028 = vmul.f32 %v2558, %v2558
    %v4029 = vmul.f32 %v3844, %v3844
    %v4030 = vmul.f32 %v3846, %v3846
    %v4031 = vmul.f32 %v2562, %v2562
    %v4032 = vmul.f32 %v2564, %v2564
    %v4033 = vmul.f32 %v3850, %v3850
    %v4034 = vmul.f32 %v3852, %v3852
    %v4035 = vmul.f32 %v2568, %v2568
    %v4036 = vmul.f32 %v2570, %v2570
    %v4037 = vmul.f32 %v3856, %v3856
    %v4038 = vmul.f32 %v3858, %v3858
    %v4039 = vmul.f32 %v2574, %v2574
    %v4040 = vmul.f32 %v2576, %v2576
    %v4041 = vmul.f32 %v3862, %v3862
    %v4042 = vmul.f32 %v3864, %v3864
    %v4043 = vmul.f32 %v2580, %v2580
    %v4044 = vmul.f32 %v2582, %v2582
    %v4045 = vmul.f32 %v3868, %v3868
    %v4046 = vmul.f32 %v3870, %v3870
    %v4047 = vmul.f32 %v2586, %v2586
    %v4048 = vmul.f32 %v2588, %v2588
    %v4049 = vmul.f32 %v3874, %v3874
    %v4050 = vmul.f32 %v3876, %v3876
    %v4051 = vmul.f32 %v2592, %v2592
    %v4052 = vmul.f32 %v2594, %v2594
    %v4053 = vmul.f32 %v3880, %v3880
    %v4054 = vmul.f32 %v3882, %v3882
    %v4055 = vmul.f32 %v2598, %v2598
    %v4056 = vmul.f32 %v2600, %v2600
    %v4057 = vmul.f32 %v3886, %v3886
    %v4058 = vmul.f32 %v3888, %v3888
    %v4059 = vmul.f32 %v2604, %v2604
    %v4060 = vmul.f32 %v2606, %v2606
    %v4061 = vmul.f32 %v3892, %v3892
    %v4062 = vmul.f32 %v3894, %v3894
    %v4063 = vmul.f32 %v2610, %v2610
    %v4064 = vmul.f32 %v2612, %v2612
    %v4065 = vmul.f32 %v3898, %v3898
    %v4066 = vmul.f32 %v3900, %v3900
    %v4067 = vmul.f32 %v2616, %v2616
    %v4068 = vmul.f32 %v2618, %v2618
    %v4069 = vmul.f32 %v3904, %v3904
    %v4070 = vmul.f32 %v3906, %v3906
    %v4071 = vmul.f32 %v2622, %v2622
    %v4072 = vmul.f32 %v2624, %v2624
    %v4073 = vmul.f32 %v3910, %v3910
    %v4074 = vmul.f32 %v3912, %v3912
    %v4075 = vmul.f32 %v2628, %v2628
    %v4076 = vmul.f32 %v2630, %v2630
    %v4077 = vmul.f32 %v3916, %v3916
    %v4078 = vmul.f32 %v3918, %v3918
    %v4079 = vmul.f32 %v2634, %v2634
    %v4080 = vmul.f32 %v2636, %v2636
    %v4081 = vmul.f32 %v3922, %v3922
    %v4082 = vmul.f32 %v3924, %v3924
    %v4083 = vmul.f32 %v2640, %v2640
    %v4084 = vmul.f32 %v2642, %v2642
    %v4085 = vmul.f32 %v3928, %v3928
    %v4086 = vmul.f32 %v3930, %v3930
    %v4087 = vadd.f32 %v4023, %v4027
    %v4088 = vadd.f32 %v4087, %v4031
    %v4089 = vadd.f32 %v4088, %v4035
    %v4090 = vadd.f32 %v4089, %v4039
    %v4091 = vadd.f32 %v4090, %v4043
    %v4092 = vadd.f32 %v4091, %v4047
    %v4093 = vadd.f32 %v4092, %v4051
    %v4094 = vadd.f32 %v4093, %v4055
    %v4095 = vadd.f32 %v4094, %v4059
    %v4096 = vadd.f32 %v4095, %v4063
    %v4097 = vadd.f32 %v4096, %v4067
    %v4098 = vadd.f32 %v4097, %v4071
    %v4099 = vadd.f32 %v4098, %v4075
    %v4100 = vadd.f32 %v4099, %v4079
    %v4101 = vadd.f32 %v4100, %v4083
    %v4102 = vrot.slane %v4101, 4
    %v4103 = vadd.f32 %v4101, %v4102
    %v4104 = vrot.slane %v4103, 2
    %v4105 = vadd.f32 %v4103, %v4104
    %v4106 = vrot.slane %v4105, 1
    %v4107 = vadd.f32 %v4105, %v4106
    %v4108 = vadd.f32 %v4024, %v4028
    %v4109 = vadd.f32 %v4108, %v4032
    %v4110 = vadd.f32 %v4109, %v4036
    %v4111 = vadd.f32 %v4110, %v4040
    %v4112 = vadd.f32 %v4111, %v4044
    %v4113 = vadd.f32 %v4112, %v4048
    %v4114 = vadd.f32 %v4113, %v4052
    %v4115 = vadd.f32 %v4114, %v4056
    %v4116 = vadd.f32 %v4115, %v4060
    %v4117 = vadd.f32 %v4116, %v4064
    %v4118 = vadd.f32 %v4117, %v4068
    %v4119 = vadd.f32 %v4118, %v4072
    %v4120 = vadd.f32 %v4119, %v4076
    %v4121 = vadd.f32 %v4120, %v4080
    %v4122 = vadd.f32 %v4121, %v4084
    %v4123 = vrot.slane %v4122, 4
    %v4124 = vadd.f32 %v4122, %v4123
    %v4125 = vrot.slane %v4124, 2
    %v4126 = vadd.f32 %v4124, %v4125
    %v4127 = vrot.slane %v4126, 1
    %v4128 = vadd.f32 %v4126, %v4127
    %v4129 = vadd.f32 %v4025, %v4029
    %v4130 = vadd.f32 %v4129, %v4033
    %v4131 = vadd.f32 %v4130, %v4037
    %v4132 = vadd.f32 %v4131, %v4041
    %v4133 = vadd.f32 %v4132, %v4045
    %v4134 = vadd.f32 %v4133, %v4049
    %v4135 = vadd.f32 %v4134, %v4053
    %v4136 = vadd.f32 %v4135, %v4057
    %v4137 = vadd.f32 %v4136, %v4061
    %v4138 = vadd.f32 %v4137, %v4065
    %v4139 = vadd.f32 %v4138, %v4069
    %v4140 = vadd.f32 %v4139, %v4073
    %v4141 = vadd.f32 %v4140, %v4077
    %v4142 = vadd.f32 %v4141, %v4081
    %v4143 = vadd.f32 %v4142, %v4085
    %v4144 = vrot.slane %v4143, 4
    %v4145 = vadd.f32 %v4143, %v4144
    %v4146 = vrot.slane %v4145, 2
    %v4147 = vadd.f32 %v4145, %v4146
    %v4148 = vrot.slane %v4147, 1
    %v4149 = vadd.f32 %v4147, %v4148
    %v4150 = vadd.f32 %v4026, %v4030
    %v4151 = vadd.f32 %v4150, %v4034
    %v4152 = vadd.f32 %v4151, %v4038
    %v4153 = vadd.f32 %v4152, %v4042
    %v4154 = vadd.f32 %v4153, %v4046
    %v4155 = vadd.f32 %v4154, %v4050
    %v4156 = vadd.f32 %v4155, %v4054
    %v4157 = vadd.f32 %v4156, %v4058
    %v4158 = vadd.f32 %v4157, %v4062
    %v4159 = vadd.f32 %v4158, %v4066
    %v4160 = vadd.f32 %v4159, %v4070
    %v4161 = vadd.f32 %v4160, %v4074
    %v4162 = vadd.f32 %v4161, %v4078
    %v4163 = vadd.f32 %v4162, %v4082
    %v4164 = vadd.f32 %v4163, %v4086
    %v4165 = vrot.slane %v4164, 4
    %v4166 = vadd.f32 %v4164, %v4165
    %v4167 = vrot.slane %v4166, 2
    %v4168 = vadd.f32 %v4166, %v4167
    %v4169 = vrot.slane %v4168, 1
    %v4170 = vadd.f32 %v4168, %v4169
    %v4171 = vmul.f32 %v4107, 0.0078125
    %v4172 = vmul.f32 %v4128, 0.0078125
    %v4173 = vmul.f32 %v4149, 0.0078125
    %v4174 = vmul.f32 %v4170, 0.0078125
    %v4175 = vmul.f32 %v4019, %v4019
    %v4176 = vmul.f32 %v4020, %v4020
    %v4177 = vmul.f32 %v4021, %v4021
    %v4178 = vmul.f32 %v4022, %v4022
    %v4179 = vsub.f32 %v4171, %v4175
    %v4180 = vsub.f32 %v4172, %v4176
    %v4181 = vsub.f32 %v4173, %v4177
    %v4182 = vsub.f32 %v4174, %v4178
    %v4183 = vadd.f32 %v4179, 1e-05
    %v4184 = vadd.f32 %v4180, 1e-05
    %v4185 = vadd.f32 %v4181, 1e-05
    %v4186 = vadd.f32 %v4182, 1e-05
    %v4187 = vrsqrt.pop %v4183
    %v4188 = vrsqrt.pop %v4184
    %v4189 = vrsqrt.pop %v4185
    %v4190 = vrsqrt.pop %v4186
    %v4195 = vcombine.low %v4187, %v4188
    %v4196 = vcombine.low %v4189, %v4190
    %v4198 = vunpack.c.l.s4 1966171168
    %v4199 = vunpack.c.0.s8 %v4198
    %v4200 = vlaneseq
    %v4201 = vshrl.u32 %v4200, 7
    %v4202 = vsub.s32 %v4199, %v4201
    %v4203 = vrot.slane %v4195, %v4202
    %v4205 = vunpack.c.l.s4 1966171168
    %v4206 = vunpack.c.0.s8 %v4205
    %v4207 = vlaneseq
    %v4208 = vshrl.u32 %v4207, 7
    %v4209 = vsub.s32 %v4206, %v4208
    %v4210 = vrot.slane %v4196, %v4209
    %v4211 = vcombine.low %v4203, %v4210
    %v4213 = vunpack.c.l.s4 1966171168
    %v4214 = vunpack.c.0.s8 %v4213
    %v4215 = vlaneseq
    %v4216 = vshrl.u32 %v4215, 7
    %v4217 = vsub.s32 %v4214, %v4216
    %v4218 = vrot.slane %v4211, %v4217
    %v4220 = vmul.f32 %v3932, %v4218
    %v4222 = vlaneseq
    %v4223 = vshrl.u32 %v4222, 7
    %v4224 = vsub.s32 0, %v4223
    %v4225 = vrot.slane %v4220, %v4224
    %v4226 = vlaneseq
    %v4227 = vshrl.u32 %v4226, 7
    %v4228 = vsub.s32 1, %v4227
    %v4229 = vrot.slane %v4220, %v4228
    %v4230 = vlaneseq
    %v4231 = vshrl.u32 %v4230, 7
    %v4232 = vsub.s32 2, %v4231
    %v4233 = vrot.slane %v4220, %v4232
    %v4234 = vlaneseq
    %v4235 = vshrl.u32 %v4234, 7
    %v4236 = vsub.s32 3, %v4235
    %v4237 = vrot.slane %v4220, %v4236
    %v4242 = vmul.f32 %v4019, %v4225
    %v4243 = vmul.f32 %v4020, %v4229
    %v4244 = vmul.f32 %v4021, %v4233
    %v4245 = vmul.f32 %v4022, %v4237
    %v4250 = vcombine.low %v4242, %v4243
    %v4251 = vcombine.low %v4244, %v4245
    %v4253 = vunpack.c.l.s4 1966171168
    %v4254 = vunpack.c.0.s8 %v4253
    %v4255 = vlaneseq
    %v4256 = vshrl.u32 %v4255, 7
    %v4257 = vsub.s32 %v4254, %v4256
    %v4258 = vrot.slane %v4250, %v4257
    %v4260 = vunpack.c.l.s4 1966171168
    %v4261 = vunpack.c.0.s8 %v4260
    %v4262 = vlaneseq
    %v4263 = vshrl.u32 %v4262, 7
    %v4264 = vsub.s32 %v4261, %v4263
    %v4265 = vrot.slane %v4251, %v4264
    %v4266 = vcombine.low %v4258, %v4265
    %v4268 = vunpack.c.l.s4 1966171168
    %v4269 = vunpack.c.0.s8 %v4268
    %v4270 = vlaneseq
    %v4271 = vshrl.u32 %v4270, 7
    %v4272 = vsub.s32 %v4269, %v4271
    %v4273 = vrot.slane %v4266, %v4272
    %v4275 = vsub.f32 %v3934, %v4273
    %v4276 = vmul.f32 %v2550, %v4225
    %v4277 = vmul.f32 %v2552, %v4229
    %v4278 = vmul.f32 %v3838, %v4233
    %v4279 = vmul.f32 %v3840, %v4237
    %v4280 = vmul.f32 %v2556, %v4225
    %v4281 = vmul.f32 %v2558, %v4229
    %v4282 = vmul.f32 %v3844, %v4233
    %v4283 = vmul.f32 %v3846, %v4237
    %v4284 = vmul.f32 %v2562, %v4225
    %v4285 = vmul.f32 %v2564, %v4229
    %v4286 = vmul.f32 %v3850, %v4233
    %v4287 = vmul.f32 %v3852, %v4237
    %v4288 = vmul.f32 %v2568, %v4225
    %v4289 = vmul.f32 %v2570, %v4229
    %v4290 = vmul.f32 %v3856, %v4233
    %v4291 = vmul.f32 %v3858, %v4237
    %v4292 = vmul.f32 %v2574, %v4225
    %v4293 = vmul.f32 %v2576, %v4229
    %v4294 = vmul.f32 %v3862, %v4233
    %v4295 = vmul.f32 %v3864, %v4237
    %v4296 = vmul.f32 %v2580, %v4225
    %v4297 = vmul.f32 %v2582, %v4229
    %v4298 = vmul.f32 %v3868, %v4233
    %v4299 = vmul.f32 %v3870, %v4237
    %v4300 = vmul.f32 %v2586, %v4225
    %v4301 = vmul.f32 %v2588, %v4229
    %v4302 = vmul.f32 %v3874, %v4233
    %v4303 = vmul.f32 %v3876, %v4237
    %v4304 = vmul.f32 %v2592, %v4225
    %v4305 = vmul.f32 %v2594, %v4229
    %v4306 = vmul.f32 %v3880, %v4233
    %v4307 = vmul.f32 %v3882, %v4237
    %v4308 = vmul.f32 %v2598, %v4225
    %v4309 = vmul.f32 %v2600, %v4229
    %v4310 = vmul.f32 %v3886, %v4233
    %v4311 = vmul.f32 %v3888, %v4237
    %v4312 = vmul.f32 %v2604, %v4225
    %v4313 = vmul.f32 %v2606, %v4229
    %v4314 = vmul.f32 %v3892, %v4233
    %v4315 = vmul.f32 %v3894, %v4237
    %v4316 = vmul.f32 %v2610, %v4225
    %v4317 = vmul.f32 %v2612, %v4229
    %v4318 = vmul.f32 %v3898, %v4233
    %v4319 = vmul.f32 %v3900, %v4237
    %v4320 = vmul.f32 %v2616, %v4225
    %v4321 = vmul.f32 %v2618, %v4229
    %v4322 = vmul.f32 %v3904, %v4233
    %v4323 = vmul.f32 %v3906, %v4237
    %v4324 = vmul.f32 %v2622, %v4225
    %v4325 = vmul.f32 %v2624, %v4229
    %v4326 = vmul.f32 %v3910, %v4233
    %v4327 = vmul.f32 %v3912, %v4237
    %v4328 = vmul.f32 %v2628, %v4225
    %v4329 = vmul.f32 %v2630, %v4229
    %v4330 = vmul.f32 %v3916, %v4233
    %v4331 = vmul.f32 %v3918, %v4237
    %v4332 = vmul.f32 %v2634, %v4225
    %v4333 = vmul.f32 %v2636, %v4229
    %v4334 = vmul.f32 %v3922, %v4233
    %v4335 = vmul.f32 %v3924, %v4237
    %v4336 = vmul.f32 %v2640, %v4225
    %v4337 = vmul.f32 %v2642, %v4229
    %v4338 = vmul.f32 %v3928, %v4233
    %v4339 = vmul.f32 %v3930, %v4237
    %v4341 = vlaneseq
    %v4342 = vshrl.u32 %v4341, 7
    %v4343 = vsub.s32 0, %v4342
    %v4344 = vrot.slane %v4275, %v4343
    %v4345 = vlaneseq
    %v4346 = vshrl.u32 %v4345, 7
    %v4347 = vsub.s32 1, %v4346
    %v4348 = vrot.slane %v4275, %v4347
    %v4349 = vlaneseq
    %v4350 = vshrl.u32 %v4349, 7
    %v4351 = vsub.s32 2, %v4350
    %v4352 = vrot.slane %v4275, %v4351
    %v4353 = vlaneseq
    %v4354 = vshrl.u32 %v4353, 7
    %v4355 = vsub.s32 3, %v4354
    %v4356 = vrot.slane %v4275, %v4355
    %v4361 = vadd.f32 %v4276, %v4344
    %v4362 = vadd.f32 %v4277, %v4348
    %v4363 = vadd.f32 %v4278, %v4352
    %v4364 = vadd.f32 %v4279, %v4356
    %v4365 = vadd.f32 %v4280, %v4344
    %v4366 = vadd.f32 %v4281, %v4348
    %v4367 = vadd.f32 %v4282, %v4352
    %v4368 = vadd.f32 %v4283, %v4356
    %v4369 = vadd.f32 %v4284, %v4344
    %v4370 = vadd.f32 %v4285, %v4348
    %v4371 = vadd.f32 %v4286, %v4352
    %v4372 = vadd.f32 %v4287, %v4356
    %v4373 = vadd.f32 %v4288, %v4344
    %v4374 = vadd.f32 %v4289, %v4348
    %v4375 = vadd.f32 %v4290, %v4352
    %v4376 = vadd.f32 %v4291, %v4356
    %v4377 = vadd.f32 %v4292, %v4344
    %v4378 = vadd.f32 %v4293, %v4348
    %v4379 = vadd.f32 %v4294, %v4352
    %v4380 = vadd.f32 %v4295, %v4356
    %v4381 = vadd.f32 %v4296, %v4344
    %v4382 = vadd.f32 %v4297, %v4348
    %v4383 = vadd.f32 %v4298, %v4352
    %v4384 = vadd.f32 %v4299, %v4356
    %v4385 = vadd.f32 %v4300, %v4344
    %v4386 = vadd.f32 %v4301, %v4348
    %v4387 = vadd.f32 %v4302, %v4352
    %v4388 = vadd.f32 %v4303, %v4356
    %v4389 = vadd.f32 %v4304, %v4344
    %v4390 = vadd.f32 %v4305, %v4348
    %v4391 = vadd.f32 %v4306, %v4352
    %v4392 = vadd.f32 %v4307, %v4356
    %v4393 = vadd.f32 %v4308, %v4344
    %v4394 = vadd.f32 %v4309, %v4348
    %v4395 = vadd.f32 %v4310, %v4352
    %v4396 = vadd.f32 %v4311, %v4356
    %v4397 = vadd.f32 %v4312, %v4344
    %v4398 = vadd.f32 %v4313, %v4348
    %v4399 = vadd.f32 %v4314, %v4352
    %v4400 = vadd.f32 %v4315, %v4356
    %v4401 = vadd.f32 %v4316, %v4344
    %v4402 = vadd.f32 %v4317, %v4348
    %v4403 = vadd.f32 %v4318, %v4352
    %v4404 = vadd.f32 %v4319, %v4356
    %v4405 = vadd.f32 %v4320, %v4344
    %v4406 = vadd.f32 %v4321, %v4348
    %v4407 = vadd.f32 %v4322, %v4352
    %v4408 = vadd.f32 %v4323, %v4356
    %v4409 = vadd.f32 %v4324, %v4344
    %v4410 = vadd.f32 %v4325, %v4348
    %v4411 = vadd.f32 %v4326, %v4352
    %v4412 = vadd.f32 %v4327, %v4356
    %v4413 = vadd.f32 %v4328, %v4344
    %v4414 = vadd.f32 %v4329, %v4348
    %v4415 = vadd.f32 %v4330, %v4352
    %v4416 = vadd.f32 %v4331, %v4356
    %v4417 = vadd.f32 %v4332, %v4344
    %v4418 = vadd.f32 %v4333, %v4348
    %v4419 = vadd.f32 %v4334, %v4352
    %v4420 = vadd.f32 %v4335, %v4356
    %v4421 = vadd.f32 %v4336, %v4344
    %v4422 = vadd.f32 %v4337, %v4348
    %v4423 = vadd.f32 %v4338, %v4352
    %v4424 = vadd.f32 %v4339, %v4356
    %v4425 = vmax.f32 %v4361, 0.0
    %v4426 = vmax.f32 %v4362, 0.0
    %v4427 = vmax.f32 %v4363, 0.0
    %v4428 = vmax.f32 %v4364, 0.0
    %v4429 = vmax.f32 %v4365, 0.0
    %v4430 = vmax.f32 %v4366, 0.0
    %v4431 = vmax.f32 %v4367, 0.0
    %v4432 = vmax.f32 %v4368, 0.0
    %v4433 = vmax.f32 %v4369, 0.0
    %v4434 = vmax.f32 %v4370, 0.0
    %v4435 = vmax.f32 %v4371, 0.0
    %v4436 = vmax.f32 %v4372, 0.0
    %v4437 = vmax.f32 %v4373, 0.0
    %v4438 = vmax.f32 %v4374, 0.0
    %v4439 = vmax.f32 %v4375, 0.0
    %v4440 = vmax.f32 %v4376, 0.0
    %v4441 = vmax.f32 %v4377, 0.0
    %v4442 = vmax.f32 %v4378, 0.0
    %v4443 = vmax.f32 %v4379, 0.0
    %v4444 = vmax.f32 %v4380, 0.0
    %v4445 = vmax.f32 %v4381, 0.0
    %v4446 = vmax.f32 %v4382, 0.0
    %v4447 = vmax.f32 %v4383, 0.0
    %v4448 = vmax.f32 %v4384, 0.0
    %v4449 = vmax.f32 %v4385, 0.0
    %v4450 = vmax.f32 %v4386, 0.0
    %v4451 = vmax.f32 %v4387, 0.0
    %v4452 = vmax.f32 %v4388, 0.0
    %v4453 = vmax.f32 %v4389, 0.0
    %v4454 = vmax.f32 %v4390, 0.0
    %v4455 = vmax.f32 %v4391, 0.0
    %v4456 = vmax.f32 %v4392, 0.0
    %v4457 = vmax.f32 %v4393, 0.0
    %v4458 = vmax.f32 %v4394, 0.0
    %v4459 = vmax.f32 %v4395, 0.0
    %v4460 = vmax.f32 %v4396, 0.0
    %v4461 = vmax.f32 %v4397, 0.0
    %v4462 = vmax.f32 %v4398, 0.0
    %v4463 = vmax.f32 %v4399, 0.0
    %v4464 = vmax.f32 %v4400, 0.0
    %v4465 = vmax.f32 %v4401, 0.0
    %v4466 = vmax.f32 %v4402, 0.0
    %v4467 = vmax.f32 %v4403, 0.0
    %v4468 = vmax.f32 %v4404, 0.0
    %v4469 = vmax.f32 %v4405, 0.0
    %v4470 = vmax.f32 %v4406, 0.0
    %v4471 = vmax.f32 %v4407, 0.0
    %v4472 = vmax.f32 %v4408, 0.0
    %v4473 = vmax.f32 %v4409, 0.0
    %v4474 = vmax.f32 %v4410, 0.0
    %v4475 = vmax.f32 %v4411, 0.0
    %v4476 = vmax.f32 %v4412, 0.0
    %v4477 = vmax.f32 %v4413, 0.0
    %v4478 = vmax.f32 %v4414, 0.0
    %v4479 = vmax.f32 %v4415, 0.0
    %v4480 = vmax.f32 %v4416, 0.0
    %v4481 = vmax.f32 %v4417, 0.0
    %v4482 = vmax.f32 %v4418, 0.0
    %v4483 = vmax.f32 %v4419, 0.0
    %v4484 = vmax.f32 %v4420, 0.0
    %v4485 = vmax.f32 %v4421, 0.0
    %v4486 = vmax.f32 %v4422, 0.0
    %v4487 = vmax.f32 %v4423, 0.0
    %v4488 = vmax.f32 %v4424, 0.0
    %v4489 = vld [vmem:[#allocation4] sm:$0xff]
    %v4490 = vld [vmem:[#allocation4 + $0x8] sm:$0xff]
    %v4491 = vld [vmem:[#allocation4 + $0x10] sm:$0xff]
    %v4492 = vld [vmem:[#allocation4 + $0x18] sm:$0xff]
    %v4493 = vld [vmem:[#allocation4 + $0x20] sm:$0xff]
    %v4494 = vld [vmem:[#allocation4 + $0x28] sm:$0xff]
    %v4495 = vld [vmem:[#allocation4 + $0x30] sm:$0xff]
    %v4496 = vld [vmem:[#allocation4 + $0x38] sm:$0xff]
    %v4497 = vld [vmem:[#allocation4 + $0x40] sm:$0xff]
    %v4498 = vld [vmem:[#allocation4 + $0x48] sm:$0xff]
    %v4499 = vld [vmem:[#allocation4 + $0x50] sm:$0xff]
    %v4500 = vld [vmem:[#allocation4 + $0x58] sm:$0xff]
    %v4501 = vld [vmem:[#allocation4 + $0x60] sm:$0xff]
    %v4502 = vld [vmem:[#allocation4 + $0x68] sm:$0xff]
    %v4503 = vld [vmem:[#allocation4 + $0x70] sm:$0xff]
    %v4504 = vld [vmem:[#allocation4 + $0x78] sm:$0xff]
    %v4505 = vld [vmem:[#allocation4 + $0x80] sm:$0xff]
    %v4506 = vld [vmem:[#allocation4 + $0x88] sm:$0xff]
    %v4507 = vld [vmem:[#allocation4 + $0x90] sm:$0xff]
    %v4508 = vld [vmem:[#allocation4 + $0x98] sm:$0xff]
    %v4509 = vld [vmem:[#allocation4 + $0xa0] sm:$0xff]
    %v4510 = vld [vmem:[#allocation4 + $0xa8] sm:$0xff]
    %v4511 = vld [vmem:[#allocation4 + $0xb0] sm:$0xff]
    %v4512 = vld [vmem:[#allocation4 + $0xb8] sm:$0xff]
    %v4513 = vld [vmem:[#allocation4 + $0xc0] sm:$0xff]
    %v4514 = vld [vmem:[#allocation4 + $0xc8] sm:$0xff]
    %v4515 = vld [vmem:[#allocation4 + $0xd0] sm:$0xff]
    %v4516 = vld [vmem:[#allocation4 + $0xd8] sm:$0xff]
    %v4517 = vld [vmem:[#allocation4 + $0xe0] sm:$0xff]
    %v4518 = vld [vmem:[#allocation4 + $0xe8] sm:$0xff]
    %v4519 = vld [vmem:[#allocation4 + $0xf0] sm:$0xff]
    %v4520 = vld [vmem:[#allocation4 + $0xf8] sm:$0xff]
    %v4521 = vld [vmem:[#allocation4 + $0x100] sm:$0xff]
    %v4522 = vld [vmem:[#allocation4 + $0x108] sm:$0xff]
    %v4523 = vld [vmem:[#allocation4 + $0x110] sm:$0xff]
    %v4524 = vld [vmem:[#allocation4 + $0x118] sm:$0xff]
    %v4525 = vld [vmem:[#allocation4 + $0x120] sm:$0xff]
    %v4526 = vld [vmem:[#allocation4 + $0x128] sm:$0xff]
    %v4527 = vld [vmem:[#allocation4 + $0x130] sm:$0xff]
    %v4528 = vld [vmem:[#allocation4 + $0x138] sm:$0xff]
    %v4529 = vld [vmem:[#allocation4 + $0x140] sm:$0xff]
    %v4530 = vld [vmem:[#allocation4 + $0x148] sm:$0xff]
    %v4531 = vld [vmem:[#allocation4 + $0x150] sm:$0xff]
    %v4532 = vld [vmem:[#allocation4 + $0x158] sm:$0xff]
    %v4533 = vld [vmem:[#allocation4 + $0x160] sm:$0xff]
    %v4534 = vld [vmem:[#allocation4 + $0x168] sm:$0xff]
    %v4535 = vld [vmem:[#allocation4 + $0x170] sm:$0xff]
    %v4536 = vld [vmem:[#allocation4 + $0x178] sm:$0xff]
    %v4537 = vld [vmem:[#allocation4 + $0x180] sm:$0xff]
    %v4538 = vld [vmem:[#allocation4 + $0x188] sm:$0xff]
    %v4539 = vld [vmem:[#allocation4 + $0x190] sm:$0xff]
    %v4540 = vld [vmem:[#allocation4 + $0x198] sm:$0xff]
    %v4541 = vld [vmem:[#allocation4 + $0x1a0] sm:$0xff]
    %v4542 = vld [vmem:[#allocation4 + $0x1a8] sm:$0xff]
    %v4543 = vld [vmem:[#allocation4 + $0x1b0] sm:$0xff]
    %v4544 = vld [vmem:[#allocation4 + $0x1b8] sm:$0xff]
    %v4545 = vld [vmem:[#allocation4 + $0x1c0] sm:$0xff]
    %v4546 = vld [vmem:[#allocation4 + $0x1c8] sm:$0xff]
    %v4547 = vld [vmem:[#allocation4 + $0x1d0] sm:$0xff]
    %v4548 = vld [vmem:[#allocation4 + $0x1d8] sm:$0xff]
    %v4549 = vld [vmem:[#allocation4 + $0x1e0] sm:$0xff]
    %v4550 = vld [vmem:[#allocation4 + $0x1e8] sm:$0xff]
    %v4551 = vld [vmem:[#allocation4 + $0x1f0] sm:$0xff]
    %v4552 = vld [vmem:[#allocation4 + $0x1f8] sm:$0xff]
    %4553 = vmatprep.subr.mxu0 0.0
    %4554 = vmatpush1.msra.mxu0 %v4489
    %4555 = vmatprep.subr.mxu0 0.0
    %4556 = vmatpush1.msra.mxu0 %v4490
    %4557 = vmatprep.subr.mxu0 0.0
    %4558 = vmatpush1.msra.mxu0 %v4491
    %4559 = vmatprep.subr.mxu0 0.0
    %4560 = vmatpush1.msra.mxu0 %v4492
    %4561 = vmatprep.subr.mxu0 0.0
    %4562 = vmatpush1.msra.mxu0 %v4493
    %4563 = vmatprep.subr.mxu0 0.0
    %4564 = vmatpush1.msra.mxu0 %v4494
    %4565 = vmatprep.subr.mxu0 0.0
    %4566 = vmatpush1.msra.mxu0 %v4495
    %4567 = vmatprep.subr.mxu0 0.0
    %4568 = vmatpush1.msra.mxu0 %v4496
    %4569 = vmatprep.subr.mxu0 0.0
    %4570 = vmatpush1.msra.mxu0 %v4497
    %4571 = vmatprep.subr.mxu0 0.0
    %4572 = vmatpush1.msra.mxu0 %v4498
    %4573 = vmatprep.subr.mxu0 0.0
    %4574 = vmatpush1.msra.mxu0 %v4499
    %4575 = vmatprep.subr.mxu0 0.0
    %4576 = vmatpush1.msra.mxu0 %v4500
    %4577 = vmatprep.subr.mxu0 0.0
    %4578 = vmatpush1.msra.mxu0 %v4501
    %4579 = vmatprep.subr.mxu0 0.0
    %4580 = vmatpush1.msra.mxu0 %v4502
    %4581 = vmatprep.subr.mxu0 0.0
    %4582 = vmatpush1.msra.mxu0 %v4503
    %4583 = vmatprep.subr.mxu0 0.0
    %4584 = vmatpush1.msra.mxu0 %v4504
    %4585 = vmatprep.subr.mxu0 0.0
    %4586 = vmatpush1.msra.mxu0 %v4505
    %4587 = vmatprep.subr.mxu0 0.0
    %4588 = vmatpush1.msra.mxu0 %v4506
    %4589 = vmatprep.subr.mxu0 0.0
    %4590 = vmatpush1.msra.mxu0 %v4507
    %4591 = vmatprep.subr.mxu0 0.0
    %4592 = vmatpush1.msra.mxu0 %v4508
    %4593 = vmatprep.subr.mxu0 0.0
    %4594 = vmatpush1.msra.mxu0 %v4509
    %4595 = vmatprep.subr.mxu0 0.0
    %4596 = vmatpush1.msra.mxu0 %v4510
    %4597 = vmatprep.subr.mxu0 0.0
    %4598 = vmatpush1.msra.mxu0 %v4511
    %4599 = vmatprep.subr.mxu0 0.0
    %4600 = vmatpush1.msra.mxu0 %v4512
    %4601 = vmatprep.subr.mxu0 0.0
    %4602 = vmatpush1.msra.mxu0 %v4513
    %4603 = vmatprep.subr.mxu0 0.0
    %4604 = vmatpush1.msra.mxu0 %v4514
    %4605 = vmatprep.subr.mxu0 0.0
    %4606 = vmatpush1.msra.mxu0 %v4515
    %4607 = vmatprep.subr.mxu0 0.0
    %4608 = vmatpush1.msra.mxu0 %v4516
    %4609 = vmatprep.subr.mxu0 0.0
    %4610 = vmatpush1.msra.mxu0 %v4517
    %4611 = vmatprep.subr.mxu0 0.0
    %4612 = vmatpush1.msra.mxu0 %v4518
    %4613 = vmatprep.subr.mxu0 0.0
    %4614 = vmatpush1.msra.mxu0 %v4519
    %4615 = vmatprep.subr.mxu0 0.0
    %4616 = vmatpush1.msra.mxu0 %v4520
    %4617 = vmatprep.mubr.f32.mxu0 %v4426
    %4618 = vmatmul.mubr.f32.gmra.mrb[0].mxu0 %v4425
    %v4619 = vpop.f32.mrb[0].mxu0
    %v4620 = vadd.f32 0.0, %v4619
    %v4621 = vpop.f32.mrb[0].mxu0
    %4622 = vmatprep.mubr.f32.mxu0 %v4430
    %4623 = vmatmul.mubr.f32.gmra.mrb[0].mxu0 %v4429
    %v4624 = vpop.f32.mrb[0].mxu0
    %v4625 = vadd.f32 0.0, %v4624
    %v4626 = vpop.f32.mrb[0].mxu0
    %4627 = vmatprep.mubr.f32.mxu0 %v4434
    %4628 = vmatmul.mubr.f32.gmra.mrb[0].mxu0 %v4433
    %v4629 = vpop.f32.mrb[0].mxu0
    %v4630 = vadd.f32 0.0, %v4629
    %v4631 = vpop.f32.mrb[0].mxu0
    %4632 = vmatprep.mubr.f32.mxu0 %v4438
    %4633 = vmatmul.mubr.f32.gmra.mrb[0].mxu0 %v4437
    %v4634 = vpop.f32.mrb[0].mxu0
    %v4635 = vadd.f32 0.0, %v4634
    %v4636 = vpop.f32.mrb[0].mxu0
    %4637 = vmatprep.mubr.f32.mxu0 %v4442
    %4638 = vmatmul.mubr.f32.gmra.mrb[0].mxu0 %v4441
    %v4639 = vpop.f32.mrb[0].mxu0
    %v4640 = vadd.f32 0.0, %v4639
    %v4641 = vpop.f32.mrb[0].mxu0
    %4642 = vmatprep.mubr.f32.mxu0 %v4446
    %4643 = vmatmul.mubr.f32.gmra.mrb[0].mxu0 %v4445
    %v4644 = vpop.f32.mrb[0].mxu0
    %v4645 = vadd.f32 0.0, %v4644
    %v4646 = vpop.f32.mrb[0].mxu0
    %4647 = vmatprep.mubr.f32.mxu0 %v4450
    %4648 = vmatmul.mubr.f32.gmra.mrb[0].mxu0 %v4449
    %v4649 = vpop.f32.mrb[0].mxu0
    %v4650 = vadd.f32 0.0, %v4649
    %v4651 = vpop.f32.mrb[0].mxu0
    %4652 = vmatprep.mubr.f32.mxu0 %v4454
    %4653 = vmatmul.mubr.f32.gmra.mrb[0].mxu0 %v4453
    %v4654 = vpop.f32.mrb[0].mxu0
    %v4655 = vadd.f32 0.0, %v4654
    %v4656 = vpop.f32.mrb[0].mxu0
    %4657 = vmatprep.mubr.f32.mxu0 %v4458
    %4658 = vmatmul.mubr.f32.gmra.mrb[0].mxu0 %v4457
    %v4659 = vpop.f32.mrb[0].mxu0
    %v4660 = vadd.f32 0.0, %v4659
    %v4661 = vpop.f32.mrb[0].mxu0
    %4662 = vmatprep.mubr.f32.mxu0 %v4462
    %4663 = vmatmul.mubr.f32.gmra.mrb[0].mxu0 %v4461
    %v4664 = vpop.f32.mrb[0].mxu0
    %v4665 = vadd.f32 0.0, %v4664
    %v4666 = vpop.f32.mrb[0].mxu0
    %4667 = vmatprep.mubr.f32.mxu0 %v4466
    %4668 = vmatmul.mubr.f32.gmra.mrb[0].mxu0 %v4465
    %v4669 = vpop.f32.mrb[0].mxu0
    %v4670 = vadd.f32 0.0, %v4669
    %v4671 = vpop.f32.mrb[0].mxu0
    %4672 = vmatprep.mubr.f32.mxu0 %v4470
    %4673 = vmatmul.mubr.f32.gmra.mrb[0].mxu0 %v4469
    %v4674 = vpop.f32.mrb[0].mxu0
    %v4675 = vadd.f32 0.0, %v4674
    %v4676 = vpop.f32.mrb[0].mxu0
    %4677 = vmatprep.mubr.f32.mxu0 %v4474
    %4678 = vmatmul.mubr.f32.gmra.mrb[0].mxu0 %v4473
    %v4679 = vpop.f32.mrb[0].mxu0
    %v4680 = vadd.f32 0.0, %v4679
    %v4681 = vpop.f32.mrb[0].mxu0
    %4682 = vmatprep.mubr.f32.mxu0 %v4478
    %4683 = vmatmul.mubr.f32.gmra.mrb[0].mxu0 %v4477
    %v4684 = vpop.f32.mrb[0].mxu0
    %v4685 = vadd.f32 0.0, %v4684
    %v4686 = vpop.f32.mrb[0].mxu0
    %4687 = vmatprep.mubr.f32.mxu0 %v4482
    %4688 = vmatmul.mubr.f32.gmra.mrb[0].mxu0 %v4481
    %v4689 = vpop.f32.mrb[0].mxu0
    %v4690 = vadd.f32 0.0, %v4689
    %v4691 = vpop.f32.mrb[0].mxu0
    %4692 = vmatprep.mubr.f32.mxu0 %v4486
    %4693 = vmatmul.mubr.f32.gmra.mrb[0].mxu0 %v4485
    %v4694 = vpop.f32.mrb[0].mxu0
    %v4695 = vadd.f32 0.0, %v4694
    %v4696 = vpop.f32.mrb[0].mxu0
    %4697 = vdwg.mxu0
    %4698 = vmatprep.subr.mxu0 0.0
    %4699 = vmatpush1.msra.mxu0 %v4521
    %4700 = vmatprep.subr.mxu0 0.0
    %4701 = vmatpush1.msra.mxu0 %v4522
    %4702 = vmatprep.subr.mxu0 0.0
    %4703 = vmatpush1.msra.mxu0 %v4523
    %4704 = vmatprep.subr.mxu0 0.0
    %4705 = vmatpush1.msra.mxu0 %v4524
    %4706 = vmatprep.subr.mxu0 0.0
    %4707 = vmatpush1.msra.mxu0 %v4525
    %4708 = vmatprep.subr.mxu0 0.0
    %4709 = vmatpush1.msra.mxu0 %v4526
    %4710 = vmatprep.subr.mxu0 0.0
    %4711 = vmatpush1.msra.mxu0 %v4527
    %4712 = vmatprep.subr.mxu0 0.0
    %4713 = vmatpush1.msra.mxu0 %v4528
    %4714 = vmatprep.subr.mxu0 0.0
    %4715 = vmatpush1.msra.mxu0 %v4529
    %4716 = vmatprep.subr.mxu0 0.0
    %4717 = vmatpush1.msra.mxu0 %v4530
    %4718 = vmatprep.subr.mxu0 0.0
    %4719 = vmatpush1.msra.mxu0 %v4531
    %4720 = vmatprep.subr.mxu0 0.0
    %4721 = vmatpush1.msra.mxu0 %v4532
    %4722 = vmatprep.subr.mxu0 0.0
    %4723 = vmatpush1.msra.mxu0 %v4533
    %4724 = vmatprep.subr.mxu0 0.0
    %4725 = vmatpush1.msra.mxu0 %v4534
    %4726 = vmatprep.subr.mxu0 0.0
    %4727 = vmatpush1.msra.mxu0 %v4535
    %4728 = vmatprep.subr.mxu0 0.0
    %4729 = vmatpush1.msra.mxu0 %v4536
    %4730 = vmatprep.subr.mxu0 0.0
    %4731 = vmatpush1.msra.mxu0 %v4537
    %4732 = vmatprep.subr.mxu0 0.0
    %4733 = vmatpush1.msra.mxu0 %v4538
    %4734 = vmatprep.subr.mxu0 0.0
    %4735 = vmatpush1.msra.mxu0 %v4539
    %4736 = vmatprep.subr.mxu0 0.0
    %4737 = vmatpush1.msra.mxu0 %v4540
    %4738 = vmatprep.subr.mxu0 0.0
    %4739 = vmatpush1.msra.mxu0 %v4541
    %4740 = vmatprep.subr.mxu0 0.0
    %4741 = vmatpush1.msra.mxu0 %v4542
    %4742 = vmatprep.subr.mxu0 0.0
    %4743 = vmatpush1.msra.mxu0 %v4543
    %4744 = vmatprep.subr.mxu0 0.0
    %4745 = vmatpush1.msra.mxu0 %v4544
    %4746 = vmatprep.subr.mxu0 0.0
    %4747 = vmatpush1.msra.mxu0 %v4545
    %4748 = vmatprep.subr.mxu0 0.0
    %4749 = vmatpush1.msra.mxu0 %v4546
    %4750 = vmatprep.subr.mxu0 0.0
    %4751 = vmatpush1.msra.mxu0 %v4547
    %4752 = vmatprep.subr.mxu0 0.0
    %4753 = vmatpush1.msra.mxu0 %v4548
    %4754 = vmatprep.subr.mxu0 0.0
    %4755 = vmatpush1.msra.mxu0 %v4549
    %4756 = vmatprep.subr.mxu0 0.0
    %4757 = vmatpush1.msra.mxu0 %v4550
    %4758 = vmatprep.subr.mxu0 0.0
    %4759 = vmatpush1.msra.mxu0 %v4551
    %4760 = vmatprep.subr.mxu0 0.0
    %4761 = vmatpush1.msra.mxu0 %v4552
    %4762 = vmatprep.mubr.f32.mxu0 %v4428
    %4763 = vmatmul.mubr.f32.gmra.mrb[0].mxu0 %v4427
    %v4764 = vpop.f32.mrb[0].mxu0
    %v4765 = vadd.f32 %v4620, %v4764
    %v4766 = vpop.f32.mrb[0].mxu0
    %4767 = vmatprep.mubr.f32.mxu0 %v4432
    %4768 = vmatmul.mubr.f32.gmra.mrb[0].mxu0 %v4431
    %v4769 = vpop.f32.mrb[0].mxu0
    %v4770 = vadd.f32 %v4625, %v4769
    %v4771 = vpop.f32.mrb[0].mxu0
    %4772 = vmatprep.mubr.f32.mxu0 %v4436
    %4773 = vmatmul.mubr.f32.gmra.mrb[0].mxu0 %v4435
    %v4774 = vpop.f32.mrb[0].mxu0
    %v4775 = vadd.f32 %v4630, %v4774
    %v4776 = vpop.f32.mrb[0].mxu0
    %4777 = vmatprep.mubr.f32.mxu0 %v4440
    %4778 = vmatmul.mubr.f32.gmra.mrb[0].mxu0 %v4439
    %v4779 = vpop.f32.mrb[0].mxu0
    %v4780 = vadd.f32 %v4635, %v4779
    %v4781 = vpop.f32.mrb[0].mxu0
    %4782 = vmatprep.mubr.f32.mxu0 %v4444
    %4783 = vmatmul.mubr.f32.gmra.mrb[0].mxu0 %v4443
    %v4784 = vpop.f32.mrb[0].mxu0
    %v4785 = vadd.f32 %v4640, %v4784
    %v4786 = vpop.f32.mrb[0].mxu0
    %4787 = vmatprep.mubr.f32.mxu0 %v4448
    %4788 = vmatmul.mubr.f32.gmra.mrb[0].mxu0 %v4447
    %v4789 = vpop.f32.mrb[0].mxu0
    %v4790 = vadd.f32 %v4645, %v4789
    %v4791 = vpop.f32.mrb[0].mxu0
    %4792 = vmatprep.mubr.f32.mxu0 %v4452
    %4793 = vmatmul.mubr.f32.gmra.mrb[0].mxu0 %v4451
    %v4794 = vpop.f32.mrb[0].mxu0
    %v4795 = vadd.f32 %v4650, %v4794
    %v4796 = vpop.f32.mrb[0].mxu0
    %4797 = vmatprep.mubr.f32.mxu0 %v4456
    %4798 = vmatmul.mubr.f32.gmra.mrb[0].mxu0 %v4455
    %v4799 = vpop.f32.mrb[0].mxu0
    %v4800 = vadd.f32 %v4655, %v4799
    %v4801 = vpop.f32.mrb[0].mxu0
    %4802 = vmatprep.mubr.f32.mxu0 %v4460
    %4803 = vmatmul.mubr.f32.gmra.mrb[0].mxu0 %v4459
    %v4804 = vpop.f32.mrb[0].mxu0
    %v4805 = vadd.f32 %v4660, %v4804
    %v4806 = vpop.f32.mrb[0].mxu0
    %4807 = vmatprep.mubr.f32.mxu0 %v4464
    %4808 = vmatmul.mubr.f32.gmra.mrb[0].mxu0 %v4463
    %v4809 = vpop.f32.mrb[0].mxu0
    %v4810 = vadd.f32 %v4665, %v4809
    %v4811 = vpop.f32.mrb[0].mxu0
    %4812 = vmatprep.mubr.f32.mxu0 %v4468
    %4813 = vmatmul.mubr.f32.gmra.mrb[0].mxu0 %v4467
    %v4814 = vpop.f32.mrb[0].mxu0
    %v4815 = vadd.f32 %v4670, %v4814
    %v4816 = vpop.f32.mrb[0].mxu0
    %4817 = vmatprep.mubr.f32.mxu0 %v4472
    %4818 = vmatmul.mubr.f32.gmra.mrb[0].mxu0 %v4471
    %v4819 = vpop.f32.mrb[0].mxu0
    %v4820 = vadd.f32 %v4675, %v4819
    %v4821 = vpop.f32.mrb[0].mxu0
    %4822 = vmatprep.mubr.f32.mxu0 %v4476
    %4823 = vmatmul.mubr.f32.gmra.mrb[0].mxu0 %v4475
    %v4824 = vpop.f32.mrb[0].mxu0
    %v4825 = vadd.f32 %v4680, %v4824
    %v4826 = vpop.f32.mrb[0].mxu0
    %4827 = vmatprep.mubr.f32.mxu0 %v4480
    %4828 = vmatmul.mubr.f32.gmra.mrb[0].mxu0 %v4479
    %v4829 = vpop.f32.mrb[0].mxu0
    %v4830 = vadd.f32 %v4685, %v4829
    %v4831 = vpop.f32.mrb[0].mxu0
    %4832 = vmatprep.mubr.f32.mxu0 %v4484
    %4833 = vmatmul.mubr.f32.gmra.mrb[0].mxu0 %v4483
    %v4834 = vpop.f32.mrb[0].mxu0
    %v4835 = vadd.f32 %v4690, %v4834
    %v4836 = vpop.f32.mrb[0].mxu0
    %4837 = vmatprep.mubr.f32.mxu0 %v4488
    %4838 = vmatmul.mubr.f32.gmra.mrb[0].mxu0 %v4487
    %v4839 = vpop.f32.mrb[0].mxu0
    %v4840 = vadd.f32 %v4695, %v4839
    %v4841 = vpop.f32.mrb[0].mxu0
    %4842 = vdwg.mxu0
    %v4843 = vld [vmem:[#allocation12] sm:$0x1]
    %v4844 = vld [vmem:[#allocation12 + $0x1] sm:$0x1]
    %v4845 = vadd.f32 %v4765, %v4770
    %v4846 = vadd.f32 %v4845, %v4775
    %v4847 = vadd.f32 %v4846, %v4780
    %v4848 = vadd.f32 %v4847, %v4785
    %v4849 = vadd.f32 %v4848, %v4790
    %v4850 = vadd.f32 %v4849, %v4795
    %v4851 = vadd.f32 %v4850, %v4800
    %v4852 = vadd.f32 %v4851, %v4805
    %v4853 = vadd.f32 %v4852, %v4810
    %v4854 = vadd.f32 %v4853, %v4815
    %v4855 = vadd.f32 %v4854, %v4820
    %v4856 = vadd.f32 %v4855, %v4825
    %v4857 = vadd.f32 %v4856, %v4830
    %v4858 = vadd.f32 %v4857, %v4835
    %v4859 = vadd.f32 %v4858, %v4840
    %v4860 = vrot.slane %v4859, 4
    %v4861 = vadd.f32 %v4859, %v4860
    %v4862 = vrot.slane %v4861, 2
    %v4863 = vadd.f32 %v4861, %v4862
    %v4864 = vrot.slane %v4863, 1
    %v4865 = vadd.f32 %v4863, %v4864
    %v4866 = vmul.f32 %v4865, 0.0078125
    %v4867 = vmul.f32 %v4765, %v4765
    %v4868 = vmul.f32 %v4770, %v4770
    %v4869 = vmul.f32 %v4775, %v4775
    %v4870 = vmul.f32 %v4780, %v4780
    %v4871 = vmul.f32 %v4785, %v4785
    %v4872 = vmul.f32 %v4790, %v4790
    %v4873 = vmul.f32 %v4795, %v4795
    %v4874 = vmul.f32 %v4800, %v4800
    %v4875 = vmul.f32 %v4805, %v4805
    %v4876 = vmul.f32 %v4810, %v4810
    %v4877 = vmul.f32 %v4815, %v4815
    %v4878 = vmul.f32 %v4820, %v4820
    %v4879 = vmul.f32 %v4825, %v4825
    %v4880 = vmul.f32 %v4830, %v4830
    %v4881 = vmul.f32 %v4835, %v4835
    %v4882 = vmul.f32 %v4840, %v4840
    %v4883 = vadd.f32 %v4867, %v4868
    %v4884 = vadd.f32 %v4883, %v4869
    %v4885 = vadd.f32 %v4884, %v4870
    %v4886 = vadd.f32 %v4885, %v4871
    %v4887 = vadd.f32 %v4886, %v4872
    %v4888 = vadd.f32 %v4887, %v4873
    %v4889 = vadd.f32 %v4888, %v4874
    %v4890 = vadd.f32 %v4889, %v4875
    %v4891 = vadd.f32 %v4890, %v4876
    %v4892 = vadd.f32 %v4891, %v4877
    %v4893 = vadd.f32 %v4892, %v4878
    %v4894 = vadd.f32 %v4893, %v4879
    %v4895 = vadd.f32 %v4894, %v4880
    %v4896 = vadd.f32 %v4895, %v4881
    %v4897 = vadd.f32 %v4896, %v4882
    %v4898 = vrot.slane %v4897, 4
    %v4899 = vadd.f32 %v4897, %v4898
    %v4900 = vrot.slane %v4899, 2
    %v4901 = vadd.f32 %v4899, %v4900
    %v4902 = vrot.slane %v4901, 1
    %v4903 = vadd.f32 %v4901, %v4902
    %v4904 = vmul.f32 %v4903, 0.0078125
    %v4905 = vmul.f32 %v4866, %v4866
    %v4906 = vsub.f32 %v4904, %v4905
    %v4907 = vadd.f32 %v4906, 1e-05
    %v4908 = vrsqrt.pop %v4907
    %v4909 = vmul.f32 %v4843, %v4908
    %v4910 = vmul.f32 %v4866, %v4909
    %v4911 = vsub.f32 %v4844, %v4910
    %v4912 = vlaneseq
    %v4913 = vshrl.u32 %v4912, 7
    %v4914 = vsub.s32 0, %v4913
    %v4915 = vrot.slane %v4909, %v4914
    %v4916 = vmul.f32 %v4765, %v4915
    %v4917 = vmul.f32 %v4770, %v4915
    %v4918 = vmul.f32 %v4775, %v4915
    %v4919 = vmul.f32 %v4780, %v4915
    %v4920 = vmul.f32 %v4785, %v4915
    %v4921 = vmul.f32 %v4790, %v4915
    %v4922 = vmul.f32 %v4795, %v4915
    %v4923 = vmul.f32 %v4800, %v4915
    %v4924 = vmul.f32 %v4805, %v4915
    %v4925 = vmul.f32 %v4810, %v4915
    %v4926 = vmul.f32 %v4815, %v4915
    %v4927 = vmul.f32 %v4820, %v4915
    %v4928 = vmul.f32 %v4825, %v4915
    %v4929 = vmul.f32 %v4830, %v4915
    %v4930 = vmul.f32 %v4835, %v4915
    %v4931 = vmul.f32 %v4840, %v4915
    %v4932 = vlaneseq
    %v4933 = vshrl.u32 %v4932, 7
    %v4934 = vsub.s32 0, %v4933
    %v4935 = vrot.slane %v4911, %v4934
    %v4936 = vadd.f32 %v4916, %v4935
    %v4937 = vadd.f32 %v4917, %v4935
    %v4938 = vadd.f32 %v4918, %v4935
    %v4939 = vadd.f32 %v4919, %v4935
    %v4940 = vadd.f32 %v4920, %v4935
    %v4941 = vadd.f32 %v4921, %v4935
    %v4942 = vadd.f32 %v4922, %v4935
    %v4943 = vadd.f32 %v4923, %v4935
    %v4944 = vadd.f32 %v4924, %v4935
    %v4945 = vadd.f32 %v4925, %v4935
    %v4946 = vadd.f32 %v4926, %v4935
    %v4947 = vadd.f32 %v4927, %v4935
    %v4948 = vadd.f32 %v4928, %v4935
    %v4949 = vadd.f32 %v4929, %v4935
    %v4950 = vadd.f32 %v4930, %v4935
    %v4951 = vadd.f32 %v4931, %v4935
    %v4952 = vmax.f32 %v4936, 0.0
    %v4953 = vmax.f32 %v4937, 0.0
    %v4954 = vmax.f32 %v4938, 0.0
    %v4955 = vmax.f32 %v4939, 0.0
    %v4956 = vmax.f32 %v4940, 0.0
    %v4957 = vmax.f32 %v4941, 0.0
    %v4958 = vmax.f32 %v4942, 0.0
    %v4959 = vmax.f32 %v4943, 0.0
    %v4960 = vmax.f32 %v4944, 0.0
    %v4961 = vmax.f32 %v4945, 0.0
    %v4962 = vmax.f32 %v4946, 0.0
    %v4963 = vmax.f32 %v4947, 0.0
    %v4964 = vmax.f32 %v4948, 0.0
    %v4965 = vmax.f32 %v4949, 0.0
    %v4966 = vmax.f32 %v4950, 0.0
    %v4967 = vmax.f32 %v4951, 0.0
    %v4968 = vld [vmem:[%s3] sm:$0xff]
    %v4969 = vld [vmem:[%s3 + $0x8] sm:$0xff]
    %v4970 = vld [vmem:[%s3 + $0x10] sm:$0xff]
    %v4971 = vld [vmem:[%s3 + $0x18] sm:$0xff]
    %v4972 = vld [vmem:[%s3 + $0x20] sm:$0xff]
    %v4973 = vld [vmem:[%s3 + $0x28] sm:$0xff]
    %v4974 = vld [vmem:[%s3 + $0x30] sm:$0xff]
    %v4975 = vld [vmem:[%s3 + $0x38] sm:$0xff]
    %v4976 = vld [vmem:[%s3 + $0x40] sm:$0xff]
    %v4977 = vld [vmem:[%s3 + $0x48] sm:$0xff]
    %v4978 = vld [vmem:[%s3 + $0x50] sm:$0xff]
    %v4979 = vld [vmem:[%s3 + $0x58] sm:$0xff]
    %v4980 = vld [vmem:[%s3 + $0x60] sm:$0xff]
    %v4981 = vld [vmem:[%s3 + $0x68] sm:$0xff]
    %v4982 = vld [vmem:[%s3 + $0x70] sm:$0xff]
    %v4983 = vld [vmem:[%s3 + $0x78] sm:$0xff]
    %v4984 = vld [vmem:[#allocation13] sm:$0x1]
    %v4985 = vlaneseq
    %v4986 = vshrl.u32 %v4985, 7
    %v4987 = vsub.s32 0, %v4986
    %v4988 = vrot.slane %v4984, %v4987
    %4989 = vmatprep.subr.mxu0 0.0
    %4990 = vmatpush1.msra.mxu0 %v4968
    %4991 = vmatprep.subr.mxu0 0.0
    %4992 = vmatpush1.msra.mxu0 %v4969
    %4993 = vmatprep.subr.mxu0 0.0
    %4994 = vmatpush1.msra.mxu0 %v4970
    %4995 = vmatprep.subr.mxu0 0.0
    %4996 = vmatpush1.msra.mxu0 %v4971
    %4997 = vmatprep.subr.mxu0 0.0
    %4998 = vmatpush1.msra.mxu0 %v4972
    %4999 = vmatprep.subr.mxu0 0.0
    %5000 = vmatpush1.msra.mxu0 %v4973
    %5001 = vmatprep.subr.mxu0 0.0
    %5002 = vmatpush1.msra.mxu0 %v4974
    %5003 = vmatprep.subr.mxu0 0.0
    %5004 = vmatpush1.msra.mxu0 %v4975
    %5005 = vmatprep.subr.mxu0 0.0
    %5006 = vmatpush1.msra.mxu0 %v4976
    %5007 = vmatprep.subr.mxu0 0.0
    %5008 = vmatpush1.msra.mxu0 %v4977
    %5009 = vmatprep.subr.mxu0 0.0
    %5010 = vmatpush1.msra.mxu0 %v4978
    %5011 = vmatprep.subr.mxu0 0.0
    %5012 = vmatpush1.msra.mxu0 %v4979
    %5013 = vmatprep.subr.mxu0 0.0
    %5014 = vmatpush1.msra.mxu0 %v4980
    %5015 = vmatprep.subr.mxu0 0.0
    %5016 = vmatpush1.msra.mxu0 %v4981
    %5017 = vmatprep.subr.mxu0 0.0
    %5018 = vmatpush1.msra.mxu0 %v4982
    %5019 = vmatprep.subr.mxu0 0.0
    %5020 = vmatpush1.msra.mxu0 %v4983
    %5021 = vmatprep.subr.mxu0 0.0
    %5022 = vmatpush1.msra.mxu0 0.0
    %5023 = vmatprep.subr.mxu0 0.0
    %5024 = vmatpush1.msra.mxu0 0.0
    %5025 = vmatprep.subr.mxu0 0.0
    %5026 = vmatpush1.msra.mxu0 0.0
    %5027 = vmatprep.subr.mxu0 0.0
    %5028 = vmatpush1.msra.mxu0 0.0
    %5029 = vmatprep.subr.mxu0 0.0
    %5030 = vmatpush1.msra.mxu0 0.0
    %5031 = vmatprep.subr.mxu0 0.0
    %5032 = vmatpush1.msra.mxu0 0.0
    %5033 = vmatprep.subr.mxu0 0.0
    %5034 = vmatpush1.msra.mxu0 0.0
    %5035 = vmatprep.subr.mxu0 0.0
    %5036 = vmatpush1.msra.mxu0 0.0
    %5037 = vmatprep.subr.mxu0 0.0
    %5038 = vmatpush1.msra.mxu0 0.0
    %5039 = vmatprep.subr.mxu0 0.0
    %5040 = vmatpush1.msra.mxu0 0.0
    %5041 = vmatprep.subr.mxu0 0.0
    %5042 = vmatpush1.msra.mxu0 0.0
    %5043 = vmatprep.subr.mxu0 0.0
    %5044 = vmatpush1.msra.mxu0 0.0
    %5045 = vmatprep.subr.mxu0 0.0
    %5046 = vmatpush1.msra.mxu0 0.0
    %5047 = vmatprep.subr.mxu0 0.0
    %5048 = vmatpush1.msra.mxu0 0.0
    %5049 = vmatprep.subr.mxu0 0.0
    %5050 = vmatpush1.msra.mxu0 0.0
    %5051 = vmatprep.subr.mxu0 0.0
    %5052 = vmatpush1.msra.mxu0 0.0
    %5053 = vmatprep.mubr.f32.mxu0 0.0
    %5054 = vmatmul.mubr.f32.gmra.mrb[0].mxu0 %v4952
    %v5055 = vpop.f32.mrb[0].mxu0
    %v5056 = vadd.f32 %v4988, %v5055
    %v5057 = vpop.f32.mrb[0].mxu0
    %5058 = vmatprep.mubr.f32.mxu0 0.0
    %5059 = vmatmul.mubr.f32.gmra.mrb[0].mxu0 %v4953
    %v5060 = vpop.f32.mrb[0].mxu0
    %v5061 = vadd.f32 %v4988, %v5060
    %v5062 = vpop.f32.mrb[0].mxu0
    %5063 = vmatprep.mubr.f32.mxu0 0.0
    %5064 = vmatmul.mubr.f32.gmra.mrb[0].mxu0 %v4954
    %v5065 = vpop.f32.mrb[0].mxu0
    %v5066 = vadd.f32 %v4988, %v5065
    %v5067 = vpop.f32.mrb[0].mxu0
    %5068 = vmatprep.mubr.f32.mxu0 0.0
    %5069 = vmatmul.mubr.f32.gmra.mrb[0].mxu0 %v4955
    %v5070 = vpop.f32.mrb[0].mxu0
    %v5071 = vadd.f32 %v4988, %v5070
    %v5072 = vpop.f32.mrb[0].mxu0
    %5073 = vmatprep.mubr.f32.mxu0 0.0
    %5074 = vmatmul.mubr.f32.gmra.mrb[0].mxu0 %v4956
    %v5075 = vpop.f32.mrb[0].mxu0
    %v5076 = vadd.f32 %v4988, %v5075
    %v5077 = vpop.f32.mrb[0].mxu0
    %5078 = vmatprep.mubr.f32.mxu0 0.0
    %5079 = vmatmul.mubr.f32.gmra.mrb[0].mxu0 %v4957
    %v5080 = vpop.f32.mrb[0].mxu0
    %v5081 = vadd.f32 %v4988, %v5080
    %v5082 = vpop.f32.mrb[0].mxu0
    %5083 = vmatprep.mubr.f32.mxu0 0.0
    %5084 = vmatmul.mubr.f32.gmra.mrb[0].mxu0 %v4958
    %v5085 = vpop.f32.mrb[0].mxu0
    %v5086 = vadd.f32 %v4988, %v5085
    %v5087 = vpop.f32.mrb[0].mxu0
    %5088 = vmatprep.mubr.f32.mxu0 0.0
    %5089 = vmatmul.mubr.f32.gmra.mrb[0].mxu0 %v4959
    %v5090 = vpop.f32.mrb[0].mxu0
    %v5091 = vadd.f32 %v4988, %v5090
    %v5092 = vpop.f32.mrb[0].mxu0
    %5093 = vmatprep.mubr.f32.mxu0 0.0
    %5094 = vmatmul.mubr.f32.gmra.mrb[0].mxu0 %v4960
    %v5095 = vpop.f32.mrb[0].mxu0
    %v5096 = vadd.f32 %v4988, %v5095
    %v5097 = vpop.f32.mrb[0].mxu0
    %5098 = vmatprep.mubr.f32.mxu0 0.0
    %5099 = vmatmul.mubr.f32.gmra.mrb[0].mxu0 %v4961
    %v5100 = vpop.f32.mrb[0].mxu0
    %v5101 = vadd.f32 %v4988, %v5100
    %v5102 = vpop.f32.mrb[0].mxu0
    %5103 = vmatprep.mubr.f32.mxu0 0.0
    %5104 = vmatmul.mubr.f32.gmra.mrb[0].mxu0 %v4962
    %v5105 = vpop.f32.mrb[0].mxu0
    %v5106 = vadd.f32 %v4988, %v5105
    %v5107 = vpop.f32.mrb[0].mxu0
    %5108 = vmatprep.mubr.f32.mxu0 0.0
    %5109 = vmatmul.mubr.f32.gmra.mrb[0].mxu0 %v4963
    %v5110 = vpop.f32.mrb[0].mxu0
    %v5111 = vadd.f32 %v4988, %v5110
    %v5112 = vpop.f32.mrb[0].mxu0
    %5113 = vmatprep.mubr.f32.mxu0 0.0
    %5114 = vmatmul.mubr.f32.gmra.mrb[0].mxu0 %v4964
    %v5115 = vpop.f32.mrb[0].mxu0
    %v5116 = vadd.f32 %v4988, %v5115
    %v5117 = vpop.f32.mrb[0].mxu0
    %5118 = vmatprep.mubr.f32.mxu0 0.0
    %5119 = vmatmul.mubr.f32.gmra.mrb[0].mxu0 %v4965
    %v5120 = vpop.f32.mrb[0].mxu0
    %v5121 = vadd.f32 %v4988, %v5120
    %v5122 = vpop.f32.mrb[0].mxu0
    %5123 = vmatprep.mubr.f32.mxu0 0.0
    %5124 = vmatmul.mubr.f32.gmra.mrb[0].mxu0 %v4966
    %v5125 = vpop.f32.mrb[0].mxu0
    %v5126 = vadd.f32 %v4988, %v5125
    %v5127 = vpop.f32.mrb[0].mxu0
    %5128 = vmatprep.mubr.f32.mxu0 0.0
    %5129 = vmatmul.mubr.f32.gmra.mrb[0].mxu0 %v4967
    %v5130 = vpop.f32.mrb[0].mxu0
    %v5131 = vadd.f32 %v4988, %v5130
    %v5132 = vpop.f32.mrb[0].mxu0
    %5133 = vdwg.mxu0
    %v5134 = vld [vmem:[#allocation6] sm:$0xff]
    %v5135 = vld [vmem:[#allocation6 + $0x8] sm:$0xff]
    %v5136 = vld [vmem:[#allocation6 + $0x10] sm:$0xff]
    %v5137 = vld [vmem:[#allocation6 + $0x18] sm:$0xff]
    %v5138 = vld [vmem:[#allocation6 + $0x20] sm:$0xff]
    %v5139 = vld [vmem:[#allocation6 + $0x28] sm:$0xff]
    %v5140 = vld [vmem:[#allocation6 + $0x30] sm:$0xff]
    %v5141 = vld [vmem:[#allocation6 + $0x38] sm:$0xff]
    %v5142 = vld [vmem:[#allocation6 + $0x40] sm:$0xff]
    %v5143 = vld [vmem:[#allocation6 + $0x48] sm:$0xff]
    %v5144 = vld [vmem:[#allocation6 + $0x50] sm:$0xff]
    %v5145 = vld [vmem:[#allocation6 + $0x58] sm:$0xff]
    %v5146 = vld [vmem:[#allocation6 + $0x60] sm:$0xff]
    %v5147 = vld [vmem:[#allocation6 + $0x68] sm:$0xff]
    %v5148 = vld [vmem:[#allocation6 + $0x70] sm:$0xff]
    %v5149 = vld [vmem:[#allocation6 + $0x78] sm:$0xff]
    %v5150 = vld [vmem:[#allocation6 + $0x80] sm:$0xff]
    %v5151 = vld [vmem:[#allocation6 + $0x88] sm:$0xff]
    %v5152 = vld [vmem:[#allocation6 + $0x90] sm:$0xff]
    %v5153 = vld [vmem:[#allocation6 + $0x98] sm:$0xff]
    %v5154 = vld [vmem:[#allocation6 + $0xa0] sm:$0xff]
    %v5155 = vld [vmem:[#allocation6 + $0xa8] sm:$0xff]
    %v5156 = vld [vmem:[#allocation6 + $0xb0] sm:$0xff]
    %v5157 = vld [vmem:[#allocation6 + $0xb8] sm:$0xff]
    %v5158 = vld [vmem:[#allocation6 + $0xc0] sm:$0xff]
    %v5159 = vld [vmem:[#allocation6 + $0xc8] sm:$0xff]
    %v5160 = vld [vmem:[#allocation6 + $0xd0] sm:$0xff]
    %v5161 = vld [vmem:[#allocation6 + $0xd8] sm:$0xff]
    %v5162 = vld [vmem:[#allocation6 + $0xe0] sm:$0xff]
    %v5163 = vld [vmem:[#allocation6 + $0xe8] sm:$0xff]
    %v5164 = vld [vmem:[#allocation6 + $0xf0] sm:$0xff]
    %v5165 = vld [vmem:[#allocation6 + $0xf8] sm:$0xff]
    %v5166 = vld [vmem:[#allocation6 + $0x100] sm:$0xff]
    %v5167 = vld [vmem:[#allocation6 + $0x108] sm:$0xff]
    %v5168 = vld [vmem:[#allocation6 + $0x110] sm:$0xff]
    %v5169 = vld [vmem:[#allocation6 + $0x118] sm:$0xff]
    %v5170 = vld [vmem:[#allocation6 + $0x120] sm:$0xff]
    %v5171 = vld [vmem:[#allocation6 + $0x128] sm:$0xff]
    %v5172 = vld [vmem:[#allocation6 + $0x130] sm:$0xff]
    %v5173 = vld [vmem:[#allocation6 + $0x138] sm:$0xff]
    %v5174 = vld [vmem:[#allocation6 + $0x140] sm:$0xff]
    %v5175 = vld [vmem:[#allocation6 + $0x148] sm:$0xff]
    %v5176 = vld [vmem:[#allocation6 + $0x150] sm:$0xff]
    %v5177 = vld [vmem:[#allocation6 + $0x158] sm:$0xff]
    %v5178 = vld [vmem:[#allocation6 + $0x160] sm:$0xff]
    %v5179 = vld [vmem:[#allocation6 + $0x168] sm:$0xff]
    %v5180 = vld [vmem:[#allocation6 + $0x170] sm:$0xff]
    %v5181 = vld [vmem:[#allocation6 + $0x178] sm:$0xff]
    %v5182 = vld [vmem:[#allocation6 + $0x180] sm:$0xff]
    %v5183 = vld [vmem:[#allocation6 + $0x188] sm:$0xff]
    %v5184 = vld [vmem:[#allocation6 + $0x190] sm:$0xff]
    %v5185 = vld [vmem:[#allocation6 + $0x198] sm:$0xff]
    %v5186 = vld [vmem:[#allocation6 + $0x1a0] sm:$0xff]
    %v5187 = vld [vmem:[#allocation6 + $0x1a8] sm:$0xff]
    %v5188 = vld [vmem:[#allocation6 + $0x1b0] sm:$0xff]
    %v5189 = vld [vmem:[#allocation6 + $0x1b8] sm:$0xff]
    %v5190 = vld [vmem:[#allocation6 + $0x1c0] sm:$0xff]
    %v5191 = vld [vmem:[#allocation6 + $0x1c8] sm:$0xff]
    %v5192 = vld [vmem:[#allocation6 + $0x1d0] sm:$0xff]
    %v5193 = vld [vmem:[#allocation6 + $0x1d8] sm:$0xff]
    %v5194 = vld [vmem:[#allocation6 + $0x1e0] sm:$0xff]
    %v5195 = vld [vmem:[#allocation6 + $0x1e8] sm:$0xff]
    %v5196 = vld [vmem:[#allocation6 + $0x1f0] sm:$0xff]
    %v5197 = vld [vmem:[#allocation6 + $0x1f8] sm:$0xff]
    %v5198 = vld [vmem:[#allocation6 + $0x200] sm:$0xff]
    %v5199 = vld [vmem:[#allocation6 + $0x208] sm:$0xff]
    %v5200 = vld [vmem:[#allocation6 + $0x210] sm:$0xff]
    %v5201 = vld [vmem:[#allocation6 + $0x218] sm:$0xff]
    %v5202 = vld [vmem:[#allocation6 + $0x220] sm:$0xff]
    %v5203 = vld [vmem:[#allocation6 + $0x228] sm:$0xff]
    %v5204 = vld [vmem:[#allocation6 + $0x230] sm:$0xff]
    %v5205 = vld [vmem:[#allocation6 + $0x238] sm:$0xff]
    %v5206 = vld [vmem:[#allocation6 + $0x240] sm:$0xff]
    %v5207 = vld [vmem:[#allocation6 + $0x248] sm:$0xff]
    %v5208 = vld [vmem:[#allocation6 + $0x250] sm:$0xff]
    %v5209 = vld [vmem:[#allocation6 + $0x258] sm:$0xff]
    %v5210 = vld [vmem:[#allocation6 + $0x260] sm:$0xff]
    %v5211 = vld [vmem:[#allocation6 + $0x268] sm:$0xff]
    %v5212 = vld [vmem:[#allocation6 + $0x270] sm:$0xff]
    %v5213 = vld [vmem:[#allocation6 + $0x278] sm:$0xff]
    %v5214 = vld [vmem:[#allocation6 + $0x280] sm:$0xff]
    %v5215 = vld [vmem:[#allocation6 + $0x288] sm:$0xff]
    %v5216 = vld [vmem:[#allocation6 + $0x290] sm:$0xff]
    %v5217 = vld [vmem:[#allocation6 + $0x298] sm:$0xff]
    %v5218 = vld [vmem:[#allocation6 + $0x2a0] sm:$0xff]
    %v5219 = vld [vmem:[#allocation6 + $0x2a8] sm:$0xff]
    %v5220 = vld [vmem:[#allocation6 + $0x2b0] sm:$0xff]
    %v5221 = vld [vmem:[#allocation6 + $0x2b8] sm:$0xff]
    %v5222 = vld [vmem:[#allocation6 + $0x2c0] sm:$0xff]
    %v5223 = vld [vmem:[#allocation6 + $0x2c8] sm:$0xff]
    %v5224 = vld [vmem:[#allocation6 + $0x2d0] sm:$0xff]
    %v5225 = vld [vmem:[#allocation6 + $0x2d8] sm:$0xff]
    %v5226 = vld [vmem:[#allocation6 + $0x2e0] sm:$0xff]
    %v5227 = vld [vmem:[#allocation6 + $0x2e8] sm:$0xff]
    %v5228 = vld [vmem:[#allocation6 + $0x2f0] sm:$0xff]
    %v5229 = vld [vmem:[#allocation6 + $0x2f8] sm:$0xff]
    %v5230 = vld [vmem:[#allocation6 + $0x300] sm:$0xff]
    %v5231 = vld [vmem:[#allocation6 + $0x308] sm:$0xff]
    %v5232 = vld [vmem:[#allocation6 + $0x310] sm:$0xff]
    %v5233 = vld [vmem:[#allocation6 + $0x318] sm:$0xff]
    %v5234 = vld [vmem:[#allocation6 + $0x320] sm:$0xff]
    %v5235 = vld [vmem:[#allocation6 + $0x328] sm:$0xff]
    %v5236 = vld [vmem:[#allocation6 + $0x330] sm:$0xff]
    %v5237 = vld [vmem:[#allocation6 + $0x338] sm:$0xff]
    %v5238 = vld [vmem:[#allocation6 + $0x340] sm:$0xff]
    %v5239 = vld [vmem:[#allocation6 + $0x348] sm:$0xff]
    %v5240 = vld [vmem:[#allocation6 + $0x350] sm:$0xff]
    %v5241 = vld [vmem:[#allocation6 + $0x358] sm:$0xff]
    %v5242 = vld [vmem:[#allocation6 + $0x360] sm:$0xff]
    %v5243 = vld [vmem:[#allocation6 + $0x368] sm:$0xff]
    %v5244 = vld [vmem:[#allocation6 + $0x370] sm:$0xff]
    %v5245 = vld [vmem:[#allocation6 + $0x378] sm:$0xff]
    %v5246 = vld [vmem:[#allocation6 + $0x380] sm:$0xff]
    %v5247 = vld [vmem:[#allocation6 + $0x388] sm:$0xff]
    %v5248 = vld [vmem:[#allocation6 + $0x390] sm:$0xff]
    %v5249 = vld [vmem:[#allocation6 + $0x398] sm:$0xff]
    %v5250 = vld [vmem:[#allocation6 + $0x3a0] sm:$0xff]
    %v5251 = vld [vmem:[#allocation6 + $0x3a8] sm:$0xff]
    %v5252 = vld [vmem:[#allocation6 + $0x3b0] sm:$0xff]
    %v5253 = vld [vmem:[#allocation6 + $0x3b8] sm:$0xff]
    %v5254 = vld [vmem:[#allocation6 + $0x3c0] sm:$0xff]
    %v5255 = vld [vmem:[#allocation6 + $0x3c8] sm:$0xff]
    %v5256 = vld [vmem:[#allocation6 + $0x3d0] sm:$0xff]
    %v5257 = vld [vmem:[#allocation6 + $0x3d8] sm:$0xff]
    %v5258 = vld [vmem:[#allocation6 + $0x3e0] sm:$0xff]
    %v5259 = vld [vmem:[#allocation6 + $0x3e8] sm:$0xff]
    %v5260 = vld [vmem:[#allocation6 + $0x3f0] sm:$0xff]
    %v5261 = vld [vmem:[#allocation6 + $0x3f8] sm:$0xff]
    %v5262 = vld [vmem:[#allocation6 + $0x400] sm:$0xff]
    %v5263 = vld [vmem:[#allocation6 + $0x408] sm:$0xff]
    %v5264 = vld [vmem:[#allocation6 + $0x410] sm:$0xff]
    %v5265 = vld [vmem:[#allocation6 + $0x418] sm:$0xff]
    %v5266 = vld [vmem:[#allocation6 + $0x420] sm:$0xff]
    %v5267 = vld [vmem:[#allocation6 + $0x428] sm:$0xff]
    %v5268 = vld [vmem:[#allocation6 + $0x430] sm:$0xff]
    %v5269 = vld [vmem:[#allocation6 + $0x438] sm:$0xff]
    %v5270 = vld [vmem:[#allocation6 + $0x440] sm:$0xff]
    %v5271 = vld [vmem:[#allocation6 + $0x448] sm:$0xff]
    %v5272 = vld [vmem:[#allocation6 + $0x450] sm:$0xff]
    %v5273 = vld [vmem:[#allocation6 + $0x458] sm:$0xff]
    %v5274 = vld [vmem:[#allocation6 + $0x460] sm:$0xff]
    %v5275 = vld [vmem:[#allocation6 + $0x468] sm:$0xff]
    %v5276 = vld [vmem:[#allocation6 + $0x470] sm:$0xff]
    %v5277 = vld [vmem:[#allocation6 + $0x478] sm:$0xff]
    %v5278 = vld [vmem:[#allocation6 + $0x480] sm:$0xff]
    %v5279 = vld [vmem:[#allocation6 + $0x488] sm:$0xff]
    %v5280 = vld [vmem:[#allocation6 + $0x490] sm:$0xff]
    %v5281 = vld [vmem:[#allocation6 + $0x498] sm:$0xff]
    %v5282 = vld [vmem:[#allocation6 + $0x4a0] sm:$0xff]
    %v5283 = vld [vmem:[#allocation6 + $0x4a8] sm:$0xff]
    %v5284 = vld [vmem:[#allocation6 + $0x4b0] sm:$0xff]
    %v5285 = vld [vmem:[#allocation6 + $0x4b8] sm:$0xff]
    %v5286 = vld [vmem:[#allocation6 + $0x4c0] sm:$0xff]
    %v5287 = vld [vmem:[#allocation6 + $0x4c8] sm:$0xff]
    %v5288 = vld [vmem:[#allocation6 + $0x4d0] sm:$0xff]
    %v5289 = vld [vmem:[#allocation6 + $0x4d8] sm:$0xff]
    %v5290 = vld [vmem:[#allocation6 + $0x4e0] sm:$0xff]
    %v5291 = vld [vmem:[#allocation6 + $0x4e8] sm:$0xff]
    %v5292 = vld [vmem:[#allocation6 + $0x4f0] sm:$0xff]
    %v5293 = vld [vmem:[#allocation6 + $0x4f8] sm:$0xff]
    %v5294 = vld [vmem:[#allocation6 + $0x500] sm:$0xff]
    %v5295 = vld [vmem:[#allocation6 + $0x508] sm:$0xff]
    %v5296 = vld [vmem:[#allocation6 + $0x510] sm:$0xff]
    %v5297 = vld [vmem:[#allocation6 + $0x518] sm:$0xff]
    %v5298 = vld [vmem:[#allocation6 + $0x520] sm:$0xff]
    %v5299 = vld [vmem:[#allocation6 + $0x528] sm:$0xff]
    %v5300 = vld [vmem:[#allocation6 + $0x530] sm:$0xff]
    %v5301 = vld [vmem:[#allocation6 + $0x538] sm:$0xff]
    %v5302 = vld [vmem:[#allocation6 + $0x540] sm:$0xff]
    %v5303 = vld [vmem:[#allocation6 + $0x548] sm:$0xff]
    %v5304 = vld [vmem:[#allocation6 + $0x550] sm:$0xff]
    %v5305 = vld [vmem:[#allocation6 + $0x558] sm:$0xff]
    %v5306 = vld [vmem:[#allocation6 + $0x560] sm:$0xff]
    %v5307 = vld [vmem:[#allocation6 + $0x568] sm:$0xff]
    %v5308 = vld [vmem:[#allocation6 + $0x570] sm:$0xff]
    %v5309 = vld [vmem:[#allocation6 + $0x578] sm:$0xff]
    %v5310 = vld [vmem:[#allocation6 + $0x580] sm:$0xff]
    %v5311 = vld [vmem:[#allocation6 + $0x588] sm:$0xff]
    %v5312 = vld [vmem:[#allocation6 + $0x590] sm:$0xff]
    %v5313 = vld [vmem:[#allocation6 + $0x598] sm:$0xff]
    %v5314 = vld [vmem:[#allocation6 + $0x5a0] sm:$0xff]
    %v5315 = vld [vmem:[#allocation6 + $0x5a8] sm:$0xff]
    %v5316 = vld [vmem:[#allocation6 + $0x5b0] sm:$0xff]
    %v5317 = vld [vmem:[#allocation6 + $0x5b8] sm:$0xff]
    %v5318 = vld [vmem:[#allocation6 + $0x5c0] sm:$0xff]
    %v5319 = vld [vmem:[#allocation6 + $0x5c8] sm:$0xff]
    %v5320 = vld [vmem:[#allocation6 + $0x5d0] sm:$0xff]
    %v5321 = vld [vmem:[#allocation6 + $0x5d8] sm:$0xff]
    %v5322 = vld [vmem:[#allocation6 + $0x5e0] sm:$0xff]
    %v5323 = vld [vmem:[#allocation6 + $0x5e8] sm:$0xff]
    %v5324 = vld [vmem:[#allocation6 + $0x5f0] sm:$0xff]
    %v5325 = vld [vmem:[#allocation6 + $0x5f8] sm:$0xff]
    %v5326 = vld [vmem:[#allocation6 + $0x600] sm:$0xff]
    %v5327 = vld [vmem:[#allocation6 + $0x608] sm:$0xff]
    %v5328 = vld [vmem:[#allocation6 + $0x610] sm:$0xff]
    %v5329 = vld [vmem:[#allocation6 + $0x618] sm:$0xff]
    %v5330 = vld [vmem:[#allocation6 + $0x620] sm:$0xff]
    %v5331 = vld [vmem:[#allocation6 + $0x628] sm:$0xff]
    %v5332 = vld [vmem:[#allocation6 + $0x630] sm:$0xff]
    %v5333 = vld [vmem:[#allocation6 + $0x638] sm:$0xff]
    %v5334 = vld [vmem:[#allocation6 + $0x640] sm:$0xff]
    %v5335 = vld [vmem:[#allocation6 + $0x648] sm:$0xff]
    %v5336 = vld [vmem:[#allocation6 + $0x650] sm:$0xff]
    %v5337 = vld [vmem:[#allocation6 + $0x658] sm:$0xff]
    %v5338 = vld [vmem:[#allocation6 + $0x660] sm:$0xff]
    %v5339 = vld [vmem:[#allocation6 + $0x668] sm:$0xff]
    %v5340 = vld [vmem:[#allocation6 + $0x670] sm:$0xff]
    %v5341 = vld [vmem:[#allocation6 + $0x678] sm:$0xff]
    %v5342 = vld [vmem:[#allocation6 + $0x680] sm:$0xff]
    %v5343 = vld [vmem:[#allocation6 + $0x688] sm:$0xff]
    %v5344 = vld [vmem:[#allocation6 + $0x690] sm:$0xff]
    %v5345 = vld [vmem:[#allocation6 + $0x698] sm:$0xff]
    %v5346 = vld [vmem:[#allocation6 + $0x6a0] sm:$0xff]
    %v5347 = vld [vmem:[#allocation6 + $0x6a8] sm:$0xff]
    %v5348 = vld [vmem:[#allocation6 + $0x6b0] sm:$0xff]
    %v5349 = vld [vmem:[#allocation6 + $0x6b8] sm:$0xff]
    %v5350 = vld [vmem:[#allocation6 + $0x6c0] sm:$0xff]
    %v5351 = vld [vmem:[#allocation6 + $0x6c8] sm:$0xff]
    %v5352 = vld [vmem:[#allocation6 + $0x6d0] sm:$0xff]
    %v5353 = vld [vmem:[#allocation6 + $0x6d8] sm:$0xff]
    %v5354 = vld [vmem:[#allocation6 + $0x6e0] sm:$0xff]
    %v5355 = vld [vmem:[#allocation6 + $0x6e8] sm:$0xff]
    %v5356 = vld [vmem:[#allocation6 + $0x6f0] sm:$0xff]
    %v5357 = vld [vmem:[#allocation6 + $0x6f8] sm:$0xff]
    %v5358 = vld [vmem:[#allocation6 + $0x700] sm:$0xff]
    %v5359 = vld [vmem:[#allocation6 + $0x708] sm:$0xff]
    %v5360 = vld [vmem:[#allocation6 + $0x710] sm:$0xff]
    %v5361 = vld [vmem:[#allocation6 + $0x718] sm:$0xff]
    %v5362 = vld [vmem:[#allocation6 + $0x720] sm:$0xff]
    %v5363 = vld [vmem:[#allocation6 + $0x728] sm:$0xff]
    %v5364 = vld [vmem:[#allocation6 + $0x730] sm:$0xff]
    %v5365 = vld [vmem:[#allocation6 + $0x738] sm:$0xff]
    %v5366 = vld [vmem:[#allocation6 + $0x740] sm:$0xff]
    %v5367 = vld [vmem:[#allocation6 + $0x748] sm:$0xff]
    %v5368 = vld [vmem:[#allocation6 + $0x750] sm:$0xff]
    %v5369 = vld [vmem:[#allocation6 + $0x758] sm:$0xff]
    %v5370 = vld [vmem:[#allocation6 + $0x760] sm:$0xff]
    %v5371 = vld [vmem:[#allocation6 + $0x768] sm:$0xff]
    %v5372 = vld [vmem:[#allocation6 + $0x770] sm:$0xff]
    %v5373 = vld [vmem:[#allocation6 + $0x778] sm:$0xff]
    %v5374 = vld [vmem:[#allocation6 + $0x780] sm:$0xff]
    %v5375 = vld [vmem:[#allocation6 + $0x788] sm:$0xff]
    %v5376 = vld [vmem:[#allocation6 + $0x790] sm:$0xff]
    %v5377 = vld [vmem:[#allocation6 + $0x798] sm:$0xff]
    %v5378 = vld [vmem:[#allocation6 + $0x7a0] sm:$0xff]
    %v5379 = vld [vmem:[#allocation6 + $0x7a8] sm:$0xff]
    %v5380 = vld [vmem:[#allocation6 + $0x7b0] sm:$0xff]
    %v5381 = vld [vmem:[#allocation6 + $0x7b8] sm:$0xff]
    %v5382 = vld [vmem:[#allocation6 + $0x7c0] sm:$0xff]
    %v5383 = vld [vmem:[#allocation6 + $0x7c8] sm:$0xff]
    %v5384 = vld [vmem:[#allocation6 + $0x7d0] sm:$0xff]
    %v5385 = vld [vmem:[#allocation6 + $0x7d8] sm:$0xff]
    %v5386 = vld [vmem:[#allocation6 + $0x7e0] sm:$0xff]
    %v5387 = vld [vmem:[#allocation6 + $0x7e8] sm:$0xff]
    %v5388 = vld [vmem:[#allocation6 + $0x7f0] sm:$0xff]
    %v5389 = vld [vmem:[#allocation6 + $0x7f8] sm:$0xff]
    %v5390 = vld [vmem:[#allocation6 + $0x800] sm:$0xff]
    %v5391 = vld [vmem:[#allocation6 + $0x808] sm:$0xff]
    %v5392 = vld [vmem:[#allocation6 + $0x810] sm:$0xff]
    %v5393 = vld [vmem:[#allocation6 + $0x818] sm:$0xff]
    %v5394 = vld [vmem:[#allocation6 + $0x820] sm:$0xff]
    %v5395 = vld [vmem:[#allocation6 + $0x828] sm:$0xff]
    %v5396 = vld [vmem:[#allocation6 + $0x830] sm:$0xff]
    %v5397 = vld [vmem:[#allocation6 + $0x838] sm:$0xff]
    %v5398 = vld [vmem:[#allocation6 + $0x840] sm:$0xff]
    %v5399 = vld [vmem:[#allocation6 + $0x848] sm:$0xff]
    %v5400 = vld [vmem:[#allocation6 + $0x850] sm:$0xff]
    %v5401 = vld [vmem:[#allocation6 + $0x858] sm:$0xff]
    %v5402 = vld [vmem:[#allocation6 + $0x860] sm:$0xff]
    %v5403 = vld [vmem:[#allocation6 + $0x868] sm:$0xff]
    %v5404 = vld [vmem:[#allocation6 + $0x870] sm:$0xff]
    %v5405 = vld [vmem:[#allocation6 + $0x878] sm:$0xff]
    %v5406 = vld [vmem:[#allocation6 + $0x880] sm:$0xff]
    %v5407 = vld [vmem:[#allocation6 + $0x888] sm:$0xff]
    %v5408 = vld [vmem:[#allocation6 + $0x890] sm:$0xff]
    %v5409 = vld [vmem:[#allocation6 + $0x898] sm:$0xff]
    %v5410 = vld [vmem:[#allocation6 + $0x8a0] sm:$0xff]
    %v5411 = vld [vmem:[#allocation6 + $0x8a8] sm:$0xff]
    %v5412 = vld [vmem:[#allocation6 + $0x8b0] sm:$0xff]
    %v5413 = vld [vmem:[#allocation6 + $0x8b8] sm:$0xff]
    %v5414 = vld [vmem:[#allocation6 + $0x8c0] sm:$0xff]
    %v5415 = vld [vmem:[#allocation6 + $0x8c8] sm:$0xff]
    %v5416 = vld [vmem:[#allocation6 + $0x8d0] sm:$0xff]
    %v5417 = vld [vmem:[#allocation6 + $0x8d8] sm:$0xff]
    %v5418 = vld [vmem:[#allocation6 + $0x8e0] sm:$0xff]
    %v5419 = vld [vmem:[#allocation6 + $0x8e8] sm:$0xff]
    %v5420 = vld [vmem:[#allocation6 + $0x8f0] sm:$0xff]
    %v5421 = vld [vmem:[#allocation6 + $0x8f8] sm:$0xff]
    %v5422 = vld [vmem:[#allocation6 + $0x900] sm:$0xff]
    %v5423 = vld [vmem:[#allocation6 + $0x908] sm:$0xff]
    %v5424 = vld [vmem:[#allocation6 + $0x910] sm:$0xff]
    %v5425 = vld [vmem:[#allocation6 + $0x918] sm:$0xff]
    %v5426 = vld [vmem:[#allocation6 + $0x920] sm:$0xff]
    %v5427 = vld [vmem:[#allocation6 + $0x928] sm:$0xff]
    %v5428 = vld [vmem:[#allocation6 + $0x930] sm:$0xff]
    %v5429 = vld [vmem:[#allocation6 + $0x938] sm:$0xff]
    %v5430 = vld [vmem:[#allocation6 + $0x940] sm:$0xff]
    %v5431 = vld [vmem:[#allocation6 + $0x948] sm:$0xff]
    %v5432 = vld [vmem:[#allocation6 + $0x950] sm:$0xff]
    %v5433 = vld [vmem:[#allocation6 + $0x958] sm:$0xff]
    %v5434 = vld [vmem:[#allocation6 + $0x960] sm:$0xff]
    %v5435 = vld [vmem:[#allocation6 + $0x968] sm:$0xff]
    %v5436 = vld [vmem:[#allocation6 + $0x970] sm:$0xff]
    %v5437 = vld [vmem:[#allocation6 + $0x978] sm:$0xff]
    %v5438 = vld [vmem:[#allocation6 + $0x980] sm:$0xff]
    %v5439 = vld [vmem:[#allocation6 + $0x988] sm:$0xff]
    %v5440 = vld [vmem:[#allocation6 + $0x990] sm:$0xff]
    %v5441 = vld [vmem:[#allocation6 + $0x998] sm:$0xff]
    %v5442 = vld [vmem:[#allocation6 + $0x9a0] sm:$0xff]
    %v5443 = vld [vmem:[#allocation6 + $0x9a8] sm:$0xff]
    %v5444 = vld [vmem:[#allocation6 + $0x9b0] sm:$0xff]
    %v5445 = vld [vmem:[#allocation6 + $0x9b8] sm:$0xff]
    %v5446 = vld [vmem:[#allocation6 + $0x9c0] sm:$0xff]
    %v5447 = vld [vmem:[#allocation6 + $0x9c8] sm:$0xff]
    %v5448 = vld [vmem:[#allocation6 + $0x9d0] sm:$0xff]
    %v5449 = vld [vmem:[#allocation6 + $0x9d8] sm:$0xff]
    %v5450 = vld [vmem:[#allocation6 + $0x9e0] sm:$0xff]
    %v5451 = vld [vmem:[#allocation6 + $0x9e8] sm:$0xff]
    %v5452 = vld [vmem:[#allocation6 + $0x9f0] sm:$0xff]
    %v5453 = vld [vmem:[#allocation6 + $0x9f8] sm:$0xff]
    %v5454 = vld [vmem:[#allocation6 + $0xa00] sm:$0xff]
    %v5455 = vld [vmem:[#allocation6 + $0xa08] sm:$0xff]
    %v5456 = vld [vmem:[#allocation6 + $0xa10] sm:$0xff]
    %v5457 = vld [vmem:[#allocation6 + $0xa18] sm:$0xff]
    %v5458 = vld [vmem:[#allocation6 + $0xa20] sm:$0xff]
    %v5459 = vld [vmem:[#allocation6 + $0xa28] sm:$0xff]
    %v5460 = vld [vmem:[#allocation6 + $0xa30] sm:$0xff]
    %v5461 = vld [vmem:[#allocation6 + $0xa38] sm:$0xff]
    %v5462 = vld [vmem:[#allocation6 + $0xa40] sm:$0xff]
    %v5463 = vld [vmem:[#allocation6 + $0xa48] sm:$0xff]
    %v5464 = vld [vmem:[#allocation6 + $0xa50] sm:$0xff]
    %v5465 = vld [vmem:[#allocation6 + $0xa58] sm:$0xff]
    %v5466 = vld [vmem:[#allocation6 + $0xa60] sm:$0xff]
    %v5467 = vld [vmem:[#allocation6 + $0xa68] sm:$0xff]
    %v5468 = vld [vmem:[#allocation6 + $0xa70] sm:$0xff]
    %v5469 = vld [vmem:[#allocation6 + $0xa78] sm:$0xff]
    %v5470 = vld [vmem:[#allocation6 + $0xa80] sm:$0xff]
    %v5471 = vld [vmem:[#allocation6 + $0xa88] sm:$0xff]
    %v5472 = vld [vmem:[#allocation6 + $0xa90] sm:$0xff]
    %v5473 = vld [vmem:[#allocation6 + $0xa98] sm:$0xff]
    %v5474 = vld [vmem:[#allocation6 + $0xaa0] sm:$0xff]
    %v5475 = vld [vmem:[#allocation6 + $0xaa8] sm:$0xff]
    %v5476 = vld [vmem:[#allocation6 + $0xab0] sm:$0xff]
    %v5477 = vld [vmem:[#allocation6 + $0xab8] sm:$0xff]
    %v5478 = vld [vmem:[#allocation6 + $0xac0] sm:$0xff]
    %v5479 = vld [vmem:[#allocation6 + $0xac8] sm:$0xff]
    %v5480 = vld [vmem:[#allocation6 + $0xad0] sm:$0xff]
    %v5481 = vld [vmem:[#allocation6 + $0xad8] sm:$0xff]
    %v5482 = vld [vmem:[#allocation6 + $0xae0] sm:$0xff]
    %v5483 = vld [vmem:[#allocation6 + $0xae8] sm:$0xff]
    %v5484 = vld [vmem:[#allocation6 + $0xaf0] sm:$0xff]
    %v5485 = vld [vmem:[#allocation6 + $0xaf8] sm:$0xff]
    %v5486 = vld [vmem:[#allocation6 + $0xb00] sm:$0xff]
    %v5487 = vld [vmem:[#allocation6 + $0xb08] sm:$0xff]
    %v5488 = vld [vmem:[#allocation6 + $0xb10] sm:$0xff]
    %v5489 = vld [vmem:[#allocation6 + $0xb18] sm:$0xff]
    %v5490 = vld [vmem:[#allocation6 + $0xb20] sm:$0xff]
    %v5491 = vld [vmem:[#allocation6 + $0xb28] sm:$0xff]
    %v5492 = vld [vmem:[#allocation6 + $0xb30] sm:$0xff]
    %v5493 = vld [vmem:[#allocation6 + $0xb38] sm:$0xff]
    %v5494 = vld [vmem:[#allocation6 + $0xb40] sm:$0xff]
    %v5495 = vld [vmem:[#allocation6 + $0xb48] sm:$0xff]
    %v5496 = vld [vmem:[#allocation6 + $0xb50] sm:$0xff]
    %v5497 = vld [vmem:[#allocation6 + $0xb58] sm:$0xff]
    %v5498 = vld [vmem:[#allocation6 + $0xb60] sm:$0xff]
    %v5499 = vld [vmem:[#allocation6 + $0xb68] sm:$0xff]
    %v5500 = vld [vmem:[#allocation6 + $0xb70] sm:$0xff]
    %v5501 = vld [vmem:[#allocation6 + $0xb78] sm:$0xff]
    %v5502 = vld [vmem:[#allocation6 + $0xb80] sm:$0xff]
    %v5503 = vld [vmem:[#allocation6 + $0xb88] sm:$0xff]
    %v5504 = vld [vmem:[#allocation6 + $0xb90] sm:$0xff]
    %v5505 = vld [vmem:[#allocation6 + $0xb98] sm:$0xff]
    %v5506 = vld [vmem:[#allocation6 + $0xba0] sm:$0xff]
    %v5507 = vld [vmem:[#allocation6 + $0xba8] sm:$0xff]
    %v5508 = vld [vmem:[#allocation6 + $0xbb0] sm:$0xff]
    %v5509 = vld [vmem:[#allocation6 + $0xbb8] sm:$0xff]
    %v5510 = vld [vmem:[#allocation6 + $0xbc0] sm:$0xff]
    %v5511 = vld [vmem:[#allocation6 + $0xbc8] sm:$0xff]
    %v5512 = vld [vmem:[#allocation6 + $0xbd0] sm:$0xff]
    %v5513 = vld [vmem:[#allocation6 + $0xbd8] sm:$0xff]
    %v5514 = vld [vmem:[#allocation6 + $0xbe0] sm:$0xff]
    %v5515 = vld [vmem:[#allocation6 + $0xbe8] sm:$0xff]
    %v5516 = vld [vmem:[#allocation6 + $0xbf0] sm:$0xff]
    %v5517 = vld [vmem:[#allocation6 + $0xbf8] sm:$0xff]
    %v5518 = vld [vmem:[#allocation6 + $0xc00] sm:$0xff]
    %v5519 = vld [vmem:[#allocation6 + $0xc08] sm:$0xff]
    %v5520 = vld [vmem:[#allocation6 + $0xc10] sm:$0xff]
    %v5521 = vld [vmem:[#allocation6 + $0xc18] sm:$0xff]
    %v5522 = vld [vmem:[#allocation6 + $0xc20] sm:$0xff]
    %v5523 = vld [vmem:[#allocation6 + $0xc28] sm:$0xff]
    %v5524 = vld [vmem:[#allocation6 + $0xc30] sm:$0xff]
    %v5525 = vld [vmem:[#allocation6 + $0xc38] sm:$0xff]
    %v5526 = vld [vmem:[#allocation6 + $0xc40] sm:$0xff]
    %v5527 = vld [vmem:[#allocation6 + $0xc48] sm:$0xff]
    %v5528 = vld [vmem:[#allocation6 + $0xc50] sm:$0xff]
    %v5529 = vld [vmem:[#allocation6 + $0xc58] sm:$0xff]
    %v5530 = vld [vmem:[#allocation6 + $0xc60] sm:$0xff]
    %v5531 = vld [vmem:[#allocation6 + $0xc68] sm:$0xff]
    %v5532 = vld [vmem:[#allocation6 + $0xc70] sm:$0xff]
    %v5533 = vld [vmem:[#allocation6 + $0xc78] sm:$0xff]
    %v5534 = vld [vmem:[#allocation6 + $0xc80] sm:$0xff]
    %v5535 = vld [vmem:[#allocation6 + $0xc88] sm:$0xff]
    %v5536 = vld [vmem:[#allocation6 + $0xc90] sm:$0xff]
    %v5537 = vld [vmem:[#allocation6 + $0xc98] sm:$0xff]
    %v5538 = vld [vmem:[#allocation6 + $0xca0] sm:$0xff]
    %v5539 = vld [vmem:[#allocation6 + $0xca8] sm:$0xff]
    %v5540 = vld [vmem:[#allocation6 + $0xcb0] sm:$0xff]
    %v5541 = vld [vmem:[#allocation6 + $0xcb8] sm:$0xff]
    %v5542 = vld [vmem:[#allocation6 + $0xcc0] sm:$0xff]
    %v5543 = vld [vmem:[#allocation6 + $0xcc8] sm:$0xff]
    %v5544 = vld [vmem:[#allocation6 + $0xcd0] sm:$0xff]
    %v5545 = vld [vmem:[#allocation6 + $0xcd8] sm:$0xff]
    %v5546 = vld [vmem:[#allocation6 + $0xce0] sm:$0xff]
    %v5547 = vld [vmem:[#allocation6 + $0xce8] sm:$0xff]
    %v5548 = vld [vmem:[#allocation6 + $0xcf0] sm:$0xff]
    %v5549 = vld [vmem:[#allocation6 + $0xcf8] sm:$0xff]
    %v5550 = vld [vmem:[#allocation7] ss:$4 sm:$0xf]
    %5552 = vset.pattern.permute.xlu0 0
    %5553 = vperm.xlu0 %5552, %v5056
    %v5554 = vpop.permute.xlu0 %5553
    %5557 = vset.pattern.permute.xlu0 0
    %5558 = vperm.xlu0 %5557, %v5061
    %v5559 = vpop.permute.xlu0 %5558
    %5562 = vset.pattern.permute.xlu0 0
    %5563 = vperm.xlu0 %5562, %v5066
    %v5564 = vpop.permute.xlu0 %5563
    %5567 = vset.pattern.permute.xlu0 0
    %5568 = vperm.xlu0 %5567, %v5071
    %v5569 = vpop.permute.xlu0 %5568
    %5572 = vset.pattern.permute.xlu0 0
    %5573 = vperm.xlu0 %5572, %v5076
    %v5574 = vpop.permute.xlu0 %5573
    %5577 = vset.pattern.permute.xlu0 0
    %5578 = vperm.xlu0 %5577, %v5081
    %v5579 = vpop.permute.xlu0 %5578
    %5582 = vset.pattern.permute.xlu0 0
    %5583 = vperm.xlu0 %5582, %v5086
    %v5584 = vpop.permute.xlu0 %5583
    %5587 = vset.pattern.permute.xlu0 0
    %5588 = vperm.xlu0 %5587, %v5091
    %v5589 = vpop.permute.xlu0 %5588
    %5592 = vset.pattern.permute.xlu0 0
    %5593 = vperm.xlu0 %5592, %v5096
    %v5594 = vpop.permute.xlu0 %5593
    %5597 = vset.pattern.permute.xlu0 0
    %5598 = vperm.xlu0 %5597, %v5101
    %v5599 = vpop.permute.xlu0 %5598
    %5602 = vset.pattern.permute.xlu0 0
    %5603 = vperm.xlu0 %5602, %v5106
    %v5604 = vpop.permute.xlu0 %5603
    %5607 = vset.pattern.permute.xlu0 0
    %5608 = vperm.xlu0 %5607, %v5111
    %v5609 = vpop.permute.xlu0 %5608
    %5612 = vset.pattern.permute.xlu0 0
    %5613 = vperm.xlu0 %5612, %v5116
    %v5614 = vpop.permute.xlu0 %5613
    %5617 = vset.pattern.permute.xlu0 0
    %5618 = vperm.xlu0 %5617, %v5121
    %v5619 = vpop.permute.xlu0 %5618
    %5622 = vset.pattern.permute.xlu0 0
    %5623 = vperm.xlu0 %5622, %v5126
    %v5624 = vpop.permute.xlu0 %5623
    %5627 = vset.pattern.permute.xlu0 0
    %5628 = vperm.xlu0 %5627, %v5131
    %v5629 = vpop.permute.xlu0 %5628
    %v5632 = vlaneseq
    %v5633 = vshrl.u32 %v5632, 7
    %v5634 = vsub.s32 0, %v5633
    %v5635 = vrot.slane %v5550, %v5634
    %v5636 = vlaneseq
    %v5637 = vshrl.u32 %v5636, 7
    %v5638 = vsub.s32 1, %v5637
    %v5639 = vrot.slane %v5550, %v5638
    %v5640 = vlaneseq
    %v5641 = vshrl.u32 %v5640, 7
    %v5642 = vsub.s32 2, %v5641
    %v5643 = vrot.slane %v5550, %v5642
    %v5644 = vlaneseq
    %v5645 = vshrl.u32 %v5644, 7
    %v5646 = vsub.s32 3, %v5645
    %v5647 = vrot.slane %v5550, %v5646
    %v5652 = vmul.f32 %v5554, %v5635
    %v5653 = vmul.f32 %v5554, %v5639
    %v5654 = vmul.f32 %v5554, %v5643
    %v5655 = vmul.f32 %v5554, %v5647
    %v5656 = vmul.f32 %v5559, %v5635
    %v5657 = vmul.f32 %v5559, %v5639
    %v5658 = vmul.f32 %v5559, %v5643
    %v5659 = vmul.f32 %v5559, %v5647
    %v5660 = vmul.f32 %v5564, %v5635
    %v5661 = vmul.f32 %v5564, %v5639
    %v5662 = vmul.f32 %v5564, %v5643
    %v5663 = vmul.f32 %v5564, %v5647
    %v5664 = vmul.f32 %v5569, %v5635
    %v5665 = vmul.f32 %v5569, %v5639
    %v5666 = vmul.f32 %v5569, %v5643
    %v5667 = vmul.f32 %v5569, %v5647
    %v5668 = vmul.f32 %v5574, %v5635
    %v5669 = vmul.f32 %v5574, %v5639
    %v5670 = vmul.f32 %v5574, %v5643
    %v5671 = vmul.f32 %v5574, %v5647
    %v5672 = vmul.f32 %v5579, %v5635
    %v5673 = vmul.f32 %v5579, %v5639
    %v5674 = vmul.f32 %v5579, %v5643
    %v5675 = vmul.f32 %v5579, %v5647
    %v5676 = vmul.f32 %v5584, %v5635
    %v5677 = vmul.f32 %v5584, %v5639
    %v5678 = vmul.f32 %v5584, %v5643
    %v5679 = vmul.f32 %v5584, %v5647
    %v5680 = vmul.f32 %v5589, %v5635
    %v5681 = vmul.f32 %v5589, %v5639
    %v5682 = vmul.f32 %v5589, %v5643
    %v5683 = vmul.f32 %v5589, %v5647
    %v5684 = vmul.f32 %v5594, %v5635
    %v5685 = vmul.f32 %v5594, %v5639
    %v5686 = vmul.f32 %v5594, %v5643
    %v5687 = vmul.f32 %v5594, %v5647
    %v5688 = vmul.f32 %v5599, %v5635
    %v5689 = vmul.f32 %v5599, %v5639
    %v5690 = vmul.f32 %v5599, %v5643
    %v5691 = vmul.f32 %v5599, %v5647
    %v5692 = vmul.f32 %v5604, %v5635
    %v5693 = vmul.f32 %v5604, %v5639
    %v5694 = vmul.f32 %v5604, %v5643
    %v5695 = vmul.f32 %v5604, %v5647
    %v5696 = vmul.f32 %v5609, %v5635
    %v5697 = vmul.f32 %v5609, %v5639
    %v5698 = vmul.f32 %v5609, %v5643
    %v5699 = vmul.f32 %v5609, %v5647
    %v5700 = vmul.f32 %v5614, %v5635
    %v5701 = vmul.f32 %v5614, %v5639
    %v5702 = vmul.f32 %v5614, %v5643
    %v5703 = vmul.f32 %v5614, %v5647
    %v5704 = vmul.f32 %v5619, %v5635
    %v5705 = vmul.f32 %v5619, %v5639
    %v5706 = vmul.f32 %v5619, %v5643
    %v5707 = vmul.f32 %v5619, %v5647
    %v5708 = vmul.f32 %v5624, %v5635
    %v5709 = vmul.f32 %v5624, %v5639
    %v5710 = vmul.f32 %v5624, %v5643
    %v5711 = vmul.f32 %v5624, %v5647
    %v5712 = vmul.f32 %v5629, %v5635
    %v5713 = vmul.f32 %v5629, %v5639
    %v5714 = vmul.f32 %v5629, %v5643
    %v5715 = vmul.f32 %v5629, %v5647
    %5716 = vmatprep.subr.mxu0 %v5135
    %5717 = vmatpush1.msra.mxu0 %v5134
    %5718 = vmatprep.subr.mxu0 %v5139
    %5719 = vmatpush1.msra.mxu0 %v5138
    %5720 = vmatprep.subr.mxu0 %v5143
    %5721 = vmatpush1.msra.mxu0 %v5142
    %5722 = vmatprep.subr.mxu0 %v5147
    %5723 = vmatpush1.msra.mxu0 %v5146
    %5724 = vmatprep.subr.mxu0 %v5151
    %5725 = vmatpush1.msra.mxu0 %v5150
    %5726 = vmatprep.subr.mxu0 %v5155
    %5727 = vmatpush1.msra.mxu0 %v5154
    %5728 = vmatprep.subr.mxu0 %v5159
    %5729 = vmatpush1.msra.mxu0 %v5158
    %5730 = vmatprep.subr.mxu0 %v5163
    %5731 = vmatpush1.msra.mxu0 %v5162
    %5732 = vmatprep.subr.mxu0 %v5167
    %5733 = vmatpush1.msra.mxu0 %v5166
    %5734 = vmatprep.subr.mxu0 %v5171
    %5735 = vmatpush1.msra.mxu0 %v5170
    %5736 = vmatprep.subr.mxu0 %v5175
    %5737 = vmatpush1.msra.mxu0 %v5174
    %5738 = vmatprep.subr.mxu0 %v5179
    %5739 = vmatpush1.msra.mxu0 %v5178
    %5740 = vmatprep.subr.mxu0 %v5183
    %5741 = vmatpush1.msra.mxu0 %v5182
    %5742 = vmatprep.subr.mxu0 %v5187
    %5743 = vmatpush1.msra.mxu0 %v5186
    %5744 = vmatprep.subr.mxu0 %v5191
    %5745 = vmatpush1.msra.mxu0 %v5190
    %5746 = vmatprep.subr.mxu0 %v5195
    %5747 = vmatpush1.msra.mxu0 %v5194
    %5748 = vmatprep.subr.mxu0 %v5199
    %5749 = vmatpush1.msra.mxu0 %v5198
    %5750 = vmatprep.subr.mxu0 %v5203
    %5751 = vmatpush1.msra.mxu0 %v5202
    %5752 = vmatprep.subr.mxu0 %v5207
    %5753 = vmatpush1.msra.mxu0 %v5206
    %5754 = vmatprep.subr.mxu0 %v5211
    %5755 = vmatpush1.msra.mxu0 %v5210
    %5756 = vmatprep.subr.mxu0 %v5215
    %5757 = vmatpush1.msra.mxu0 %v5214
    %5758 = vmatprep.subr.mxu0 %v5219
    %5759 = vmatpush1.msra.mxu0 %v5218
    %5760 = vmatprep.subr.mxu0 %v5223
    %5761 = vmatpush1.msra.mxu0 %v5222
    %5762 = vmatprep.subr.mxu0 %v5227
    %5763 = vmatpush1.msra.mxu0 %v5226
    %5764 = vmatprep.subr.mxu0 %v5231
    %5765 = vmatpush1.msra.mxu0 %v5230
    %5766 = vmatprep.subr.mxu0 %v5235
    %5767 = vmatpush1.msra.mxu0 %v5234
    %5768 = vmatprep.subr.mxu0 %v5239
    %5769 = vmatpush1.msra.mxu0 %v5238
    %5770 = vmatprep.subr.mxu0 %v5243
    %5771 = vmatpush1.msra.mxu0 %v5242
    %5772 = vmatprep.subr.mxu0 %v5247
    %5773 = vmatpush1.msra.mxu0 %v5246
    %5774 = vmatprep.subr.mxu0 %v5251
    %5775 = vmatpush1.msra.mxu0 %v5250
    %5776 = vmatprep.subr.mxu0 %v5255
    %5777 = vmatpush1.msra.mxu0 %v5254
    %5778 = vmatprep.subr.mxu0 %v5259
    %5779 = vmatpush1.msra.mxu0 %v5258
    %5780 = vmatprep.mubr.f32.mxu0 %v148
    %5781 = vmatmul.mubr.f32.gmra.mrb[0].mxu0 %v147
    %v5782 = vpop.f32.mrb[0].mxu0
    %v5783 = vadd.f32 %v5652, %v5782
    %v5784 = vpop.f32.mrb[0].mxu0
    %v5785 = vadd.f32 %v5653, %v5784
    %5786 = vmatprep.mubr.f32.mxu0 %v163
    %5787 = vmatmul.mubr.f32.gmra.mrb[0].mxu0 %v162
    %v5788 = vpop.f32.mrb[0].mxu0
    %v5789 = vadd.f32 %v5656, %v5788
    %v5790 = vpop.f32.mrb[0].mxu0
    %v5791 = vadd.f32 %v5657, %v5790
    %5792 = vmatprep.mubr.f32.mxu0 %v178
    %5793 = vmatmul.mubr.f32.gmra.mrb[0].mxu0 %v177
    %v5794 = vpop.f32.mrb[0].mxu0
    %v5795 = vadd.f32 %v5660, %v5794
    %v5796 = vpop.f32.mrb[0].mxu0
    %v5797 = vadd.f32 %v5661, %v5796
    %5798 = vmatprep.mubr.f32.mxu0 %v193
    %5799 = vmatmul.mubr.f32.gmra.mrb[0].mxu0 %v192
    %v5800 = vpop.f32.mrb[0].mxu0
    %v5801 = vadd.f32 %v5664, %v5800
    %v5802 = vpop.f32.mrb[0].mxu0
    %v5803 = vadd.f32 %v5665, %v5802
    %5804 = vmatprep.mubr.f32.mxu0 %v208
    %5805 = vmatmul.mubr.f32.gmra.mrb[0].mxu0 %v207
    %v5806 = vpop.f32.mrb[0].mxu0
    %v5807 = vadd.f32 %v5668, %v5806
    %v5808 = vpop.f32.mrb[0].mxu0
    %v5809 = vadd.f32 %v5669, %v5808
    %5810 = vmatprep.mubr.f32.mxu0 %v223
    %5811 = vmatmul.mubr.f32.gmra.mrb[0].mxu0 %v222
    %v5812 = vpop.f32.mrb[0].mxu0
    %v5813 = vadd.f32 %v5672, %v5812
    %v5814 = vpop.f32.mrb[0].mxu0
    %v5815 = vadd.f32 %v5673, %v5814
    %5816 = vmatprep.mubr.f32.mxu0 %v238
    %5817 = vmatmul.mubr.f32.gmra.mrb[0].mxu0 %v237
    %v5818 = vpop.f32.mrb[0].mxu0
    %v5819 = vadd.f32 %v5676, %v5818
    %v5820 = vpop.f32.mrb[0].mxu0
    %v5821 = vadd.f32 %v5677, %v5820
    %5822 = vmatprep.mubr.f32.mxu0 %v253
    %5823 = vmatmul.mubr.f32.gmra.mrb[0].mxu0 %v252
    %v5824 = vpop.f32.mrb[0].mxu0
    %v5825 = vadd.f32 %v5680, %v5824
    %v5826 = vpop.f32.mrb[0].mxu0
    %v5827 = vadd.f32 %v5681, %v5826
    %5828 = vmatprep.mubr.f32.mxu0 %v268
    %5829 = vmatmul.mubr.f32.gmra.mrb[0].mxu0 %v267
    %v5830 = vpop.f32.mrb[0].mxu0
    %v5831 = vadd.f32 %v5684, %v5830
    %v5832 = vpop.f32.mrb[0].mxu0
    %v5833 = vadd.f32 %v5685, %v5832
    %5834 = vmatprep.mubr.f32.mxu0 %v283
    %5835 = vmatmul.mubr.f32.gmra.mrb[0].mxu0 %v282
    %v5836 = vpop.f32.mrb[0].mxu0
    %v5837 = vadd.f32 %v5688, %v5836
    %v5838 = vpop.f32.mrb[0].mxu0
    %v5839 = vadd.f32 %v5689, %v5838
    %5840 = vmatprep.mubr.f32.mxu0 %v298
    %5841 = vmatmul.mubr.f32.gmra.mrb[0].mxu0 %v297
    %v5842 = vpop.f32.mrb[0].mxu0
    %v5843 = vadd.f32 %v5692, %v5842
    %v5844 = vpop.f32.mrb[0].mxu0
    %v5845 = vadd.f32 %v5693, %v5844
    %5846 = vmatprep.mubr.f32.mxu0 %v313
    %5847 = vmatmul.mubr.f32.gmra.mrb[0].mxu0 %v312
    %v5848 = vpop.f32.mrb[0].mxu0
    %v5849 = vadd.f32 %v5696, %v5848
    %v5850 = vpop.f32.mrb[0].mxu0
    %v5851 = vadd.f32 %v5697, %v5850
    %5852 = vmatprep.mubr.f32.mxu0 %v328
    %5853 = vmatmul.mubr.f32.gmra.mrb[0].mxu0 %v327
    %v5854 = vpop.f32.mrb[0].mxu0
    %v5855 = vadd.f32 %v5700, %v5854
    %v5856 = vpop.f32.mrb[0].mxu0
    %v5857 = vadd.f32 %v5701, %v5856
    %5858 = vmatprep.mubr.f32.mxu0 %v343
    %5859 = vmatmul.mubr.f32.gmra.mrb[0].mxu0 %v342
    %v5860 = vpop.f32.mrb[0].mxu0
    %v5861 = vadd.f32 %v5704, %v5860
    %v5862 = vpop.f32.mrb[0].mxu0
    %v5863 = vadd.f32 %v5705, %v5862
    %5864 = vmatprep.mubr.f32.mxu0 %v358
    %5865 = vmatmul.mubr.f32.gmra.mrb[0].mxu0 %v357
    %v5866 = vpop.f32.mrb[0].mxu0
    %v5867 = vadd.f32 %v5708, %v5866
    %v5868 = vpop.f32.mrb[0].mxu0
    %v5869 = vadd.f32 %v5709, %v5868
    %5870 = vmatprep.mubr.f32.mxu0 %v373
    %5871 = vmatmul.mubr.f32.gmra.mrb[0].mxu0 %v372
    %v5872 = vpop.f32.mrb[0].mxu0
    %v5873 = vadd.f32 %v5712, %v5872
    %v5874 = vpop.f32.mrb[0].mxu0
    %v5875 = vadd.f32 %v5713, %v5874
    %5876 = vdwg.mxu0
    %5877 = vmatprep.subr.mxu0 %v5263
    %5878 = vmatpush1.msra.mxu0 %v5262
    %5879 = vmatprep.subr.mxu0 %v5267
    %5880 = vmatpush1.msra.mxu0 %v5266
    %5881 = vmatprep.subr.mxu0 %v5271
    %5882 = vmatpush1.msra.mxu0 %v5270
    %5883 = vmatprep.subr.mxu0 %v5275
    %5884 = vmatpush1.msra.mxu0 %v5274
    %5885 = vmatprep.subr.mxu0 %v5279
    %5886 = vmatpush1.msra.mxu0 %v5278
    %5887 = vmatprep.subr.mxu0 %v5283
    %5888 = vmatpush1.msra.mxu0 %v5282
    %5889 = vmatprep.subr.mxu0 %v5287
    %5890 = vmatpush1.msra.mxu0 %v5286
    %5891 = vmatprep.subr.mxu0 %v5291
    %5892 = vmatpush1.msra.mxu0 %v5290
    %5893 = vmatprep.subr.mxu0 %v5295
    %5894 = vmatpush1.msra.mxu0 %v5294
    %5895 = vmatprep.subr.mxu0 %v5299
    %5896 = vmatpush1.msra.mxu0 %v5298
    %5897 = vmatprep.subr.mxu0 %v5303
    %5898 = vmatpush1.msra.mxu0 %v5302
    %5899 = vmatprep.subr.mxu0 %v5307
    %5900 = vmatpush1.msra.mxu0 %v5306
    %5901 = vmatprep.subr.mxu0 %v5311
    %5902 = vmatpush1.msra.mxu0 %v5310
    %5903 = vmatprep.subr.mxu0 %v5315
    %5904 = vmatpush1.msra.mxu0 %v5314
    %5905 = vmatprep.subr.mxu0 %v5319
    %5906 = vmatpush1.msra.mxu0 %v5318
    %5907 = vmatprep.subr.mxu0 %v5323
    %5908 = vmatpush1.msra.mxu0 %v5322
    %5909 = vmatprep.subr.mxu0 %v5327
    %5910 = vmatpush1.msra.mxu0 %v5326
    %5911 = vmatprep.subr.mxu0 %v5331
    %5912 = vmatpush1.msra.mxu0 %v5330
    %5913 = vmatprep.subr.mxu0 %v5335
    %5914 = vmatpush1.msra.mxu0 %v5334
    %5915 = vmatprep.subr.mxu0 %v5339
    %5916 = vmatpush1.msra.mxu0 %v5338
    %5917 = vmatprep.subr.mxu0 %v5343
    %5918 = vmatpush1.msra.mxu0 %v5342
    %5919 = vmatprep.subr.mxu0 %v5347
    %5920 = vmatpush1.msra.mxu0 %v5346
    %5921 = vmatprep.subr.mxu0 %v5351
    %5922 = vmatpush1.msra.mxu0 %v5350
    %5923 = vmatprep.subr.mxu0 %v5355
    %5924 = vmatpush1.msra.mxu0 %v5354
    %5925 = vmatprep.subr.mxu0 %v5359
    %5926 = vmatpush1.msra.mxu0 %v5358
    %5927 = vmatprep.subr.mxu0 %v5363
    %5928 = vmatpush1.msra.mxu0 %v5362
    %5929 = vmatprep.subr.mxu0 %v5367
    %5930 = vmatpush1.msra.mxu0 %v5366
    %5931 = vmatprep.subr.mxu0 %v5371
    %5932 = vmatpush1.msra.mxu0 %v5370
    %5933 = vmatprep.subr.mxu0 %v5375
    %5934 = vmatpush1.msra.mxu0 %v5374
    %5935 = vmatprep.subr.mxu0 %v5379
    %5936 = vmatpush1.msra.mxu0 %v5378
    %5937 = vmatprep.subr.mxu0 %v5383
    %5938 = vmatpush1.msra.mxu0 %v5382
    %5939 = vmatprep.subr.mxu0 %v5387
    %5940 = vmatpush1.msra.mxu0 %v5386
    %5941 = vmatprep.mubr.f32.mxu0 %v150
    %5942 = vmatmul.mubr.f32.gmra.mrb[0].mxu0 %v149
    %v5943 = vpop.f32.mrb[0].mxu0
    %v5944 = vadd.f32 %v5783, %v5943
    %v5945 = vpop.f32.mrb[0].mxu0
    %v5946 = vadd.f32 %v5785, %v5945
    %5947 = vmatprep.mubr.f32.mxu0 %v165
    %5948 = vmatmul.mubr.f32.gmra.mrb[0].mxu0 %v164
    %v5949 = vpop.f32.mrb[0].mxu0
    %v5950 = vadd.f32 %v5789, %v5949
    %v5951 = vpop.f32.mrb[0].mxu0
    %v5952 = vadd.f32 %v5791, %v5951
    %5953 = vmatprep.mubr.f32.mxu0 %v180
    %5954 = vmatmul.mubr.f32.gmra.mrb[0].mxu0 %v179
    %v5955 = vpop.f32.mrb[0].mxu0
    %v5956 = vadd.f32 %v5795, %v5955
    %v5957 = vpop.f32.mrb[0].mxu0
    %v5958 = vadd.f32 %v5797, %v5957
    %5959 = vmatprep.mubr.f32.mxu0 %v195
    %5960 = vmatmul.mubr.f32.gmra.mrb[0].mxu0 %v194
    %v5961 = vpop.f32.mrb[0].mxu0
    %v5962 = vadd.f32 %v5801, %v5961
    %v5963 = vpop.f32.mrb[0].mxu0
    %v5964 = vadd.f32 %v5803, %v5963
    %5965 = vmatprep.mubr.f32.mxu0 %v210
    %5966 = vmatmul.mubr.f32.gmra.mrb[0].mxu0 %v209
    %v5967 = vpop.f32.mrb[0].mxu0
    %v5968 = vadd.f32 %v5807, %v5967
    %v5969 = vpop.f32.mrb[0].mxu0
    %v5970 = vadd.f32 %v5809, %v5969
    %5971 = vmatprep.mubr.f32.mxu0 %v225
    %5972 = vmatmul.mubr.f32.gmra.mrb[0].mxu0 %v224
    %v5973 = vpop.f32.mrb[0].mxu0
    %v5974 = vadd.f32 %v5813, %v5973
    %v5975 = vpop.f32.mrb[0].mxu0
    %v5976 = vadd.f32 %v5815, %v5975
    %5977 = vmatprep.mubr.f32.mxu0 %v240
    %5978 = vmatmul.mubr.f32.gmra.mrb[0].mxu0 %v239
    %v5979 = vpop.f32.mrb[0].mxu0
    %v5980 = vadd.f32 %v5819, %v5979
    %v5981 = vpop.f32.mrb[0].mxu0
    %v5982 = vadd.f32 %v5821, %v5981
    %5983 = vmatprep.mubr.f32.mxu0 %v255
    %5984 = vmatmul.mubr.f32.gmra.mrb[0].mxu0 %v254
    %v5985 = vpop.f32.mrb[0].mxu0
    %v5986 = vadd.f32 %v5825, %v5985
    %v5987 = vpop.f32.mrb[0].mxu0
    %v5988 = vadd.f32 %v5827, %v5987
    %5989 = vmatprep.mubr.f32.mxu0 %v270
    %5990 = vmatmul.mubr.f32.gmra.mrb[0].mxu0 %v269
    %v5991 = vpop.f32.mrb[0].mxu0
    %v5992 = vadd.f32 %v5831, %v5991
    %v5993 = vpop.f32.mrb[0].mxu0
    %v5994 = vadd.f32 %v5833, %v5993
    %5995 = vmatprep.mubr.f32.mxu0 %v285
    %5996 = vmatmul.mubr.f32.gmra.mrb[0].mxu0 %v284
    %v5997 = vpop.f32.mrb[0].mxu0
    %v5998 = vadd.f32 %v5837, %v5997
    %v5999 = vpop.f32.mrb[0].mxu0
    %v6000 = vadd.f32 %v5839, %v5999
    %6001 = vmatprep.mubr.f32.mxu0 %v300
    %6002 = vmatmul.mubr.f32.gmra.mrb[0].mxu0 %v299
    %v6003 = vpop.f32.mrb[0].mxu0
    %v6004 = vadd.f32 %v5843, %v6003
    %v6005 = vpop.f32.mrb[0].mxu0
    %v6006 = vadd.f32 %v5845, %v6005
    %6007 = vmatprep.mubr.f32.mxu0 %v315
    %6008 = vmatmul.mubr.f32.gmra.mrb[0].mxu0 %v314
    %v6009 = vpop.f32.mrb[0].mxu0
    %v6010 = vadd.f32 %v5849, %v6009
    %v6011 = vpop.f32.mrb[0].mxu0
    %v6012 = vadd.f32 %v5851, %v6011
    %6013 = vmatprep.mubr.f32.mxu0 %v330
    %6014 = vmatmul.mubr.f32.gmra.mrb[0].mxu0 %v329
    %v6015 = vpop.f32.mrb[0].mxu0
    %v6016 = vadd.f32 %v5855, %v6015
    %v6017 = vpop.f32.mrb[0].mxu0
    %v6018 = vadd.f32 %v5857, %v6017
    %6019 = vmatprep.mubr.f32.mxu0 %v345
    %6020 = vmatmul.mubr.f32.gmra.mrb[0].mxu0 %v344
    %v6021 = vpop.f32.mrb[0].mxu0
    %v6022 = vadd.f32 %v5861, %v6021
    %v6023 = vpop.f32.mrb[0].mxu0
    %v6024 = vadd.f32 %v5863, %v6023
    %6025 = vmatprep.mubr.f32.mxu0 %v360
    %6026 = vmatmul.mubr.f32.gmra.mrb[0].mxu0 %v359
    %v6027 = vpop.f32.mrb[0].mxu0
    %v6028 = vadd.f32 %v5867, %v6027
    %v6029 = vpop.f32.mrb[0].mxu0
    %v6030 = vadd.f32 %v5869, %v6029
    %6031 = vmatprep.mubr.f32.mxu0 %v375
    %6032 = vmatmul.mubr.f32.gmra.mrb[0].mxu0 %v374
    %v6033 = vpop.f32.mrb[0].mxu0
    %v6034 = vadd.f32 %v5873, %v6033
    %v6035 = vpop.f32.mrb[0].mxu0
    %v6036 = vadd.f32 %v5875, %v6035
    %6037 = vdwg.mxu0
    %6038 = vmatprep.subr.mxu0 %v5391
    %6039 = vmatpush1.msra.mxu0 %v5390
    %6040 = vmatprep.subr.mxu0 %v5395
    %6041 = vmatpush1.msra.mxu0 %v5394
    %6042 = vmatprep.subr.mxu0 %v5399
    %6043 = vmatpush1.msra.mxu0 %v5398
    %6044 = vmatprep.subr.mxu0 %v5403
    %6045 = vmatpush1.msra.mxu0 %v5402
    %6046 = vmatprep.subr.mxu0 %v5407
    %6047 = vmatpush1.msra.mxu0 %v5406
    %6048 = vmatprep.subr.mxu0 %v5411
    %6049 = vmatpush1.msra.mxu0 %v5410
    %6050 = vmatprep.subr.mxu0 %v5415
    %6051 = vmatpush1.msra.mxu0 %v5414
    %6052 = vmatprep.subr.mxu0 %v5419
    %6053 = vmatpush1.msra.mxu0 %v5418
    %6054 = vmatprep.subr.mxu0 %v5423
    %6055 = vmatpush1.msra.mxu0 %v5422
    %6056 = vmatprep.subr.mxu0 %v5427
    %6057 = vmatpush1.msra.mxu0 %v5426
    %6058 = vmatprep.subr.mxu0 %v5431
    %6059 = vmatpush1.msra.mxu0 %v5430
    %6060 = vmatprep.subr.mxu0 %v5435
    %6061 = vmatpush1.msra.mxu0 %v5434
    %6062 = vmatprep.subr.mxu0 %v5439
    %6063 = vmatpush1.msra.mxu0 %v5438
    %6064 = vmatprep.subr.mxu0 %v5443
    %6065 = vmatpush1.msra.mxu0 %v5442
    %6066 = vmatprep.subr.mxu0 %v5447
    %6067 = vmatpush1.msra.mxu0 %v5446
    %6068 = vmatprep.subr.mxu0 %v5451
    %6069 = vmatpush1.msra.mxu0 %v5450
    %6070 = vmatprep.subr.mxu0 %v5455
    %6071 = vmatpush1.msra.mxu0 %v5454
    %6072 = vmatprep.subr.mxu0 %v5459
    %6073 = vmatpush1.msra.mxu0 %v5458
    %6074 = vmatprep.subr.mxu0 %v5463
    %6075 = vmatpush1.msra.mxu0 %v5462
    %6076 = vmatprep.subr.mxu0 %v5467
    %6077 = vmatpush1.msra.mxu0 %v5466
    %6078 = vmatprep.subr.mxu0 %v5471
    %6079 = vmatpush1.msra.mxu0 %v5470
    %6080 = vmatprep.subr.mxu0 %v5475
    %6081 = vmatpush1.msra.mxu0 %v5474
    %6082 = vmatprep.subr.mxu0 %v5479
    %6083 = vmatpush1.msra.mxu0 %v5478
    %6084 = vmatprep.subr.mxu0 %v5483
    %6085 = vmatpush1.msra.mxu0 %v5482
    %6086 = vmatprep.subr.mxu0 %v5487
    %6087 = vmatpush1.msra.mxu0 %v5486
    %6088 = vmatprep.subr.mxu0 %v5491
    %6089 = vmatpush1.msra.mxu0 %v5490
    %6090 = vmatprep.subr.mxu0 %v5495
    %6091 = vmatpush1.msra.mxu0 %v5494
    %6092 = vmatprep.subr.mxu0 %v5499
    %6093 = vmatpush1.msra.mxu0 %v5498
    %6094 = vmatprep.subr.mxu0 %v5503
    %6095 = vmatpush1.msra.mxu0 %v5502
    %6096 = vmatprep.subr.mxu0 %v5507
    %6097 = vmatpush1.msra.mxu0 %v5506
    %6098 = vmatprep.subr.mxu0 %v5511
    %6099 = vmatpush1.msra.mxu0 %v5510
    %6100 = vmatprep.subr.mxu0 %v5515
    %6101 = vmatpush1.msra.mxu0 %v5514
    %6102 = vmatprep.mubr.f32.mxu0 %v152
    %6103 = vmatmul.mubr.f32.gmra.mrb[0].mxu0 %v151
    %v6104 = vpop.f32.mrb[0].mxu0
    %v6105 = vadd.f32 %v5944, %v6104
    %v6106 = vpop.f32.mrb[0].mxu0
    %v6107 = vadd.f32 %v5946, %v6106
    %6108 = vmatprep.mubr.f32.mxu0 %v167
    %6109 = vmatmul.mubr.f32.gmra.mrb[0].mxu0 %v166
    %v6110 = vpop.f32.mrb[0].mxu0
    %v6111 = vadd.f32 %v5950, %v6110
    %v6112 = vpop.f32.mrb[0].mxu0
    %v6113 = vadd.f32 %v5952, %v6112
    %6114 = vmatprep.mubr.f32.mxu0 %v182
    %6115 = vmatmul.mubr.f32.gmra.mrb[0].mxu0 %v181
    %v6116 = vpop.f32.mrb[0].mxu0
    %v6117 = vadd.f32 %v5956, %v6116
    %v6118 = vpop.f32.mrb[0].mxu0
    %v6119 = vadd.f32 %v5958, %v6118
    %6120 = vmatprep.mubr.f32.mxu0 %v197
    %6121 = vmatmul.mubr.f32.gmra.mrb[0].mxu0 %v196
    %v6122 = vpop.f32.mrb[0].mxu0
    %v6123 = vadd.f32 %v5962, %v6122
    %v6124 = vpop.f32.mrb[0].mxu0
    %v6125 = vadd.f32 %v5964, %v6124
    %6126 = vmatprep.mubr.f32.mxu0 %v212
    %6127 = vmatmul.mubr.f32.gmra.mrb[0].mxu0 %v211
    %v6128 = vpop.f32.mrb[0].mxu0
    %v6129 = vadd.f32 %v5968, %v6128
    %v6130 = vpop.f32.mrb[0].mxu0
    %v6131 = vadd.f32 %v5970, %v6130
    %6132 = vmatprep.mubr.f32.mxu0 %v227
    %6133 = vmatmul.mubr.f32.gmra.mrb[0].mxu0 %v226
    %v6134 = vpop.f32.mrb[0].mxu0
    %v6135 = vadd.f32 %v5974, %v6134
    %v6136 = vpop.f32.mrb[0].mxu0
    %v6137 = vadd.f32 %v5976, %v6136
    %6138 = vmatprep.mubr.f32.mxu0 %v242
    %6139 = vmatmul.mubr.f32.gmra.mrb[0].mxu0 %v241
    %v6140 = vpop.f32.mrb[0].mxu0
    %v6141 = vadd.f32 %v5980, %v6140
    %v6142 = vpop.f32.mrb[0].mxu0
    %v6143 = vadd.f32 %v5982, %v6142
    %6144 = vmatprep.mubr.f32.mxu0 %v257
    %6145 = vmatmul.mubr.f32.gmra.mrb[0].mxu0 %v256
    %v6146 = vpop.f32.mrb[0].mxu0
    %v6147 = vadd.f32 %v5986, %v6146
    %v6148 = vpop.f32.mrb[0].mxu0
    %v6149 = vadd.f32 %v5988, %v6148
    %6150 = vmatprep.mubr.f32.mxu0 %v272
    %6151 = vmatmul.mubr.f32.gmra.mrb[0].mxu0 %v271
    %v6152 = vpop.f32.mrb[0].mxu0
    %v6153 = vadd.f32 %v5992, %v6152
    %v6154 = vpop.f32.mrb[0].mxu0
    %v6155 = vadd.f32 %v5994, %v6154
    %6156 = vmatprep.mubr.f32.mxu0 %v287
    %6157 = vmatmul.mubr.f32.gmra.mrb[0].mxu0 %v286
    %v6158 = vpop.f32.mrb[0].mxu0
    %v6159 = vadd.f32 %v5998, %v6158
    %v6160 = vpop.f32.mrb[0].mxu0
    %v6161 = vadd.f32 %v6000, %v6160
    %6162 = vmatprep.mubr.f32.mxu0 %v302
    %6163 = vmatmul.mubr.f32.gmra.mrb[0].mxu0 %v301
    %v6164 = vpop.f32.mrb[0].mxu0
    %v6165 = vadd.f32 %v6004, %v6164
    %v6166 = vpop.f32.mrb[0].mxu0
    %v6167 = vadd.f32 %v6006, %v6166
    %6168 = vmatprep.mubr.f32.mxu0 %v317
    %6169 = vmatmul.mubr.f32.gmra.mrb[0].mxu0 %v316
    %v6170 = vpop.f32.mrb[0].mxu0
    %v6171 = vadd.f32 %v6010, %v6170
    %v6172 = vpop.f32.mrb[0].mxu0
    %v6173 = vadd.f32 %v6012, %v6172
    %6174 = vmatprep.mubr.f32.mxu0 %v332
    %6175 = vmatmul.mubr.f32.gmra.mrb[0].mxu0 %v331
    %v6176 = vpop.f32.mrb[0].mxu0
    %v6177 = vadd.f32 %v6016, %v6176
    %v6178 = vpop.f32.mrb[0].mxu0
    %v6179 = vadd.f32 %v6018, %v6178
    %6180 = vmatprep.mubr.f32.mxu0 %v347
    %6181 = vmatmul.mubr.f32.gmra.mrb[0].mxu0 %v346
    %v6182 = vpop.f32.mrb[0].mxu0
    %v6183 = vadd.f32 %v6022, %v6182
    %v6184 = vpop.f32.mrb[0].mxu0
    %v6185 = vadd.f32 %v6024, %v6184
    %6186 = vmatprep.mubr.f32.mxu0 %v362
    %6187 = vmatmul.mubr.f32.gmra.mrb[0].mxu0 %v361
    %v6188 = vpop.f32.mrb[0].mxu0
    %v6189 = vadd.f32 %v6028, %v6188
    %v6190 = vpop.f32.mrb[0].mxu0
    %v6191 = vadd.f32 %v6030, %v6190
    %6192 = vmatprep.mubr.f32.mxu0 %v377
    %6193 = vmatmul.mubr.f32.gmra.mrb[0].mxu0 %v376
    %v6194 = vpop.f32.mrb[0].mxu0
    %v6195 = vadd.f32 %v6034, %v6194
    %v6196 = vpop.f32.mrb[0].mxu0
    %v6197 = vadd.f32 %v6036, %v6196
    %6198 = vdwg.mxu0
    %6199 = vmatprep.subr.mxu0 %v5519
    %6200 = vmatpush1.msra.mxu0 %v5518
    %6201 = vmatprep.subr.mxu0 %v5523
    %6202 = vmatpush1.msra.mxu0 %v5522
    %6203 = vmatprep.subr.mxu0 %v5527
    %6204 = vmatpush1.msra.mxu0 %v5526
    %6205 = vmatprep.subr.mxu0 %v5531
    %6206 = vmatpush1.msra.mxu0 %v5530
    %6207 = vmatprep.subr.mxu0 %v5535
    %6208 = vmatpush1.msra.mxu0 %v5534
    %6209 = vmatprep.subr.mxu0 %v5539
    %6210 = vmatpush1.msra.mxu0 %v5538
    %6211 = vmatprep.subr.mxu0 %v5543
    %6212 = vmatpush1.msra.mxu0 %v5542
    %6213 = vmatprep.subr.mxu0 %v5547
    %6214 = vmatpush1.msra.mxu0 %v5546
    %6215 = vmatprep.subr.mxu0 0.0
    %6216 = vmatpush1.msra.mxu0 0.0
    %6217 = vmatprep.subr.mxu0 0.0
    %6218 = vmatpush1.msra.mxu0 0.0
    %6219 = vmatprep.subr.mxu0 0.0
    %6220 = vmatpush1.msra.mxu0 0.0
    %6221 = vmatprep.subr.mxu0 0.0
    %6222 = vmatpush1.msra.mxu0 0.0
    %6223 = vmatprep.subr.mxu0 0.0
    %6224 = vmatpush1.msra.mxu0 0.0
    %6225 = vmatprep.subr.mxu0 0.0
    %6226 = vmatpush1.msra.mxu0 0.0
    %6227 = vmatprep.subr.mxu0 0.0
    %6228 = vmatpush1.msra.mxu0 0.0
    %6229 = vmatprep.subr.mxu0 0.0
    %6230 = vmatpush1.msra.mxu0 0.0
    %6231 = vmatprep.subr.mxu0 0.0
    %6232 = vmatpush1.msra.mxu0 0.0
    %6233 = vmatprep.subr.mxu0 0.0
    %6234 = vmatpush1.msra.mxu0 0.0
    %6235 = vmatprep.subr.mxu0 0.0
    %6236 = vmatpush1.msra.mxu0 0.0
    %6237 = vmatprep.subr.mxu0 0.0
    %6238 = vmatpush1.msra.mxu0 0.0
    %6239 = vmatprep.subr.mxu0 0.0
    %6240 = vmatpush1.msra.mxu0 0.0
    %6241 = vmatprep.subr.mxu0 0.0
    %6242 = vmatpush1.msra.mxu0 0.0
    %6243 = vmatprep.subr.mxu0 0.0
    %6244 = vmatpush1.msra.mxu0 0.0
    %6245 = vmatprep.subr.mxu0 0.0
    %6246 = vmatpush1.msra.mxu0 0.0
    %6247 = vmatprep.subr.mxu0 0.0
    %6248 = vmatpush1.msra.mxu0 0.0
    %6249 = vmatprep.subr.mxu0 0.0
    %6250 = vmatpush1.msra.mxu0 0.0
    %6251 = vmatprep.subr.mxu0 0.0
    %6252 = vmatpush1.msra.mxu0 0.0
    %6253 = vmatprep.subr.mxu0 0.0
    %6254 = vmatpush1.msra.mxu0 0.0
    %6255 = vmatprep.subr.mxu0 0.0
    %6256 = vmatpush1.msra.mxu0 0.0
    %6257 = vmatprep.subr.mxu0 0.0
    %6258 = vmatpush1.msra.mxu0 0.0
    %6259 = vmatprep.subr.mxu0 0.0
    %6260 = vmatpush1.msra.mxu0 0.0
    %6261 = vmatprep.subr.mxu0 0.0
    %6262 = vmatpush1.msra.mxu0 0.0
    %6263 = vmatprep.mubr.f32.mxu0 0.0
    %6264 = vmatmul.mubr.f32.gmra.mrb[0].mxu0 %v1309
    %v6265 = vpop.f32.mrb[0].mxu0
    %v6266 = vadd.f32 %v6105, %v6265
    %v6267 = vpop.f32.mrb[0].mxu0
    %v6268 = vadd.f32 %v6107, %v6267
    %6269 = vmatprep.mubr.f32.mxu0 0.0
    %6270 = vmatmul.mubr.f32.gmra.mrb[0].mxu0 %v1312
    %v6271 = vpop.f32.mrb[0].mxu0
    %v6272 = vadd.f32 %v6111, %v6271
    %v6273 = vpop.f32.mrb[0].mxu0
    %v6274 = vadd.f32 %v6113, %v6273
    %6275 = vmatprep.mubr.f32.mxu0 0.0
    %6276 = vmatmul.mubr.f32.gmra.mrb[0].mxu0 %v1315
    %v6277 = vpop.f32.mrb[0].mxu0
    %v6278 = vadd.f32 %v6117, %v6277
    %v6279 = vpop.f32.mrb[0].mxu0
    %v6280 = vadd.f32 %v6119, %v6279
    %6281 = vmatprep.mubr.f32.mxu0 0.0
    %6282 = vmatmul.mubr.f32.gmra.mrb[0].mxu0 %v1318
    %v6283 = vpop.f32.mrb[0].mxu0
    %v6284 = vadd.f32 %v6123, %v6283
    %v6285 = vpop.f32.mrb[0].mxu0
    %v6286 = vadd.f32 %v6125, %v6285
    %6287 = vmatprep.mubr.f32.mxu0 0.0
    %6288 = vmatmul.mubr.f32.gmra.mrb[0].mxu0 %v1321
    %v6289 = vpop.f32.mrb[0].mxu0
    %v6290 = vadd.f32 %v6129, %v6289
    %v6291 = vpop.f32.mrb[0].mxu0
    %v6292 = vadd.f32 %v6131, %v6291
    %6293 = vmatprep.mubr.f32.mxu0 0.0
    %6294 = vmatmul.mubr.f32.gmra.mrb[0].mxu0 %v1324
    %v6295 = vpop.f32.mrb[0].mxu0
    %v6296 = vadd.f32 %v6135, %v6295
    %v6297 = vpop.f32.mrb[0].mxu0
    %v6298 = vadd.f32 %v6137, %v6297
    %6299 = vmatprep.mubr.f32.mxu0 0.0
    %6300 = vmatmul.mubr.f32.gmra.mrb[0].mxu0 %v1327
    %v6301 = vpop.f32.mrb[0].mxu0
    %v6302 = vadd.f32 %v6141, %v6301
    %v6303 = vpop.f32.mrb[0].mxu0
    %v6304 = vadd.f32 %v6143, %v6303
    %6305 = vmatprep.mubr.f32.mxu0 0.0
    %6306 = vmatmul.mubr.f32.gmra.mrb[0].mxu0 %v1330
    %v6307 = vpop.f32.mrb[0].mxu0
    %v6308 = vadd.f32 %v6147, %v6307
    %v6309 = vpop.f32.mrb[0].mxu0
    %v6310 = vadd.f32 %v6149, %v6309
    %6311 = vmatprep.mubr.f32.mxu0 0.0
    %6312 = vmatmul.mubr.f32.gmra.mrb[0].mxu0 %v1333
    %v6313 = vpop.f32.mrb[0].mxu0
    %v6314 = vadd.f32 %v6153, %v6313
    %v6315 = vpop.f32.mrb[0].mxu0
    %v6316 = vadd.f32 %v6155, %v6315
    %6317 = vmatprep.mubr.f32.mxu0 0.0
    %6318 = vmatmul.mubr.f32.gmra.mrb[0].mxu0 %v1336
    %v6319 = vpop.f32.mrb[0].mxu0
    %v6320 = vadd.f32 %v6159, %v6319
    %v6321 = vpop.f32.mrb[0].mxu0
    %v6322 = vadd.f32 %v6161, %v6321
    %6323 = vmatprep.mubr.f32.mxu0 0.0
    %6324 = vmatmul.mubr.f32.gmra.mrb[0].mxu0 %v1339
    %v6325 = vpop.f32.mrb[0].mxu0
    %v6326 = vadd.f32 %v6165, %v6325
    %v6327 = vpop.f32.mrb[0].mxu0
    %v6328 = vadd.f32 %v6167, %v6327
    %6329 = vmatprep.mubr.f32.mxu0 0.0
    %6330 = vmatmul.mubr.f32.gmra.mrb[0].mxu0 %v1342
    %v6331 = vpop.f32.mrb[0].mxu0
    %v6332 = vadd.f32 %v6171, %v6331
    %v6333 = vpop.f32.mrb[0].mxu0
    %v6334 = vadd.f32 %v6173, %v6333
    %6335 = vmatprep.mubr.f32.mxu0 0.0
    %6336 = vmatmul.mubr.f32.gmra.mrb[0].mxu0 %v1345
    %v6337 = vpop.f32.mrb[0].mxu0
    %v6338 = vadd.f32 %v6177, %v6337
    %v6339 = vpop.f32.mrb[0].mxu0
    %v6340 = vadd.f32 %v6179, %v6339
    %6341 = vmatprep.mubr.f32.mxu0 0.0
    %6342 = vmatmul.mubr.f32.gmra.mrb[0].mxu0 %v1348
    %v6343 = vpop.f32.mrb[0].mxu0
    %v6344 = vadd.f32 %v6183, %v6343
    %v6345 = vpop.f32.mrb[0].mxu0
    %v6346 = vadd.f32 %v6185, %v6345
    %6347 = vmatprep.mubr.f32.mxu0 0.0
    %6348 = vmatmul.mubr.f32.gmra.mrb[0].mxu0 %v1351
    %v6349 = vpop.f32.mrb[0].mxu0
    %v6350 = vadd.f32 %v6189, %v6349
    %v6351 = vpop.f32.mrb[0].mxu0
    %v6352 = vadd.f32 %v6191, %v6351
    %6353 = vmatprep.mubr.f32.mxu0 0.0
    %6354 = vmatmul.mubr.f32.gmra.mrb[0].mxu0 %v1354
    %v6355 = vpop.f32.mrb[0].mxu0
    %v6356 = vadd.f32 %v6195, %v6355
    %v6357 = vpop.f32.mrb[0].mxu0
    %v6358 = vadd.f32 %v6197, %v6357
    %6359 = vdwg.mxu0
    %6360 = vmatprep.subr.mxu0 %v5137
    %6361 = vmatpush1.msra.mxu0 %v5136
    %6362 = vmatprep.subr.mxu0 %v5141
    %6363 = vmatpush1.msra.mxu0 %v5140
    %6364 = vmatprep.subr.mxu0 %v5145
    %6365 = vmatpush1.msra.mxu0 %v5144
    %6366 = vmatprep.subr.mxu0 %v5149
    %6367 = vmatpush1.msra.mxu0 %v5148
    %6368 = vmatprep.subr.mxu0 %v5153
    %6369 = vmatpush1.msra.mxu0 %v5152
    %6370 = vmatprep.subr.mxu0 %v5157
    %6371 = vmatpush1.msra.mxu0 %v5156
    %6372 = vmatprep.subr.mxu0 %v5161
    %6373 = vmatpush1.msra.mxu0 %v5160
    %6374 = vmatprep.subr.mxu0 %v5165
    %6375 = vmatpush1.msra.mxu0 %v5164
    %6376 = vmatprep.subr.mxu0 %v5169
    %6377 = vmatpush1.msra.mxu0 %v5168
    %6378 = vmatprep.subr.mxu0 %v5173
    %6379 = vmatpush1.msra.mxu0 %v5172
    %6380 = vmatprep.subr.mxu0 %v5177
    %6381 = vmatpush1.msra.mxu0 %v5176
    %6382 = vmatprep.subr.mxu0 %v5181
    %6383 = vmatpush1.msra.mxu0 %v5180
    %6384 = vmatprep.subr.mxu0 %v5185
    %6385 = vmatpush1.msra.mxu0 %v5184
    %6386 = vmatprep.subr.mxu0 %v5189
    %6387 = vmatpush1.msra.mxu0 %v5188
    %6388 = vmatprep.subr.mxu0 %v5193
    %6389 = vmatpush1.msra.mxu0 %v5192
    %6390 = vmatprep.subr.mxu0 %v5197
    %6391 = vmatpush1.msra.mxu0 %v5196
    %6392 = vmatprep.subr.mxu0 %v5201
    %6393 = vmatpush1.msra.mxu0 %v5200
    %6394 = vmatprep.subr.mxu0 %v5205
    %6395 = vmatpush1.msra.mxu0 %v5204
    %6396 = vmatprep.subr.mxu0 %v5209
    %6397 = vmatpush1.msra.mxu0 %v5208
    %6398 = vmatprep.subr.mxu0 %v5213
    %6399 = vmatpush1.msra.mxu0 %v5212
    %6400 = vmatprep.subr.mxu0 %v5217
    %6401 = vmatpush1.msra.mxu0 %v5216
    %6402 = vmatprep.subr.mxu0 %v5221
    %6403 = vmatpush1.msra.mxu0 %v5220
    %6404 = vmatprep.subr.mxu0 %v5225
    %6405 = vmatpush1.msra.mxu0 %v5224
    %6406 = vmatprep.subr.mxu0 %v5229
    %6407 = vmatpush1.msra.mxu0 %v5228
    %6408 = vmatprep.subr.mxu0 %v5233
    %6409 = vmatpush1.msra.mxu0 %v5232
    %6410 = vmatprep.subr.mxu0 %v5237
    %6411 = vmatpush1.msra.mxu0 %v5236
    %6412 = vmatprep.subr.mxu0 %v5241
    %6413 = vmatpush1.msra.mxu0 %v5240
    %6414 = vmatprep.subr.mxu0 %v5245
    %6415 = vmatpush1.msra.mxu0 %v5244
    %6416 = vmatprep.subr.mxu0 %v5249
    %6417 = vmatpush1.msra.mxu0 %v5248
    %6418 = vmatprep.subr.mxu0 %v5253
    %6419 = vmatpush1.msra.mxu0 %v5252
    %6420 = vmatprep.subr.mxu0 %v5257
    %6421 = vmatpush1.msra.mxu0 %v5256
    %6422 = vmatprep.subr.mxu0 %v5261
    %6423 = vmatpush1.msra.mxu0 %v5260
    %6424 = vmatprep.mubr.f32.mxu0 %v148
    %6425 = vmatmul.mubr.f32.gmra.mrb[0].mxu0 %v147
    %v6426 = vpop.f32.mrb[0].mxu0
    %v6427 = vadd.f32 %v5654, %v6426
    %v6428 = vpop.f32.mrb[0].mxu0
    %v6429 = vadd.f32 %v5655, %v6428
    %6430 = vmatprep.mubr.f32.mxu0 %v163
    %6431 = vmatmul.mubr.f32.gmra.mrb[0].mxu0 %v162
    %v6432 = vpop.f32.mrb[0].mxu0
    %v6433 = vadd.f32 %v5658, %v6432
    %v6434 = vpop.f32.mrb[0].mxu0
    %v6435 = vadd.f32 %v5659, %v6434
    %6436 = vmatprep.mubr.f32.mxu0 %v178
    %6437 = vmatmul.mubr.f32.gmra.mrb[0].mxu0 %v177
    %v6438 = vpop.f32.mrb[0].mxu0
    %v6439 = vadd.f32 %v5662, %v6438
    %v6440 = vpop.f32.mrb[0].mxu0
    %v6441 = vadd.f32 %v5663, %v6440
    %6442 = vmatprep.mubr.f32.mxu0 %v193
    %6443 = vmatmul.mubr.f32.gmra.mrb[0].mxu0 %v192
    %v6444 = vpop.f32.mrb[0].mxu0
    %v6445 = vadd.f32 %v5666, %v6444
    %v6446 = vpop.f32.mrb[0].mxu0
    %v6447 = vadd.f32 %v5667, %v6446
    %6448 = vmatprep.mubr.f32.mxu0 %v208
    %6449 = vmatmul.mubr.f32.gmra.mrb[0].mxu0 %v207
    %v6450 = vpop.f32.mrb[0].mxu0
    %v6451 = vadd.f32 %v5670, %v6450
    %v6452 = vpop.f32.mrb[0].mxu0
    %v6453 = vadd.f32 %v5671, %v6452
    %6454 = vmatprep.mubr.f32.mxu0 %v223
    %6455 = vmatmul.mubr.f32.gmra.mrb[0].mxu0 %v222
    %v6456 = vpop.f32.mrb[0].mxu0
    %v6457 = vadd.f32 %v5674, %v6456
    %v6458 = vpop.f32.mrb[0].mxu0
    %v6459 = vadd.f32 %v5675, %v6458
    %6460 = vmatprep.mubr.f32.mxu0 %v238
    %6461 = vmatmul.mubr.f32.gmra.mrb[0].mxu0 %v237
    %v6462 = vpop.f32.mrb[0].mxu0
    %v6463 = vadd.f32 %v5678, %v6462
    %v6464 = vpop.f32.mrb[0].mxu0
    %v6465 = vadd.f32 %v5679, %v6464
    %6466 = vmatprep.mubr.f32.mxu0 %v253
    %6467 = vmatmul.mubr.f32.gmra.mrb[0].mxu0 %v252
    %v6468 = vpop.f32.mrb[0].mxu0
    %v6469 = vadd.f32 %v5682, %v6468
    %v6470 = vpop.f32.mrb[0].mxu0
    %v6471 = vadd.f32 %v5683, %v6470
    %6472 = vmatprep.mubr.f32.mxu0 %v268
    %6473 = vmatmul.mubr.f32.gmra.mrb[0].mxu0 %v267
    %v6474 = vpop.f32.mrb[0].mxu0
    %v6475 = vadd.f32 %v5686, %v6474
    %v6476 = vpop.f32.mrb[0].mxu0
    %v6477 = vadd.f32 %v5687, %v6476
    %6478 = vmatprep.mubr.f32.mxu0 %v283
    %6479 = vmatmul.mubr.f32.gmra.mrb[0].mxu0 %v282
    %v6480 = vpop.f32.mrb[0].mxu0
    %v6481 = vadd.f32 %v5690, %v6480
    %v6482 = vpop.f32.mrb[0].mxu0
    %v6483 = vadd.f32 %v5691, %v6482
    %6484 = vmatprep.mubr.f32.mxu0 %v298
    %6485 = vmatmul.mubr.f32.gmra.mrb[0].mxu0 %v297
    %v6486 = vpop.f32.mrb[0].mxu0
    %v6487 = vadd.f32 %v5694, %v6486
    %v6488 = vpop.f32.mrb[0].mxu0
    %v6489 = vadd.f32 %v5695, %v6488
    %6490 = vmatprep.mubr.f32.mxu0 %v313
    %6491 = vmatmul.mubr.f32.gmra.mrb[0].mxu0 %v312
    %v6492 = vpop.f32.mrb[0].mxu0
    %v6493 = vadd.f32 %v5698, %v6492
    %v6494 = vpop.f32.mrb[0].mxu0
    %v6495 = vadd.f32 %v5699, %v6494
    %6496 = vmatprep.mubr.f32.mxu0 %v328
    %6497 = vmatmul.mubr.f32.gmra.mrb[0].mxu0 %v327
    %v6498 = vpop.f32.mrb[0].mxu0
    %v6499 = vadd.f32 %v5702, %v6498
    %v6500 = vpop.f32.mrb[0].mxu0
    %v6501 = vadd.f32 %v5703, %v6500
    %6502 = vmatprep.mubr.f32.mxu0 %v343
    %6503 = vmatmul.mubr.f32.gmra.mrb[0].mxu0 %v342
    %v6504 = vpop.f32.mrb[0].mxu0
    %v6505 = vadd.f32 %v5706, %v6504
    %v6506 = vpop.f32.mrb[0].mxu0
    %v6507 = vadd.f32 %v5707, %v6506
    %6508 = vmatprep.mubr.f32.mxu0 %v358
    %6509 = vmatmul.mubr.f32.gmra.mrb[0].mxu0 %v357
    %v6510 = vpop.f32.mrb[0].mxu0
    %v6511 = vadd.f32 %v5710, %v6510
    %v6512 = vpop.f32.mrb[0].mxu0
    %v6513 = vadd.f32 %v5711, %v6512
    %6514 = vmatprep.mubr.f32.mxu0 %v373
    %6515 = vmatmul.mubr.f32.gmra.mrb[0].mxu0 %v372
    %v6516 = vpop.f32.mrb[0].mxu0
    %v6517 = vadd.f32 %v5714, %v6516
    %v6518 = vpop.f32.mrb[0].mxu0
    %v6519 = vadd.f32 %v5715, %v6518
    %6520 = vdwg.mxu0
    %6521 = vmatprep.subr.mxu0 %v5265
    %6522 = vmatpush1.msra.mxu0 %v5264
    %6523 = vmatprep.subr.mxu0 %v5269
    %6524 = vmatpush1.msra.mxu0 %v5268
    %6525 = vmatprep.subr.mxu0 %v5273
    %6526 = vmatpush1.msra.mxu0 %v5272
    %6527 = vmatprep.subr.mxu0 %v5277
    %6528 = vmatpush1.msra.mxu0 %v5276
    %6529 = vmatprep.subr.mxu0 %v5281
    %6530 = vmatpush1.msra.mxu0 %v5280
    %6531 = vmatprep.subr.mxu0 %v5285
    %6532 = vmatpush1.msra.mxu0 %v5284
    %6533 = vmatprep.subr.mxu0 %v5289
    %6534 = vmatpush1.msra.mxu0 %v5288
    %6535 = vmatprep.subr.mxu0 %v5293
    %6536 = vmatpush1.msra.mxu0 %v5292
    %6537 = vmatprep.subr.mxu0 %v5297
    %6538 = vmatpush1.msra.mxu0 %v5296
    %6539 = vmatprep.subr.mxu0 %v5301
    %6540 = vmatpush1.msra.mxu0 %v5300
    %6541 = vmatprep.subr.mxu0 %v5305
    %6542 = vmatpush1.msra.mxu0 %v5304
    %6543 = vmatprep.subr.mxu0 %v5309
    %6544 = vmatpush1.msra.mxu0 %v5308
    %6545 = vmatprep.subr.mxu0 %v5313
    %6546 = vmatpush1.msra.mxu0 %v5312
    %6547 = vmatprep.subr.mxu0 %v5317
    %6548 = vmatpush1.msra.mxu0 %v5316
    %6549 = vmatprep.subr.mxu0 %v5321
    %6550 = vmatpush1.msra.mxu0 %v5320
    %6551 = vmatprep.subr.mxu0 %v5325
    %6552 = vmatpush1.msra.mxu0 %v5324
    %6553 = vmatprep.subr.mxu0 %v5329
    %6554 = vmatpush1.msra.mxu0 %v5328
    %6555 = vmatprep.subr.mxu0 %v5333
    %6556 = vmatpush1.msra.mxu0 %v5332
    %6557 = vmatprep.subr.mxu0 %v5337
    %6558 = vmatpush1.msra.mxu0 %v5336
    %6559 = vmatprep.subr.mxu0 %v5341
    %6560 = vmatpush1.msra.mxu0 %v5340
    %6561 = vmatprep.subr.mxu0 %v5345
    %6562 = vmatpush1.msra.mxu0 %v5344
    %6563 = vmatprep.subr.mxu0 %v5349
    %6564 = vmatpush1.msra.mxu0 %v5348
    %6565 = vmatprep.subr.mxu0 %v5353
    %6566 = vmatpush1.msra.mxu0 %v5352
    %6567 = vmatprep.subr.mxu0 %v5357
    %6568 = vmatpush1.msra.mxu0 %v5356
    %6569 = vmatprep.subr.mxu0 %v5361
    %6570 = vmatpush1.msra.mxu0 %v5360
    %6571 = vmatprep.subr.mxu0 %v5365
    %6572 = vmatpush1.msra.mxu0 %v5364
    %6573 = vmatprep.subr.mxu0 %v5369
    %6574 = vmatpush1.msra.mxu0 %v5368
    %6575 = vmatprep.subr.mxu0 %v5373
    %6576 = vmatpush1.msra.mxu0 %v5372
    %6577 = vmatprep.subr.mxu0 %v5377
    %6578 = vmatpush1.msra.mxu0 %v5376
    %6579 = vmatprep.subr.mxu0 %v5381
    %6580 = vmatpush1.msra.mxu0 %v5380
    %6581 = vmatprep.subr.mxu0 %v5385
    %6582 = vmatpush1.msra.mxu0 %v5384
    %6583 = vmatprep.subr.mxu0 %v5389
    %6584 = vmatpush1.msra.mxu0 %v5388
    %6585 = vmatprep.mubr.f32.mxu0 %v150
    %6586 = vmatmul.mubr.f32.gmra.mrb[0].mxu0 %v149
    %v6587 = vpop.f32.mrb[0].mxu0
    %v6588 = vadd.f32 %v6427, %v6587
    %v6589 = vpop.f32.mrb[0].mxu0
    %v6590 = vadd.f32 %v6429, %v6589
    %6591 = vmatprep.mubr.f32.mxu0 %v165
    %6592 = vmatmul.mubr.f32.gmra.mrb[0].mxu0 %v164
    %v6593 = vpop.f32.mrb[0].mxu0
    %v6594 = vadd.f32 %v6433, %v6593
    %v6595 = vpop.f32.mrb[0].mxu0
    %v6596 = vadd.f32 %v6435, %v6595
    %6597 = vmatprep.mubr.f32.mxu0 %v180
    %6598 = vmatmul.mubr.f32.gmra.mrb[0].mxu0 %v179
    %v6599 = vpop.f32.mrb[0].mxu0
    %v6600 = vadd.f32 %v6439, %v6599
    %v6601 = vpop.f32.mrb[0].mxu0
    %v6602 = vadd.f32 %v6441, %v6601
    %6603 = vmatprep.mubr.f32.mxu0 %v195
    %6604 = vmatmul.mubr.f32.gmra.mrb[0].mxu0 %v194
    %v6605 = vpop.f32.mrb[0].mxu0
    %v6606 = vadd.f32 %v6445, %v6605
    %v6607 = vpop.f32.mrb[0].mxu0
    %v6608 = vadd.f32 %v6447, %v6607
    %6609 = vmatprep.mubr.f32.mxu0 %v210
    %6610 = vmatmul.mubr.f32.gmra.mrb[0].mxu0 %v209
    %v6611 = vpop.f32.mrb[0].mxu0
    %v6612 = vadd.f32 %v6451, %v6611
    %v6613 = vpop.f32.mrb[0].mxu0
    %v6614 = vadd.f32 %v6453, %v6613
    %6615 = vmatprep.mubr.f32.mxu0 %v225
    %6616 = vmatmul.mubr.f32.gmra.mrb[0].mxu0 %v224
    %v6617 = vpop.f32.mrb[0].mxu0
    %v6618 = vadd.f32 %v6457, %v6617
    %v6619 = vpop.f32.mrb[0].mxu0
    %v6620 = vadd.f32 %v6459, %v6619
    %6621 = vmatprep.mubr.f32.mxu0 %v240
    %6622 = vmatmul.mubr.f32.gmra.mrb[0].mxu0 %v239
    %v6623 = vpop.f32.mrb[0].mxu0
    %v6624 = vadd.f32 %v6463, %v6623
    %v6625 = vpop.f32.mrb[0].mxu0
    %v6626 = vadd.f32 %v6465, %v6625
    %6627 = vmatprep.mubr.f32.mxu0 %v255
    %6628 = vmatmul.mubr.f32.gmra.mrb[0].mxu0 %v254
    %v6629 = vpop.f32.mrb[0].mxu0
    %v6630 = vadd.f32 %v6469, %v6629
    %v6631 = vpop.f32.mrb[0].mxu0
    %v6632 = vadd.f32 %v6471, %v6631
    %6633 = vmatprep.mubr.f32.mxu0 %v270
    %6634 = vmatmul.mubr.f32.gmra.mrb[0].mxu0 %v269
    %v6635 = vpop.f32.mrb[0].mxu0
    %v6636 = vadd.f32 %v6475, %v6635
    %v6637 = vpop.f32.mrb[0].mxu0
    %v6638 = vadd.f32 %v6477, %v6637
    %6639 = vmatprep.mubr.f32.mxu0 %v285
    %6640 = vmatmul.mubr.f32.gmra.mrb[0].mxu0 %v284
    %v6641 = vpop.f32.mrb[0].mxu0
    %v6642 = vadd.f32 %v6481, %v6641
    %v6643 = vpop.f32.mrb[0].mxu0
    %v6644 = vadd.f32 %v6483, %v6643
    %6645 = vmatprep.mubr.f32.mxu0 %v300
    %6646 = vmatmul.mubr.f32.gmra.mrb[0].mxu0 %v299
    %v6647 = vpop.f32.mrb[0].mxu0
    %v6648 = vadd.f32 %v6487, %v6647
    %v6649 = vpop.f32.mrb[0].mxu0
    %v6650 = vadd.f32 %v6489, %v6649
    %6651 = vmatprep.mubr.f32.mxu0 %v315
    %6652 = vmatmul.mubr.f32.gmra.mrb[0].mxu0 %v314
    %v6653 = vpop.f32.mrb[0].mxu0
    %v6654 = vadd.f32 %v6493, %v6653
    %v6655 = vpop.f32.mrb[0].mxu0
    %v6656 = vadd.f32 %v6495, %v6655
    %6657 = vmatprep.mubr.f32.mxu0 %v330
    %6658 = vmatmul.mubr.f32.gmra.mrb[0].mxu0 %v329
    %v6659 = vpop.f32.mrb[0].mxu0
    %v6660 = vadd.f32 %v6499, %v6659
    %v6661 = vpop.f32.mrb[0].mxu0
    %v6662 = vadd.f32 %v6501, %v6661
    %6663 = vmatprep.mubr.f32.mxu0 %v345
    %6664 = vmatmul.mubr.f32.gmra.mrb[0].mxu0 %v344
    %v6665 = vpop.f32.mrb[0].mxu0
    %v6666 = vadd.f32 %v6505, %v6665
    %v6667 = vpop.f32.mrb[0].mxu0
    %v6668 = vadd.f32 %v6507, %v6667
    %6669 = vmatprep.mubr.f32.mxu0 %v360
    %6670 = vmatmul.mubr.f32.gmra.mrb[0].mxu0 %v359
    %v6671 = vpop.f32.mrb[0].mxu0
    %v6672 = vadd.f32 %v6511, %v6671
    %v6673 = vpop.f32.mrb[0].mxu0
    %v6674 = vadd.f32 %v6513, %v6673
    %6675 = vmatprep.mubr.f32.mxu0 %v375
    %6676 = vmatmul.mubr.f32.gmra.mrb[0].mxu0 %v374
    %v6677 = vpop.f32.mrb[0].mxu0
    %v6678 = vadd.f32 %v6517, %v6677
    %v6679 = vpop.f32.mrb[0].mxu0
    %v6680 = vadd.f32 %v6519, %v6679
    %6681 = vdwg.mxu0
    %6682 = vmatprep.subr.mxu0 %v5393
    %6683 = vmatpush1.msra.mxu0 %v5392
    %6684 = vmatprep.subr.mxu0 %v5397
    %6685 = vmatpush1.msra.mxu0 %v5396
    %6686 = vmatprep.subr.mxu0 %v5401
    %6687 = vmatpush1.msra.mxu0 %v5400
    %6688 = vmatprep.subr.mxu0 %v5405
    %6689 = vmatpush1.msra.mxu0 %v5404
    %6690 = vmatprep.subr.mxu0 %v5409
    %6691 = vmatpush1.msra.mxu0 %v5408
    %6692 = vmatprep.subr.mxu0 %v5413
    %6693 = vmatpush1.msra.mxu0 %v5412
    %6694 = vmatprep.subr.mxu0 %v5417
    %6695 = vmatpush1.msra.mxu0 %v5416
    %6696 = vmatprep.subr.mxu0 %v5421
    %6697 = vmatpush1.msra.mxu0 %v5420
    %6698 = vmatprep.subr.mxu0 %v5425
    %6699 = vmatpush1.msra.mxu0 %v5424
    %6700 = vmatprep.subr.mxu0 %v5429
    %6701 = vmatpush1.msra.mxu0 %v5428
    %6702 = vmatprep.subr.mxu0 %v5433
    %6703 = vmatpush1.msra.mxu0 %v5432
    %6704 = vmatprep.subr.mxu0 %v5437
    %6705 = vmatpush1.msra.mxu0 %v5436
    %6706 = vmatprep.subr.mxu0 %v5441
    %6707 = vmatpush1.msra.mxu0 %v5440
    %6708 = vmatprep.subr.mxu0 %v5445
    %6709 = vmatpush1.msra.mxu0 %v5444
    %6710 = vmatprep.subr.mxu0 %v5449
    %6711 = vmatpush1.msra.mxu0 %v5448
    %6712 = vmatprep.subr.mxu0 %v5453
    %6713 = vmatpush1.msra.mxu0 %v5452
    %6714 = vmatprep.subr.mxu0 %v5457
    %6715 = vmatpush1.msra.mxu0 %v5456
    %6716 = vmatprep.subr.mxu0 %v5461
    %6717 = vmatpush1.msra.mxu0 %v5460
    %6718 = vmatprep.subr.mxu0 %v5465
    %6719 = vmatpush1.msra.mxu0 %v5464
    %6720 = vmatprep.subr.mxu0 %v5469
    %6721 = vmatpush1.msra.mxu0 %v5468
    %6722 = vmatprep.subr.mxu0 %v5473
    %6723 = vmatpush1.msra.mxu0 %v5472
    %6724 = vmatprep.subr.mxu0 %v5477
    %6725 = vmatpush1.msra.mxu0 %v5476
    %6726 = vmatprep.subr.mxu0 %v5481
    %6727 = vmatpush1.msra.mxu0 %v5480
    %6728 = vmatprep.subr.mxu0 %v5485
    %6729 = vmatpush1.msra.mxu0 %v5484
    %6730 = vmatprep.subr.mxu0 %v5489
    %6731 = vmatpush1.msra.mxu0 %v5488
    %6732 = vmatprep.subr.mxu0 %v5493
    %6733 = vmatpush1.msra.mxu0 %v5492
    %6734 = vmatprep.subr.mxu0 %v5497
    %6735 = vmatpush1.msra.mxu0 %v5496
    %6736 = vmatprep.subr.mxu0 %v5501
    %6737 = vmatpush1.msra.mxu0 %v5500
    %6738 = vmatprep.subr.mxu0 %v5505
    %6739 = vmatpush1.msra.mxu0 %v5504
    %6740 = vmatprep.subr.mxu0 %v5509
    %6741 = vmatpush1.msra.mxu0 %v5508
    %6742 = vmatprep.subr.mxu0 %v5513
    %6743 = vmatpush1.msra.mxu0 %v5512
    %6744 = vmatprep.subr.mxu0 %v5517
    %6745 = vmatpush1.msra.mxu0 %v5516
    %6746 = vmatprep.mubr.f32.mxu0 %v152
    %6747 = vmatmul.mubr.f32.gmra.mrb[0].mxu0 %v151
    %v6748 = vpop.f32.mrb[0].mxu0
    %v6749 = vadd.f32 %v6588, %v6748
    %v6750 = vpop.f32.mrb[0].mxu0
    %v6751 = vadd.f32 %v6590, %v6750
    %6752 = vmatprep.mubr.f32.mxu0 %v167
    %6753 = vmatmul.mubr.f32.gmra.mrb[0].mxu0 %v166
    %v6754 = vpop.f32.mrb[0].mxu0
    %v6755 = vadd.f32 %v6594, %v6754
    %v6756 = vpop.f32.mrb[0].mxu0
    %v6757 = vadd.f32 %v6596, %v6756
    %6758 = vmatprep.mubr.f32.mxu0 %v182
    %6759 = vmatmul.mubr.f32.gmra.mrb[0].mxu0 %v181
    %v6760 = vpop.f32.mrb[0].mxu0
    %v6761 = vadd.f32 %v6600, %v6760
    %v6762 = vpop.f32.mrb[0].mxu0
    %v6763 = vadd.f32 %v6602, %v6762
    %6764 = vmatprep.mubr.f32.mxu0 %v197
    %6765 = vmatmul.mubr.f32.gmra.mrb[0].mxu0 %v196
    %v6766 = vpop.f32.mrb[0].mxu0
    %v6767 = vadd.f32 %v6606, %v6766
    %v6768 = vpop.f32.mrb[0].mxu0
    %v6769 = vadd.f32 %v6608, %v6768
    %6770 = vmatprep.mubr.f32.mxu0 %v212
    %6771 = vmatmul.mubr.f32.gmra.mrb[0].mxu0 %v211
    %v6772 = vpop.f32.mrb[0].mxu0
    %v6773 = vadd.f32 %v6612, %v6772
    %v6774 = vpop.f32.mrb[0].mxu0
    %v6775 = vadd.f32 %v6614, %v6774
    %6776 = vmatprep.mubr.f32.mxu0 %v227
    %6777 = vmatmul.mubr.f32.gmra.mrb[0].mxu0 %v226
    %v6778 = vpop.f32.mrb[0].mxu0
    %v6779 = vadd.f32 %v6618, %v6778
    %v6780 = vpop.f32.mrb[0].mxu0
    %v6781 = vadd.f32 %v6620, %v6780
    %6782 = vmatprep.mubr.f32.mxu0 %v242
    %6783 = vmatmul.mubr.f32.gmra.mrb[0].mxu0 %v241
    %v6784 = vpop.f32.mrb[0].mxu0
    %v6785 = vadd.f32 %v6624, %v6784
    %v6786 = vpop.f32.mrb[0].mxu0
    %v6787 = vadd.f32 %v6626, %v6786
    %6788 = vmatprep.mubr.f32.mxu0 %v257
    %6789 = vmatmul.mubr.f32.gmra.mrb[0].mxu0 %v256
    %v6790 = vpop.f32.mrb[0].mxu0
    %v6791 = vadd.f32 %v6630, %v6790
    %v6792 = vpop.f32.mrb[0].mxu0
    %v6793 = vadd.f32 %v6632, %v6792
    %6794 = vmatprep.mubr.f32.mxu0 %v272
    %6795 = vmatmul.mubr.f32.gmra.mrb[0].mxu0 %v271
    %v6796 = vpop.f32.mrb[0].mxu0
    %v6797 = vadd.f32 %v6636, %v6796
    %v6798 = vpop.f32.mrb[0].mxu0
    %v6799 = vadd.f32 %v6638, %v6798
    %6800 = vmatprep.mubr.f32.mxu0 %v287
    %6801 = vmatmul.mubr.f32.gmra.mrb[0].mxu0 %v286
    %v6802 = vpop.f32.mrb[0].mxu0
    %v6803 = vadd.f32 %v6642, %v6802
    %v6804 = vpop.f32.mrb[0].mxu0
    %v6805 = vadd.f32 %v6644, %v6804
    %6806 = vmatprep.mubr.f32.mxu0 %v302
    %6807 = vmatmul.mubr.f32.gmra.mrb[0].mxu0 %v301
    %v6808 = vpop.f32.mrb[0].mxu0
    %v6809 = vadd.f32 %v6648, %v6808
    %v6810 = vpop.f32.mrb[0].mxu0
    %v6811 = vadd.f32 %v6650, %v6810
    %6812 = vmatprep.mubr.f32.mxu0 %v317
    %6813 = vmatmul.mubr.f32.gmra.mrb[0].mxu0 %v316
    %v6814 = vpop.f32.mrb[0].mxu0
    %v6815 = vadd.f32 %v6654, %v6814
    %v6816 = vpop.f32.mrb[0].mxu0
    %v6817 = vadd.f32 %v6656, %v6816
    %6818 = vmatprep.mubr.f32.mxu0 %v332
    %6819 = vmatmul.mubr.f32.gmra.mrb[0].mxu0 %v331
    %v6820 = vpop.f32.mrb[0].mxu0
    %v6821 = vadd.f32 %v6660, %v6820
    %v6822 = vpop.f32.mrb[0].mxu0
    %v6823 = vadd.f32 %v6662, %v6822
    %6824 = vmatprep.mubr.f32.mxu0 %v347
    %6825 = vmatmul.mubr.f32.gmra.mrb[0].mxu0 %v346
    %v6826 = vpop.f32.mrb[0].mxu0
    %v6827 = vadd.f32 %v6666, %v6826
    %v6828 = vpop.f32.mrb[0].mxu0
    %v6829 = vadd.f32 %v6668, %v6828
    %6830 = vmatprep.mubr.f32.mxu0 %v362
    %6831 = vmatmul.mubr.f32.gmra.mrb[0].mxu0 %v361
    %v6832 = vpop.f32.mrb[0].mxu0
    %v6833 = vadd.f32 %v6672, %v6832
    %v6834 = vpop.f32.mrb[0].mxu0
    %v6835 = vadd.f32 %v6674, %v6834
    %6836 = vmatprep.mubr.f32.mxu0 %v377
    %6837 = vmatmul.mubr.f32.gmra.mrb[0].mxu0 %v376
    %v6838 = vpop.f32.mrb[0].mxu0
    %v6839 = vadd.f32 %v6678, %v6838
    %v6840 = vpop.f32.mrb[0].mxu0
    %v6841 = vadd.f32 %v6680, %v6840
    %6842 = vdwg.mxu0
    %6843 = vmatprep.subr.mxu0 %v5521
    %6844 = vmatpush1.msra.mxu0 %v5520
    %6845 = vmatprep.subr.mxu0 %v5525
    %6846 = vmatpush1.msra.mxu0 %v5524
    %6847 = vmatprep.subr.mxu0 %v5529
    %6848 = vmatpush1.msra.mxu0 %v5528
    %6849 = vmatprep.subr.mxu0 %v5533
    %6850 = vmatpush1.msra.mxu0 %v5532
    %6851 = vmatprep.subr.mxu0 %v5537
    %6852 = vmatpush1.msra.mxu0 %v5536
    %6853 = vmatprep.subr.mxu0 %v5541
    %6854 = vmatpush1.msra.mxu0 %v5540
    %6855 = vmatprep.subr.mxu0 %v5545
    %6856 = vmatpush1.msra.mxu0 %v5544
    %6857 = vmatprep.subr.mxu0 %v5549
    %6858 = vmatpush1.msra.mxu0 %v5548
    %6859 = vmatprep.subr.mxu0 0.0
    %6860 = vmatpush1.msra.mxu0 0.0
    %6861 = vmatprep.subr.mxu0 0.0
    %6862 = vmatpush1.msra.mxu0 0.0
    %6863 = vmatprep.subr.mxu0 0.0
    %6864 = vmatpush1.msra.mxu0 0.0
    %6865 = vmatprep.subr.mxu0 0.0
    %6866 = vmatpush1.msra.mxu0 0.0
    %6867 = vmatprep.subr.mxu0 0.0
    %6868 = vmatpush1.msra.mxu0 0.0
    %6869 = vmatprep.subr.mxu0 0.0
    %6870 = vmatpush1.msra.mxu0 0.0
    %6871 = vmatprep.subr.mxu0 0.0
    %6872 = vmatpush1.msra.mxu0 0.0
    %6873 = vmatprep.subr.mxu0 0.0
    %6874 = vmatpush1.msra.mxu0 0.0
    %6875 = vmatprep.subr.mxu0 0.0
    %6876 = vmatpush1.msra.mxu0 0.0
    %6877 = vmatprep.subr.mxu0 0.0
    %6878 = vmatpush1.msra.mxu0 0.0
    %6879 = vmatprep.subr.mxu0 0.0
    %6880 = vmatpush1.msra.mxu0 0.0
    %6881 = vmatprep.subr.mxu0 0.0
    %6882 = vmatpush1.msra.mxu0 0.0
    %6883 = vmatprep.subr.mxu0 0.0
    %6884 = vmatpush1.msra.mxu0 0.0
    %6885 = vmatprep.subr.mxu0 0.0
    %6886 = vmatpush1.msra.mxu0 0.0
    %6887 = vmatprep.subr.mxu0 0.0
    %6888 = vmatpush1.msra.mxu0 0.0
    %6889 = vmatprep.subr.mxu0 0.0
    %6890 = vmatpush1.msra.mxu0 0.0
    %6891 = vmatprep.subr.mxu0 0.0
    %6892 = vmatpush1.msra.mxu0 0.0
    %6893 = vmatprep.subr.mxu0 0.0
    %6894 = vmatpush1.msra.mxu0 0.0
    %6895 = vmatprep.subr.mxu0 0.0
    %6896 = vmatpush1.msra.mxu0 0.0
    %6897 = vmatprep.subr.mxu0 0.0
    %6898 = vmatpush1.msra.mxu0 0.0
    %6899 = vmatprep.subr.mxu0 0.0
    %6900 = vmatpush1.msra.mxu0 0.0
    %6901 = vmatprep.subr.mxu0 0.0
    %6902 = vmatpush1.msra.mxu0 0.0
    %6903 = vmatprep.subr.mxu0 0.0
    %6904 = vmatpush1.msra.mxu0 0.0
    %6905 = vmatprep.subr.mxu0 0.0
    %6906 = vmatpush1.msra.mxu0 0.0
    %6907 = vmatprep.mubr.f32.mxu0 0.0
    %6908 = vmatmul.mubr.f32.gmra.mrb[0].mxu0 %v1309
    %v6909 = vpop.f32.mrb[0].mxu0
    %v6910 = vadd.f32 %v6749, %v6909
    %v6911 = vpop.f32.mrb[0].mxu0
    %v6912 = vadd.f32 %v6751, %v6911
    %6913 = vmatprep.mubr.f32.mxu0 0.0
    %6914 = vmatmul.mubr.f32.gmra.mrb[0].mxu0 %v1312
    %v6915 = vpop.f32.mrb[0].mxu0
    %v6916 = vadd.f32 %v6755, %v6915
    %v6917 = vpop.f32.mrb[0].mxu0
    %v6918 = vadd.f32 %v6757, %v6917
    %6919 = vmatprep.mubr.f32.mxu0 0.0
    %6920 = vmatmul.mubr.f32.gmra.mrb[0].mxu0 %v1315
    %v6921 = vpop.f32.mrb[0].mxu0
    %v6922 = vadd.f32 %v6761, %v6921
    %v6923 = vpop.f32.mrb[0].mxu0
    %v6924 = vadd.f32 %v6763, %v6923
    %6925 = vmatprep.mubr.f32.mxu0 0.0
    %6926 = vmatmul.mubr.f32.gmra.mrb[0].mxu0 %v1318
    %v6927 = vpop.f32.mrb[0].mxu0
    %v6928 = vadd.f32 %v6767, %v6927
    %v6929 = vpop.f32.mrb[0].mxu0
    %v6930 = vadd.f32 %v6769, %v6929
    %6931 = vmatprep.mubr.f32.mxu0 0.0
    %6932 = vmatmul.mubr.f32.gmra.mrb[0].mxu0 %v1321
    %v6933 = vpop.f32.mrb[0].mxu0
    %v6934 = vadd.f32 %v6773, %v6933
    %v6935 = vpop.f32.mrb[0].mxu0
    %v6936 = vadd.f32 %v6775, %v6935
    %6937 = vmatprep.mubr.f32.mxu0 0.0
    %6938 = vmatmul.mubr.f32.gmra.mrb[0].mxu0 %v1324
    %v6939 = vpop.f32.mrb[0].mxu0
    %v6940 = vadd.f32 %v6779, %v6939
    %v6941 = vpop.f32.mrb[0].mxu0
    %v6942 = vadd.f32 %v6781, %v6941
    %6943 = vmatprep.mubr.f32.mxu0 0.0
    %6944 = vmatmul.mubr.f32.gmra.mrb[0].mxu0 %v1327
    %v6945 = vpop.f32.mrb[0].mxu0
    %v6946 = vadd.f32 %v6785, %v6945
    %v6947 = vpop.f32.mrb[0].mxu0
    %v6948 = vadd.f32 %v6787, %v6947
    %6949 = vmatprep.mubr.f32.mxu0 0.0
    %6950 = vmatmul.mubr.f32.gmra.mrb[0].mxu0 %v1330
    %v6951 = vpop.f32.mrb[0].mxu0
    %v6952 = vadd.f32 %v6791, %v6951
    %v6953 = vpop.f32.mrb[0].mxu0
    %v6954 = vadd.f32 %v6793, %v6953
    %6955 = vmatprep.mubr.f32.mxu0 0.0
    %6956 = vmatmul.mubr.f32.gmra.mrb[0].mxu0 %v1333
    %v6957 = vpop.f32.mrb[0].mxu0
    %v6958 = vadd.f32 %v6797, %v6957
    %v6959 = vpop.f32.mrb[0].mxu0
    %v6960 = vadd.f32 %v6799, %v6959
    %6961 = vmatprep.mubr.f32.mxu0 0.0
    %6962 = vmatmul.mubr.f32.gmra.mrb[0].mxu0 %v1336
    %v6963 = vpop.f32.mrb[0].mxu0
    %v6964 = vadd.f32 %v6803, %v6963
    %v6965 = vpop.f32.mrb[0].mxu0
    %v6966 = vadd.f32 %v6805, %v6965
    %6967 = vmatprep.mubr.f32.mxu0 0.0
    %6968 = vmatmul.mubr.f32.gmra.mrb[0].mxu0 %v1339
    %v6969 = vpop.f32.mrb[0].mxu0
    %v6970 = vadd.f32 %v6809, %v6969
    %v6971 = vpop.f32.mrb[0].mxu0
    %v6972 = vadd.f32 %v6811, %v6971
    %6973 = vmatprep.mubr.f32.mxu0 0.0
    %6974 = vmatmul.mubr.f32.gmra.mrb[0].mxu0 %v1342
    %v6975 = vpop.f32.mrb[0].mxu0
    %v6976 = vadd.f32 %v6815, %v6975
    %v6977 = vpop.f32.mrb[0].mxu0
    %v6978 = vadd.f32 %v6817, %v6977
    %6979 = vmatprep.mubr.f32.mxu0 0.0
    %6980 = vmatmul.mubr.f32.gmra.mrb[0].mxu0 %v1345
    %v6981 = vpop.f32.mrb[0].mxu0
    %v6982 = vadd.f32 %v6821, %v6981
    %v6983 = vpop.f32.mrb[0].mxu0
    %v6984 = vadd.f32 %v6823, %v6983
    %6985 = vmatprep.mubr.f32.mxu0 0.0
    %6986 = vmatmul.mubr.f32.gmra.mrb[0].mxu0 %v1348
    %v6987 = vpop.f32.mrb[0].mxu0
    %v6988 = vadd.f32 %v6827, %v6987
    %v6989 = vpop.f32.mrb[0].mxu0
    %v6990 = vadd.f32 %v6829, %v6989
    %6991 = vmatprep.mubr.f32.mxu0 0.0
    %6992 = vmatmul.mubr.f32.gmra.mrb[0].mxu0 %v1351
    %v6993 = vpop.f32.mrb[0].mxu0
    %v6994 = vadd.f32 %v6833, %v6993
    %v6995 = vpop.f32.mrb[0].mxu0
    %v6996 = vadd.f32 %v6835, %v6995
    %6997 = vmatprep.mubr.f32.mxu0 0.0
    %6998 = vmatmul.mubr.f32.gmra.mrb[0].mxu0 %v1354
    %v6999 = vpop.f32.mrb[0].mxu0
    %v7000 = vadd.f32 %v6839, %v6999
    %v7001 = vpop.f32.mrb[0].mxu0
    %v7002 = vadd.f32 %v6841, %v7001
    %7003 = vdwg.mxu0
    %s7004 = scalar_lea.vmem [#allocation7], 1
    %v7005 = vld [vmem:[%s7004] ss:$4 sm:$0xf]
    %7006 = vset.pattern.permute.xlu0 1
    %7007 = vperm.xlu0 %7006, %v5056
    %v7008 = vpop.permute.xlu0 %7007
    %7010 = vset.pattern.permute.xlu0 1
    %7011 = vperm.xlu0 %7010, %v5061
    %v7012 = vpop.permute.xlu0 %7011
    %7014 = vset.pattern.permute.xlu0 1
    %7015 = vperm.xlu0 %7014, %v5066
    %v7016 = vpop.permute.xlu0 %7015
    %7018 = vset.pattern.permute.xlu0 1
    %7019 = vperm.xlu0 %7018, %v5071
    %v7020 = vpop.permute.xlu0 %7019
    %7022 = vset.pattern.permute.xlu0 1
    %7023 = vperm.xlu0 %7022, %v5076
    %v7024 = vpop.permute.xlu0 %7023
    %7026 = vset.pattern.permute.xlu0 1
    %7027 = vperm.xlu0 %7026, %v5081
    %v7028 = vpop.permute.xlu0 %7027
    %7030 = vset.pattern.permute.xlu0 1
    %7031 = vperm.xlu0 %7030, %v5086
    %v7032 = vpop.permute.xlu0 %7031
    %7034 = vset.pattern.permute.xlu0 1
    %7035 = vperm.xlu0 %7034, %v5091
    %v7036 = vpop.permute.xlu0 %7035
    %7038 = vset.pattern.permute.xlu0 1
    %7039 = vperm.xlu0 %7038, %v5096
    %v7040 = vpop.permute.xlu0 %7039
    %7042 = vset.pattern.permute.xlu0 1
    %7043 = vperm.xlu0 %7042, %v5101
    %v7044 = vpop.permute.xlu0 %7043
    %7046 = vset.pattern.permute.xlu0 1
    %7047 = vperm.xlu0 %7046, %v5106
    %v7048 = vpop.permute.xlu0 %7047
    %7050 = vset.pattern.permute.xlu0 1
    %7051 = vperm.xlu0 %7050, %v5111
    %v7052 = vpop.permute.xlu0 %7051
    %7054 = vset.pattern.permute.xlu0 1
    %7055 = vperm.xlu0 %7054, %v5116
    %v7056 = vpop.permute.xlu0 %7055
    %7058 = vset.pattern.permute.xlu0 1
    %7059 = vperm.xlu0 %7058, %v5121
    %v7060 = vpop.permute.xlu0 %7059
    %7062 = vset.pattern.permute.xlu0 1
    %7063 = vperm.xlu0 %7062, %v5126
    %v7064 = vpop.permute.xlu0 %7063
    %7066 = vset.pattern.permute.xlu0 1
    %7067 = vperm.xlu0 %7066, %v5131
    %v7068 = vpop.permute.xlu0 %7067
    %v7071 = vlaneseq
    %v7072 = vshrl.u32 %v7071, 7
    %v7073 = vsub.s32 0, %v7072
    %v7074 = vrot.slane %v7005, %v7073
    %v7075 = vlaneseq
    %v7076 = vshrl.u32 %v7075, 7
    %v7077 = vsub.s32 1, %v7076
    %v7078 = vrot.slane %v7005, %v7077
    %v7079 = vlaneseq
    %v7080 = vshrl.u32 %v7079, 7
    %v7081 = vsub.s32 2, %v7080
    %v7082 = vrot.slane %v7005, %v7081
    %v7083 = vlaneseq
    %v7084 = vshrl.u32 %v7083, 7
    %v7085 = vsub.s32 3, %v7084
    %v7086 = vrot.slane %v7005, %v7085
    %v7091 = vmul.f32 %v7008, %v7074
    %v7092 = vmul.f32 %v7008, %v7078
    %v7093 = vmul.f32 %v7008, %v7082
    %v7094 = vmul.f32 %v7008, %v7086
    %v7095 = vmul.f32 %v7012, %v7074
    %v7096 = vmul.f32 %v7012, %v7078
    %v7097 = vmul.f32 %v7012, %v7082
    %v7098 = vmul.f32 %v7012, %v7086
    %v7099 = vmul.f32 %v7016, %v7074
    %v7100 = vmul.f32 %v7016, %v7078
    %v7101 = vmul.f32 %v7016, %v7082
    %v7102 = vmul.f32 %v7016, %v7086
    %v7103 = vmul.f32 %v7020, %v7074
    %v7104 = vmul.f32 %v7020, %v7078
    %v7105 = vmul.f32 %v7020, %v7082
    %v7106 = vmul.f32 %v7020, %v7086
    %v7107 = vmul.f32 %v7024, %v7074
    %v7108 = vmul.f32 %v7024, %v7078
    %v7109 = vmul.f32 %v7024, %v7082
    %v7110 = vmul.f32 %v7024, %v7086
    %v7111 = vmul.f32 %v7028, %v7074
    %v7112 = vmul.f32 %v7028, %v7078
    %v7113 = vmul.f32 %v7028, %v7082
    %v7114 = vmul.f32 %v7028, %v7086
    %v7115 = vmul.f32 %v7032, %v7074
    %v7116 = vmul.f32 %v7032, %v7078
    %v7117 = vmul.f32 %v7032, %v7082
    %v7118 = vmul.f32 %v7032, %v7086
    %v7119 = vmul.f32 %v7036, %v7074
    %v7120 = vmul.f32 %v7036, %v7078
    %v7121 = vmul.f32 %v7036, %v7082
    %v7122 = vmul.f32 %v7036, %v7086
    %v7123 = vmul.f32 %v7040, %v7074
    %v7124 = vmul.f32 %v7040, %v7078
    %v7125 = vmul.f32 %v7040, %v7082
    %v7126 = vmul.f32 %v7040, %v7086
    %v7127 = vmul.f32 %v7044, %v7074
    %v7128 = vmul.f32 %v7044, %v7078
    %v7129 = vmul.f32 %v7044, %v7082
    %v7130 = vmul.f32 %v7044, %v7086
    %v7131 = vmul.f32 %v7048, %v7074
    %v7132 = vmul.f32 %v7048, %v7078
    %v7133 = vmul.f32 %v7048, %v7082
    %v7134 = vmul.f32 %v7048, %v7086
    %v7135 = vmul.f32 %v7052, %v7074
    %v7136 = vmul.f32 %v7052, %v7078
    %v7137 = vmul.f32 %v7052, %v7082
    %v7138 = vmul.f32 %v7052, %v7086
    %v7139 = vmul.f32 %v7056, %v7074
    %v7140 = vmul.f32 %v7056, %v7078
    %v7141 = vmul.f32 %v7056, %v7082
    %v7142 = vmul.f32 %v7056, %v7086
    %v7143 = vmul.f32 %v7060, %v7074
    %v7144 = vmul.f32 %v7060, %v7078
    %v7145 = vmul.f32 %v7060, %v7082
    %v7146 = vmul.f32 %v7060, %v7086
    %v7147 = vmul.f32 %v7064, %v7074
    %v7148 = vmul.f32 %v7064, %v7078
    %v7149 = vmul.f32 %v7064, %v7082
    %v7150 = vmul.f32 %v7064, %v7086
    %v7151 = vmul.f32 %v7068, %v7074
    %v7152 = vmul.f32 %v7068, %v7078
    %v7153 = vmul.f32 %v7068, %v7082
    %v7154 = vmul.f32 %v7068, %v7086
    %v7155 = vadd.f32 %v6266, %v7091
    %v7156 = vadd.f32 %v6268, %v7092
    %v7157 = vadd.f32 %v6910, %v7093
    %v7158 = vadd.f32 %v6912, %v7094
    %v7159 = vadd.f32 %v6272, %v7095
    %v7160 = vadd.f32 %v6274, %v7096
    %v7161 = vadd.f32 %v6916, %v7097
    %v7162 = vadd.f32 %v6918, %v7098
    %v7163 = vadd.f32 %v6278, %v7099
    %v7164 = vadd.f32 %v6280, %v7100
    %v7165 = vadd.f32 %v6922, %v7101
    %v7166 = vadd.f32 %v6924, %v7102
    %v7167 = vadd.f32 %v6284, %v7103
    %v7168 = vadd.f32 %v6286, %v7104
    %v7169 = vadd.f32 %v6928, %v7105
    %v7170 = vadd.f32 %v6930, %v7106
    %v7171 = vadd.f32 %v6290, %v7107
    %v7172 = vadd.f32 %v6292, %v7108
    %v7173 = vadd.f32 %v6934, %v7109
    %v7174 = vadd.f32 %v6936, %v7110
    %v7175 = vadd.f32 %v6296, %v7111
    %v7176 = vadd.f32 %v6298, %v7112
    %v7177 = vadd.f32 %v6940, %v7113
    %v7178 = vadd.f32 %v6942, %v7114
    %v7179 = vadd.f32 %v6302, %v7115
    %v7180 = vadd.f32 %v6304, %v7116
    %v7181 = vadd.f32 %v6946, %v7117
    %v7182 = vadd.f32 %v6948, %v7118
    %v7183 = vadd.f32 %v6308, %v7119
    %v7184 = vadd.f32 %v6310, %v7120
    %v7185 = vadd.f32 %v6952, %v7121
    %v7186 = vadd.f32 %v6954, %v7122
    %v7187 = vadd.f32 %v6314, %v7123
    %v7188 = vadd.f32 %v6316, %v7124
    %v7189 = vadd.f32 %v6958, %v7125
    %v7190 = vadd.f32 %v6960, %v7126
    %v7191 = vadd.f32 %v6320, %v7127
    %v7192 = vadd.f32 %v6322, %v7128
    %v7193 = vadd.f32 %v6964, %v7129
    %v7194 = vadd.f32 %v6966, %v7130
    %v7195 = vadd.f32 %v6326, %v7131
    %v7196 = vadd.f32 %v6328, %v7132
    %v7197 = vadd.f32 %v6970, %v7133
    %v7198 = vadd.f32 %v6972, %v7134
    %v7199 = vadd.f32 %v6332, %v7135
    %v7200 = vadd.f32 %v6334, %v7136
    %v7201 = vadd.f32 %v6976, %v7137
    %v7202 = vadd.f32 %v6978, %v7138
    %v7203 = vadd.f32 %v6338, %v7139
    %v7204 = vadd.f32 %v6340, %v7140
    %v7205 = vadd.f32 %v6982, %v7141
    %v7206 = vadd.f32 %v6984, %v7142
    %v7207 = vadd.f32 %v6344, %v7143
    %v7208 = vadd.f32 %v6346, %v7144
    %v7209 = vadd.f32 %v6988, %v7145
    %v7210 = vadd.f32 %v6990, %v7146
    %v7211 = vadd.f32 %v6350, %v7147
    %v7212 = vadd.f32 %v6352, %v7148
    %v7213 = vadd.f32 %v6994, %v7149
    %v7214 = vadd.f32 %v6996, %v7150
    %v7215 = vadd.f32 %v6356, %v7151
    %v7216 = vadd.f32 %v6358, %v7152
    %v7217 = vadd.f32 %v7000, %v7153
    %v7218 = vadd.f32 %v7002, %v7154
    %s7219 = scalar_lea.vmem [#allocation7], 2
    %v7220 = vld [vmem:[%s7219] ss:$4 sm:$0xf]
    %7221 = vset.pattern.permute.xlu0 2
    %7222 = vperm.xlu0 %7221, %v5056
    %v7223 = vpop.permute.xlu0 %7222
    %7225 = vset.pattern.permute.xlu0 2
    %7226 = vperm.xlu0 %7225, %v5061
    %v7227 = vpop.permute.xlu0 %7226
    %7229 = vset.pattern.permute.xlu0 2
    %7230 = vperm.xlu0 %7229, %v5066
    %v7231 = vpop.permute.xlu0 %7230
    %7233 = vset.pattern.permute.xlu0 2
    %7234 = vperm.xlu0 %7233, %v5071
    %v7235 = vpop.permute.xlu0 %7234
    %7237 = vset.pattern.permute.xlu0 2
    %7238 = vperm.xlu0 %7237, %v5076
    %v7239 = vpop.permute.xlu0 %7238
    %7241 = vset.pattern.permute.xlu0 2
    %7242 = vperm.xlu0 %7241, %v5081
    %v7243 = vpop.permute.xlu0 %7242
    %7245 = vset.pattern.permute.xlu0 2
    %7246 = vperm.xlu0 %7245, %v5086
    %v7247 = vpop.permute.xlu0 %7246
    %7249 = vset.pattern.permute.xlu0 2
    %7250 = vperm.xlu0 %7249, %v5091
    %v7251 = vpop.permute.xlu0 %7250
    %7253 = vset.pattern.permute.xlu0 2
    %7254 = vperm.xlu0 %7253, %v5096
    %v7255 = vpop.permute.xlu0 %7254
    %7257 = vset.pattern.permute.xlu0 2
    %7258 = vperm.xlu0 %7257, %v5101
    %v7259 = vpop.permute.xlu0 %7258
    %7261 = vset.pattern.permute.xlu0 2
    %7262 = vperm.xlu0 %7261, %v5106
    %v7263 = vpop.permute.xlu0 %7262
    %7265 = vset.pattern.permute.xlu0 2
    %7266 = vperm.xlu0 %7265, %v5111
    %v7267 = vpop.permute.xlu0 %7266
    %7269 = vset.pattern.permute.xlu0 2
    %7270 = vperm.xlu0 %7269, %v5116
    %v7271 = vpop.permute.xlu0 %7270
    %7273 = vset.pattern.permute.xlu0 2
    %7274 = vperm.xlu0 %7273, %v5121
    %v7275 = vpop.permute.xlu0 %7274
    %7277 = vset.pattern.permute.xlu0 2
    %7278 = vperm.xlu0 %7277, %v5126
    %v7279 = vpop.permute.xlu0 %7278
    %7281 = vset.pattern.permute.xlu0 2
    %7282 = vperm.xlu0 %7281, %v5131
    %v7283 = vpop.permute.xlu0 %7282
    %v7286 = vlaneseq
    %v7287 = vshrl.u32 %v7286, 7
    %v7288 = vsub.s32 0, %v7287
    %v7289 = vrot.slane %v7220, %v7288
    %v7290 = vlaneseq
    %v7291 = vshrl.u32 %v7290, 7
    %v7292 = vsub.s32 1, %v7291
    %v7293 = vrot.slane %v7220, %v7292
    %v7294 = vlaneseq
    %v7295 = vshrl.u32 %v7294, 7
    %v7296 = vsub.s32 2, %v7295
    %v7297 = vrot.slane %v7220, %v7296
    %v7298 = vlaneseq
    %v7299 = vshrl.u32 %v7298, 7
    %v7300 = vsub.s32 3, %v7299
    %v7301 = vrot.slane %v7220, %v7300
    %v7306 = vmul.f32 %v7223, %v7289
    %v7307 = vmul.f32 %v7223, %v7293
    %v7308 = vmul.f32 %v7223, %v7297
    %v7309 = vmul.f32 %v7223, %v7301
    %v7310 = vmul.f32 %v7227, %v7289
    %v7311 = vmul.f32 %v7227, %v7293
    %v7312 = vmul.f32 %v7227, %v7297
    %v7313 = vmul.f32 %v7227, %v7301
    %v7314 = vmul.f32 %v7231, %v7289
    %v7315 = vmul.f32 %v7231, %v7293
    %v7316 = vmul.f32 %v7231, %v7297
    %v7317 = vmul.f32 %v7231, %v7301
    %v7318 = vmul.f32 %v7235, %v7289
    %v7319 = vmul.f32 %v7235, %v7293
    %v7320 = vmul.f32 %v7235, %v7297
    %v7321 = vmul.f32 %v7235, %v7301
    %v7322 = vmul.f32 %v7239, %v7289
    %v7323 = vmul.f32 %v7239, %v7293
    %v7324 = vmul.f32 %v7239, %v7297
    %v7325 = vmul.f32 %v7239, %v7301
    %v7326 = vmul.f32 %v7243, %v7289
    %v7327 = vmul.f32 %v7243, %v7293
    %v7328 = vmul.f32 %v7243, %v7297
    %v7329 = vmul.f32 %v7243, %v7301
    %v7330 = vmul.f32 %v7247, %v7289
    %v7331 = vmul.f32 %v7247, %v7293
    %v7332 = vmul.f32 %v7247, %v7297
    %v7333 = vmul.f32 %v7247, %v7301
    %v7334 = vmul.f32 %v7251, %v7289
    %v7335 = vmul.f32 %v7251, %v7293
    %v7336 = vmul.f32 %v7251, %v7297
    %v7337 = vmul.f32 %v7251, %v7301
    %v7338 = vmul.f32 %v7255, %v7289
    %v7339 = vmul.f32 %v7255, %v7293
    %v7340 = vmul.f32 %v7255, %v7297
    %v7341 = vmul.f32 %v7255, %v7301
    %v7342 = vmul.f32 %v7259, %v7289
    %v7343 = vmul.f32 %v7259, %v7293
    %v7344 = vmul.f32 %v7259, %v7297
    %v7345 = vmul.f32 %v7259, %v7301
    %v7346 = vmul.f32 %v7263, %v7289
    %v7347 = vmul.f32 %v7263, %v7293
    %v7348 = vmul.f32 %v7263, %v7297
    %v7349 = vmul.f32 %v7263, %v7301
    %v7350 = vmul.f32 %v7267, %v7289
    %v7351 = vmul.f32 %v7267, %v7293
    %v7352 = vmul.f32 %v7267, %v7297
    %v7353 = vmul.f32 %v7267, %v7301
    %v7354 = vmul.f32 %v7271, %v7289
    %v7355 = vmul.f32 %v7271, %v7293
    %v7356 = vmul.f32 %v7271, %v7297
    %v7357 = vmul.f32 %v7271, %v7301
    %v7358 = vmul.f32 %v7275, %v7289
    %v7359 = vmul.f32 %v7275, %v7293
    %v7360 = vmul.f32 %v7275, %v7297
    %v7361 = vmul.f32 %v7275, %v7301
    %v7362 = vmul.f32 %v7279, %v7289
    %v7363 = vmul.f32 %v7279, %v7293
    %v7364 = vmul.f32 %v7279, %v7297
    %v7365 = vmul.f32 %v7279, %v7301
    %v7366 = vmul.f32 %v7283, %v7289
    %v7367 = vmul.f32 %v7283, %v7293
    %v7368 = vmul.f32 %v7283, %v7297
    %v7369 = vmul.f32 %v7283, %v7301
    %v7370 = vadd.f32 %v7155, %v7306
    %v7371 = vadd.f32 %v7156, %v7307
    %v7372 = vadd.f32 %v7157, %v7308
    %v7373 = vadd.f32 %v7158, %v7309
    %v7374 = vadd.f32 %v7159, %v7310
    %v7375 = vadd.f32 %v7160, %v7311
    %v7376 = vadd.f32 %v7161, %v7312
    %v7377 = vadd.f32 %v7162, %v7313
    %v7378 = vadd.f32 %v7163, %v7314
    %v7379 = vadd.f32 %v7164, %v7315
    %v7380 = vadd.f32 %v7165, %v7316
    %v7381 = vadd.f32 %v7166, %v7317
    %v7382 = vadd.f32 %v7167, %v7318
    %v7383 = vadd.f32 %v7168, %v7319
    %v7384 = vadd.f32 %v7169, %v7320
    %v7385 = vadd.f32 %v7170, %v7321
    %v7386 = vadd.f32 %v7171, %v7322
    %v7387 = vadd.f32 %v7172, %v7323
    %v7388 = vadd.f32 %v7173, %v7324
    %v7389 = vadd.f32 %v7174, %v7325
    %v7390 = vadd.f32 %v7175, %v7326
    %v7391 = vadd.f32 %v7176, %v7327
    %v7392 = vadd.f32 %v7177, %v7328
    %v7393 = vadd.f32 %v7178, %v7329
    %v7394 = vadd.f32 %v7179, %v7330
    %v7395 = vadd.f32 %v7180, %v7331
    %v7396 = vadd.f32 %v7181, %v7332
    %v7397 = vadd.f32 %v7182, %v7333
    %v7398 = vadd.f32 %v7183, %v7334
    %v7399 = vadd.f32 %v7184, %v7335
    %v7400 = vadd.f32 %v7185, %v7336
    %v7401 = vadd.f32 %v7186, %v7337
    %v7402 = vadd.f32 %v7187, %v7338
    %v7403 = vadd.f32 %v7188, %v7339
    %v7404 = vadd.f32 %v7189, %v7340
    %v7405 = vadd.f32 %v7190, %v7341
    %v7406 = vadd.f32 %v7191, %v7342
    %v7407 = vadd.f32 %v7192, %v7343
    %v7408 = vadd.f32 %v7193, %v7344
    %v7409 = vadd.f32 %v7194, %v7345
    %v7410 = vadd.f32 %v7195, %v7346
    %v7411 = vadd.f32 %v7196, %v7347
    %v7412 = vadd.f32 %v7197, %v7348
    %v7413 = vadd.f32 %v7198, %v7349
    %v7414 = vadd.f32 %v7199, %v7350
    %v7415 = vadd.f32 %v7200, %v7351
    %v7416 = vadd.f32 %v7201, %v7352
    %v7417 = vadd.f32 %v7202, %v7353
    %v7418 = vadd.f32 %v7203, %v7354
    %v7419 = vadd.f32 %v7204, %v7355
    %v7420 = vadd.f32 %v7205, %v7356
    %v7421 = vadd.f32 %v7206, %v7357
    %v7422 = vadd.f32 %v7207, %v7358
    %v7423 = vadd.f32 %v7208, %v7359
    %v7424 = vadd.f32 %v7209, %v7360
    %v7425 = vadd.f32 %v7210, %v7361
    %v7426 = vadd.f32 %v7211, %v7362
    %v7427 = vadd.f32 %v7212, %v7363
    %v7428 = vadd.f32 %v7213, %v7364
    %v7429 = vadd.f32 %v7214, %v7365
    %v7430 = vadd.f32 %v7215, %v7366
    %v7431 = vadd.f32 %v7216, %v7367
    %v7432 = vadd.f32 %v7217, %v7368
    %v7433 = vadd.f32 %v7218, %v7369
    %s7434 = scalar_lea.vmem [#allocation10], 2
    %v7435 = vld [vmem:[%s7434] ss:$4 sm:$0xf]
    %s7436 = scalar_lea.vmem [#allocation10], 3
    %v7437 = vld [vmem:[%s7436] ss:$4 sm:$0xf]
    %v7438 = vadd.f32 %v7370, %v7374
    %v7439 = vadd.f32 %v7438, %v7378
    %v7440 = vadd.f32 %v7439, %v7382
    %v7441 = vadd.f32 %v7440, %v7386
    %v7442 = vadd.f32 %v7441, %v7390
    %v7443 = vadd.f32 %v7442, %v7394
    %v7444 = vadd.f32 %v7443, %v7398
    %v7445 = vadd.f32 %v7444, %v7402
    %v7446 = vadd.f32 %v7445, %v7406
    %v7447 = vadd.f32 %v7446, %v7410
    %v7448 = vadd.f32 %v7447, %v7414
    %v7449 = vadd.f32 %v7448, %v7418
    %v7450 = vadd.f32 %v7449, %v7422
    %v7451 = vadd.f32 %v7450, %v7426
    %v7452 = vadd.f32 %v7451, %v7430
    %v7453 = vrot.slane %v7452, 4
    %v7454 = vadd.f32 %v7452, %v7453
    %v7455 = vrot.slane %v7454, 2
    %v7456 = vadd.f32 %v7454, %v7455
    %v7457 = vrot.slane %v7456, 1
    %v7458 = vadd.f32 %v7456, %v7457
    %v7459 = vadd.f32 %v7371, %v7375
    %v7460 = vadd.f32 %v7459, %v7379
    %v7461 = vadd.f32 %v7460, %v7383
    %v7462 = vadd.f32 %v7461, %v7387
    %v7463 = vadd.f32 %v7462, %v7391
    %v7464 = vadd.f32 %v7463, %v7395
    %v7465 = vadd.f32 %v7464, %v7399
    %v7466 = vadd.f32 %v7465, %v7403
    %v7467 = vadd.f32 %v7466, %v7407
    %v7468 = vadd.f32 %v7467, %v7411
    %v7469 = vadd.f32 %v7468, %v7415
    %v7470 = vadd.f32 %v7469, %v7419
    %v7471 = vadd.f32 %v7470, %v7423
    %v7472 = vadd.f32 %v7471, %v7427
    %v7473 = vadd.f32 %v7472, %v7431
    %v7474 = vrot.slane %v7473, 4
    %v7475 = vadd.f32 %v7473, %v7474
    %v7476 = vrot.slane %v7475, 2
    %v7477 = vadd.f32 %v7475, %v7476
    %v7478 = vrot.slane %v7477, 1
    %v7479 = vadd.f32 %v7477, %v7478
    %v7480 = vadd.f32 %v7372, %v7376
    %v7481 = vadd.f32 %v7480, %v7380
    %v7482 = vadd.f32 %v7481, %v7384
    %v7483 = vadd.f32 %v7482, %v7388
    %v7484 = vadd.f32 %v7483, %v7392
    %v7485 = vadd.f32 %v7484, %v7396
    %v7486 = vadd.f32 %v7485, %v7400
    %v7487 = vadd.f32 %v7486, %v7404
    %v7488 = vadd.f32 %v7487, %v7408
    %v7489 = vadd.f32 %v7488, %v7412
    %v7490 = vadd.f32 %v7489, %v7416
    %v7491 = vadd.f32 %v7490, %v7420
    %v7492 = vadd.f32 %v7491, %v7424
    %v7493 = vadd.f32 %v7492, %v7428
    %v7494 = vadd.f32 %v7493, %v7432
    %v7495 = vrot.slane %v7494, 4
    %v7496 = vadd.f32 %v7494, %v7495
    %v7497 = vrot.slane %v7496, 2
    %v7498 = vadd.f32 %v7496, %v7497
    %v7499 = vrot.slane %v7498, 1
    %v7500 = vadd.f32 %v7498, %v7499
    %v7501 = vadd.f32 %v7373, %v7377
    %v7502 = vadd.f32 %v7501, %v7381
    %v7503 = vadd.f32 %v7502, %v7385
    %v7504 = vadd.f32 %v7503, %v7389
    %v7505 = vadd.f32 %v7504, %v7393
    %v7506 = vadd.f32 %v7505, %v7397
    %v7507 = vadd.f32 %v7506, %v7401
    %v7508 = vadd.f32 %v7507, %v7405
    %v7509 = vadd.f32 %v7508, %v7409
    %v7510 = vadd.f32 %v7509, %v7413
    %v7511 = vadd.f32 %v7510, %v7417
    %v7512 = vadd.f32 %v7511, %v7421
    %v7513 = vadd.f32 %v7512, %v7425
    %v7514 = vadd.f32 %v7513, %v7429
    %v7515 = vadd.f32 %v7514, %v7433
    %v7516 = vrot.slane %v7515, 4
    %v7517 = vadd.f32 %v7515, %v7516
    %v7518 = vrot.slane %v7517, 2
    %v7519 = vadd.f32 %v7517, %v7518
    %v7520 = vrot.slane %v7519, 1
    %v7521 = vadd.f32 %v7519, %v7520
    %v7522 = vmul.f32 %v7458, 0.0078125
    %v7523 = vmul.f32 %v7479, 0.0078125
    %v7524 = vmul.f32 %v7500, 0.0078125
    %v7525 = vmul.f32 %v7521, 0.0078125
    %v7526 = vmul.f32 %v7370, %v7370
    %v7527 = vmul.f32 %v7371, %v7371
    %v7528 = vmul.f32 %v7372, %v7372
    %v7529 = vmul.f32 %v7373, %v7373
    %v7530 = vmul.f32 %v7374, %v7374
    %v7531 = vmul.f32 %v7375, %v7375
    %v7532 = vmul.f32 %v7376, %v7376
    %v7533 = vmul.f32 %v7377, %v7377
    %v7534 = vmul.f32 %v7378, %v7378
    %v7535 = vmul.f32 %v7379, %v7379
    %v7536 = vmul.f32 %v7380, %v7380
    %v7537 = vmul.f32 %v7381, %v7381
    %v7538 = vmul.f32 %v7382, %v7382
    %v7539 = vmul.f32 %v7383, %v7383
    %v7540 = vmul.f32 %v7384, %v7384
    %v7541 = vmul.f32 %v7385, %v7385
    %v7542 = vmul.f32 %v7386, %v7386
    %v7543 = vmul.f32 %v7387, %v7387
    %v7544 = vmul.f32 %v7388, %v7388
    %v7545 = vmul.f32 %v7389, %v7389
    %v7546 = vmul.f32 %v7390, %v7390
    %v7547 = vmul.f32 %v7391, %v7391
    %v7548 = vmul.f32 %v7392, %v7392
    %v7549 = vmul.f32 %v7393, %v7393
    %v7550 = vmul.f32 %v7394, %v7394
    %v7551 = vmul.f32 %v7395, %v7395
    %v7552 = vmul.f32 %v7396, %v7396
    %v7553 = vmul.f32 %v7397, %v7397
    %v7554 = vmul.f32 %v7398, %v7398
    %v7555 = vmul.f32 %v7399, %v7399
    %v7556 = vmul.f32 %v7400, %v7400
    %v7557 = vmul.f32 %v7401, %v7401
    %v7558 = vmul.f32 %v7402, %v7402
    %v7559 = vmul.f32 %v7403, %v7403
    %v7560 = vmul.f32 %v7404, %v7404
    %v7561 = vmul.f32 %v7405, %v7405
    %v7562 = vmul.f32 %v7406, %v7406
    %v7563 = vmul.f32 %v7407, %v7407
    %v7564 = vmul.f32 %v7408, %v7408
    %v7565 = vmul.f32 %v7409, %v7409
    %v7566 = vmul.f32 %v7410, %v7410
    %v7567 = vmul.f32 %v7411, %v7411
    %v7568 = vmul.f32 %v7412, %v7412
    %v7569 = vmul.f32 %v7413, %v7413
    %v7570 = vmul.f32 %v7414, %v7414
    %v7571 = vmul.f32 %v7415, %v7415
    %v7572 = vmul.f32 %v7416, %v7416
    %v7573 = vmul.f32 %v7417, %v7417
    %v7574 = vmul.f32 %v7418, %v7418
    %v7575 = vmul.f32 %v7419, %v7419
    %v7576 = vmul.f32 %v7420, %v7420
    %v7577 = vmul.f32 %v7421, %v7421
    %v7578 = vmul.f32 %v7422, %v7422
    %v7579 = vmul.f32 %v7423, %v7423
    %v7580 = vmul.f32 %v7424, %v7424
    %v7581 = vmul.f32 %v7425, %v7425
    %v7582 = vmul.f32 %v7426, %v7426
    %v7583 = vmul.f32 %v7427, %v7427
    %v7584 = vmul.f32 %v7428, %v7428
    %v7585 = vmul.f32 %v7429, %v7429
    %v7586 = vmul.f32 %v7430, %v7430
    %v7587 = vmul.f32 %v7431, %v7431
    %v7588 = vmul.f32 %v7432, %v7432
    %v7589 = vmul.f32 %v7433, %v7433
    %v7590 = vadd.f32 %v7526, %v7530
    %v7591 = vadd.f32 %v7590, %v7534
    %v7592 = vadd.f32 %v7591, %v7538
    %v7593 = vadd.f32 %v7592, %v7542
    %v7594 = vadd.f32 %v7593, %v7546
    %v7595 = vadd.f32 %v7594, %v7550
    %v7596 = vadd.f32 %v7595, %v7554
    %v7597 = vadd.f32 %v7596, %v7558
    %v7598 = vadd.f32 %v7597, %v7562
    %v7599 = vadd.f32 %v7598, %v7566
    %v7600 = vadd.f32 %v7599, %v7570
    %v7601 = vadd.f32 %v7600, %v7574
    %v7602 = vadd.f32 %v7601, %v7578
    %v7603 = vadd.f32 %v7602, %v7582
    %v7604 = vadd.f32 %v7603, %v7586
    %v7605 = vrot.slane %v7604, 4
    %v7606 = vadd.f32 %v7604, %v7605
    %v7607 = vrot.slane %v7606, 2
    %v7608 = vadd.f32 %v7606, %v7607
    %v7609 = vrot.slane %v7608, 1
    %v7610 = vadd.f32 %v7608, %v7609
    %v7611 = vadd.f32 %v7527, %v7531
    %v7612 = vadd.f32 %v7611, %v7535
    %v7613 = vadd.f32 %v7612, %v7539
    %v7614 = vadd.f32 %v7613, %v7543
    %v7615 = vadd.f32 %v7614, %v7547
    %v7616 = vadd.f32 %v7615, %v7551
    %v7617 = vadd.f32 %v7616, %v7555
    %v7618 = vadd.f32 %v7617, %v7559
    %v7619 = vadd.f32 %v7618, %v7563
    %v7620 = vadd.f32 %v7619, %v7567
    %v7621 = vadd.f32 %v7620, %v7571
    %v7622 = vadd.f32 %v7621, %v7575
    %v7623 = vadd.f32 %v7622, %v7579
    %v7624 = vadd.f32 %v7623, %v7583
    %v7625 = vadd.f32 %v7624, %v7587
    %v7626 = vrot.slane %v7625, 4
    %v7627 = vadd.f32 %v7625, %v7626
    %v7628 = vrot.slane %v7627, 2
    %v7629 = vadd.f32 %v7627, %v7628
    %v7630 = vrot.slane %v7629, 1
    %v7631 = vadd.f32 %v7629, %v7630
    %v7632 = vadd.f32 %v7528, %v7532
    %v7633 = vadd.f32 %v7632, %v7536
    %v7634 = vadd.f32 %v7633, %v7540
    %v7635 = vadd.f32 %v7634, %v7544
    %v7636 = vadd.f32 %v7635, %v7548
    %v7637 = vadd.f32 %v7636, %v7552
    %v7638 = vadd.f32 %v7637, %v7556
    %v7639 = vadd.f32 %v7638, %v7560
    %v7640 = vadd.f32 %v7639, %v7564
    %v7641 = vadd.f32 %v7640, %v7568
    %v7642 = vadd.f32 %v7641, %v7572
    %v7643 = vadd.f32 %v7642, %v7576
    %v7644 = vadd.f32 %v7643, %v7580
    %v7645 = vadd.f32 %v7644, %v7584
    %v7646 = vadd.f32 %v7645, %v7588
    %v7647 = vrot.slane %v7646, 4
    %v7648 = vadd.f32 %v7646, %v7647
    %v7649 = vrot.slane %v7648, 2
    %v7650 = vadd.f32 %v7648, %v7649
    %v7651 = vrot.slane %v7650, 1
    %v7652 = vadd.f32 %v7650, %v7651
    %v7653 = vadd.f32 %v7529, %v7533
    %v7654 = vadd.f32 %v7653, %v7537
    %v7655 = vadd.f32 %v7654, %v7541
    %v7656 = vadd.f32 %v7655, %v7545
    %v7657 = vadd.f32 %v7656, %v7549
    %v7658 = vadd.f32 %v7657, %v7553
    %v7659 = vadd.f32 %v7658, %v7557
    %v7660 = vadd.f32 %v7659, %v7561
    %v7661 = vadd.f32 %v7660, %v7565
    %v7662 = vadd.f32 %v7661, %v7569
    %v7663 = vadd.f32 %v7662, %v7573
    %v7664 = vadd.f32 %v7663, %v7577
    %v7665 = vadd.f32 %v7664, %v7581
    %v7666 = vadd.f32 %v7665, %v7585
    %v7667 = vadd.f32 %v7666, %v7589
    %v7668 = vrot.slane %v7667, 4
    %v7669 = vadd.f32 %v7667, %v7668
    %v7670 = vrot.slane %v7669, 2
    %v7671 = vadd.f32 %v7669, %v7670
    %v7672 = vrot.slane %v7671, 1
    %v7673 = vadd.f32 %v7671, %v7672
    %v7674 = vmul.f32 %v7610, 0.0078125
    %v7675 = vmul.f32 %v7631, 0.0078125
    %v7676 = vmul.f32 %v7652, 0.0078125
    %v7677 = vmul.f32 %v7673, 0.0078125
    %v7678 = vmul.f32 %v7522, %v7522
    %v7679 = vmul.f32 %v7523, %v7523
    %v7680 = vmul.f32 %v7524, %v7524
    %v7681 = vmul.f32 %v7525, %v7525
    %v7682 = vsub.f32 %v7674, %v7678
    %v7683 = vsub.f32 %v7675, %v7679
    %v7684 = vsub.f32 %v7676, %v7680
    %v7685 = vsub.f32 %v7677, %v7681
    %v7686 = vadd.f32 %v7682, 1e-05
    %v7687 = vadd.f32 %v7683, 1e-05
    %v7688 = vadd.f32 %v7684, 1e-05
    %v7689 = vadd.f32 %v7685, 1e-05
    %v7690 = vrsqrt.pop %v7686
    %v7691 = vrsqrt.pop %v7687
    %v7692 = vrsqrt.pop %v7688
    %v7693 = vrsqrt.pop %v7689
    %v7698 = vcombine.low %v7690, %v7691
    %v7699 = vcombine.low %v7692, %v7693
    %v7701 = vunpack.c.l.s4 1966171168
    %v7702 = vunpack.c.0.s8 %v7701
    %v7703 = vlaneseq
    %v7704 = vshrl.u32 %v7703, 7
    %v7705 = vsub.s32 %v7702, %v7704
    %v7706 = vrot.slane %v7698, %v7705
    %v7708 = vunpack.c.l.s4 1966171168
    %v7709 = vunpack.c.0.s8 %v7708
    %v7710 = vlaneseq
    %v7711 = vshrl.u32 %v7710, 7
    %v7712 = vsub.s32 %v7709, %v7711
    %v7713 = vrot.slane %v7699, %v7712
    %v7714 = vcombine.low %v7706, %v7713
    %v7716 = vunpack.c.l.s4 1966171168
    %v7717 = vunpack.c.0.s8 %v7716
    %v7718 = vlaneseq
    %v7719 = vshrl.u32 %v7718, 7
    %v7720 = vsub.s32 %v7717, %v7719
    %v7721 = vrot.slane %v7714, %v7720
    %v7723 = vmul.f32 %v7435, %v7721
    %v7725 = vlaneseq
    %v7726 = vshrl.u32 %v7725, 7
    %v7727 = vsub.s32 0, %v7726
    %v7728 = vrot.slane %v7723, %v7727
    %v7729 = vlaneseq
    %v7730 = vshrl.u32 %v7729, 7
    %v7731 = vsub.s32 1, %v7730
    %v7732 = vrot.slane %v7723, %v7731
    %v7733 = vlaneseq
    %v7734 = vshrl.u32 %v7733, 7
    %v7735 = vsub.s32 2, %v7734
    %v7736 = vrot.slane %v7723, %v7735
    %v7737 = vlaneseq
    %v7738 = vshrl.u32 %v7737, 7
    %v7739 = vsub.s32 3, %v7738
    %v7740 = vrot.slane %v7723, %v7739
    %v7745 = vmul.f32 %v7522, %v7728
    %v7746 = vmul.f32 %v7523, %v7732
    %v7747 = vmul.f32 %v7524, %v7736
    %v7748 = vmul.f32 %v7525, %v7740
    %v7753 = vcombine.low %v7745, %v7746
    %v7754 = vcombine.low %v7747, %v7748
    %v7756 = vunpack.c.l.s4 1966171168
    %v7757 = vunpack.c.0.s8 %v7756
    %v7758 = vlaneseq
    %v7759 = vshrl.u32 %v7758, 7
    %v7760 = vsub.s32 %v7757, %v7759
    %v7761 = vrot.slane %v7753, %v7760
    %v7763 = vunpack.c.l.s4 1966171168
    %v7764 = vunpack.c.0.s8 %v7763
    %v7765 = vlaneseq
    %v7766 = vshrl.u32 %v7765, 7
    %v7767 = vsub.s32 %v7764, %v7766
    %v7768 = vrot.slane %v7754, %v7767
    %v7769 = vcombine.low %v7761, %v7768
    %v7771 = vunpack.c.l.s4 1966171168
    %v7772 = vunpack.c.0.s8 %v7771
    %v7773 = vlaneseq
    %v7774 = vshrl.u32 %v7773, 7
    %v7775 = vsub.s32 %v7772, %v7774
    %v7776 = vrot.slane %v7769, %v7775
    %v7778 = vsub.f32 %v7437, %v7776
    %v7779 = vmul.f32 %v7370, %v7728
    %v7780 = vmul.f32 %v7371, %v7732
    %v7781 = vmul.f32 %v7372, %v7736
    %v7782 = vmul.f32 %v7373, %v7740
    %v7783 = vmul.f32 %v7374, %v7728
    %v7784 = vmul.f32 %v7375, %v7732
    %v7785 = vmul.f32 %v7376, %v7736
    %v7786 = vmul.f32 %v7377, %v7740
    %v7787 = vmul.f32 %v7378, %v7728
    %v7788 = vmul.f32 %v7379, %v7732
    %v7789 = vmul.f32 %v7380, %v7736
    %v7790 = vmul.f32 %v7381, %v7740
    %v7791 = vmul.f32 %v7382, %v7728
    %v7792 = vmul.f32 %v7383, %v7732
    %v7793 = vmul.f32 %v7384, %v7736
    %v7794 = vmul.f32 %v7385, %v7740
    %v7795 = vmul.f32 %v7386, %v7728
    %v7796 = vmul.f32 %v7387, %v7732
    %v7797 = vmul.f32 %v7388, %v7736
    %v7798 = vmul.f32 %v7389, %v7740
    %v7799 = vmul.f32 %v7390, %v7728
    %v7800 = vmul.f32 %v7391, %v7732
    %v7801 = vmul.f32 %v7392, %v7736
    %v7802 = vmul.f32 %v7393, %v7740
    %v7803 = vmul.f32 %v7394, %v7728
    %v7804 = vmul.f32 %v7395, %v7732
    %v7805 = vmul.f32 %v7396, %v7736
    %v7806 = vmul.f32 %v7397, %v7740
    %v7807 = vmul.f32 %v7398, %v7728
    %v7808 = vmul.f32 %v7399, %v7732
    %v7809 = vmul.f32 %v7400, %v7736
    %v7810 = vmul.f32 %v7401, %v7740
    %v7811 = vmul.f32 %v7402, %v7728
    %v7812 = vmul.f32 %v7403, %v7732
    %v7813 = vmul.f32 %v7404, %v7736
    %v7814 = vmul.f32 %v7405, %v7740
    %v7815 = vmul.f32 %v7406, %v7728
    %v7816 = vmul.f32 %v7407, %v7732
    %v7817 = vmul.f32 %v7408, %v7736
    %v7818 = vmul.f32 %v7409, %v7740
    %v7819 = vmul.f32 %v7410, %v7728
    %v7820 = vmul.f32 %v7411, %v7732
    %v7821 = vmul.f32 %v7412, %v7736
    %v7822 = vmul.f32 %v7413, %v7740
    %v7823 = vmul.f32 %v7414, %v7728
    %v7824 = vmul.f32 %v7415, %v7732
    %v7825 = vmul.f32 %v7416, %v7736
    %v7826 = vmul.f32 %v7417, %v7740
    %v7827 = vmul.f32 %v7418, %v7728
    %v7828 = vmul.f32 %v7419, %v7732
    %v7829 = vmul.f32 %v7420, %v7736
    %v7830 = vmul.f32 %v7421, %v7740
    %v7831 = vmul.f32 %v7422, %v7728
    %v7832 = vmul.f32 %v7423, %v7732
    %v7833 = vmul.f32 %v7424, %v7736
    %v7834 = vmul.f32 %v7425, %v7740
    %v7835 = vmul.f32 %v7426, %v7728
    %v7836 = vmul.f32 %v7427, %v7732
    %v7837 = vmul.f32 %v7428, %v7736
    %v7838 = vmul.f32 %v7429, %v7740
    %v7839 = vmul.f32 %v7430, %v7728
    %v7840 = vmul.f32 %v7431, %v7732
    %v7841 = vmul.f32 %v7432, %v7736
    %v7842 = vmul.f32 %v7433, %v7740
    %v7844 = vlaneseq
    %v7845 = vshrl.u32 %v7844, 7
    %v7846 = vsub.s32 0, %v7845
    %v7847 = vrot.slane %v7778, %v7846
    %v7848 = vlaneseq
    %v7849 = vshrl.u32 %v7848, 7
    %v7850 = vsub.s32 1, %v7849
    %v7851 = vrot.slane %v7778, %v7850
    %v7852 = vlaneseq
    %v7853 = vshrl.u32 %v7852, 7
    %v7854 = vsub.s32 2, %v7853
    %v7855 = vrot.slane %v7778, %v7854
    %v7856 = vlaneseq
    %v7857 = vshrl.u32 %v7856, 7
    %v7858 = vsub.s32 3, %v7857
    %v7859 = vrot.slane %v7778, %v7858
    %v7864 = vadd.f32 %v7779, %v7847
    %v7865 = vadd.f32 %v7780, %v7851
    %v7866 = vadd.f32 %v7781, %v7855
    %v7867 = vadd.f32 %v7782, %v7859
    %v7868 = vadd.f32 %v7783, %v7847
    %v7869 = vadd.f32 %v7784, %v7851
    %v7870 = vadd.f32 %v7785, %v7855
    %v7871 = vadd.f32 %v7786, %v7859
    %v7872 = vadd.f32 %v7787, %v7847
    %v7873 = vadd.f32 %v7788, %v7851
    %v7874 = vadd.f32 %v7789, %v7855
    %v7875 = vadd.f32 %v7790, %v7859
    %v7876 = vadd.f32 %v7791, %v7847
    %v7877 = vadd.f32 %v7792, %v7851
    %v7878 = vadd.f32 %v7793, %v7855
    %v7879 = vadd.f32 %v7794, %v7859
    %v7880 = vadd.f32 %v7795, %v7847
    %v7881 = vadd.f32 %v7796, %v7851
    %v7882 = vadd.f32 %v7797, %v7855
    %v7883 = vadd.f32 %v7798, %v7859
    %v7884 = vadd.f32 %v7799, %v7847
    %v7885 = vadd.f32 %v7800, %v7851
    %v7886 = vadd.f32 %v7801, %v7855
    %v7887 = vadd.f32 %v7802, %v7859
    %v7888 = vadd.f32 %v7803, %v7847
    %v7889 = vadd.f32 %v7804, %v7851
    %v7890 = vadd.f32 %v7805, %v7855
    %v7891 = vadd.f32 %v7806, %v7859
    %v7892 = vadd.f32 %v7807, %v7847
    %v7893 = vadd.f32 %v7808, %v7851
    %v7894 = vadd.f32 %v7809, %v7855
    %v7895 = vadd.f32 %v7810, %v7859
    %v7896 = vadd.f32 %v7811, %v7847
    %v7897 = vadd.f32 %v7812, %v7851
    %v7898 = vadd.f32 %v7813, %v7855
    %v7899 = vadd.f32 %v7814, %v7859
    %v7900 = vadd.f32 %v7815, %v7847
    %v7901 = vadd.f32 %v7816, %v7851
    %v7902 = vadd.f32 %v7817, %v7855
    %v7903 = vadd.f32 %v7818, %v7859
    %v7904 = vadd.f32 %v7819, %v7847
    %v7905 = vadd.f32 %v7820, %v7851
    %v7906 = vadd.f32 %v7821, %v7855
    %v7907 = vadd.f32 %v7822, %v7859
    %v7908 = vadd.f32 %v7823, %v7847
    %v7909 = vadd.f32 %v7824, %v7851
    %v7910 = vadd.f32 %v7825, %v7855
    %v7911 = vadd.f32 %v7826, %v7859
    %v7912 = vadd.f32 %v7827, %v7847
    %v7913 = vadd.f32 %v7828, %v7851
    %v7914 = vadd.f32 %v7829, %v7855
    %v7915 = vadd.f32 %v7830, %v7859
    %v7916 = vadd.f32 %v7831, %v7847
    %v7917 = vadd.f32 %v7832, %v7851
    %v7918 = vadd.f32 %v7833, %v7855
    %v7919 = vadd.f32 %v7834, %v7859
    %v7920 = vadd.f32 %v7835, %v7847
    %v7921 = vadd.f32 %v7836, %v7851
    %v7922 = vadd.f32 %v7837, %v7855
    %v7923 = vadd.f32 %v7838, %v7859
    %v7924 = vadd.f32 %v7839, %v7847
    %v7925 = vadd.f32 %v7840, %v7851
    %v7926 = vadd.f32 %v7841, %v7855
    %v7927 = vadd.f32 %v7842, %v7859
    %v7928 = vmax.f32 %v7864, 0.0
    %v7929 = vmax.f32 %v7865, 0.0
    %v7930 = vmax.f32 %v7866, 0.0
    %v7931 = vmax.f32 %v7867, 0.0
    %v7932 = vmax.f32 %v7868, 0.0
    %v7933 = vmax.f32 %v7869, 0.0
    %v7934 = vmax.f32 %v7870, 0.0
    %v7935 = vmax.f32 %v7871, 0.0
    %v7936 = vmax.f32 %v7872, 0.0
    %v7937 = vmax.f32 %v7873, 0.0
    %v7938 = vmax.f32 %v7874, 0.0
    %v7939 = vmax.f32 %v7875, 0.0
    %v7940 = vmax.f32 %v7876, 0.0
    %v7941 = vmax.f32 %v7877, 0.0
    %v7942 = vmax.f32 %v7878, 0.0
    %v7943 = vmax.f32 %v7879, 0.0
    %v7944 = vmax.f32 %v7880, 0.0
    %v7945 = vmax.f32 %v7881, 0.0
    %v7946 = vmax.f32 %v7882, 0.0
    %v7947 = vmax.f32 %v7883, 0.0
    %v7948 = vmax.f32 %v7884, 0.0
    %v7949 = vmax.f32 %v7885, 0.0
    %v7950 = vmax.f32 %v7886, 0.0
    %v7951 = vmax.f32 %v7887, 0.0
    %v7952 = vmax.f32 %v7888, 0.0
    %v7953 = vmax.f32 %v7889, 0.0
    %v7954 = vmax.f32 %v7890, 0.0
    %v7955 = vmax.f32 %v7891, 0.0
    %v7956 = vmax.f32 %v7892, 0.0
    %v7957 = vmax.f32 %v7893, 0.0
    %v7958 = vmax.f32 %v7894, 0.0
    %v7959 = vmax.f32 %v7895, 0.0
    %v7960 = vmax.f32 %v7896, 0.0
    %v7961 = vmax.f32 %v7897, 0.0
    %v7962 = vmax.f32 %v7898, 0.0
    %v7963 = vmax.f32 %v7899, 0.0
    %v7964 = vmax.f32 %v7900, 0.0
    %v7965 = vmax.f32 %v7901, 0.0
    %v7966 = vmax.f32 %v7902, 0.0
    %v7967 = vmax.f32 %v7903, 0.0
    %v7968 = vmax.f32 %v7904, 0.0
    %v7969 = vmax.f32 %v7905, 0.0
    %v7970 = vmax.f32 %v7906, 0.0
    %v7971 = vmax.f32 %v7907, 0.0
    %v7972 = vmax.f32 %v7908, 0.0
    %v7973 = vmax.f32 %v7909, 0.0
    %v7974 = vmax.f32 %v7910, 0.0
    %v7975 = vmax.f32 %v7911, 0.0
    %v7976 = vmax.f32 %v7912, 0.0
    %v7977 = vmax.f32 %v7913, 0.0
    %v7978 = vmax.f32 %v7914, 0.0
    %v7979 = vmax.f32 %v7915, 0.0
    %v7980 = vmax.f32 %v7916, 0.0
    %v7981 = vmax.f32 %v7917, 0.0
    %v7982 = vmax.f32 %v7918, 0.0
    %v7983 = vmax.f32 %v7919, 0.0
    %v7984 = vmax.f32 %v7920, 0.0
    %v7985 = vmax.f32 %v7921, 0.0
    %v7986 = vmax.f32 %v7922, 0.0
    %v7987 = vmax.f32 %v7923, 0.0
    %v7988 = vmax.f32 %v7924, 0.0
    %v7989 = vmax.f32 %v7925, 0.0
    %v7990 = vmax.f32 %v7926, 0.0
    %v7991 = vmax.f32 %v7927, 0.0
    %v7992 = vld [vmem:[#allocation9] sm:$0xff]
    %v7993 = vld [vmem:[#allocation9 + $0x8] sm:$0xff]
    %v7994 = vld [vmem:[#allocation9 + $0x10] sm:$0xff]
    %v7995 = vld [vmem:[#allocation9 + $0x18] sm:$0xff]
    %v7996 = vld [vmem:[#allocation9 + $0x20] sm:$0xff]
    %v7997 = vld [vmem:[#allocation9 + $0x28] sm:$0xff]
    %v7998 = vld [vmem:[#allocation9 + $0x30] sm:$0xff]
    %v7999 = vld [vmem:[#allocation9 + $0x38] sm:$0xff]
    %v8000 = vld [vmem:[#allocation9 + $0x40] sm:$0xff]
    %v8001 = vld [vmem:[#allocation9 + $0x48] sm:$0xff]
    %v8002 = vld [vmem:[#allocation9 + $0x50] sm:$0xff]
    %v8003 = vld [vmem:[#allocation9 + $0x58] sm:$0xff]
    %v8004 = vld [vmem:[#allocation9 + $0x60] sm:$0xff]
    %v8005 = vld [vmem:[#allocation9 + $0x68] sm:$0xff]
    %v8006 = vld [vmem:[#allocation9 + $0x70] sm:$0xff]
    %v8007 = vld [vmem:[#allocation9 + $0x78] sm:$0xff]
    %v8008 = vld [vmem:[#allocation9 + $0x80] sm:$0xff]
    %v8009 = vld [vmem:[#allocation9 + $0x88] sm:$0xff]
    %v8010 = vld [vmem:[#allocation9 + $0x90] sm:$0xff]
    %v8011 = vld [vmem:[#allocation9 + $0x98] sm:$0xff]
    %v8012 = vld [vmem:[#allocation9 + $0xa0] sm:$0xff]
    %v8013 = vld [vmem:[#allocation9 + $0xa8] sm:$0xff]
    %v8014 = vld [vmem:[#allocation9 + $0xb0] sm:$0xff]
    %v8015 = vld [vmem:[#allocation9 + $0xb8] sm:$0xff]
    %v8016 = vld [vmem:[#allocation9 + $0xc0] sm:$0xff]
    %v8017 = vld [vmem:[#allocation9 + $0xc8] sm:$0xff]
    %v8018 = vld [vmem:[#allocation9 + $0xd0] sm:$0xff]
    %v8019 = vld [vmem:[#allocation9 + $0xd8] sm:$0xff]
    %v8020 = vld [vmem:[#allocation9 + $0xe0] sm:$0xff]
    %v8021 = vld [vmem:[#allocation9 + $0xe8] sm:$0xff]
    %v8022 = vld [vmem:[#allocation9 + $0xf0] sm:$0xff]
    %v8023 = vld [vmem:[#allocation9 + $0xf8] sm:$0xff]
    %v8024 = vld [vmem:[#allocation9 + $0x100] sm:$0xff]
    %v8025 = vld [vmem:[#allocation9 + $0x108] sm:$0xff]
    %v8026 = vld [vmem:[#allocation9 + $0x110] sm:$0xff]
    %v8027 = vld [vmem:[#allocation9 + $0x118] sm:$0xff]
    %v8028 = vld [vmem:[#allocation9 + $0x120] sm:$0xff]
    %v8029 = vld [vmem:[#allocation9 + $0x128] sm:$0xff]
    %v8030 = vld [vmem:[#allocation9 + $0x130] sm:$0xff]
    %v8031 = vld [vmem:[#allocation9 + $0x138] sm:$0xff]
    %v8032 = vld [vmem:[#allocation9 + $0x140] sm:$0xff]
    %v8033 = vld [vmem:[#allocation9 + $0x148] sm:$0xff]
    %v8034 = vld [vmem:[#allocation9 + $0x150] sm:$0xff]
    %v8035 = vld [vmem:[#allocation9 + $0x158] sm:$0xff]
    %v8036 = vld [vmem:[#allocation9 + $0x160] sm:$0xff]
    %v8037 = vld [vmem:[#allocation9 + $0x168] sm:$0xff]
    %v8038 = vld [vmem:[#allocation9 + $0x170] sm:$0xff]
    %v8039 = vld [vmem:[#allocation9 + $0x178] sm:$0xff]
    %v8040 = vld [vmem:[#allocation9 + $0x180] sm:$0xff]
    %v8041 = vld [vmem:[#allocation9 + $0x188] sm:$0xff]
    %v8042 = vld [vmem:[#allocation9 + $0x190] sm:$0xff]
    %v8043 = vld [vmem:[#allocation9 + $0x198] sm:$0xff]
    %v8044 = vld [vmem:[#allocation9 + $0x1a0] sm:$0xff]
    %v8045 = vld [vmem:[#allocation9 + $0x1a8] sm:$0xff]
    %v8046 = vld [vmem:[#allocation9 + $0x1b0] sm:$0xff]
    %v8047 = vld [vmem:[#allocation9 + $0x1b8] sm:$0xff]
    %v8048 = vld [vmem:[#allocation9 + $0x1c0] sm:$0xff]
    %v8049 = vld [vmem:[#allocation9 + $0x1c8] sm:$0xff]
    %v8050 = vld [vmem:[#allocation9 + $0x1d0] sm:$0xff]
    %v8051 = vld [vmem:[#allocation9 + $0x1d8] sm:$0xff]
    %v8052 = vld [vmem:[#allocation9 + $0x1e0] sm:$0xff]
    %v8053 = vld [vmem:[#allocation9 + $0x1e8] sm:$0xff]
    %v8054 = vld [vmem:[#allocation9 + $0x1f0] sm:$0xff]
    %v8055 = vld [vmem:[#allocation9 + $0x1f8] sm:$0xff]
    %8056 = vmatprep.subr.mxu0 0.0
    %8057 = vmatpush1.msra.mxu0 %v7992
    %8058 = vmatprep.subr.mxu0 0.0
    %8059 = vmatpush1.msra.mxu0 %v7993
    %8060 = vmatprep.subr.mxu0 0.0
    %8061 = vmatpush1.msra.mxu0 %v7994
    %8062 = vmatprep.subr.mxu0 0.0
    %8063 = vmatpush1.msra.mxu0 %v7995
    %8064 = vmatprep.subr.mxu0 0.0
    %8065 = vmatpush1.msra.mxu0 %v7996
    %8066 = vmatprep.subr.mxu0 0.0
    %8067 = vmatpush1.msra.mxu0 %v7997
    %8068 = vmatprep.subr.mxu0 0.0
    %8069 = vmatpush1.msra.mxu0 %v7998
    %8070 = vmatprep.subr.mxu0 0.0
    %8071 = vmatpush1.msra.mxu0 %v7999
    %8072 = vmatprep.subr.mxu0 0.0
    %8073 = vmatpush1.msra.mxu0 %v8000
    %8074 = vmatprep.subr.mxu0 0.0
    %8075 = vmatpush1.msra.mxu0 %v8001
    %8076 = vmatprep.subr.mxu0 0.0
    %8077 = vmatpush1.msra.mxu0 %v8002
    %8078 = vmatprep.subr.mxu0 0.0
    %8079 = vmatpush1.msra.mxu0 %v8003
    %8080 = vmatprep.subr.mxu0 0.0
    %8081 = vmatpush1.msra.mxu0 %v8004
    %8082 = vmatprep.subr.mxu0 0.0
    %8083 = vmatpush1.msra.mxu0 %v8005
    %8084 = vmatprep.subr.mxu0 0.0
    %8085 = vmatpush1.msra.mxu0 %v8006
    %8086 = vmatprep.subr.mxu0 0.0
    %8087 = vmatpush1.msra.mxu0 %v8007
    %8088 = vmatprep.subr.mxu0 0.0
    %8089 = vmatpush1.msra.mxu0 %v8008
    %8090 = vmatprep.subr.mxu0 0.0
    %8091 = vmatpush1.msra.mxu0 %v8009
    %8092 = vmatprep.subr.mxu0 0.0
    %8093 = vmatpush1.msra.mxu0 %v8010
    %8094 = vmatprep.subr.mxu0 0.0
    %8095 = vmatpush1.msra.mxu0 %v8011
    %8096 = vmatprep.subr.mxu0 0.0
    %8097 = vmatpush1.msra.mxu0 %v8012
    %8098 = vmatprep.subr.mxu0 0.0
    %8099 = vmatpush1.msra.mxu0 %v8013
    %8100 = vmatprep.subr.mxu0 0.0
    %8101 = vmatpush1.msra.mxu0 %v8014
    %8102 = vmatprep.subr.mxu0 0.0
    %8103 = vmatpush1.msra.mxu0 %v8015
    %8104 = vmatprep.subr.mxu0 0.0
    %8105 = vmatpush1.msra.mxu0 %v8016
    %8106 = vmatprep.subr.mxu0 0.0
    %8107 = vmatpush1.msra.mxu0 %v8017
    %8108 = vmatprep.subr.mxu0 0.0
    %8109 = vmatpush1.msra.mxu0 %v8018
    %8110 = vmatprep.subr.mxu0 0.0
    %8111 = vmatpush1.msra.mxu0 %v8019
    %8112 = vmatprep.subr.mxu0 0.0
    %8113 = vmatpush1.msra.mxu0 %v8020
    %8114 = vmatprep.subr.mxu0 0.0
    %8115 = vmatpush1.msra.mxu0 %v8021
    %8116 = vmatprep.subr.mxu0 0.0
    %8117 = vmatpush1.msra.mxu0 %v8022
    %8118 = vmatprep.subr.mxu0 0.0
    %8119 = vmatpush1.msra.mxu0 %v8023
    %8120 = vmatprep.mubr.f32.mxu0 %v7929
    %8121 = vmatmul.mubr.f32.gmra.mrb[0].mxu0 %v7928
    %v8122 = vpop.f32.mrb[0].mxu0
    %v8123 = vadd.f32 0.0, %v8122
    %v8124 = vpop.f32.mrb[0].mxu0
    %8125 = vmatprep.mubr.f32.mxu0 %v7933
    %8126 = vmatmul.mubr.f32.gmra.mrb[0].mxu0 %v7932
    %v8127 = vpop.f32.mrb[0].mxu0
    %v8128 = vadd.f32 0.0, %v8127
    %v8129 = vpop.f32.mrb[0].mxu0
    %8130 = vmatprep.mubr.f32.mxu0 %v7937
    %8131 = vmatmul.mubr.f32.gmra.mrb[0].mxu0 %v7936
    %v8132 = vpop.f32.mrb[0].mxu0
    %v8133 = vadd.f32 0.0, %v8132
    %v8134 = vpop.f32.mrb[0].mxu0
    %8135 = vmatprep.mubr.f32.mxu0 %v7941
    %8136 = vmatmul.mubr.f32.gmra.mrb[0].mxu0 %v7940
    %v8137 = vpop.f32.mrb[0].mxu0
    %v8138 = vadd.f32 0.0, %v8137
    %v8139 = vpop.f32.mrb[0].mxu0
    %8140 = vmatprep.mubr.f32.mxu0 %v7945
    %8141 = vmatmul.mubr.f32.gmra.mrb[0].mxu0 %v7944
    %v8142 = vpop.f32.mrb[0].mxu0
    %v8143 = vadd.f32 0.0, %v8142
    %v8144 = vpop.f32.mrb[0].mxu0
    %8145 = vmatprep.mubr.f32.mxu0 %v7949
    %8146 = vmatmul.mubr.f32.gmra.mrb[0].mxu0 %v7948
    %v8147 = vpop.f32.mrb[0].mxu0
    %v8148 = vadd.f32 0.0, %v8147
    %v8149 = vpop.f32.mrb[0].mxu0
    %8150 = vmatprep.mubr.f32.mxu0 %v7953
    %8151 = vmatmul.mubr.f32.gmra.mrb[0].mxu0 %v7952
    %v8152 = vpop.f32.mrb[0].mxu0
    %v8153 = vadd.f32 0.0, %v8152
    %v8154 = vpop.f32.mrb[0].mxu0
    %8155 = vmatprep.mubr.f32.mxu0 %v7957
    %8156 = vmatmul.mubr.f32.gmra.mrb[0].mxu0 %v7956
    %v8157 = vpop.f32.mrb[0].mxu0
    %v8158 = vadd.f32 0.0, %v8157
    %v8159 = vpop.f32.mrb[0].mxu0
    %8160 = vmatprep.mubr.f32.mxu0 %v7961
    %8161 = vmatmul.mubr.f32.gmra.mrb[0].mxu0 %v7960
    %v8162 = vpop.f32.mrb[0].mxu0
    %v8163 = vadd.f32 0.0, %v8162
    %v8164 = vpop.f32.mrb[0].mxu0
    %8165 = vmatprep.mubr.f32.mxu0 %v7965
    %8166 = vmatmul.mubr.f32.gmra.mrb[0].mxu0 %v7964
    %v8167 = vpop.f32.mrb[0].mxu0
    %v8168 = vadd.f32 0.0, %v8167
    %v8169 = vpop.f32.mrb[0].mxu0
    %8170 = vmatprep.mubr.f32.mxu0 %v7969
    %8171 = vmatmul.mubr.f32.gmra.mrb[0].mxu0 %v7968
    %v8172 = vpop.f32.mrb[0].mxu0
    %v8173 = vadd.f32 0.0, %v8172
    %v8174 = vpop.f32.mrb[0].mxu0
    %8175 = vmatprep.mubr.f32.mxu0 %v7973
    %8176 = vmatmul.mubr.f32.gmra.mrb[0].mxu0 %v7972
    %v8177 = vpop.f32.mrb[0].mxu0
    %v8178 = vadd.f32 0.0, %v8177
    %v8179 = vpop.f32.mrb[0].mxu0
    %8180 = vmatprep.mubr.f32.mxu0 %v7977
    %8181 = vmatmul.mubr.f32.gmra.mrb[0].mxu0 %v7976
    %v8182 = vpop.f32.mrb[0].mxu0
    %v8183 = vadd.f32 0.0, %v8182
    %v8184 = vpop.f32.mrb[0].mxu0
    %8185 = vmatprep.mubr.f32.mxu0 %v7981
    %8186 = vmatmul.mubr.f32.gmra.mrb[0].mxu0 %v7980
    %v8187 = vpop.f32.mrb[0].mxu0
    %v8188 = vadd.f32 0.0, %v8187
    %v8189 = vpop.f32.mrb[0].mxu0
    %8190 = vmatprep.mubr.f32.mxu0 %v7985
    %8191 = vmatmul.mubr.f32.gmra.mrb[0].mxu0 %v7984
    %v8192 = vpop.f32.mrb[0].mxu0
    %v8193 = vadd.f32 0.0, %v8192
    %v8194 = vpop.f32.mrb[0].mxu0
    %8195 = vmatprep.mubr.f32.mxu0 %v7989
    %8196 = vmatmul.mubr.f32.gmra.mrb[0].mxu0 %v7988
    %v8197 = vpop.f32.mrb[0].mxu0
    %v8198 = vadd.f32 0.0, %v8197
    %v8199 = vpop.f32.mrb[0].mxu0
    %8200 = vdwg.mxu0
    %8201 = vmatprep.subr.mxu0 0.0
    %8202 = vmatpush1.msra.mxu0 %v8024
    %8203 = vmatprep.subr.mxu0 0.0
    %8204 = vmatpush1.msra.mxu0 %v8025
    %8205 = vmatprep.subr.mxu0 0.0
    %8206 = vmatpush1.msra.mxu0 %v8026
    %8207 = vmatprep.subr.mxu0 0.0
    %8208 = vmatpush1.msra.mxu0 %v8027
    %8209 = vmatprep.subr.mxu0 0.0
    %8210 = vmatpush1.msra.mxu0 %v8028
    %8211 = vmatprep.subr.mxu0 0.0
    %8212 = vmatpush1.msra.mxu0 %v8029
    %8213 = vmatprep.subr.mxu0 0.0
    %8214 = vmatpush1.msra.mxu0 %v8030
    %8215 = vmatprep.subr.mxu0 0.0
    %8216 = vmatpush1.msra.mxu0 %v8031
    %8217 = vmatprep.subr.mxu0 0.0
    %8218 = vmatpush1.msra.mxu0 %v8032
    %8219 = vmatprep.subr.mxu0 0.0
    %8220 = vmatpush1.msra.mxu0 %v8033
    %8221 = vmatprep.subr.mxu0 0.0
    %8222 = vmatpush1.msra.mxu0 %v8034
    %8223 = vmatprep.subr.mxu0 0.0
    %8224 = vmatpush1.msra.mxu0 %v8035
    %8225 = vmatprep.subr.mxu0 0.0
    %8226 = vmatpush1.msra.mxu0 %v8036
    %8227 = vmatprep.subr.mxu0 0.0
    %8228 = vmatpush1.msra.mxu0 %v8037
    %8229 = vmatprep.subr.mxu0 0.0
    %8230 = vmatpush1.msra.mxu0 %v8038
    %8231 = vmatprep.subr.mxu0 0.0
    %8232 = vmatpush1.msra.mxu0 %v8039
    %8233 = vmatprep.subr.mxu0 0.0
    %8234 = vmatpush1.msra.mxu0 %v8040
    %8235 = vmatprep.subr.mxu0 0.0
    %8236 = vmatpush1.msra.mxu0 %v8041
    %8237 = vmatprep.subr.mxu0 0.0
    %8238 = vmatpush1.msra.mxu0 %v8042
    %8239 = vmatprep.subr.mxu0 0.0
    %8240 = vmatpush1.msra.mxu0 %v8043
    %8241 = vmatprep.subr.mxu0 0.0
    %8242 = vmatpush1.msra.mxu0 %v8044
    %8243 = vmatprep.subr.mxu0 0.0
    %8244 = vmatpush1.msra.mxu0 %v8045
    %8245 = vmatprep.subr.mxu0 0.0
    %8246 = vmatpush1.msra.mxu0 %v8046
    %8247 = vmatprep.subr.mxu0 0.0
    %8248 = vmatpush1.msra.mxu0 %v8047
    %8249 = vmatprep.subr.mxu0 0.0
    %8250 = vmatpush1.msra.mxu0 %v8048
    %8251 = vmatprep.subr.mxu0 0.0
    %8252 = vmatpush1.msra.mxu0 %v8049
    %8253 = vmatprep.subr.mxu0 0.0
    %8254 = vmatpush1.msra.mxu0 %v8050
    %8255 = vmatprep.subr.mxu0 0.0
    %8256 = vmatpush1.msra.mxu0 %v8051
    %8257 = vmatprep.subr.mxu0 0.0
    %8258 = vmatpush1.msra.mxu0 %v8052
    %8259 = vmatprep.subr.mxu0 0.0
    %8260 = vmatpush1.msra.mxu0 %v8053
    %8261 = vmatprep.subr.mxu0 0.0
    %8262 = vmatpush1.msra.mxu0 %v8054
    %8263 = vmatprep.subr.mxu0 0.0
    %8264 = vmatpush1.msra.mxu0 %v8055
    %8265 = vmatprep.mubr.f32.mxu0 %v7931
    %8266 = vmatmul.mubr.f32.gmra.mrb[0].mxu0 %v7930
    %v8267 = vpop.f32.mrb[0].mxu0
    %v8268 = vadd.f32 %v8123, %v8267
    %v8269 = vpop.f32.mrb[0].mxu0
    %8270 = vmatprep.mubr.f32.mxu0 %v7935
    %8271 = vmatmul.mubr.f32.gmra.mrb[0].mxu0 %v7934
    %v8272 = vpop.f32.mrb[0].mxu0
    %v8273 = vadd.f32 %v8128, %v8272
    %v8274 = vpop.f32.mrb[0].mxu0
    %8275 = vmatprep.mubr.f32.mxu0 %v7939
    %8276 = vmatmul.mubr.f32.gmra.mrb[0].mxu0 %v7938
    %v8277 = vpop.f32.mrb[0].mxu0
    %v8278 = vadd.f32 %v8133, %v8277
    %v8279 = vpop.f32.mrb[0].mxu0
    %8280 = vmatprep.mubr.f32.mxu0 %v7943
    %8281 = vmatmul.mubr.f32.gmra.mrb[0].mxu0 %v7942
    %v8282 = vpop.f32.mrb[0].mxu0
    %v8283 = vadd.f32 %v8138, %v8282
    %v8284 = vpop.f32.mrb[0].mxu0
    %8285 = vmatprep.mubr.f32.mxu0 %v7947
    %8286 = vmatmul.mubr.f32.gmra.mrb[0].mxu0 %v7946
    %v8287 = vpop.f32.mrb[0].mxu0
    %v8288 = vadd.f32 %v8143, %v8287
    %v8289 = vpop.f32.mrb[0].mxu0
    %8290 = vmatprep.mubr.f32.mxu0 %v7951
    %8291 = vmatmul.mubr.f32.gmra.mrb[0].mxu0 %v7950
    %v8292 = vpop.f32.mrb[0].mxu0
    %v8293 = vadd.f32 %v8148, %v8292
    %v8294 = vpop.f32.mrb[0].mxu0
    %8295 = vmatprep.mubr.f32.mxu0 %v7955
    %8296 = vmatmul.mubr.f32.gmra.mrb[0].mxu0 %v7954
    %v8297 = vpop.f32.mrb[0].mxu0
    %v8298 = vadd.f32 %v8153, %v8297
    %v8299 = vpop.f32.mrb[0].mxu0
    %8300 = vmatprep.mubr.f32.mxu0 %v7959
    %8301 = vmatmul.mubr.f32.gmra.mrb[0].mxu0 %v7958
    %v8302 = vpop.f32.mrb[0].mxu0
    %v8303 = vadd.f32 %v8158, %v8302
    %v8304 = vpop.f32.mrb[0].mxu0
    %8305 = vmatprep.mubr.f32.mxu0 %v7963
    %8306 = vmatmul.mubr.f32.gmra.mrb[0].mxu0 %v7962
    %v8307 = vpop.f32.mrb[0].mxu0
    %v8308 = vadd.f32 %v8163, %v8307
    %v8309 = vpop.f32.mrb[0].mxu0
    %8310 = vmatprep.mubr.f32.mxu0 %v7967
    %8311 = vmatmul.mubr.f32.gmra.mrb[0].mxu0 %v7966
    %v8312 = vpop.f32.mrb[0].mxu0
    %v8313 = vadd.f32 %v8168, %v8312
    %v8314 = vpop.f32.mrb[0].mxu0
    %8315 = vmatprep.mubr.f32.mxu0 %v7971
    %8316 = vmatmul.mubr.f32.gmra.mrb[0].mxu0 %v7970
    %v8317 = vpop.f32.mrb[0].mxu0
    %v8318 = vadd.f32 %v8173, %v8317
    %v8319 = vpop.f32.mrb[0].mxu0
    %8320 = vmatprep.mubr.f32.mxu0 %v7975
    %8321 = vmatmul.mubr.f32.gmra.mrb[0].mxu0 %v7974
    %v8322 = vpop.f32.mrb[0].mxu0
    %v8323 = vadd.f32 %v8178, %v8322
    %v8324 = vpop.f32.mrb[0].mxu0
    %8325 = vmatprep.mubr.f32.mxu0 %v7979
    %8326 = vmatmul.mubr.f32.gmra.mrb[0].mxu0 %v7978
    %v8327 = vpop.f32.mrb[0].mxu0
    %v8328 = vadd.f32 %v8183, %v8327
    %v8329 = vpop.f32.mrb[0].mxu0
    %8330 = vmatprep.mubr.f32.mxu0 %v7983
    %8331 = vmatmul.mubr.f32.gmra.mrb[0].mxu0 %v7982
    %v8332 = vpop.f32.mrb[0].mxu0
    %v8333 = vadd.f32 %v8188, %v8332
    %v8334 = vpop.f32.mrb[0].mxu0
    %8335 = vmatprep.mubr.f32.mxu0 %v7987
    %8336 = vmatmul.mubr.f32.gmra.mrb[0].mxu0 %v7986
    %v8337 = vpop.f32.mrb[0].mxu0
    %v8338 = vadd.f32 %v8193, %v8337
    %v8339 = vpop.f32.mrb[0].mxu0
    %8340 = vmatprep.mubr.f32.mxu0 %v7991
    %8341 = vmatmul.mubr.f32.gmra.mrb[0].mxu0 %v7990
    %v8342 = vpop.f32.mrb[0].mxu0
    %v8343 = vadd.f32 %v8198, %v8342
    %v8344 = vpop.f32.mrb[0].mxu0
    %8345 = vdwg.mxu0
    %v8346 = vld [vmem:[#allocation12 + $0x2] sm:$0x1]
    %v8347 = vld [vmem:[#allocation12 + $0x3] sm:$0x1]
    %v8348 = vadd.f32 %v8268, %v8273
    %v8349 = vadd.f32 %v8348, %v8278
    %v8350 = vadd.f32 %v8349, %v8283
    %v8351 = vadd.f32 %v8350, %v8288
    %v8352 = vadd.f32 %v8351, %v8293
    %v8353 = vadd.f32 %v8352, %v8298
    %v8354 = vadd.f32 %v8353, %v8303
    %v8355 = vadd.f32 %v8354, %v8308
    %v8356 = vadd.f32 %v8355, %v8313
    %v8357 = vadd.f32 %v8356, %v8318
    %v8358 = vadd.f32 %v8357, %v8323
    %v8359 = vadd.f32 %v8358, %v8328
    %v8360 = vadd.f32 %v8359, %v8333
    %v8361 = vadd.f32 %v8360, %v8338
    %v8362 = vadd.f32 %v8361, %v8343
    %v8363 = vrot.slane %v8362, 4
    %v8364 = vadd.f32 %v8362, %v8363
    %v8365 = vrot.slane %v8364, 2
    %v8366 = vadd.f32 %v8364, %v8365
    %v8367 = vrot.slane %v8366, 1
    %v8368 = vadd.f32 %v8366, %v8367
    %v8369 = vmul.f32 %v8368, 0.0078125
    %v8370 = vmul.f32 %v8268, %v8268
    %v8371 = vmul.f32 %v8273, %v8273
    %v8372 = vmul.f32 %v8278, %v8278
    %v8373 = vmul.f32 %v8283, %v8283
    %v8374 = vmul.f32 %v8288, %v8288
    %v8375 = vmul.f32 %v8293, %v8293
    %v8376 = vmul.f32 %v8298, %v8298
    %v8377 = vmul.f32 %v8303, %v8303
    %v8378 = vmul.f32 %v8308, %v8308
    %v8379 = vmul.f32 %v8313, %v8313
    %v8380 = vmul.f32 %v8318, %v8318
    %v8381 = vmul.f32 %v8323, %v8323
    %v8382 = vmul.f32 %v8328, %v8328
    %v8383 = vmul.f32 %v8333, %v8333
    %v8384 = vmul.f32 %v8338, %v8338
    %v8385 = vmul.f32 %v8343, %v8343
    %v8386 = vadd.f32 %v8370, %v8371
    %v8387 = vadd.f32 %v8386, %v8372
    %v8388 = vadd.f32 %v8387, %v8373
    %v8389 = vadd.f32 %v8388, %v8374
    %v8390 = vadd.f32 %v8389, %v8375
    %v8391 = vadd.f32 %v8390, %v8376
    %v8392 = vadd.f32 %v8391, %v8377
    %v8393 = vadd.f32 %v8392, %v8378
    %v8394 = vadd.f32 %v8393, %v8379
    %v8395 = vadd.f32 %v8394, %v8380
    %v8396 = vadd.f32 %v8395, %v8381
    %v8397 = vadd.f32 %v8396, %v8382
    %v8398 = vadd.f32 %v8397, %v8383
    %v8399 = vadd.f32 %v8398, %v8384
    %v8400 = vadd.f32 %v8399, %v8385
    %v8401 = vrot.slane %v8400, 4
    %v8402 = vadd.f32 %v8400, %v8401
    %v8403 = vrot.slane %v8402, 2
    %v8404 = vadd.f32 %v8402, %v8403
    %v8405 = vrot.slane %v8404, 1
    %v8406 = vadd.f32 %v8404, %v8405
    %v8407 = vmul.f32 %v8406, 0.0078125
    %v8408 = vmul.f32 %v8369, %v8369
    %v8409 = vsub.f32 %v8407, %v8408
    %v8410 = vadd.f32 %v8409, 1e-05
    %v8411 = vrsqrt.pop %v8410
    %v8412 = vmul.f32 %v8346, %v8411
    %v8413 = vmul.f32 %v8369, %v8412
    %v8414 = vsub.f32 %v8347, %v8413
    %v8415 = vlaneseq
    %v8416 = vshrl.u32 %v8415, 7
    %v8417 = vsub.s32 0, %v8416
    %v8418 = vrot.slane %v8412, %v8417
    %v8419 = vmul.f32 %v8268, %v8418
    %v8420 = vmul.f32 %v8273, %v8418
    %v8421 = vmul.f32 %v8278, %v8418
    %v8422 = vmul.f32 %v8283, %v8418
    %v8423 = vmul.f32 %v8288, %v8418
    %v8424 = vmul.f32 %v8293, %v8418
    %v8425 = vmul.f32 %v8298, %v8418
    %v8426 = vmul.f32 %v8303, %v8418
    %v8427 = vmul.f32 %v8308, %v8418
    %v8428 = vmul.f32 %v8313, %v8418
    %v8429 = vmul.f32 %v8318, %v8418
    %v8430 = vmul.f32 %v8323, %v8418
    %v8431 = vmul.f32 %v8328, %v8418
    %v8432 = vmul.f32 %v8333, %v8418
    %v8433 = vmul.f32 %v8338, %v8418
    %v8434 = vmul.f32 %v8343, %v8418
    %v8435 = vlaneseq
    %v8436 = vshrl.u32 %v8435, 7
    %v8437 = vsub.s32 0, %v8436
    %v8438 = vrot.slane %v8414, %v8437
    %v8439 = vadd.f32 %v8419, %v8438
    %v8440 = vadd.f32 %v8420, %v8438
    %v8441 = vadd.f32 %v8421, %v8438
    %v8442 = vadd.f32 %v8422, %v8438
    %v8443 = vadd.f32 %v8423, %v8438
    %v8444 = vadd.f32 %v8424, %v8438
    %v8445 = vadd.f32 %v8425, %v8438
    %v8446 = vadd.f32 %v8426, %v8438
    %v8447 = vadd.f32 %v8427, %v8438
    %v8448 = vadd.f32 %v8428, %v8438
    %v8449 = vadd.f32 %v8429, %v8438
    %v8450 = vadd.f32 %v8430, %v8438
    %v8451 = vadd.f32 %v8431, %v8438
    %v8452 = vadd.f32 %v8432, %v8438
    %v8453 = vadd.f32 %v8433, %v8438
    %v8454 = vadd.f32 %v8434, %v8438
    %v8455 = vmax.f32 %v8439, 0.0
    %v8456 = vmax.f32 %v8440, 0.0
    %v8457 = vmax.f32 %v8441, 0.0
    %v8458 = vmax.f32 %v8442, 0.0
    %v8459 = vmax.f32 %v8443, 0.0
    %v8460 = vmax.f32 %v8444, 0.0
    %v8461 = vmax.f32 %v8445, 0.0
    %v8462 = vmax.f32 %v8446, 0.0
    %v8463 = vmax.f32 %v8447, 0.0
    %v8464 = vmax.f32 %v8448, 0.0
    %v8465 = vmax.f32 %v8449, 0.0
    %v8466 = vmax.f32 %v8450, 0.0
    %v8467 = vmax.f32 %v8451, 0.0
    %v8468 = vmax.f32 %v8452, 0.0
    %v8469 = vmax.f32 %v8453, 0.0
    %v8470 = vmax.f32 %v8454, 0.0
    %v8471 = vld [vmem:[%s7] sm:$0xff]
    %v8472 = vld [vmem:[%s7 + $0x8] sm:$0xff]
    %v8473 = vld [vmem:[%s7 + $0x10] sm:$0xff]
    %v8474 = vld [vmem:[%s7 + $0x18] sm:$0xff]
    %v8475 = vld [vmem:[%s7 + $0x20] sm:$0xff]
    %v8476 = vld [vmem:[%s7 + $0x28] sm:$0xff]
    %v8477 = vld [vmem:[%s7 + $0x30] sm:$0xff]
    %v8478 = vld [vmem:[%s7 + $0x38] sm:$0xff]
    %v8479 = vld [vmem:[%s7 + $0x40] sm:$0xff]
    %v8480 = vld [vmem:[%s7 + $0x48] sm:$0xff]
    %v8481 = vld [vmem:[%s7 + $0x50] sm:$0xff]
    %v8482 = vld [vmem:[%s7 + $0x58] sm:$0xff]
    %v8483 = vld [vmem:[%s7 + $0x60] sm:$0xff]
    %v8484 = vld [vmem:[%s7 + $0x68] sm:$0xff]
    %v8485 = vld [vmem:[%s7 + $0x70] sm:$0xff]
    %v8486 = vld [vmem:[%s7 + $0x78] sm:$0xff]
    %v8487 = vld [vmem:[#allocation13 + $0x1] sm:$0x1]
    %v8488 = vlaneseq
    %v8489 = vshrl.u32 %v8488, 7
    %v8490 = vsub.s32 0, %v8489
    %v8491 = vrot.slane %v8487, %v8490
    %8492 = vmatprep.subr.mxu0 0.0
    %8493 = vmatpush1.msra.mxu0 %v8471
    %8494 = vmatprep.subr.mxu0 0.0
    %8495 = vmatpush1.msra.mxu0 %v8472
    %8496 = vmatprep.subr.mxu0 0.0
    %8497 = vmatpush1.msra.mxu0 %v8473
    %8498 = vmatprep.subr.mxu0 0.0
    %8499 = vmatpush1.msra.mxu0 %v8474
    %8500 = vmatprep.subr.mxu0 0.0
    %8501 = vmatpush1.msra.mxu0 %v8475
    %8502 = vmatprep.subr.mxu0 0.0
    %8503 = vmatpush1.msra.mxu0 %v8476
    %8504 = vmatprep.subr.mxu0 0.0
    %8505 = vmatpush1.msra.mxu0 %v8477
    %8506 = vmatprep.subr.mxu0 0.0
    %8507 = vmatpush1.msra.mxu0 %v8478
    %8508 = vmatprep.subr.mxu0 0.0
    %8509 = vmatpush1.msra.mxu0 %v8479
    %8510 = vmatprep.subr.mxu0 0.0
    %8511 = vmatpush1.msra.mxu0 %v8480
    %8512 = vmatprep.subr.mxu0 0.0
    %8513 = vmatpush1.msra.mxu0 %v8481
    %8514 = vmatprep.subr.mxu0 0.0
    %8515 = vmatpush1.msra.mxu0 %v8482
    %8516 = vmatprep.subr.mxu0 0.0
    %8517 = vmatpush1.msra.mxu0 %v8483
    %8518 = vmatprep.subr.mxu0 0.0
    %8519 = vmatpush1.msra.mxu0 %v8484
    %8520 = vmatprep.subr.mxu0 0.0
    %8521 = vmatpush1.msra.mxu0 %v8485
    %8522 = vmatprep.subr.mxu0 0.0
    %8523 = vmatpush1.msra.mxu0 %v8486
    %8524 = vmatprep.subr.mxu0 0.0
    %8525 = vmatpush1.msra.mxu0 0.0
    %8526 = vmatprep.subr.mxu0 0.0
    %8527 = vmatpush1.msra.mxu0 0.0
    %8528 = vmatprep.subr.mxu0 0.0
    %8529 = vmatpush1.msra.mxu0 0.0
    %8530 = vmatprep.subr.mxu0 0.0
    %8531 = vmatpush1.msra.mxu0 0.0
    %8532 = vmatprep.subr.mxu0 0.0
    %8533 = vmatpush1.msra.mxu0 0.0
    %8534 = vmatprep.subr.mxu0 0.0
    %8535 = vmatpush1.msra.mxu0 0.0
    %8536 = vmatprep.subr.mxu0 0.0
    %8537 = vmatpush1.msra.mxu0 0.0
    %8538 = vmatprep.subr.mxu0 0.0
    %8539 = vmatpush1.msra.mxu0 0.0
    %8540 = vmatprep.subr.mxu0 0.0
    %8541 = vmatpush1.msra.mxu0 0.0
    %8542 = vmatprep.subr.mxu0 0.0
    %8543 = vmatpush1.msra.mxu0 0.0
    %8544 = vmatprep.subr.mxu0 0.0
    %8545 = vmatpush1.msra.mxu0 0.0
    %8546 = vmatprep.subr.mxu0 0.0
    %8547 = vmatpush1.msra.mxu0 0.0
    %8548 = vmatprep.subr.mxu0 0.0
    %8549 = vmatpush1.msra.mxu0 0.0
    %8550 = vmatprep.subr.mxu0 0.0
    %8551 = vmatpush1.msra.mxu0 0.0
    %8552 = vmatprep.subr.mxu0 0.0
    %8553 = vmatpush1.msra.mxu0 0.0
    %8554 = vmatprep.subr.mxu0 0.0
    %8555 = vmatpush1.msra.mxu0 0.0
    %8556 = vmatprep.mubr.f32.mxu0 0.0
    %8557 = vmatmul.mubr.f32.gmra.mrb[0].mxu0 %v8455
    %v8558 = vpop.f32.mrb[0].mxu0
    %v8559 = vadd.f32 %v8491, %v8558
    %v8560 = vpop.f32.mrb[0].mxu0
    %8561 = vmatprep.mubr.f32.mxu0 0.0
    %8562 = vmatmul.mubr.f32.gmra.mrb[0].mxu0 %v8456
    %v8563 = vpop.f32.mrb[0].mxu0
    %v8564 = vadd.f32 %v8491, %v8563
    %v8565 = vpop.f32.mrb[0].mxu0
    %8566 = vmatprep.mubr.f32.mxu0 0.0
    %8567 = vmatmul.mubr.f32.gmra.mrb[0].mxu0 %v8457
    %v8568 = vpop.f32.mrb[0].mxu0
    %v8569 = vadd.f32 %v8491, %v8568
    %v8570 = vpop.f32.mrb[0].mxu0
    %8571 = vmatprep.mubr.f32.mxu0 0.0
    %8572 = vmatmul.mubr.f32.gmra.mrb[0].mxu0 %v8458
    %v8573 = vpop.f32.mrb[0].mxu0
    %v8574 = vadd.f32 %v8491, %v8573
    %v8575 = vpop.f32.mrb[0].mxu0
    %8576 = vmatprep.mubr.f32.mxu0 0.0
    %8577 = vmatmul.mubr.f32.gmra.mrb[0].mxu0 %v8459
    %v8578 = vpop.f32.mrb[0].mxu0
    %v8579 = vadd.f32 %v8491, %v8578
    %v8580 = vpop.f32.mrb[0].mxu0
    %8581 = vmatprep.mubr.f32.mxu0 0.0
    %8582 = vmatmul.mubr.f32.gmra.mrb[0].mxu0 %v8460
    %v8583 = vpop.f32.mrb[0].mxu0
    %v8584 = vadd.f32 %v8491, %v8583
    %v8585 = vpop.f32.mrb[0].mxu0
    %8586 = vmatprep.mubr.f32.mxu0 0.0
    %8587 = vmatmul.mubr.f32.gmra.mrb[0].mxu0 %v8461
    %v8588 = vpop.f32.mrb[0].mxu0
    %v8589 = vadd.f32 %v8491, %v8588
    %v8590 = vpop.f32.mrb[0].mxu0
    %8591 = vmatprep.mubr.f32.mxu0 0.0
    %8592 = vmatmul.mubr.f32.gmra.mrb[0].mxu0 %v8462
    %v8593 = vpop.f32.mrb[0].mxu0
    %v8594 = vadd.f32 %v8491, %v8593
    %v8595 = vpop.f32.mrb[0].mxu0
    %8596 = vmatprep.mubr.f32.mxu0 0.0
    %8597 = vmatmul.mubr.f32.gmra.mrb[0].mxu0 %v8463
    %v8598 = vpop.f32.mrb[0].mxu0
    %v8599 = vadd.f32 %v8491, %v8598
    %v8600 = vpop.f32.mrb[0].mxu0
    %8601 = vmatprep.mubr.f32.mxu0 0.0
    %8602 = vmatmul.mubr.f32.gmra.mrb[0].mxu0 %v8464
    %v8603 = vpop.f32.mrb[0].mxu0
    %v8604 = vadd.f32 %v8491, %v8603
    %v8605 = vpop.f32.mrb[0].mxu0
    %8606 = vmatprep.mubr.f32.mxu0 0.0
    %8607 = vmatmul.mubr.f32.gmra.mrb[0].mxu0 %v8465
    %v8608 = vpop.f32.mrb[0].mxu0
    %v8609 = vadd.f32 %v8491, %v8608
    %v8610 = vpop.f32.mrb[0].mxu0
    %8611 = vmatprep.mubr.f32.mxu0 0.0
    %8612 = vmatmul.mubr.f32.gmra.mrb[0].mxu0 %v8466
    %v8613 = vpop.f32.mrb[0].mxu0
    %v8614 = vadd.f32 %v8491, %v8613
    %v8615 = vpop.f32.mrb[0].mxu0
    %8616 = vmatprep.mubr.f32.mxu0 0.0
    %8617 = vmatmul.mubr.f32.gmra.mrb[0].mxu0 %v8467
    %v8618 = vpop.f32.mrb[0].mxu0
    %v8619 = vadd.f32 %v8491, %v8618
    %v8620 = vpop.f32.mrb[0].mxu0
    %8621 = vmatprep.mubr.f32.mxu0 0.0
    %8622 = vmatmul.mubr.f32.gmra.mrb[0].mxu0 %v8468
    %v8623 = vpop.f32.mrb[0].mxu0
    %v8624 = vadd.f32 %v8491, %v8623
    %v8625 = vpop.f32.mrb[0].mxu0
    %8626 = vmatprep.mubr.f32.mxu0 0.0
    %8627 = vmatmul.mubr.f32.gmra.mrb[0].mxu0 %v8469
    %v8628 = vpop.f32.mrb[0].mxu0
    %v8629 = vadd.f32 %v8491, %v8628
    %v8630 = vpop.f32.mrb[0].mxu0
    %8631 = vmatprep.mubr.f32.mxu0 0.0
    %8632 = vmatmul.mubr.f32.gmra.mrb[0].mxu0 %v8470
    %v8633 = vpop.f32.mrb[0].mxu0
    %v8634 = vadd.f32 %v8491, %v8633
    %v8635 = vpop.f32.mrb[0].mxu0
    %8636 = vdwg.mxu0
    %vm8637 = vcmask 23552
    %8638 = vst.msk [vmem:[%s11] sm:$0xff] %vm8637, %v8559
    %8639 = vst.msk [vmem:[%s11 + $0x8] sm:$0xff] %vm8637, %v8564
    %8640 = vst.msk [vmem:[%s11 + $0x10] sm:$0xff] %vm8637, %v8569
    %8641 = vst.msk [vmem:[%s11 + $0x18] sm:$0xff] %vm8637, %v8574
    %8642 = vst.msk [vmem:[%s11 + $0x20] sm:$0xff] %vm8637, %v8579
    %8643 = vst.msk [vmem:[%s11 + $0x28] sm:$0xff] %vm8637, %v8584
    %8644 = vst.msk [vmem:[%s11 + $0x30] sm:$0xff] %vm8637, %v8589
    %8645 = vst.msk [vmem:[%s11 + $0x38] sm:$0xff] %vm8637, %v8594
    %8646 = vst.msk [vmem:[%s11 + $0x40] sm:$0xff] %vm8637, %v8599
    %8647 = vst.msk [vmem:[%s11 + $0x48] sm:$0xff] %vm8637, %v8604
    %8648 = vst.msk [vmem:[%s11 + $0x50] sm:$0xff] %vm8637, %v8609
    %8649 = vst.msk [vmem:[%s11 + $0x58] sm:$0xff] %vm8637, %v8614
    %8650 = vst.msk [vmem:[%s11 + $0x60] sm:$0xff] %vm8637, %v8619
    %8651 = vst.msk [vmem:[%s11 + $0x68] sm:$0xff] %vm8637, %v8624
    %8652 = vst.msk [vmem:[%s11 + $0x70] sm:$0xff] %vm8637, %v8629
    %8653 = vst.msk [vmem:[%s11 + $0x78] sm:$0xff] %vm8637, %v8634
    // Predicated region
    $region78: #{tpu_custom_call.1} parent=1 // pred_check
      _
    $region79: #{tpu_custom_call.1} parent=1 // pred_check_branch
      %8655 = sbr.rel (0) target = $region81
    $region80: #{tpu_custom_call.1} parent=1 // pred_region
      _
    $region81: #{tpu_custom_call.1} parent=1 // pred_fallthru
      _
    // Predicated region
    $region82: #{tpu_custom_call.1} parent=1 // pred_check
      _
    $region83: #{tpu_custom_call.1} parent=1 // pred_check_branch
      %8657 = sbr.rel (0) target = $region85
    $region84: #{tpu_custom_call.1} parent=1 // pred_region
      _
    $region85: #{tpu_custom_call.1} parent=1 // pred_fallthru
      _
    %8658 = vsyncpa [#allocation3], 1
    %8659 = vsyncpa [#allocation5], 1
    %8660 = vsyncpa [#allocation8], 1
    %8661 = vsyncpa [#allocation11], 1
    %8662 = vsyncpa [#allocation14], 1

</llo_original>
